<compile_context>
chip_gen: v5e
topology: v5e:2x2
jax: 0.10.0
libtpu: 0.0.40
codegen_flags: <defaults>
</compile_context>

<pallas_src>
import functools
import math

import jax
import jax.numpy as jnp
from jax import lax
from jax.experimental import pallas as pl
from jax.experimental.pallas import tpu as pltpu


# --------------------------------------------------------------------------- #
# kernel-side helpers
# --------------------------------------------------------------------------- #
def _layer_norm(x, gamma, beta, eps=1e-5):
    # two-pass variance: matches nn.LayerNorm and avoids catastrophic
    # cancellation when the post-residual mean is large.
    mean = jnp.mean(x, axis=-1, keepdims=True)
    xc = x - mean
    var = jnp.mean(xc * xc, axis=-1, keepdims=True)
    return xc * lax.rsqrt(var + eps) * gamma + beta


def _split_heads(x2d, b, s, h, dk):
    # (b*s, h*dk) f32 -> (b, h, s, dk) bf16 for the MXU.
    # TODO(synk): transpose kept explicit; Mosaic dot_general needs leading
    # batch dims, so computing scores straight from (b, s, h, dk) would make
    # einsum re-insert the same transpose implicitly.
    return x2d.reshape(b, s, h, dk).transpose(0, 2, 1, 3).astype(jnp.bfloat16)


def _merge_heads(x4, b, s, h, dk):
    # (b, h, s, dk) f32 -> (b*s, h*dk) f32
    return x4.transpose(0, 2, 1, 3).reshape(b * s, h * dk)


def _linear(x2d, w_ref, b_ref):
    # bf16 MXU matmul, f32 accumulation; bias add in f32
    return jnp.dot(x2d.astype(jnp.bfloat16), w_ref[...],
                   preferred_element_type=jnp.float32) + b_ref[...]


def _attention(q4, k4, v4, mask_bias, kv_chunk):
    """Online-softmax attention, tiled over the KV axis.

    q4: (b, h, sq, dk) bf16 (1/sqrt(dk) already folded into the Q projection)
    k4/v4: (b, h, sk, dk) bf16
    mask_bias: (b, sq or 1, sk) f32 additive bias (-1e9 masked, 0 otherwise)
    Only one (g, sq, chunk) f32 score tensor is live at a time.
    """
    b, h, sq, dk = q4.shape
    sk = k4.shape[2]
    g = b * h
    q3 = q4.reshape(g, sq, dk)
    k3 = k4.reshape(g, sk, dk)
    v3 = v4.reshape(g, sk, dk)

    ck = min(kv_chunk, sk)
    n_chunks = pl.cdiv(sk, ck)          # static python int

    def chunk_scores(c0, c1):
        s = jnp.einsum('gqd,gkd->gqk', q3, k3[:, c0:c1, :],
                       preferred_element_type=jnp.float32)
        s = s.reshape(b, h, sq, c1 - c0) + mask_bias[:, None, :, c0:c1]
        return s.reshape(g, sq, c1 - c0)

    # chunk 0 initializes the running max / denominator / accumulator
    s0 = chunk_scores(0, ck)
    m = jnp.max(s0, axis=-1, keepdims=True)                      # (g, sq, 1)
    e = jnp.exp(s0 - m)
    l = jnp.sum(e, axis=-1, keepdims=True)
    acc = jnp.einsum('gqk,gkd->gqd', e.astype(jnp.bfloat16), v3[:, 0:ck, :],
                     preferred_element_type=jnp.float32)          # (g, sq, dk)

    for c in range(1, n_chunks):        # static loop: shapes are compile-time
        c0 = c * ck
        c1 = min(c0 + ck, sk)
        s = chunk_scores(c0, c1)
        m_new = jnp.maximum(m, jnp.max(s, axis=-1, keepdims=True))
        alpha = jnp.exp(m - m_new)
        e = jnp.exp(s - m_new)
        l = alpha * l + jnp.sum(e, axis=-1, keepdims=True)
        acc = alpha * acc + jnp.einsum('gqk,gkd->gqd', e.astype(jnp.bfloat16),
                                       v3[:, c0:c1, :],
                                       preferred_element_type=jnp.float32)
        m = m_new

    out3 = acc * pl.reciprocal(l, approx=True)    # divide -> EUP slot
    return _merge_heads(out3.reshape(b, h, sq, dk), b, sq, h, dk)


# --------------------------------------------------------------------------- #
# kernel
# --------------------------------------------------------------------------- #
def decoder_layer_kernel(num_heads, kv_chunk,
                         x_ref, enc_ref, tgt_mask_ref, src_mask_ref,
                         sa_wqkv, sa_bqkv, sa_wo, sa_bo,
                         ca_wq, ca_bq, ca_wkv, ca_bkv, ca_wo, ca_bo,
                         ff_w1, ff_b1, ff_w2, ff_b2, ln_ref,
                         out_ref):
    bt, s, d = x_ref.shape
    s_enc = enc_ref.shape[1]
    h = num_heads
    dk = d // h

    x2d = x_ref[...].reshape(bt * s, d)                     # f32 (rows, d)
    enc2d = enc_ref[...].reshape(bt * s_enc, d)
    ln = ln_ref[...]                                        # (6, d) f32

    # masks arrive as int8 (1 = attend, 0 = masked); build additive biases once
    tgt_bias = jnp.where(tgt_mask_ref[...].astype(jnp.float32) == 0.0,
                         jnp.float32(-1e9), jnp.float32(0.0))   # (bt, s, s)
    src_bias = jnp.where(src_mask_ref[...].astype(jnp.float32) == 0.0,
                         jnp.float32(-1e9), jnp.float32(0.0))   # (bt, 1, s_enc)

    # ---- self-attention (fused QKV, scale folded into Wq) + add&norm1 ------
    qkv = _linear(x2d, sa_wqkv, sa_bqkv)                    # (bt*s, 3d)
    q4 = _split_heads(qkv[:, :d], bt, s, h, dk)
    k4 = _split_heads(qkv[:, d:2 * d], bt, s, h, dk)
    v4 = _split_heads(qkv[:, 2 * d:], bt, s, h, dk)
    attn = _attention(q4, k4, v4, tgt_bias, kv_chunk)       # (bt*s, d) f32
    attn = _linear(attn, sa_wo, sa_bo)
    # TODO(synk): dropout treated as identity (eval-mode determinism).
    x2d = _layer_norm(x2d + attn, ln[0:1], ln[1:2])

    # ---- cross-attention (fused KV, scale folded into Wq) + add&norm2 ------
    q = _linear(x2d, ca_wq, ca_bq)                          # (bt*s, d)
    kv = _linear(enc2d, ca_wkv, ca_bkv)                     # (bt*s_enc, 2d)
    q4 = _split_heads(q, bt, s, h, dk)
    k4 = _split_heads(kv[:, :d], bt, s_enc, h, dk)
    v4 = _split_heads(kv[:, d:], bt, s_enc, h, dk)
    attn = _attention(q4, k4, v4, src_bias, kv_chunk)
    attn = _linear(attn, ca_wo, ca_bo)
    x2d = _layer_norm(x2d + attn, ln[2:3], ln[3:4])

    # ---- position-wise feed-forward + add&norm3 ------------------------------
    hdn = jnp.maximum(_linear(x2d, ff_w1, ff_b1), 0.0).astype(jnp.bfloat16)
    ff = _linear(hdn, ff_w2, ff_b2)
    x2d = _layer_norm(x2d + ff, ln[4:5], ln[5:6])

    out_ref[...] = x2d.reshape(bt, s, d)


# --------------------------------------------------------------------------- #
# VMEM budgeting helpers
# --------------------------------------------------------------------------- #
def _vmem_capacity_bytes(default=64 * 1024 * 1024):
    # query the chip; fall back to the most conservative (v7x) 64 MiB
    try:
        cap = getattr(pltpu.get_tpu_info(), "vmem_capacity_bytes", None)
        return int(cap) if cap else default
    except Exception:
        return default


def _estimate_vmem_bytes(bt, S, S_enc, D, DFF, H, kv_chunk, weight_bytes):
    rows = bt * S
    dk = D // H
    sk = max(S, S_enc)
    ck = min(kv_chunk, sk)
    # streamed grid blocks: x, enc, out f32 (double-buffered) + int8 masks
    io = 2 * 4 * (2 * bt * S * D + bt * S_enc * D)
    io += 2 * (bt * S * S + bt * S_enc)
    # live f32 (rows, D)-ish activations: x2d, residual, attn out, qkv
    act = 4 * rows * D * 4 + 4 * rows * 3 * D
    # bf16 per-head q/k/v + f32 attention accumulator
    act += 2 * 3 * bt * H * sk * dk + 4 * bt * H * S * dk
    # per-chunk f32 score / exp temporaries (online softmax)
    act += 2 * 4 * bt * H * S * ck
    # FFN hidden (f32 pre-relu + bf16 stored copy)
    act += (4 + 2) * rows * DFF
    return weight_bytes + io + act


def _pick_block_b(B, S, S_enc, D, DFF, H, kv_chunk, weight_bytes, budget):
    divisors = [c for c in range(1, B + 1) if B % c == 0]
    feasible = [c for c in divisors
                if _estimate_vmem_bytes(c, S, S_enc, D, DFF, H, kv_chunk,
                                        weight_bytes) <= budget]
    if not feasible:
        feasible = [1]
    # keep >= 2 grid steps when possible so both v7x TensorCores get work
    pref = [c for c in feasible if B // c >= 2] or feasible
    # prefer MXU-friendly row counts (multiples of 128, else 8)
    for mult in (128, 8):
        cand = [c for c in pref if (c * S) % mult == 0]
        if cand:
            pref = cand
            break
    return max(pref)


# --------------------------------------------------------------------------- #
# wrapper
# --------------------------------------------------------------------------- #
def decoder_layer(x, enc_output, src_mask, tgt_mask, params, num_heads,
                  *, block_b=None, kv_chunk=512, vmem_limit_bytes=None):
    B, S, D = x.shape
    S_enc = enc_output.shape[1]
    assert D % num_heads == 0, "d_model must be divisible by num_heads"
    assert enc_output.shape[0] == B and enc_output.shape[2] == D

    DFF = params[10].shape[1]                                  # ff_w1: (D, DFF)
    weight_bytes = sum(int(p.size) * p.dtype.itemsize for p in params)

    cap = _vmem_capacity_bytes()
    if vmem_limit_bytes is None:
        vmem_limit_bytes = int(cap * 0.85)   # leave Mosaic internal headroom
    budget = int(vmem_limit_bytes * 0.9)

    if block_b is None:
        block_b = _pick_block_b(B, S, S_enc, D, DFF, num_heads, kv_chunk,
                                weight_bytes, budget)
    assert B % block_b == 0

    # masks -> int8 (1 = attend, 0 = masked): 4x less mask DMA per grid step
    tgt_i8 = (tgt_mask != 0).astype(jnp.int8)
    src_i8 = (src_mask != 0).astype(jnp.int8)
    batched = [x, enc_output, tgt_i8, src_i8]                  # kernel arg order

    def batched_spec(a):
        tail = a.shape[1:]
        return pl.BlockSpec((block_b,) + tail,
                            lambda b, _n=len(tail): (b,) + (0,) * _n)

    def replicated_spec(a, single_buffer):
        idx = lambda b, _n=a.ndim: (0,) * _n
        if single_buffer:
            try:
                # grid-invariant weights: one VMEM buffer is enough
                return pl.BlockSpec(a.shape, idx, pipeline_mode=pl.Buffered(1))
            except TypeError:
                pass
        return pl.BlockSpec(a.shape, idx)

    kern = functools.partial(decoder_layer_kernel, num_heads, kv_chunk)

    def build(single_buffer_weights):
        in_specs = ([batched_spec(a) for a in batched]
                    + [replicated_spec(p, single_buffer_weights)
                       for p in params])
        return pl.pallas_call(
            kern,
            out_shape=jax.ShapeDtypeStruct((B, S, D), jnp.float32),
            grid=(B // block_b,),
            in_specs=in_specs,
            out_specs=pl.BlockSpec((block_b, S, D), lambda b: (b, 0, 0)),
            compiler_params=pltpu.CompilerParams(
                dimension_semantics=("parallel",),
                vmem_limit_bytes=vmem_limit_bytes),
        )

    try:
        return build(True)(*batched, *params)
    except Exception:
        # fallback: default double-buffered weights (identical semantics)
        return build(False)(*batched, *params)


def pack_params(raw, num_heads, mm_dtype=jnp.bfloat16):
    """Fuse / pack raw f32 (in, out) weights into the kernel parameter list.
    The 1/sqrt(d_k) attention scale is folded into the Q projections."""
    D = raw['sa_wq'].shape[0]
    scale = 1.0 / math.sqrt(D // num_heads)
    sa_wqkv = jnp.concatenate([raw['sa_wq'] * scale, raw['sa_wk'], raw['sa_wv']],
                              axis=1).astype(mm_dtype)
    sa_bqkv = jnp.concatenate([raw['sa_bq'] * scale, raw['sa_bk'], raw['sa_bv']],
                              axis=1)
    ca_wkv = jnp.concatenate([raw['ca_wk'], raw['ca_wv']], axis=1).astype(mm_dtype)
    ca_bkv = jnp.concatenate([raw['ca_bk'], raw['ca_bv']], axis=1)
    ln = jnp.concatenate([raw['g1'], raw['b1'], raw['g2'], raw['b2'],
                          raw['g3'], raw['b3']], axis=0)             # (6, D)
    return (sa_wqkv, sa_bqkv,
            raw['sa_wo'].astype(mm_dtype), raw['sa_bo'],
            (raw['ca_wq'] * scale).astype(mm_dtype), raw['ca_bq'] * scale,
            ca_wkv, ca_bkv,
            raw['ca_wo'].astype(mm_dtype), raw['ca_bo'],
            raw['ff_w1'].astype(mm_dtype), raw['ff_b1'],
            raw['ff_w2'].astype(mm_dtype), raw['ff_b2'],
            ln)


# --------------------------------------------------------------------------- #
# pure-JAX f32 reference (faithful to the PyTorch module) for correctness
# --------------------------------------------------------------------------- #
def _ref_layer_norm(x, gamma, beta, eps=1e-5):
    mean = jnp.mean(x, axis=-1, keepdims=True)
    var = jnp.mean((x - mean) ** 2, axis=-1, keepdims=True)
    return (x - mean) / jnp.sqrt(var + eps) * gamma + beta


def _ref_mha(q_in, k_in, v_in, mask, wq, bq, wk, bk, wv, bv, wo, bo, num_heads):
    d = q_in.shape[-1]
    dk = d // num_heads
    Q = q_in @ wq + bq
    K = k_in @ wk + bk
    V = v_in @ wv + bv

    def split(a):  # (s, d) -> (h, s, dk)
        return a.reshape(a.shape[0], num_heads, dk).transpose(1, 0, 2)

    Qh, Kh, Vh = split(Q), split(K), split(V)
    scores = jnp.einsum('hqd,hkd->hqk', Qh, Kh) / math.sqrt(dk)
    scores = jnp.where(mask[None] == 0.0, -1e9, scores)
    attn = jax.nn.softmax(scores, axis=-1)
    out = jnp.einsum('hqk,hkd->hqd', attn, Vh)
    out = out.transpose(1, 0, 2).reshape(q_in.shape[0], d)
    return out @ wo + bo


def _ref_forward(x, enc, src_mask, tgt_mask, raw, num_heads):
    def one(xb, eb, sm, tm):
        a = _ref_mha(xb, xb, xb, tm,
                     raw['sa_wq'], raw['sa_bq'], raw['sa_wk'], raw['sa_bk'],
                     raw['sa_wv'], raw['sa_bv'], raw['sa_wo'], raw['sa_bo'],
                     num_heads)
        xb = _ref_layer_norm(xb + a, raw['g1'], raw['b1'])
        a = _ref_mha(xb, eb, eb, sm,
                     raw['ca_wq'], raw['ca_bq'], raw['ca_wk'], raw['ca_bk'],
                     raw['ca_wv'], raw['ca_bv'], raw['ca_wo'], raw['ca_bo'],
                     num_heads)
        xb = _ref_layer_norm(xb + a, raw['g2'], raw['b2'])
        h = jnp.maximum(xb @ raw['ff_w1'] + raw['ff_b1'], 0.0)
        ff = h @ raw['ff_w2'] + raw['ff_b2']
        return _ref_layer_norm(xb + ff, raw['g3'], raw['b3'])

    return jax.vmap(one)(x, enc, src_mask, tgt_mask)


# --------------------------------------------------------------------------- #
# demo / correctness check
# --------------------------------------------------------------------------- #
if __name__ == "__main__":
    # D multiple of 128 -> lane-aligned QKV/KV column slices in the kernel
    B, S, S_ENC, D, H, DFF = 2, 8, 16, 128, 4, 256
    key = jax.random.PRNGKey(0)
    ks = jax.random.split(key, 20)

    def lin(k, fan_in, fan_out):
        bound = 1.0 / math.sqrt(fan_in)
        kw, kb = jax.random.split(k)
        w = jax.random.uniform(kw, (fan_in, fan_out), jnp.float32, -bound, bound)
        b = jax.random.uniform(kb, (1, fan_out), jnp.float32, -bound, bound)
        return w, b

    raw = {}
    for i, name in enumerate(['sa_wq', 'sa_wk', 'sa_wv', 'sa_wo',
                              'ca_wq', 'ca_wk', 'ca_wv', 'ca_wo']):
        w, b = lin(ks[i], D, D)
        raw[name] = w
        raw[name.replace('w', 'b')] = b
    raw['ff_w1'], raw['ff_b1'] = lin(ks[8], D, DFF)
    raw['ff_w2'], raw['ff_b2'] = lin(ks[9], DFF, D)
    for i in range(1, 4):
        raw[f'g{i}'] = 1.0 + 0.1 * jax.random.normal(ks[9 + i], (1, D), jnp.float32)
        raw[f'b{i}'] = 0.1 * jax.random.normal(ks[12 + i], (1, D), jnp.float32)

    x = jax.random.normal(ks[16], (B, S, D), jnp.float32)
    enc = jax.random.normal(ks[17], (B, S_ENC, D), jnp.float32)
    tgt_mask = jnp.broadcast_to(jnp.tril(jnp.ones((S, S), jnp.float32)),
                                (B, S, S))
    src_mask = jnp.ones((B, 1, S_ENC), jnp.float32).at[1, 0, 12:].set(0.0)

    params = pack_params(raw, H)          # fused, pre-scaled, bf16 matmul weights
    # kv_chunk=8 so the cross-attention (S_enc=16) exercises the online-softmax
    # KV-tiling loop; the production default is 512.
    out = decoder_layer(x, enc, src_mask, tgt_mask, params, H, kv_chunk=8)
    out = jax.block_until_ready(out)

    ref = _ref_forward(x, enc, src_mask, tgt_mask, raw, H)
    assert out.shape == (B, S, D)
    # bf16 MXU inputs (f32 accumulation) + approximate reciprocal in softmax:
    # compare against the full-f32 reference with relaxed tolerance.
    assert jnp.allclose(out, ref, atol=1e-1, rtol=1e-1), \
        f"mismatch vs f32 reference (max abs err {float(jnp.max(jnp.abs(out - ref)))})"
    print("KERNEL_OK")
</pallas_src>

<mosaic_0001>
module attributes {stable_mosaic.version = 11 : i64} {
  func.func @decoder_layer_kernel(%arg0: i32, %arg1: memref<1x8x128xf32, #tpu.memory_space<vmem>>, %arg2: memref<1x16x128xf32, #tpu.memory_space<vmem>>, %arg3: memref<1x8x8xi8, #tpu.memory_space<vmem>>, %arg4: memref<1x1x16xi8, #tpu.memory_space<vmem>>, %arg5: memref<128x384xbf16, #tpu.memory_space<vmem>>, %arg6: memref<1x384xf32, #tpu.memory_space<vmem>>, %arg7: memref<128x128xbf16, #tpu.memory_space<vmem>>, %arg8: memref<1x128xf32, #tpu.memory_space<vmem>>, %arg9: memref<128x128xbf16, #tpu.memory_space<vmem>>, %arg10: memref<1x128xf32, #tpu.memory_space<vmem>>, %arg11: memref<128x256xbf16, #tpu.memory_space<vmem>>, %arg12: memref<1x256xf32, #tpu.memory_space<vmem>>, %arg13: memref<128x128xbf16, #tpu.memory_space<vmem>>, %arg14: memref<1x128xf32, #tpu.memory_space<vmem>>, %arg15: memref<128x256xbf16, #tpu.memory_space<vmem>>, %arg16: memref<1x256xf32, #tpu.memory_space<vmem>>, %arg17: memref<256x128xbf16, #tpu.memory_space<vmem>>, %arg18: memref<1x128xf32, #tpu.memory_space<vmem>>, %arg19: memref<6x128xf32, #tpu.memory_space<vmem>>, %arg20: memref<1x8x128xf32, #tpu.memory_space<vmem>>) attributes {dimension_semantics = [#tpu.dimension_semantics<parallel>], iteration_bounds = array<i64: 2>, scalar_prefetch = 0 : i64, scratch_operands = 0 : i64, tpu.core_type = #tpu.core_type<tc>, window_params = [{transform_indices = @transform_0, window_bounds = array<i64: 1, 8, 128>}, {transform_indices = @transform_1, window_bounds = array<i64: 1, 16, 128>}, {transform_indices = @transform_2, window_bounds = array<i64: 1, 8, 8>}, {transform_indices = @transform_3, window_bounds = array<i64: 1, 1, 16>}, {pipeline_mode = #tpu.pipeline_mode<synchronous>, transform_indices = @transform_4, window_bounds = array<i64: 128, 384>}, {pipeline_mode = #tpu.pipeline_mode<synchronous>, transform_indices = @transform_5, window_bounds = array<i64: 1, 384>}, {pipeline_mode = #tpu.pipeline_mode<synchronous>, transform_indices = @transform_6, window_bounds = array<i64: 128, 128>}, {pipeline_mode = #tpu.pipeline_mode<synchronous>, transform_indices = @transform_7, window_bounds = array<i64: 1, 128>}, {pipeline_mode = #tpu.pipeline_mode<synchronous>, transform_indices = @transform_8, window_bounds = array<i64: 128, 128>}, {pipeline_mode = #tpu.pipeline_mode<synchronous>, transform_indices = @transform_9, window_bounds = array<i64: 1, 128>}, {pipeline_mode = #tpu.pipeline_mode<synchronous>, transform_indices = @transform_10, window_bounds = array<i64: 128, 256>}, {pipeline_mode = #tpu.pipeline_mode<synchronous>, transform_indices = @transform_11, window_bounds = array<i64: 1, 256>}, {pipeline_mode = #tpu.pipeline_mode<synchronous>, transform_indices = @transform_12, window_bounds = array<i64: 128, 128>}, {pipeline_mode = #tpu.pipeline_mode<synchronous>, transform_indices = @transform_13, window_bounds = array<i64: 1, 128>}, {pipeline_mode = #tpu.pipeline_mode<synchronous>, transform_indices = @transform_14, window_bounds = array<i64: 128, 256>}, {pipeline_mode = #tpu.pipeline_mode<synchronous>, transform_indices = @transform_15, window_bounds = array<i64: 1, 256>}, {pipeline_mode = #tpu.pipeline_mode<synchronous>, transform_indices = @transform_16, window_bounds = array<i64: 256, 128>}, {pipeline_mode = #tpu.pipeline_mode<synchronous>, transform_indices = @transform_17, window_bounds = array<i64: 1, 128>}, {pipeline_mode = #tpu.pipeline_mode<synchronous>, transform_indices = @transform_18, window_bounds = array<i64: 6, 128>}, {transform_indices = @transform_19, window_bounds = array<i64: 1, 8, 128>}]} {
    %c0 = arith.constant 0 : index
    %c0_0 = arith.constant 0 : index
    %c0_1 = arith.constant 0 : index
    %0 = vector.load %arg1[%c0, %c0_0, %c0_1] : memref<1x8x128xf32, #tpu.memory_space<vmem>>, vector<1x8x128xf32>
    %1 = vector.shape_cast %0 : vector<1x8x128xf32> to vector<8x128xf32>
    %c0_2 = arith.constant 0 : index
    %c0_3 = arith.constant 0 : index
    %c0_4 = arith.constant 0 : index
    %2 = vector.load %arg2[%c0_2, %c0_3, %c0_4] : memref<1x16x128xf32, #tpu.memory_space<vmem>>, vector<1x16x128xf32>
    %3 = vector.shape_cast %2 : vector<1x16x128xf32> to vector<16x128xf32>
    %c0_5 = arith.constant 0 : index
    %c0_6 = arith.constant 0 : index
    %4 = vector.load %arg19[%c0_5, %c0_6] : memref<6x128xf32, #tpu.memory_space<vmem>>, vector<6x128xf32>
    %c0_7 = arith.constant 0 : index
    %c0_8 = arith.constant 0 : index
    %c0_9 = arith.constant 0 : index
    %5 = vector.load %arg3[%c0_7, %c0_8, %c0_9] : memref<1x8x8xi8, #tpu.memory_space<vmem>>, vector<1x8x8xi8>
    %6 = arith.sitofp %5 : vector<1x8x8xi8> to vector<1x8x8xf32>
    %cst = arith.constant 0.000000e+00 : f32
    %7 = vector.broadcast %cst : f32 to vector<1x8x8xf32>
    %8 = arith.cmpf oeq, %6, %7 : vector<1x8x8xf32>
    %cst_10 = arith.constant -1.000000e+09 : f32
    %cst_11 = arith.constant 0.000000e+00 : f32
    %9 = vector.broadcast %cst_10 : f32 to vector<1x8x8xf32>
    %10 = vector.broadcast %cst_11 : f32 to vector<1x8x8xf32>
    %11 = arith.select %8, %9, %10 : vector<1x8x8xi1>, vector<1x8x8xf32>
    %c0_12 = arith.constant 0 : index
    %c0_13 = arith.constant 0 : index
    %c0_14 = arith.constant 0 : index
    %12 = vector.load %arg4[%c0_12, %c0_13, %c0_14] : memref<1x1x16xi8, #tpu.memory_space<vmem>>, vector<1x1x16xi8>
    %13 = arith.sitofp %12 : vector<1x1x16xi8> to vector<1x1x16xf32>
    %cst_15 = arith.constant 0.000000e+00 : f32
    %14 = vector.broadcast %cst_15 : f32 to vector<1x1x16xf32>
    %15 = arith.cmpf oeq, %13, %14 : vector<1x1x16xf32>
    %cst_16 = arith.constant -1.000000e+09 : f32
    %cst_17 = arith.constant 0.000000e+00 : f32
    %16 = vector.broadcast %cst_16 : f32 to vector<1x1x16xf32>
    %17 = vector.broadcast %cst_17 : f32 to vector<1x1x16xf32>
    %18 = arith.select %15, %16, %17 : vector<1x1x16xi1>, vector<1x1x16xf32>
    %19 = arith.truncf %1 : vector<8x128xf32> to vector<8x128xbf16>
    %c0_18 = arith.constant 0 : index
    %c0_19 = arith.constant 0 : index
    %20 = vector.load %arg5[%c0_18, %c0_19] : memref<128x384xbf16, #tpu.memory_space<vmem>>, vector<128x384xbf16>
    %cst_20 = arith.constant dense<0.000000e+00> : vector<8x384xf32>
    %21 = tpu.matmul %19, %20, %cst_20 {dimension_numbers = #tpu.dot_dimension_numbers<[1], [0], [0], [1], [0, 0, 1, 1], [], []>} : vector<8x128xbf16>, vector<128x384xbf16>, vector<8x384xf32> -> vector<8x384xf32>
    %c0_21 = arith.constant 0 : index
    %c0_22 = arith.constant 0 : index
    %22 = vector.load %arg6[%c0_21, %c0_22] : memref<1x384xf32, #tpu.memory_space<vmem>>, vector<1x384xf32>
    %23 = vector.broadcast %22 : vector<1x384xf32> to vector<8x384xf32>
    %24 = arith.addf %21, %23 : vector<8x384xf32>
    %25 = vector.extract_strided_slice %24 {offsets = [0, 0], sizes = [8, 128], strides = [1, 1]} : vector<8x384xf32> to vector<8x128xf32>
    %26 = vector.shape_cast %25 : vector<8x128xf32> to vector<1x8x4x32xf32>
    %27 = tpu.transpose %26, [0, 2, 1, 3] : vector<1x8x4x32xf32> -> vector<1x4x8x32xf32>
    %28 = arith.truncf %27 : vector<1x4x8x32xf32> to vector<1x4x8x32xbf16>
    %29 = vector.extract_strided_slice %24 {offsets = [0, 128], sizes = [8, 128], strides = [1, 1]} : vector<8x384xf32> to vector<8x128xf32>
    %30 = vector.shape_cast %29 : vector<8x128xf32> to vector<1x8x4x32xf32>
    %31 = tpu.transpose %30, [0, 2, 1, 3] : vector<1x8x4x32xf32> -> vector<1x4x8x32xf32>
    %32 = arith.truncf %31 : vector<1x4x8x32xf32> to vector<1x4x8x32xbf16>
    %33 = vector.extract_strided_slice %24 {offsets = [0, 256], sizes = [8, 128], strides = [1, 1]} : vector<8x384xf32> to vector<8x128xf32>
    %34 = vector.shape_cast %33 : vector<8x128xf32> to vector<1x8x4x32xf32>
    %35 = tpu.transpose %34, [0, 2, 1, 3] : vector<1x8x4x32xf32> -> vector<1x4x8x32xf32>
    %36 = arith.truncf %35 : vector<1x4x8x32xf32> to vector<1x4x8x32xbf16>
    %37 = vector.shape_cast %28 : vector<1x4x8x32xbf16> to vector<4x8x32xbf16>
    %38 = vector.shape_cast %32 : vector<1x4x8x32xbf16> to vector<4x8x32xbf16>
    %39 = vector.shape_cast %36 : vector<1x4x8x32xbf16> to vector<4x8x32xbf16>
    "tpu.trace_start"() <{level = 10 : i32, message = "gqd,gkd->gqk"}> : () -> ()
    %cst_23 = arith.constant dense<0.000000e+00> : vector<4x8x8xf32>
    %40 = tpu.matmul %37, %38, %cst_23 {dimension_numbers = #tpu.dot_dimension_numbers<[2], [2], [1], [1], [0, 0, 0, 1, 1, 1], [0], [0]>} : vector<4x8x32xbf16>, vector<4x8x32xbf16>, vector<4x8x8xf32> -> vector<4x8x8xf32>
    "tpu.trace_stop"() : () -> ()
    %41 = vector.shape_cast %40 : vector<4x8x8xf32> to vector<1x4x8x8xf32>
    %42 = vector.shape_cast %11 : vector<1x8x8xf32> to vector<1x1x8x8xf32>
    %43 = vector.broadcast %42 : vector<1x1x8x8xf32> to vector<1x4x8x8xf32>
    %44 = arith.addf %41, %43 : vector<1x4x8x8xf32>
    %45 = vector.shape_cast %44 : vector<1x4x8x8xf32> to vector<4x8x8xf32>
    %cst_24 = arith.constant dense<0xFF800000> : vector<4x8xf32>
    %46 = vector.multi_reduction <maximumf>, %45, %cst_24 [2] : vector<4x8x8xf32> to vector<4x8xf32>
    %47 = vector.shape_cast %46 : vector<4x8xf32> to vector<4x8x1xf32>
    %48 = vector.broadcast %47 : vector<4x8x1xf32> to vector<4x8x8xf32>
    %49 = arith.subf %45, %48 : vector<4x8x8xf32>
    %50 = math.exp %49 : vector<4x8x8xf32>
    %cst_25 = arith.constant dense<0.000000e+00> : vector<4x8xf32>
    %51 = vector.multi_reduction <add>, %50, %cst_25 [2] : vector<4x8x8xf32> to vector<4x8xf32>
    %52 = vector.shape_cast %51 : vector<4x8xf32> to vector<4x8x1xf32>
    %53 = arith.truncf %50 : vector<4x8x8xf32> to vector<4x8x8xbf16>
    "tpu.trace_start"() <{level = 10 : i32, message = "gqk,gkd->gqd"}> : () -> ()
    %cst_26 = arith.constant dense<0.000000e+00> : vector<4x8x32xf32>
    %54 = tpu.matmul %53, %39, %cst_26 {dimension_numbers = #tpu.dot_dimension_numbers<[2], [1], [1], [2], [0, 0, 0, 1, 1, 2], [0], [0]>} : vector<4x8x8xbf16>, vector<4x8x32xbf16>, vector<4x8x32xf32> -> vector<4x8x32xf32>
    "tpu.trace_stop"() : () -> ()
    %55 = tpu.reciprocal %52 {approx = true} : vector<4x8x1xf32> -> vector<4x8x1xf32>
    %56 = vector.broadcast %55 : vector<4x8x1xf32> to vector<4x8x32xf32>
    %57 = arith.mulf %54, %56 : vector<4x8x32xf32>
    %58 = vector.shape_cast %57 : vector<4x8x32xf32> to vector<1x4x8x32xf32>
    %59 = tpu.transpose %58, [0, 2, 1, 3] : vector<1x4x8x32xf32> -> vector<1x8x4x32xf32>
    %60 = vector.shape_cast %59 : vector<1x8x4x32xf32> to vector<8x128xf32>
    %61 = arith.truncf %60 : vector<8x128xf32> to vector<8x128xbf16>
    %c0_27 = arith.constant 0 : index
    %c0_28 = arith.constant 0 : index
    %62 = vector.load %arg7[%c0_27, %c0_28] : memref<128x128xbf16, #tpu.memory_space<vmem>>, vector<128x128xbf16>
    %cst_29 = arith.constant dense<0.000000e+00> : vector<8x128xf32>
    %63 = tpu.matmul %61, %62, %cst_29 {dimension_numbers = #tpu.dot_dimension_numbers<[1], [0], [0], [1], [0, 0, 1, 1], [], []>} : vector<8x128xbf16>, vector<128x128xbf16>, vector<8x128xf32> -> vector<8x128xf32>
    %c0_30 = arith.constant 0 : index
    %c0_31 = arith.constant 0 : index
    %64 = vector.load %arg8[%c0_30, %c0_31] : memref<1x128xf32, #tpu.memory_space<vmem>>, vector<1x128xf32>
    %65 = vector.broadcast %64 : vector<1x128xf32> to vector<8x128xf32>
    %66 = arith.addf %63, %65 : vector<8x128xf32>
    %67 = arith.addf %1, %66 : vector<8x128xf32>
    %68 = vector.extract_strided_slice %4 {offsets = [0, 0], sizes = [1, 128], strides = [1, 1]} : vector<6x128xf32> to vector<1x128xf32>
    %69 = vector.extract_strided_slice %4 {offsets = [1, 0], sizes = [1, 128], strides = [1, 1]} : vector<6x128xf32> to vector<1x128xf32>
    %cst_32 = arith.constant dense<0.000000e+00> : vector<8xf32>
    %70 = vector.multi_reduction <add>, %67, %cst_32 [1] : vector<8x128xf32> to vector<8xf32>
    %71 = vector.shape_cast %70 : vector<8xf32> to vector<8x1xf32>
    %cst_33 = arith.constant 1.280000e+02 : f32
    %72 = vector.broadcast %cst_33 : f32 to vector<8x1xf32>
    %73 = arith.divf %71, %72 : vector<8x1xf32>
    %74 = vector.broadcast %73 : vector<8x1xf32> to vector<8x128xf32>
    %75 = arith.subf %67, %74 : vector<8x128xf32>
    %76 = arith.mulf %75, %75 : vector<8x128xf32>
    %cst_34 = arith.constant dense<0.000000e+00> : vector<8xf32>
    %77 = vector.multi_reduction <add>, %76, %cst_34 [1] : vector<8x128xf32> to vector<8xf32>
    %78 = vector.shape_cast %77 : vector<8xf32> to vector<8x1xf32>
    %cst_35 = arith.constant 1.280000e+02 : f32
    %79 = vector.broadcast %cst_35 : f32 to vector<8x1xf32>
    %80 = arith.divf %78, %79 : vector<8x1xf32>
    %cst_36 = arith.constant 9.99999974E-6 : f32
    %81 = vector.broadcast %cst_36 : f32 to vector<8x1xf32>
    %82 = arith.addf %80, %81 : vector<8x1xf32>
    %83 = math.rsqrt %82 : vector<8x1xf32>
    %84 = vector.broadcast %83 : vector<8x1xf32> to vector<8x128xf32>
    %85 = arith.mulf %75, %84 : vector<8x128xf32>
    %86 = vector.broadcast %68 : vector<1x128xf32> to vector<8x128xf32>
    %87 = arith.mulf %85, %86 : vector<8x128xf32>
    %88 = vector.broadcast %69 : vector<1x128xf32> to vector<8x128xf32>
    %89 = arith.addf %87, %88 : vector<8x128xf32>
    %90 = arith.truncf %89 : vector<8x128xf32> to vector<8x128xbf16>
    %c0_37 = arith.constant 0 : index
    %c0_38 = arith.constant 0 : index
    %91 = vector.load %arg9[%c0_37, %c0_38] : memref<128x128xbf16, #tpu.memory_space<vmem>>, vector<128x128xbf16>
    %cst_39 = arith.constant dense<0.000000e+00> : vector<8x128xf32>
    %92 = tpu.matmul %90, %91, %cst_39 {dimension_numbers = #tpu.dot_dimension_numbers<[1], [0], [0], [1], [0, 0, 1, 1], [], []>} : vector<8x128xbf16>, vector<128x128xbf16>, vector<8x128xf32> -> vector<8x128xf32>
    %c0_40 = arith.constant 0 : index
    %c0_41 = arith.constant 0 : index
    %93 = vector.load %arg10[%c0_40, %c0_41] : memref<1x128xf32, #tpu.memory_space<vmem>>, vector<1x128xf32>
    %94 = vector.broadcast %93 : vector<1x128xf32> to vector<8x128xf32>
    %95 = arith.addf %92, %94 : vector<8x128xf32>
    %96 = arith.truncf %3 : vector<16x128xf32> to vector<16x128xbf16>
    %c0_42 = arith.constant 0 : index
    %c0_43 = arith.constant 0 : index
    %97 = vector.load %arg11[%c0_42, %c0_43] : memref<128x256xbf16, #tpu.memory_space<vmem>>, vector<128x256xbf16>
    %cst_44 = arith.constant dense<0.000000e+00> : vector<16x256xf32>
    %98 = tpu.matmul %96, %97, %cst_44 {dimension_numbers = #tpu.dot_dimension_numbers<[1], [0], [0], [1], [0, 0, 1, 1], [], []>} : vector<16x128xbf16>, vector<128x256xbf16>, vector<16x256xf32> -> vector<16x256xf32>
    %c0_45 = arith.constant 0 : index
    %c0_46 = arith.constant 0 : index
    %99 = vector.load %arg12[%c0_45, %c0_46] : memref<1x256xf32, #tpu.memory_space<vmem>>, vector<1x256xf32>
    %100 = vector.broadcast %99 : vector<1x256xf32> to vector<16x256xf32>
    %101 = arith.addf %98, %100 : vector<16x256xf32>
    %102 = vector.shape_cast %95 : vector<8x128xf32> to vector<1x8x4x32xf32>
    %103 = tpu.transpose %102, [0, 2, 1, 3] : vector<1x8x4x32xf32> -> vector<1x4x8x32xf32>
    %104 = arith.truncf %103 : vector<1x4x8x32xf32> to vector<1x4x8x32xbf16>
    %105 = vector.extract_strided_slice %101 {offsets = [0, 0], sizes = [16, 128], strides = [1, 1]} : vector<16x256xf32> to vector<16x128xf32>
    %106 = vector.shape_cast %105 : vector<16x128xf32> to vector<1x16x4x32xf32>
    %107 = tpu.transpose %106, [0, 2, 1, 3] : vector<1x16x4x32xf32> -> vector<1x4x16x32xf32>
    %108 = arith.truncf %107 : vector<1x4x16x32xf32> to vector<1x4x16x32xbf16>
    %109 = vector.extract_strided_slice %101 {offsets = [0, 128], sizes = [16, 128], strides = [1, 1]} : vector<16x256xf32> to vector<16x128xf32>
    %110 = vector.shape_cast %109 : vector<16x128xf32> to vector<1x16x4x32xf32>
    %111 = tpu.transpose %110, [0, 2, 1, 3] : vector<1x16x4x32xf32> -> vector<1x4x16x32xf32>
    %112 = arith.truncf %111 : vector<1x4x16x32xf32> to vector<1x4x16x32xbf16>
    %113 = vector.shape_cast %104 : vector<1x4x8x32xbf16> to vector<4x8x32xbf16>
    %114 = vector.shape_cast %108 : vector<1x4x16x32xbf16> to vector<4x16x32xbf16>
    %115 = vector.shape_cast %112 : vector<1x4x16x32xbf16> to vector<4x16x32xbf16>
    %116 = vector.extract_strided_slice %114 {offsets = [0, 0, 0], sizes = [4, 8, 32], strides = [1, 1, 1]} : vector<4x16x32xbf16> to vector<4x8x32xbf16>
    "tpu.trace_start"() <{level = 10 : i32, message = "gqd,gkd->gqk"}> : () -> ()
    %cst_47 = arith.constant dense<0.000000e+00> : vector<4x8x8xf32>
    %117 = tpu.matmul %113, %116, %cst_47 {dimension_numbers = #tpu.dot_dimension_numbers<[2], [2], [1], [1], [0, 0, 0, 1, 1, 1], [0], [0]>} : vector<4x8x32xbf16>, vector<4x8x32xbf16>, vector<4x8x8xf32> -> vector<4x8x8xf32>
    "tpu.trace_stop"() : () -> ()
    %118 = vector.shape_cast %117 : vector<4x8x8xf32> to vector<1x4x8x8xf32>
    %119 = vector.extract_strided_slice %18 {offsets = [0, 0, 0], sizes = [1, 1, 8], strides = [1, 1, 1]} : vector<1x1x16xf32> to vector<1x1x8xf32>
    %120 = vector.shape_cast %119 : vector<1x1x8xf32> to vector<1x1x1x8xf32>
    %121 = vector.broadcast %120 : vector<1x1x1x8xf32> to vector<1x4x8x8xf32>
    %122 = arith.addf %118, %121 : vector<1x4x8x8xf32>
    %123 = vector.shape_cast %122 : vector<1x4x8x8xf32> to vector<4x8x8xf32>
    %cst_48 = arith.constant dense<0xFF800000> : vector<4x8xf32>
    %124 = vector.multi_reduction <maximumf>, %123, %cst_48 [2] : vector<4x8x8xf32> to vector<4x8xf32>
    %125 = vector.shape_cast %124 : vector<4x8xf32> to vector<4x8x1xf32>
    %126 = vector.broadcast %125 : vector<4x8x1xf32> to vector<4x8x8xf32>
    %127 = arith.subf %123, %126 : vector<4x8x8xf32>
    %128 = math.exp %127 : vector<4x8x8xf32>
    %cst_49 = arith.constant dense<0.000000e+00> : vector<4x8xf32>
    %129 = vector.multi_reduction <add>, %128, %cst_49 [2] : vector<4x8x8xf32> to vector<4x8xf32>
    %130 = vector.shape_cast %129 : vector<4x8xf32> to vector<4x8x1xf32>
    %131 = arith.truncf %128 : vector<4x8x8xf32> to vector<4x8x8xbf16>
    %132 = vector.extract_strided_slice %115 {offsets = [0, 0, 0], sizes = [4, 8, 32], strides = [1, 1, 1]} : vector<4x16x32xbf16> to vector<4x8x32xbf16>
    "tpu.trace_start"() <{level = 10 : i32, message = "gqk,gkd->gqd"}> : () -> ()
    %cst_50 = arith.constant dense<0.000000e+00> : vector<4x8x32xf32>
    %133 = tpu.matmul %131, %132, %cst_50 {dimension_numbers = #tpu.dot_dimension_numbers<[2], [1], [1], [2], [0, 0, 0, 1, 1, 2], [0], [0]>} : vector<4x8x8xbf16>, vector<4x8x32xbf16>, vector<4x8x32xf32> -> vector<4x8x32xf32>
    "tpu.trace_stop"() : () -> ()
    %134 = vector.extract_strided_slice %114 {offsets = [0, 8, 0], sizes = [4, 8, 32], strides = [1, 1, 1]} : vector<4x16x32xbf16> to vector<4x8x32xbf16>
    "tpu.trace_start"() <{level = 10 : i32, message = "gqd,gkd->gqk"}> : () -> ()
    %cst_51 = arith.constant dense<0.000000e+00> : vector<4x8x8xf32>
    %135 = tpu.matmul %113, %134, %cst_51 {dimension_numbers = #tpu.dot_dimension_numbers<[2], [2], [1], [1], [0, 0, 0, 1, 1, 1], [0], [0]>} : vector<4x8x32xbf16>, vector<4x8x32xbf16>, vector<4x8x8xf32> -> vector<4x8x8xf32>
    "tpu.trace_stop"() : () -> ()
    %136 = vector.shape_cast %135 : vector<4x8x8xf32> to vector<1x4x8x8xf32>
    %137 = vector.extract_strided_slice %18 {offsets = [0, 0, 8], sizes = [1, 1, 8], strides = [1, 1, 1]} : vector<1x1x16xf32> to vector<1x1x8xf32>
    %138 = vector.shape_cast %137 : vector<1x1x8xf32> to vector<1x1x1x8xf32>
    %139 = vector.broadcast %138 : vector<1x1x1x8xf32> to vector<1x4x8x8xf32>
    %140 = arith.addf %136, %139 : vector<1x4x8x8xf32>
    %141 = vector.shape_cast %140 : vector<1x4x8x8xf32> to vector<4x8x8xf32>
    %cst_52 = arith.constant dense<0xFF800000> : vector<4x8xf32>
    %142 = vector.multi_reduction <maximumf>, %141, %cst_52 [2] : vector<4x8x8xf32> to vector<4x8xf32>
    %143 = vector.shape_cast %142 : vector<4x8xf32> to vector<4x8x1xf32>
    %144 = arith.maximumf %125, %143 : vector<4x8x1xf32>
    %145 = arith.subf %125, %144 : vector<4x8x1xf32>
    %146 = math.exp %145 : vector<4x8x1xf32>
    %147 = vector.broadcast %144 : vector<4x8x1xf32> to vector<4x8x8xf32>
    %148 = arith.subf %141, %147 : vector<4x8x8xf32>
    %149 = math.exp %148 : vector<4x8x8xf32>
    %150 = arith.mulf %146, %130 : vector<4x8x1xf32>
    %cst_53 = arith.constant dense<0.000000e+00> : vector<4x8xf32>
    %151 = vector.multi_reduction <add>, %149, %cst_53 [2] : vector<4x8x8xf32> to vector<4x8xf32>
    %152 = vector.shape_cast %151 : vector<4x8xf32> to vector<4x8x1xf32>
    %153 = arith.addf %150, %152 : vector<4x8x1xf32>
    %154 = vector.broadcast %146 : vector<4x8x1xf32> to vector<4x8x32xf32>
    %155 = arith.mulf %154, %133 : vector<4x8x32xf32>
    %156 = arith.truncf %149 : vector<4x8x8xf32> to vector<4x8x8xbf16>
    %157 = vector.extract_strided_slice %115 {offsets = [0, 8, 0], sizes = [4, 8, 32], strides = [1, 1, 1]} : vector<4x16x32xbf16> to vector<4x8x32xbf16>
    "tpu.trace_start"() <{level = 10 : i32, message = "gqk,gkd->gqd"}> : () -> ()
    %cst_54 = arith.constant dense<0.000000e+00> : vector<4x8x32xf32>
    %158 = tpu.matmul %156, %157, %cst_54 {dimension_numbers = #tpu.dot_dimension_numbers<[2], [1], [1], [2], [0, 0, 0, 1, 1, 2], [0], [0]>} : vector<4x8x8xbf16>, vector<4x8x32xbf16>, vector<4x8x32xf32> -> vector<4x8x32xf32>
    "tpu.trace_stop"() : () -> ()
    %159 = arith.addf %155, %158 : vector<4x8x32xf32>
    %160 = tpu.reciprocal %153 {approx = true} : vector<4x8x1xf32> -> vector<4x8x1xf32>
    %161 = vector.broadcast %160 : vector<4x8x1xf32> to vector<4x8x32xf32>
    %162 = arith.mulf %159, %161 : vector<4x8x32xf32>
    %163 = vector.shape_cast %162 : vector<4x8x32xf32> to vector<1x4x8x32xf32>
    %164 = tpu.transpose %163, [0, 2, 1, 3] : vector<1x4x8x32xf32> -> vector<1x8x4x32xf32>
    %165 = vector.shape_cast %164 : vector<1x8x4x32xf32> to vector<8x128xf32>
    %166 = arith.truncf %165 : vector<8x128xf32> to vector<8x128xbf16>
    %c0_55 = arith.constant 0 : index
    %c0_56 = arith.constant 0 : index
    %167 = vector.load %arg13[%c0_55, %c0_56] : memref<128x128xbf16, #tpu.memory_space<vmem>>, vector<128x128xbf16>
    %cst_57 = arith.constant dense<0.000000e+00> : vector<8x128xf32>
    %168 = tpu.matmul %166, %167, %cst_57 {dimension_numbers = #tpu.dot_dimension_numbers<[1], [0], [0], [1], [0, 0, 1, 1], [], []>} : vector<8x128xbf16>, vector<128x128xbf16>, vector<8x128xf32> -> vector<8x128xf32>
    %c0_58 = arith.constant 0 : index
    %c0_59 = arith.constant 0 : index
    %169 = vector.load %arg14[%c0_58, %c0_59] : memref<1x128xf32, #tpu.memory_space<vmem>>, vector<1x128xf32>
    %170 = vector.broadcast %169 : vector<1x128xf32> to vector<8x128xf32>
    %171 = arith.addf %168, %170 : vector<8x128xf32>
    %172 = arith.addf %89, %171 : vector<8x128xf32>
    %173 = vector.extract_strided_slice %4 {offsets = [2, 0], sizes = [1, 128], strides = [1, 1]} : vector<6x128xf32> to vector<1x128xf32>
    %174 = vector.extract_strided_slice %4 {offsets = [3, 0], sizes = [1, 128], strides = [1, 1]} : vector<6x128xf32> to vector<1x128xf32>
    %cst_60 = arith.constant dense<0.000000e+00> : vector<8xf32>
    %175 = vector.multi_reduction <add>, %172, %cst_60 [1] : vector<8x128xf32> to vector<8xf32>
    %176 = vector.shape_cast %175 : vector<8xf32> to vector<8x1xf32>
    %cst_61 = arith.constant 1.280000e+02 : f32
    %177 = vector.broadcast %cst_61 : f32 to vector<8x1xf32>
    %178 = arith.divf %176, %177 : vector<8x1xf32>
    %179 = vector.broadcast %178 : vector<8x1xf32> to vector<8x128xf32>
    %180 = arith.subf %172, %179 : vector<8x128xf32>
    %181 = arith.mulf %180, %180 : vector<8x128xf32>
    %cst_62 = arith.constant dense<0.000000e+00> : vector<8xf32>
    %182 = vector.multi_reduction <add>, %181, %cst_62 [1] : vector<8x128xf32> to vector<8xf32>
    %183 = vector.shape_cast %182 : vector<8xf32> to vector<8x1xf32>
    %cst_63 = arith.constant 1.280000e+02 : f32
    %184 = vector.broadcast %cst_63 : f32 to vector<8x1xf32>
    %185 = arith.divf %183, %184 : vector<8x1xf32>
    %cst_64 = arith.constant 9.99999974E-6 : f32
    %186 = vector.broadcast %cst_64 : f32 to vector<8x1xf32>
    %187 = arith.addf %185, %186 : vector<8x1xf32>
    %188 = math.rsqrt %187 : vector<8x1xf32>
    %189 = vector.broadcast %188 : vector<8x1xf32> to vector<8x128xf32>
    %190 = arith.mulf %180, %189 : vector<8x128xf32>
    %191 = vector.broadcast %173 : vector<1x128xf32> to vector<8x128xf32>
    %192 = arith.mulf %190, %191 : vector<8x128xf32>
    %193 = vector.broadcast %174 : vector<1x128xf32> to vector<8x128xf32>
    %194 = arith.addf %192, %193 : vector<8x128xf32>
    %195 = arith.truncf %194 : vector<8x128xf32> to vector<8x128xbf16>
    %c0_65 = arith.constant 0 : index
    %c0_66 = arith.constant 0 : index
    %196 = vector.load %arg15[%c0_65, %c0_66] : memref<128x256xbf16, #tpu.memory_space<vmem>>, vector<128x256xbf16>
    %cst_67 = arith.constant dense<0.000000e+00> : vector<8x256xf32>
    %197 = tpu.matmul %195, %196, %cst_67 {dimension_numbers = #tpu.dot_dimension_numbers<[1], [0], [0], [1], [0, 0, 1, 1], [], []>} : vector<8x128xbf16>, vector<128x256xbf16>, vector<8x256xf32> -> vector<8x256xf32>
    %c0_68 = arith.constant 0 : index
    %c0_69 = arith.constant 0 : index
    %198 = vector.load %arg16[%c0_68, %c0_69] : memref<1x256xf32, #tpu.memory_space<vmem>>, vector<1x256xf32>
    %199 = vector.broadcast %198 : vector<1x256xf32> to vector<8x256xf32>
    %200 = arith.addf %197, %199 : vector<8x256xf32>
    %cst_70 = arith.constant 0.000000e+00 : f32
    %201 = vector.broadcast %cst_70 : f32 to vector<8x256xf32>
    %202 = arith.maximumf %200, %201 : vector<8x256xf32>
    %203 = arith.truncf %202 : vector<8x256xf32> to vector<8x256xbf16>
    %c0_71 = arith.constant 0 : index
    %c0_72 = arith.constant 0 : index
    %204 = vector.load %arg17[%c0_71, %c0_72] : memref<256x128xbf16, #tpu.memory_space<vmem>>, vector<256x128xbf16>
    %cst_73 = arith.constant dense<0.000000e+00> : vector<8x128xf32>
    %205 = tpu.matmul %203, %204, %cst_73 {dimension_numbers = #tpu.dot_dimension_numbers<[1], [0], [0], [1], [0, 0, 1, 1], [], []>} : vector<8x256xbf16>, vector<256x128xbf16>, vector<8x128xf32> -> vector<8x128xf32>
    %c0_74 = arith.constant 0 : index
    %c0_75 = arith.constant 0 : index
    %206 = vector.load %arg18[%c0_74, %c0_75] : memref<1x128xf32, #tpu.memory_space<vmem>>, vector<1x128xf32>
    %207 = vector.broadcast %206 : vector<1x128xf32> to vector<8x128xf32>
    %208 = arith.addf %205, %207 : vector<8x128xf32>
    %209 = arith.addf %194, %208 : vector<8x128xf32>
    %210 = vector.extract_strided_slice %4 {offsets = [4, 0], sizes = [1, 128], strides = [1, 1]} : vector<6x128xf32> to vector<1x128xf32>
    %211 = vector.extract_strided_slice %4 {offsets = [5, 0], sizes = [1, 128], strides = [1, 1]} : vector<6x128xf32> to vector<1x128xf32>
    %cst_76 = arith.constant dense<0.000000e+00> : vector<8xf32>
    %212 = vector.multi_reduction <add>, %209, %cst_76 [1] : vector<8x128xf32> to vector<8xf32>
    %213 = vector.shape_cast %212 : vector<8xf32> to vector<8x1xf32>
    %cst_77 = arith.constant 1.280000e+02 : f32
    %214 = vector.broadcast %cst_77 : f32 to vector<8x1xf32>
    %215 = arith.divf %213, %214 : vector<8x1xf32>
    %216 = vector.broadcast %215 : vector<8x1xf32> to vector<8x128xf32>
    %217 = arith.subf %209, %216 : vector<8x128xf32>
    %218 = arith.mulf %217, %217 : vector<8x128xf32>
    %cst_78 = arith.constant dense<0.000000e+00> : vector<8xf32>
    %219 = vector.multi_reduction <add>, %218, %cst_78 [1] : vector<8x128xf32> to vector<8xf32>
    %220 = vector.shape_cast %219 : vector<8xf32> to vector<8x1xf32>
    %cst_79 = arith.constant 1.280000e+02 : f32
    %221 = vector.broadcast %cst_79 : f32 to vector<8x1xf32>
    %222 = arith.divf %220, %221 : vector<8x1xf32>
    %cst_80 = arith.constant 9.99999974E-6 : f32
    %223 = vector.broadcast %cst_80 : f32 to vector<8x1xf32>
    %224 = arith.addf %222, %223 : vector<8x1xf32>
    %225 = math.rsqrt %224 : vector<8x1xf32>
    %226 = vector.broadcast %225 : vector<8x1xf32> to vector<8x128xf32>
    %227 = arith.mulf %217, %226 : vector<8x128xf32>
    %228 = vector.broadcast %210 : vector<1x128xf32> to vector<8x128xf32>
    %229 = arith.mulf %227, %228 : vector<8x128xf32>
    %230 = vector.broadcast %211 : vector<1x128xf32> to vector<8x128xf32>
    %231 = arith.addf %229, %230 : vector<8x128xf32>
    %232 = vector.shape_cast %231 : vector<8x128xf32> to vector<1x8x128xf32>
    %c0_81 = arith.constant 0 : index
    %c0_82 = arith.constant 0 : index
    %c0_83 = arith.constant 0 : index
    %233 = vector.load %arg20[%c0_81, %c0_82, %c0_83] : memref<1x8x128xf32, #tpu.memory_space<vmem>>, vector<1x8x128xf32>
    tpu.vector_store %arg20[%c0_81, %c0_82, %c0_83], %232 {strides = array<i32>} : memref<1x8x128xf32, #tpu.memory_space<vmem>>, vector<1x8x128xf32>,
    return
  }
  func.func @transform_0(%arg0: i32) -> (i32, i32, i32) {
    %c0_i32 = arith.constant 0 : i32
    %c0_i32_0 = arith.constant 0 : i32
    %c0_i32_1 = arith.constant 0 : i32
    return %arg0, %c0_i32, %c0_i32_0 : i32, i32, i32
  }
  func.func @transform_1(%arg0: i32) -> (i32, i32, i32) {
    %c0_i32 = arith.constant 0 : i32
    %c0_i32_0 = arith.constant 0 : i32
    %c0_i32_1 = arith.constant 0 : i32
    return %arg0, %c0_i32, %c0_i32_0 : i32, i32, i32
  }
  func.func @transform_2(%arg0: i32) -> (i32, i32, i32) {
    %c0_i32 = arith.constant 0 : i32
    %c0_i32_0 = arith.constant 0 : i32
    %c0_i32_1 = arith.constant 0 : i32
    return %arg0, %c0_i32, %c0_i32_0 : i32, i32, i32
  }
  func.func @transform_3(%arg0: i32) -> (i32, i32, i32) {
    %c0_i32 = arith.constant 0 : i32
    %c0_i32_0 = arith.constant 0 : i32
    %c0_i32_1 = arith.constant 0 : i32
    return %arg0, %c0_i32, %c0_i32_0 : i32, i32, i32
  }
  func.func @transform_4(%arg0: i32) -> (i32, i32) {
    %c0_i32 = arith.constant 0 : i32
    %c0_i32_0 = arith.constant 0 : i32
    %c0_i32_1 = arith.constant 0 : i32
    return %c0_i32, %c0_i32_0 : i32, i32
  }
  func.func @transform_5(%arg0: i32) -> (i32, i32) {
    %c0_i32 = arith.constant 0 : i32
    %c0_i32_0 = arith.constant 0 : i32
    %c0_i32_1 = arith.constant 0 : i32
    return %c0_i32, %c0_i32_0 : i32, i32
  }
  func.func @transform_6(%arg0: i32) -> (i32, i32) {
    %c0_i32 = arith.constant 0 : i32
    %c0_i32_0 = arith.constant 0 : i32
    %c0_i32_1 = arith.constant 0 : i32
    return %c0_i32, %c0_i32_0 : i32, i32
  }
  func.func @transform_7(%arg0: i32) -> (i32, i32) {
    %c0_i32 = arith.constant 0 : i32
    %c0_i32_0 = arith.constant 0 : i32
    %c0_i32_1 = arith.constant 0 : i32
    return %c0_i32, %c0_i32_0 : i32, i32
  }
  func.func @transform_8(%arg0: i32) -> (i32, i32) {
    %c0_i32 = arith.constant 0 : i32
    %c0_i32_0 = arith.constant 0 : i32
    %c0_i32_1 = arith.constant 0 : i32
    return %c0_i32, %c0_i32_0 : i32, i32
  }
  func.func @transform_9(%arg0: i32) -> (i32, i32) {
    %c0_i32 = arith.constant 0 : i32
    %c0_i32_0 = arith.constant 0 : i32
    %c0_i32_1 = arith.constant 0 : i32
    return %c0_i32, %c0_i32_0 : i32, i32
  }
  func.func @transform_10(%arg0: i32) -> (i32, i32) {
    %c0_i32 = arith.constant 0 : i32
    %c0_i32_0 = arith.constant 0 : i32
    %c0_i32_1 = arith.constant 0 : i32
    return %c0_i32, %c0_i32_0 : i32, i32
  }
  func.func @transform_11(%arg0: i32) -> (i32, i32) {
    %c0_i32 = arith.constant 0 : i32
    %c0_i32_0 = arith.constant 0 : i32
    %c0_i32_1 = arith.constant 0 : i32
    return %c0_i32, %c0_i32_0 : i32, i32
  }
  func.func @transform_12(%arg0: i32) -> (i32, i32) {
    %c0_i32 = arith.constant 0 : i32
    %c0_i32_0 = arith.constant 0 : i32
    %c0_i32_1 = arith.constant 0 : i32
    return %c0_i32, %c0_i32_0 : i32, i32
  }
  func.func @transform_13(%arg0: i32) -> (i32, i32) {
    %c0_i32 = arith.constant 0 : i32
    %c0_i32_0 = arith.constant 0 : i32
    %c0_i32_1 = arith.constant 0 : i32
    return %c0_i32, %c0_i32_0 : i32, i32
  }
  func.func @transform_14(%arg0: i32) -> (i32, i32) {
    %c0_i32 = arith.constant 0 : i32
    %c0_i32_0 = arith.constant 0 : i32
    %c0_i32_1 = arith.constant 0 : i32
    return %c0_i32, %c0_i32_0 : i32, i32
  }
  func.func @transform_15(%arg0: i32) -> (i32, i32) {
    %c0_i32 = arith.constant 0 : i32
    %c0_i32_0 = arith.constant 0 : i32
    %c0_i32_1 = arith.constant 0 : i32
    return %c0_i32, %c0_i32_0 : i32, i32
  }
  func.func @transform_16(%arg0: i32) -> (i32, i32) {
    %c0_i32 = arith.constant 0 : i32
    %c0_i32_0 = arith.constant 0 : i32
    %c0_i32_1 = arith.constant 0 : i32
    return %c0_i32, %c0_i32_0 : i32, i32
  }
  func.func @transform_17(%arg0: i32) -> (i32, i32) {
    %c0_i32 = arith.constant 0 : i32
    %c0_i32_0 = arith.constant 0 : i32
    %c0_i32_1 = arith.constant 0 : i32
    return %c0_i32, %c0_i32_0 : i32, i32
  }
  func.func @transform_18(%arg0: i32) -> (i32, i32) {
    %c0_i32 = arith.constant 0 : i32
    %c0_i32_0 = arith.constant 0 : i32
    %c0_i32_1 = arith.constant 0 : i32
    return %c0_i32, %c0_i32_0 : i32, i32
  }
  func.func @transform_19(%arg0: i32) -> (i32, i32, i32) {
    %c0_i32 = arith.constant 0 : i32
    %c0_i32_0 = arith.constant 0 : i32
    %c0_i32_1 = arith.constant 0 : i32
    return %arg0, %c0_i32, %c0_i32_0 : i32, i32, i32
  }
}

module attributes {stable_mosaic.version = 11 : i64} {
  func.func @decoder_layer_kernel(%arg0: i32, %arg1: memref<1x8x128xf32, #tpu.memory_space<vmem>>, %arg2: memref<1x16x128xf32, #tpu.memory_space<vmem>>, %arg3: memref<1x8x8xi8, #tpu.memory_space<vmem>>, %arg4: memref<1x1x16xi8, #tpu.memory_space<vmem>>, %arg5: memref<128x384xbf16, #tpu.memory_space<vmem>>, %arg6: memref<1x384xf32, #tpu.memory_space<vmem>>, %arg7: memref<128x128xbf16, #tpu.memory_space<vmem>>, %arg8: memref<1x128xf32, #tpu.memory_space<vmem>>, %arg9: memref<128x128xbf16, #tpu.memory_space<vmem>>, %arg10: memref<1x128xf32, #tpu.memory_space<vmem>>, %arg11: memref<128x256xbf16, #tpu.memory_space<vmem>>, %arg12: memref<1x256xf32, #tpu.memory_space<vmem>>, %arg13: memref<128x128xbf16, #tpu.memory_space<vmem>>, %arg14: memref<1x128xf32, #tpu.memory_space<vmem>>, %arg15: memref<128x256xbf16, #tpu.memory_space<vmem>>, %arg16: memref<1x256xf32, #tpu.memory_space<vmem>>, %arg17: memref<256x128xbf16, #tpu.memory_space<vmem>>, %arg18: memref<1x128xf32, #tpu.memory_space<vmem>>, %arg19: memref<6x128xf32, #tpu.memory_space<vmem>>, %arg20: memref<1x8x128xf32, #tpu.memory_space<vmem>>) attributes {dimension_semantics = [#tpu.dimension_semantics<parallel>], iteration_bounds = array<i64: 2>, scalar_prefetch = 0 : i64, scratch_operands = 0 : i64, tpu.core_type = #tpu.core_type<tc>, window_params = [{transform_indices = @transform_0, window_bounds = array<i64: 1, 8, 128>}, {transform_indices = @transform_1, window_bounds = array<i64: 1, 16, 128>}, {transform_indices = @transform_2, window_bounds = array<i64: 1, 8, 8>}, {transform_indices = @transform_3, window_bounds = array<i64: 1, 1, 16>}, {pipeline_mode = #tpu.pipeline_mode<synchronous>, transform_indices = @transform_4, window_bounds = array<i64: 128, 384>}, {pipeline_mode = #tpu.pipeline_mode<synchronous>, transform_indices = @transform_5, window_bounds = array<i64: 1, 384>}, {pipeline_mode = #tpu.pipeline_mode<synchronous>, transform_indices = @transform_6, window_bounds = array<i64: 128, 128>}, {pipeline_mode = #tpu.pipeline_mode<synchronous>, transform_indices = @transform_7, window_bounds = array<i64: 1, 128>}, {pipeline_mode = #tpu.pipeline_mode<synchronous>, transform_indices = @transform_8, window_bounds = array<i64: 128, 128>}, {pipeline_mode = #tpu.pipeline_mode<synchronous>, transform_indices = @transform_9, window_bounds = array<i64: 1, 128>}, {pipeline_mode = #tpu.pipeline_mode<synchronous>, transform_indices = @transform_10, window_bounds = array<i64: 128, 256>}, {pipeline_mode = #tpu.pipeline_mode<synchronous>, transform_indices = @transform_11, window_bounds = array<i64: 1, 256>}, {pipeline_mode = #tpu.pipeline_mode<synchronous>, transform_indices = @transform_12, window_bounds = array<i64: 128, 128>}, {pipeline_mode = #tpu.pipeline_mode<synchronous>, transform_indices = @transform_13, window_bounds = array<i64: 1, 128>}, {pipeline_mode = #tpu.pipeline_mode<synchronous>, transform_indices = @transform_14, window_bounds = array<i64: 128, 256>}, {pipeline_mode = #tpu.pipeline_mode<synchronous>, transform_indices = @transform_15, window_bounds = array<i64: 1, 256>}, {pipeline_mode = #tpu.pipeline_mode<synchronous>, transform_indices = @transform_16, window_bounds = array<i64: 256, 128>}, {pipeline_mode = #tpu.pipeline_mode<synchronous>, transform_indices = @transform_17, window_bounds = array<i64: 1, 128>}, {pipeline_mode = #tpu.pipeline_mode<synchronous>, transform_indices = @transform_18, window_bounds = array<i64: 6, 128>}, {transform_indices = @transform_19, window_bounds = array<i64: 1, 8, 128>}]} {
    %c0 = arith.constant 0 : index
    %c0_0 = arith.constant 0 : index
    %c0_1 = arith.constant 0 : index
    %0 = vector.load %arg1[%c0, %c0_0, %c0_1] : memref<1x8x128xf32, #tpu.memory_space<vmem>>, vector<1x8x128xf32>
    %1 = vector.shape_cast %0 : vector<1x8x128xf32> to vector<8x128xf32>
    %c0_2 = arith.constant 0 : index
    %c0_3 = arith.constant 0 : index
    %c0_4 = arith.constant 0 : index
    %2 = vector.load %arg2[%c0_2, %c0_3, %c0_4] : memref<1x16x128xf32, #tpu.memory_space<vmem>>, vector<1x16x128xf32>
    %3 = vector.shape_cast %2 : vector<1x16x128xf32> to vector<16x128xf32>
    %c0_5 = arith.constant 0 : index
    %c0_6 = arith.constant 0 : index
    %4 = vector.load %arg19[%c0_5, %c0_6] : memref<6x128xf32, #tpu.memory_space<vmem>>, vector<6x128xf32>
    %c0_7 = arith.constant 0 : index
    %c0_8 = arith.constant 0 : index
    %c0_9 = arith.constant 0 : index
    %5 = vector.load %arg3[%c0_7, %c0_8, %c0_9] : memref<1x8x8xi8, #tpu.memory_space<vmem>>, vector<1x8x8xi8>
    %6 = arith.sitofp %5 : vector<1x8x8xi8> to vector<1x8x8xf32>
    %cst = arith.constant 0.000000e+00 : f32
    %7 = vector.broadcast %cst : f32 to vector<1x8x8xf32>
    %8 = arith.cmpf oeq, %6, %7 : vector<1x8x8xf32>
    %cst_10 = arith.constant -1.000000e+09 : f32
    %cst_11 = arith.constant 0.000000e+00 : f32
    %9 = vector.broadcast %cst_10 : f32 to vector<1x8x8xf32>
    %10 = vector.broadcast %cst_11 : f32 to vector<1x8x8xf32>
    %11 = arith.select %8, %9, %10 : vector<1x8x8xi1>, vector<1x8x8xf32>
    %c0_12 = arith.constant 0 : index
    %c0_13 = arith.constant 0 : index
    %c0_14 = arith.constant 0 : index
    %12 = vector.load %arg4[%c0_12, %c0_13, %c0_14] : memref<1x1x16xi8, #tpu.memory_space<vmem>>, vector<1x1x16xi8>
    %13 = arith.sitofp %12 : vector<1x1x16xi8> to vector<1x1x16xf32>
    %cst_15 = arith.constant 0.000000e+00 : f32
    %14 = vector.broadcast %cst_15 : f32 to vector<1x1x16xf32>
    %15 = arith.cmpf oeq, %13, %14 : vector<1x1x16xf32>
    %cst_16 = arith.constant -1.000000e+09 : f32
    %cst_17 = arith.constant 0.000000e+00 : f32
    %16 = vector.broadcast %cst_16 : f32 to vector<1x1x16xf32>
    %17 = vector.broadcast %cst_17 : f32 to vector<1x1x16xf32>
    %18 = arith.select %15, %16, %17 : vector<1x1x16xi1>, vector<1x1x16xf32>
    %19 = arith.truncf %1 : vector<8x128xf32> to vector<8x128xbf16>
    %c0_18 = arith.constant 0 : index
    %c0_19 = arith.constant 0 : index
    %20 = vector.load %arg5[%c0_18, %c0_19] : memref<128x384xbf16, #tpu.memory_space<vmem>>, vector<128x384xbf16>
    %cst_20 = arith.constant dense<0.000000e+00> : vector<8x384xf32>
    %21 = tpu.matmul %19, %20, %cst_20 {dimension_numbers = #tpu.dot_dimension_numbers<[1], [0], [0], [1], [0, 0, 1, 1], [], []>} : vector<8x128xbf16>, vector<128x384xbf16>, vector<8x384xf32> -> vector<8x384xf32>
    %c0_21 = arith.constant 0 : index
    %c0_22 = arith.constant 0 : index
    %22 = vector.load %arg6[%c0_21, %c0_22] : memref<1x384xf32, #tpu.memory_space<vmem>>, vector<1x384xf32>
    %23 = vector.broadcast %22 : vector<1x384xf32> to vector<8x384xf32>
    %24 = arith.addf %21, %23 : vector<8x384xf32>
    %25 = vector.extract_strided_slice %24 {offsets = [0, 0], sizes = [8, 128], strides = [1, 1]} : vector<8x384xf32> to vector<8x128xf32>
    %26 = vector.shape_cast %25 : vector<8x128xf32> to vector<1x8x4x32xf32>
    %27 = tpu.transpose %26, [0, 2, 1, 3] : vector<1x8x4x32xf32> -> vector<1x4x8x32xf32>
    %28 = arith.truncf %27 : vector<1x4x8x32xf32> to vector<1x4x8x32xbf16>
    %29 = vector.extract_strided_slice %24 {offsets = [0, 128], sizes = [8, 128], strides = [1, 1]} : vector<8x384xf32> to vector<8x128xf32>
    %30 = vector.shape_cast %29 : vector<8x128xf32> to vector<1x8x4x32xf32>
    %31 = tpu.transpose %30, [0, 2, 1, 3] : vector<1x8x4x32xf32> -> vector<1x4x8x32xf32>
    %32 = arith.truncf %31 : vector<1x4x8x32xf32> to vector<1x4x8x32xbf16>
    %33 = vector.extract_strided_slice %24 {offsets = [0, 256], sizes = [8, 128], strides = [1, 1]} : vector<8x384xf32> to vector<8x128xf32>
    %34 = vector.shape_cast %33 : vector<8x128xf32> to vector<1x8x4x32xf32>
    %35 = tpu.transpose %34, [0, 2, 1, 3] : vector<1x8x4x32xf32> -> vector<1x4x8x32xf32>
    %36 = arith.truncf %35 : vector<1x4x8x32xf32> to vector<1x4x8x32xbf16>
    %37 = vector.shape_cast %28 : vector<1x4x8x32xbf16> to vector<4x8x32xbf16>
    %38 = vector.shape_cast %32 : vector<1x4x8x32xbf16> to vector<4x8x32xbf16>
    %39 = vector.shape_cast %36 : vector<1x4x8x32xbf16> to vector<4x8x32xbf16>
    "tpu.trace_start"() <{level = 10 : i32, message = "gqd,gkd->gqk"}> : () -> ()
    %cst_23 = arith.constant dense<0.000000e+00> : vector<4x8x8xf32>
    %40 = tpu.matmul %37, %38, %cst_23 {dimension_numbers = #tpu.dot_dimension_numbers<[2], [2], [1], [1], [0, 0, 0, 1, 1, 1], [0], [0]>} : vector<4x8x32xbf16>, vector<4x8x32xbf16>, vector<4x8x8xf32> -> vector<4x8x8xf32>
    "tpu.trace_stop"() : () -> ()
    %41 = vector.shape_cast %40 : vector<4x8x8xf32> to vector<1x4x8x8xf32>
    %42 = vector.shape_cast %11 : vector<1x8x8xf32> to vector<1x1x8x8xf32>
    %43 = vector.broadcast %42 : vector<1x1x8x8xf32> to vector<1x4x8x8xf32>
    %44 = arith.addf %41, %43 : vector<1x4x8x8xf32>
    %45 = vector.shape_cast %44 : vector<1x4x8x8xf32> to vector<4x8x8xf32>
    %cst_24 = arith.constant dense<0xFF800000> : vector<4x8xf32>
    %46 = vector.multi_reduction <maximumf>, %45, %cst_24 [2] : vector<4x8x8xf32> to vector<4x8xf32>
    %47 = vector.shape_cast %46 : vector<4x8xf32> to vector<4x8x1xf32>
    %48 = vector.broadcast %47 : vector<4x8x1xf32> to vector<4x8x8xf32>
    %49 = arith.subf %45, %48 : vector<4x8x8xf32>
    %50 = math.exp %49 : vector<4x8x8xf32>
    %cst_25 = arith.constant dense<0.000000e+00> : vector<4x8xf32>
    %51 = vector.multi_reduction <add>, %50, %cst_25 [2] : vector<4x8x8xf32> to vector<4x8xf32>
    %52 = vector.shape_cast %51 : vector<4x8xf32> to vector<4x8x1xf32>
    %53 = arith.truncf %50 : vector<4x8x8xf32> to vector<4x8x8xbf16>
    "tpu.trace_start"() <{level = 10 : i32, message = "gqk,gkd->gqd"}> : () -> ()
    %cst_26 = arith.constant dense<0.000000e+00> : vector<4x8x32xf32>
    %54 = tpu.matmul %53, %39, %cst_26 {dimension_numbers = #tpu.dot_dimension_numbers<[2], [1], [1], [2], [0, 0, 0, 1, 1, 2], [0], [0]>} : vector<4x8x8xbf16>, vector<4x8x32xbf16>, vector<4x8x32xf32> -> vector<4x8x32xf32>
    "tpu.trace_stop"() : () -> ()
    %55 = tpu.reciprocal %52 {approx = true} : vector<4x8x1xf32> -> vector<4x8x1xf32>
    %56 = vector.broadcast %55 : vector<4x8x1xf32> to vector<4x8x32xf32>
    %57 = arith.mulf %54, %56 : vector<4x8x32xf32>
    %58 = vector.shape_cast %57 : vector<4x8x32xf32> to vector<1x4x8x32xf32>
    %59 = tpu.transpose %58, [0, 2, 1, 3] : vector<1x4x8x32xf32> -> vector<1x8x4x32xf32>
    %60 = vector.shape_cast %59 : vector<1x8x4x32xf32> to vector<8x128xf32>
    %61 = arith.truncf %60 : vector<8x128xf32> to vector<8x128xbf16>
    %c0_27 = arith.constant 0 : index
    %c0_28 = arith.constant 0 : index
    %62 = vector.load %arg7[%c0_27, %c0_28] : memref<128x128xbf16, #tpu.memory_space<vmem>>, vector<128x128xbf16>
    %cst_29 = arith.constant dense<0.000000e+00> : vector<8x128xf32>
    %63 = tpu.matmul %61, %62, %cst_29 {dimension_numbers = #tpu.dot_dimension_numbers<[1], [0], [0], [1], [0, 0, 1, 1], [], []>} : vector<8x128xbf16>, vector<128x128xbf16>, vector<8x128xf32> -> vector<8x128xf32>
    %c0_30 = arith.constant 0 : index
    %c0_31 = arith.constant 0 : index
    %64 = vector.load %arg8[%c0_30, %c0_31] : memref<1x128xf32, #tpu.memory_space<vmem>>, vector<1x128xf32>
    %65 = vector.broadcast %64 : vector<1x128xf32> to vector<8x128xf32>
    %66 = arith.addf %63, %65 : vector<8x128xf32>
    %67 = arith.addf %1, %66 : vector<8x128xf32>
    %68 = vector.extract_strided_slice %4 {offsets = [0, 0], sizes = [1, 128], strides = [1, 1]} : vector<6x128xf32> to vector<1x128xf32>
    %69 = vector.extract_strided_slice %4 {offsets = [1, 0], sizes = [1, 128], strides = [1, 1]} : vector<6x128xf32> to vector<1x128xf32>
    %cst_32 = arith.constant dense<0.000000e+00> : vector<8xf32>
    %70 = vector.multi_reduction <add>, %67, %cst_32 [1] : vector<8x128xf32> to vector<8xf32>
    %71 = vector.shape_cast %70 : vector<8xf32> to vector<8x1xf32>
    %cst_33 = arith.constant 1.280000e+02 : f32
    %72 = vector.broadcast %cst_33 : f32 to vector<8x1xf32>
    %73 = arith.divf %71, %72 : vector<8x1xf32>
    %74 = vector.broadcast %73 : vector<8x1xf32> to vector<8x128xf32>
    %75 = arith.subf %67, %74 : vector<8x128xf32>
    %76 = arith.mulf %75, %75 : vector<8x128xf32>
    %cst_34 = arith.constant dense<0.000000e+00> : vector<8xf32>
    %77 = vector.multi_reduction <add>, %76, %cst_34 [1] : vector<8x128xf32> to vector<8xf32>
    %78 = vector.shape_cast %77 : vector<8xf32> to vector<8x1xf32>
    %cst_35 = arith.constant 1.280000e+02 : f32
    %79 = vector.broadcast %cst_35 : f32 to vector<8x1xf32>
    %80 = arith.divf %78, %79 : vector<8x1xf32>
    %cst_36 = arith.constant 9.99999974E-6 : f32
    %81 = vector.broadcast %cst_36 : f32 to vector<8x1xf32>
    %82 = arith.addf %80, %81 : vector<8x1xf32>
    %83 = math.rsqrt %82 : vector<8x1xf32>
    %84 = vector.broadcast %83 : vector<8x1xf32> to vector<8x128xf32>
    %85 = arith.mulf %75, %84 : vector<8x128xf32>
    %86 = vector.broadcast %68 : vector<1x128xf32> to vector<8x128xf32>
    %87 = arith.mulf %85, %86 : vector<8x128xf32>
    %88 = vector.broadcast %69 : vector<1x128xf32> to vector<8x128xf32>
    %89 = arith.addf %87, %88 : vector<8x128xf32>
    %90 = arith.truncf %89 : vector<8x128xf32> to vector<8x128xbf16>
    %c0_37 = arith.constant 0 : index
    %c0_38 = arith.constant 0 : index
    %91 = vector.load %arg9[%c0_37, %c0_38] : memref<128x128xbf16, #tpu.memory_space<vmem>>, vector<128x128xbf16>
    %cst_39 = arith.constant dense<0.000000e+00> : vector<8x128xf32>
    %92 = tpu.matmul %90, %91, %cst_39 {dimension_numbers = #tpu.dot_dimension_numbers<[1], [0], [0], [1], [0, 0, 1, 1], [], []>} : vector<8x128xbf16>, vector<128x128xbf16>, vector<8x128xf32> -> vector<8x128xf32>
    %c0_40 = arith.constant 0 : index
    %c0_41 = arith.constant 0 : index
    %93 = vector.load %arg10[%c0_40, %c0_41] : memref<1x128xf32, #tpu.memory_space<vmem>>, vector<1x128xf32>
    %94 = vector.broadcast %93 : vector<1x128xf32> to vector<8x128xf32>
    %95 = arith.addf %92, %94 : vector<8x128xf32>
    %96 = arith.truncf %3 : vector<16x128xf32> to vector<16x128xbf16>
    %c0_42 = arith.constant 0 : index
    %c0_43 = arith.constant 0 : index
    %97 = vector.load %arg11[%c0_42, %c0_43] : memref<128x256xbf16, #tpu.memory_space<vmem>>, vector<128x256xbf16>
    %cst_44 = arith.constant dense<0.000000e+00> : vector<16x256xf32>
    %98 = tpu.matmul %96, %97, %cst_44 {dimension_numbers = #tpu.dot_dimension_numbers<[1], [0], [0], [1], [0, 0, 1, 1], [], []>} : vector<16x128xbf16>, vector<128x256xbf16>, vector<16x256xf32> -> vector<16x256xf32>
    %c0_45 = arith.constant 0 : index
    %c0_46 = arith.constant 0 : index
    %99 = vector.load %arg12[%c0_45, %c0_46] : memref<1x256xf32, #tpu.memory_space<vmem>>, vector<1x256xf32>
    %100 = vector.broadcast %99 : vector<1x256xf32> to vector<16x256xf32>
    %101 = arith.addf %98, %100 : vector<16x256xf32>
    %102 = vector.shape_cast %95 : vector<8x128xf32> to vector<1x8x4x32xf32>
    %103 = tpu.transpose %102, [0, 2, 1, 3] : vector<1x8x4x32xf32> -> vector<1x4x8x32xf32>
    %104 = arith.truncf %103 : vector<1x4x8x32xf32> to vector<1x4x8x32xbf16>
    %105 = vector.extract_strided_slice %101 {offsets = [0, 0], sizes = [16, 128], strides = [1, 1]} : vector<16x256xf32> to vector<16x128xf32>
    %106 = vector.shape_cast %105 : vector<16x128xf32> to vector<1x16x4x32xf32>
    %107 = tpu.transpose %106, [0, 2, 1, 3] : vector<1x16x4x32xf32> -> vector<1x4x16x32xf32>
    %108 = arith.truncf %107 : vector<1x4x16x32xf32> to vector<1x4x16x32xbf16>
    %109 = vector.extract_strided_slice %101 {offsets = [0, 128], sizes = [16, 128], strides = [1, 1]} : vector<16x256xf32> to vector<16x128xf32>
    %110 = vector.shape_cast %109 : vector<16x128xf32> to vector<1x16x4x32xf32>
    %111 = tpu.transpose %110, [0, 2, 1, 3] : vector<1x16x4x32xf32> -> vector<1x4x16x32xf32>
    %112 = arith.truncf %111 : vector<1x4x16x32xf32> to vector<1x4x16x32xbf16>
    %113 = vector.shape_cast %104 : vector<1x4x8x32xbf16> to vector<4x8x32xbf16>
    %114 = vector.shape_cast %108 : vector<1x4x16x32xbf16> to vector<4x16x32xbf16>
    %115 = vector.shape_cast %112 : vector<1x4x16x32xbf16> to vector<4x16x32xbf16>
    %116 = vector.extract_strided_slice %114 {offsets = [0, 0, 0], sizes = [4, 8, 32], strides = [1, 1, 1]} : vector<4x16x32xbf16> to vector<4x8x32xbf16>
    "tpu.trace_start"() <{level = 10 : i32, message = "gqd,gkd->gqk"}> : () -> ()
    %cst_47 = arith.constant dense<0.000000e+00> : vector<4x8x8xf32>
    %117 = tpu.matmul %113, %116, %cst_47 {dimension_numbers = #tpu.dot_dimension_numbers<[2], [2], [1], [1], [0, 0, 0, 1, 1, 1], [0], [0]>} : vector<4x8x32xbf16>, vector<4x8x32xbf16>, vector<4x8x8xf32> -> vector<4x8x8xf32>
    "tpu.trace_stop"() : () -> ()
    %118 = vector.shape_cast %117 : vector<4x8x8xf32> to vector<1x4x8x8xf32>
    %119 = vector.extract_strided_slice %18 {offsets = [0, 0, 0], sizes = [1, 1, 8], strides = [1, 1, 1]} : vector<1x1x16xf32> to vector<1x1x8xf32>
    %120 = vector.shape_cast %119 : vector<1x1x8xf32> to vector<1x1x1x8xf32>
    %121 = vector.broadcast %120 : vector<1x1x1x8xf32> to vector<1x4x8x8xf32>
    %122 = arith.addf %118, %121 : vector<1x4x8x8xf32>
    %123 = vector.shape_cast %122 : vector<1x4x8x8xf32> to vector<4x8x8xf32>
    %cst_48 = arith.constant dense<0xFF800000> : vector<4x8xf32>
    %124 = vector.multi_reduction <maximumf>, %123, %cst_48 [2] : vector<4x8x8xf32> to vector<4x8xf32>
    %125 = vector.shape_cast %124 : vector<4x8xf32> to vector<4x8x1xf32>
    %126 = vector.broadcast %125 : vector<4x8x1xf32> to vector<4x8x8xf32>
    %127 = arith.subf %123, %126 : vector<4x8x8xf32>
    %128 = math.exp %127 : vector<4x8x8xf32>
    %cst_49 = arith.constant dense<0.000000e+00> : vector<4x8xf32>
    %129 = vector.multi_reduction <add>, %128, %cst_49 [2] : vector<4x8x8xf32> to vector<4x8xf32>
    %130 = vector.shape_cast %129 : vector<4x8xf32> to vector<4x8x1xf32>
    %131 = arith.truncf %128 : vector<4x8x8xf32> to vector<4x8x8xbf16>
    %132 = vector.extract_strided_slice %115 {offsets = [0, 0, 0], sizes = [4, 8, 32], strides = [1, 1, 1]} : vector<4x16x32xbf16> to vector<4x8x32xbf16>
    "tpu.trace_start"() <{level = 10 : i32, message = "gqk,gkd->gqd"}> : () -> ()
    %cst_50 = arith.constant dense<0.000000e+00> : vector<4x8x32xf32>
    %133 = tpu.matmul %131, %132, %cst_50 {dimension_numbers = #tpu.dot_dimension_numbers<[2], [1], [1], [2], [0, 0, 0, 1, 1, 2], [0], [0]>} : vector<4x8x8xbf16>, vector<4x8x32xbf16>, vector<4x8x32xf32> -> vector<4x8x32xf32>
    "tpu.trace_stop"() : () -> ()
    %134 = vector.extract_strided_slice %114 {offsets = [0, 8, 0], sizes = [4, 8, 32], strides = [1, 1, 1]} : vector<4x16x32xbf16> to vector<4x8x32xbf16>
    "tpu.trace_start"() <{level = 10 : i32, message = "gqd,gkd->gqk"}> : () -> ()
    %cst_51 = arith.constant dense<0.000000e+00> : vector<4x8x8xf32>
    %135 = tpu.matmul %113, %134, %cst_51 {dimension_numbers = #tpu.dot_dimension_numbers<[2], [2], [1], [1], [0, 0, 0, 1, 1, 1], [0], [0]>} : vector<4x8x32xbf16>, vector<4x8x32xbf16>, vector<4x8x8xf32> -> vector<4x8x8xf32>
    "tpu.trace_stop"() : () -> ()
    %136 = vector.shape_cast %135 : vector<4x8x8xf32> to vector<1x4x8x8xf32>
    %137 = vector.extract_strided_slice %18 {offsets = [0, 0, 8], sizes = [1, 1, 8], strides = [1, 1, 1]} : vector<1x1x16xf32> to vector<1x1x8xf32>
    %138 = vector.shape_cast %137 : vector<1x1x8xf32> to vector<1x1x1x8xf32>
    %139 = vector.broadcast %138 : vector<1x1x1x8xf32> to vector<1x4x8x8xf32>
    %140 = arith.addf %136, %139 : vector<1x4x8x8xf32>
    %141 = vector.shape_cast %140 : vector<1x4x8x8xf32> to vector<4x8x8xf32>
    %cst_52 = arith.constant dense<0xFF800000> : vector<4x8xf32>
    %142 = vector.multi_reduction <maximumf>, %141, %cst_52 [2] : vector<4x8x8xf32> to vector<4x8xf32>
    %143 = vector.shape_cast %142 : vector<4x8xf32> to vector<4x8x1xf32>
    %144 = arith.maximumf %125, %143 : vector<4x8x1xf32>
    %145 = arith.subf %125, %144 : vector<4x8x1xf32>
    %146 = math.exp %145 : vector<4x8x1xf32>
    %147 = vector.broadcast %144 : vector<4x8x1xf32> to vector<4x8x8xf32>
    %148 = arith.subf %141, %147 : vector<4x8x8xf32>
    %149 = math.exp %148 : vector<4x8x8xf32>
    %150 = arith.mulf %146, %130 : vector<4x8x1xf32>
    %cst_53 = arith.constant dense<0.000000e+00> : vector<4x8xf32>
    %151 = vector.multi_reduction <add>, %149, %cst_53 [2] : vector<4x8x8xf32> to vector<4x8xf32>
    %152 = vector.shape_cast %151 : vector<4x8xf32> to vector<4x8x1xf32>
    %153 = arith.addf %150, %152 : vector<4x8x1xf32>
    %154 = vector.broadcast %146 : vector<4x8x1xf32> to vector<4x8x32xf32>
    %155 = arith.mulf %154, %133 : vector<4x8x32xf32>
    %156 = arith.truncf %149 : vector<4x8x8xf32> to vector<4x8x8xbf16>
    %157 = vector.extract_strided_slice %115 {offsets = [0, 8, 0], sizes = [4, 8, 32], strides = [1, 1, 1]} : vector<4x16x32xbf16> to vector<4x8x32xbf16>
    "tpu.trace_start"() <{level = 10 : i32, message = "gqk,gkd->gqd"}> : () -> ()
    %cst_54 = arith.constant dense<0.000000e+00> : vector<4x8x32xf32>
    %158 = tpu.matmul %156, %157, %cst_54 {dimension_numbers = #tpu.dot_dimension_numbers<[2], [1], [1], [2], [0, 0, 0, 1, 1, 2], [0], [0]>} : vector<4x8x8xbf16>, vector<4x8x32xbf16>, vector<4x8x32xf32> -> vector<4x8x32xf32>
    "tpu.trace_stop"() : () -> ()
    %159 = arith.addf %155, %158 : vector<4x8x32xf32>
    %160 = tpu.reciprocal %153 {approx = true} : vector<4x8x1xf32> -> vector<4x8x1xf32>
    %161 = vector.broadcast %160 : vector<4x8x1xf32> to vector<4x8x32xf32>
    %162 = arith.mulf %159, %161 : vector<4x8x32xf32>
    %163 = vector.shape_cast %162 : vector<4x8x32xf32> to vector<1x4x8x32xf32>
    %164 = tpu.transpose %163, [0, 2, 1, 3] : vector<1x4x8x32xf32> -> vector<1x8x4x32xf32>
    %165 = vector.shape_cast %164 : vector<1x8x4x32xf32> to vector<8x128xf32>
    %166 = arith.truncf %165 : vector<8x128xf32> to vector<8x128xbf16>
    %c0_55 = arith.constant 0 : index
    %c0_56 = arith.constant 0 : index
    %167 = vector.load %arg13[%c0_55, %c0_56] : memref<128x128xbf16, #tpu.memory_space<vmem>>, vector<128x128xbf16>
    %cst_57 = arith.constant dense<0.000000e+00> : vector<8x128xf32>
    %168 = tpu.matmul %166, %167, %cst_57 {dimension_numbers = #tpu.dot_dimension_numbers<[1], [0], [0], [1], [0, 0, 1, 1], [], []>} : vector<8x128xbf16>, vector<128x128xbf16>, vector<8x128xf32> -> vector<8x128xf32>
    %c0_58 = arith.constant 0 : index
    %c0_59 = arith.constant 0 : index
    %169 = vector.load %arg14[%c0_58, %c0_59] : memref<1x128xf32, #tpu.memory_space<vmem>>, vector<1x128xf32>
    %170 = vector.broadcast %169 : vector<1x128xf32> to vector<8x128xf32>
    %171 = arith.addf %168, %170 : vector<8x128xf32>
    %172 = arith.addf %89, %171 : vector<8x128xf32>
    %173 = vector.extract_strided_slice %4 {offsets = [2, 0], sizes = [1, 128], strides = [1, 1]} : vector<6x128xf32> to vector<1x128xf32>
    %174 = vector.extract_strided_slice %4 {offsets = [3, 0], sizes = [1, 128], strides = [1, 1]} : vector<6x128xf32> to vector<1x128xf32>
    %cst_60 = arith.constant dense<0.000000e+00> : vector<8xf32>
    %175 = vector.multi_reduction <add>, %172, %cst_60 [1] : vector<8x128xf32> to vector<8xf32>
    %176 = vector.shape_cast %175 : vector<8xf32> to vector<8x1xf32>
    %cst_61 = arith.constant 1.280000e+02 : f32
    %177 = vector.broadcast %cst_61 : f32 to vector<8x1xf32>
    %178 = arith.divf %176, %177 : vector<8x1xf32>
    %179 = vector.broadcast %178 : vector<8x1xf32> to vector<8x128xf32>
    %180 = arith.subf %172, %179 : vector<8x128xf32>
    %181 = arith.mulf %180, %180 : vector<8x128xf32>
    %cst_62 = arith.constant dense<0.000000e+00> : vector<8xf32>
    %182 = vector.multi_reduction <add>, %181, %cst_62 [1] : vector<8x128xf32> to vector<8xf32>
    %183 = vector.shape_cast %182 : vector<8xf32> to vector<8x1xf32>
    %cst_63 = arith.constant 1.280000e+02 : f32
    %184 = vector.broadcast %cst_63 : f32 to vector<8x1xf32>
    %185 = arith.divf %183, %184 : vector<8x1xf32>
    %cst_64 = arith.constant 9.99999974E-6 : f32
    %186 = vector.broadcast %cst_64 : f32 to vector<8x1xf32>
    %187 = arith.addf %185, %186 : vector<8x1xf32>
    %188 = math.rsqrt %187 : vector<8x1xf32>
    %189 = vector.broadcast %188 : vector<8x1xf32> to vector<8x128xf32>
    %190 = arith.mulf %180, %189 : vector<8x128xf32>
    %191 = vector.broadcast %173 : vector<1x128xf32> to vector<8x128xf32>
    %192 = arith.mulf %190, %191 : vector<8x128xf32>
    %193 = vector.broadcast %174 : vector<1x128xf32> to vector<8x128xf32>
    %194 = arith.addf %192, %193 : vector<8x128xf32>
    %195 = arith.truncf %194 : vector<8x128xf32> to vector<8x128xbf16>
    %c0_65 = arith.constant 0 : index
    %c0_66 = arith.constant 0 : index
    %196 = vector.load %arg15[%c0_65, %c0_66] : memref<128x256xbf16, #tpu.memory_space<vmem>>, vector<128x256xbf16>
    %cst_67 = arith.constant dense<0.000000e+00> : vector<8x256xf32>
    %197 = tpu.matmul %195, %196, %cst_67 {dimension_numbers = #tpu.dot_dimension_numbers<[1], [0], [0], [1], [0, 0, 1, 1], [], []>} : vector<8x128xbf16>, vector<128x256xbf16>, vector<8x256xf32> -> vector<8x256xf32>
    %c0_68 = arith.constant 0 : index
    %c0_69 = arith.constant 0 : index
    %198 = vector.load %arg16[%c0_68, %c0_69] : memref<1x256xf32, #tpu.memory_space<vmem>>, vector<1x256xf32>
    %199 = vector.broadcast %198 : vector<1x256xf32> to vector<8x256xf32>
    %200 = arith.addf %197, %199 : vector<8x256xf32>
    %cst_70 = arith.constant 0.000000e+00 : f32
    %201 = vector.broadcast %cst_70 : f32 to vector<8x256xf32>
    %202 = arith.maximumf %200, %201 : vector<8x256xf32>
    %203 = arith.truncf %202 : vector<8x256xf32> to vector<8x256xbf16>
    %c0_71 = arith.constant 0 : index
    %c0_72 = arith.constant 0 : index
    %204 = vector.load %arg17[%c0_71, %c0_72] : memref<256x128xbf16, #tpu.memory_space<vmem>>, vector<256x128xbf16>
    %cst_73 = arith.constant dense<0.000000e+00> : vector<8x128xf32>
    %205 = tpu.matmul %203, %204, %cst_73 {dimension_numbers = #tpu.dot_dimension_numbers<[1], [0], [0], [1], [0, 0, 1, 1], [], []>} : vector<8x256xbf16>, vector<256x128xbf16>, vector<8x128xf32> -> vector<8x128xf32>
    %c0_74 = arith.constant 0 : index
    %c0_75 = arith.constant 0 : index
    %206 = vector.load %arg18[%c0_74, %c0_75] : memref<1x128xf32, #tpu.memory_space<vmem>>, vector<1x128xf32>
    %207 = vector.broadcast %206 : vector<1x128xf32> to vector<8x128xf32>
    %208 = arith.addf %205, %207 : vector<8x128xf32>
    %209 = arith.addf %194, %208 : vector<8x128xf32>
    %210 = vector.extract_strided_slice %4 {offsets = [4, 0], sizes = [1, 128], strides = [1, 1]} : vector<6x128xf32> to vector<1x128xf32>
    %211 = vector.extract_strided_slice %4 {offsets = [5, 0], sizes = [1, 128], strides = [1, 1]} : vector<6x128xf32> to vector<1x128xf32>
    %cst_76 = arith.constant dense<0.000000e+00> : vector<8xf32>
    %212 = vector.multi_reduction <add>, %209, %cst_76 [1] : vector<8x128xf32> to vector<8xf32>
    %213 = vector.shape_cast %212 : vector<8xf32> to vector<8x1xf32>
    %cst_77 = arith.constant 1.280000e+02 : f32
    %214 = vector.broadcast %cst_77 : f32 to vector<8x1xf32>
    %215 = arith.divf %213, %214 : vector<8x1xf32>
    %216 = vector.broadcast %215 : vector<8x1xf32> to vector<8x128xf32>
    %217 = arith.subf %209, %216 : vector<8x128xf32>
    %218 = arith.mulf %217, %217 : vector<8x128xf32>
    %cst_78 = arith.constant dense<0.000000e+00> : vector<8xf32>
    %219 = vector.multi_reduction <add>, %218, %cst_78 [1] : vector<8x128xf32> to vector<8xf32>
    %220 = vector.shape_cast %219 : vector<8xf32> to vector<8x1xf32>
    %cst_79 = arith.constant 1.280000e+02 : f32
    %221 = vector.broadcast %cst_79 : f32 to vector<8x1xf32>
    %222 = arith.divf %220, %221 : vector<8x1xf32>
    %cst_80 = arith.constant 9.99999974E-6 : f32
    %223 = vector.broadcast %cst_80 : f32 to vector<8x1xf32>
    %224 = arith.addf %222, %223 : vector<8x1xf32>
    %225 = math.rsqrt %224 : vector<8x1xf32>
    %226 = vector.broadcast %225 : vector<8x1xf32> to vector<8x128xf32>
    %227 = arith.mulf %217, %226 : vector<8x128xf32>
    %228 = vector.broadcast %210 : vector<1x128xf32> to vector<8x128xf32>
    %229 = arith.mulf %227, %228 : vector<8x128xf32>
    %230 = vector.broadcast %211 : vector<1x128xf32> to vector<8x128xf32>
    %231 = arith.addf %229, %230 : vector<8x128xf32>
    %232 = vector.shape_cast %231 : vector<8x128xf32> to vector<1x8x128xf32>
    %c0_81 = arith.constant 0 : index
    %c0_82 = arith.constant 0 : index
    %c0_83 = arith.constant 0 : index
    %233 = vector.load %arg20[%c0_81, %c0_82, %c0_83] : memref<1x8x128xf32, #tpu.memory_space<vmem>>, vector<1x8x128xf32>
    tpu.vector_store %arg20[%c0_81, %c0_82, %c0_83], %232 {strides = array<i32>} : memref<1x8x128xf32, #tpu.memory_space<vmem>>, vector<1x8x128xf32>,
    return
  }
  func.func @transform_0(%arg0: i32) -> (i32, i32, i32) {
    %c0_i32 = arith.constant 0 : i32
    %c0_i32_0 = arith.constant 0 : i32
    %c0_i32_1 = arith.constant 0 : i32
    return %arg0, %c0_i32, %c0_i32_0 : i32, i32, i32
  }
  func.func @transform_1(%arg0: i32) -> (i32, i32, i32) {
    %c0_i32 = arith.constant 0 : i32
    %c0_i32_0 = arith.constant 0 : i32
    %c0_i32_1 = arith.constant 0 : i32
    return %arg0, %c0_i32, %c0_i32_0 : i32, i32, i32
  }
  func.func @transform_2(%arg0: i32) -> (i32, i32, i32) {
    %c0_i32 = arith.constant 0 : i32
    %c0_i32_0 = arith.constant 0 : i32
    %c0_i32_1 = arith.constant 0 : i32
    return %arg0, %c0_i32, %c0_i32_0 : i32, i32, i32
  }
  func.func @transform_3(%arg0: i32) -> (i32, i32, i32) {
    %c0_i32 = arith.constant 0 : i32
    %c0_i32_0 = arith.constant 0 : i32
    %c0_i32_1 = arith.constant 0 : i32
    return %arg0, %c0_i32, %c0_i32_0 : i32, i32, i32
  }
  func.func @transform_4(%arg0: i32) -> (i32, i32) {
    %c0_i32 = arith.constant 0 : i32
    %c0_i32_0 = arith.constant 0 : i32
    %c0_i32_1 = arith.constant 0 : i32
    return %c0_i32, %c0_i32_0 : i32, i32
  }
  func.func @transform_5(%arg0: i32) -> (i32, i32) {
    %c0_i32 = arith.constant 0 : i32
    %c0_i32_0 = arith.constant 0 : i32
    %c0_i32_1 = arith.constant 0 : i32
    return %c0_i32, %c0_i32_0 : i32, i32
  }
  func.func @transform_6(%arg0: i32) -> (i32, i32) {
    %c0_i32 = arith.constant 0 : i32
    %c0_i32_0 = arith.constant 0 : i32
    %c0_i32_1 = arith.constant 0 : i32
    return %c0_i32, %c0_i32_0 : i32, i32
  }
  func.func @transform_7(%arg0: i32) -> (i32, i32) {
    %c0_i32 = arith.constant 0 : i32
    %c0_i32_0 = arith.constant 0 : i32
    %c0_i32_1 = arith.constant 0 : i32
    return %c0_i32, %c0_i32_0 : i32, i32
  }
  func.func @transform_8(%arg0: i32) -> (i32, i32) {
    %c0_i32 = arith.constant 0 : i32
    %c0_i32_0 = arith.constant 0 : i32
    %c0_i32_1 = arith.constant 0 : i32
    return %c0_i32, %c0_i32_0 : i32, i32
  }
  func.func @transform_9(%arg0: i32) -> (i32, i32) {
    %c0_i32 = arith.constant 0 : i32
    %c0_i32_0 = arith.constant 0 : i32
    %c0_i32_1 = arith.constant 0 : i32
    return %c0_i32, %c0_i32_0 : i32, i32
  }
  func.func @transform_10(%arg0: i32) -> (i32, i32) {
    %c0_i32 = arith.constant 0 : i32
    %c0_i32_0 = arith.constant 0 : i32
    %c0_i32_1 = arith.constant 0 : i32
    return %c0_i32, %c0_i32_0 : i32, i32
  }
  func.func @transform_11(%arg0: i32) -> (i32, i32) {
    %c0_i32 = arith.constant 0 : i32
    %c0_i32_0 = arith.constant 0 : i32
    %c0_i32_1 = arith.constant 0 : i32
    return %c0_i32, %c0_i32_0 : i32, i32
  }
  func.func @transform_12(%arg0: i32) -> (i32, i32) {
    %c0_i32 = arith.constant 0 : i32
    %c0_i32_0 = arith.constant 0 : i32
    %c0_i32_1 = arith.constant 0 : i32
    return %c0_i32, %c0_i32_0 : i32, i32
  }
  func.func @transform_13(%arg0: i32) -> (i32, i32) {
    %c0_i32 = arith.constant 0 : i32
    %c0_i32_0 = arith.constant 0 : i32
    %c0_i32_1 = arith.constant 0 : i32
    return %c0_i32, %c0_i32_0 : i32, i32
  }
  func.func @transform_14(%arg0: i32) -> (i32, i32) {
    %c0_i32 = arith.constant 0 : i32
    %c0_i32_0 = arith.constant 0 : i32
    %c0_i32_1 = arith.constant 0 : i32
    return %c0_i32, %c0_i32_0 : i32, i32
  }
  func.func @transform_15(%arg0: i32) -> (i32, i32) {
    %c0_i32 = arith.constant 0 : i32
    %c0_i32_0 = arith.constant 0 : i32
    %c0_i32_1 = arith.constant 0 : i32
    return %c0_i32, %c0_i32_0 : i32, i32
  }
  func.func @transform_16(%arg0: i32) -> (i32, i32) {
    %c0_i32 = arith.constant 0 : i32
    %c0_i32_0 = arith.constant 0 : i32
    %c0_i32_1 = arith.constant 0 : i32
    return %c0_i32, %c0_i32_0 : i32, i32
  }
  func.func @transform_17(%arg0: i32) -> (i32, i32) {
    %c0_i32 = arith.constant 0 : i32
    %c0_i32_0 = arith.constant 0 : i32
    %c0_i32_1 = arith.constant 0 : i32
    return %c0_i32, %c0_i32_0 : i32, i32
  }
  func.func @transform_18(%arg0: i32) -> (i32, i32) {
    %c0_i32 = arith.constant 0 : i32
    %c0_i32_0 = arith.constant 0 : i32
    %c0_i32_1 = arith.constant 0 : i32
    return %c0_i32, %c0_i32_0 : i32, i32
  }
  func.func @transform_19(%arg0: i32) -> (i32, i32, i32) {
    %c0_i32 = arith.constant 0 : i32
    %c0_i32_0 = arith.constant 0 : i32
    %c0_i32_1 = arith.constant 0 : i32
    return %arg0, %c0_i32, %c0_i32_0 : i32, i32, i32
  }
}

</mosaic_0001>

<llo_original>
// kernel: tpu_custom_call.1
$region0: #{tpu_custom_call.1}
  #allocation0 [shape = 'u32[]', space=smem, size = 0x4, offset = 0x4, fixed_abs, tag = 'smem constant byte address 0x4 - core index']
  #allocation1 [shape = 'u32[72,128]{1,0:T(1,128)}', space=vmem, size = 0x9000, scoped, tag = 'internal scratch']
  %s0 = inlined_call_operand.hbm [shape: f32[2,8,128], index: 0, kind: input, shape index: {}]
  %s1 = inlined_call_operand.hbm [shape: f32[2,16,128], index: 1, kind: input, shape index: {}]
  %s2 = inlined_call_operand.hbm [shape: s8[2,8,8], index: 2, kind: input, shape index: {}]
  %s3 = inlined_call_operand.vmem [shape: s8[2,1,16], index: 3, kind: input, shape index: {}]
  %s4 = inlined_call_operand.hbm [shape: bf16[128,384], index: 4, kind: input, shape index: {}]
  %s5 = inlined_call_operand.vmem [shape: f32[1,384], index: 5, kind: input, shape index: {}]
  %s6 = inlined_call_operand.hbm [shape: bf16[128,128], index: 6, kind: input, shape index: {}]
  %s7 = inlined_call_operand.hbm [shape: f32[1,128], index: 7, kind: input, shape index: {}]
  %s8 = inlined_call_operand.hbm [shape: bf16[128,128], index: 8, kind: input, shape index: {}]
  %s9 = inlined_call_operand.hbm [shape: f32[1,128], index: 9, kind: input, shape index: {}]
  %s10 = inlined_call_operand.hbm [shape: bf16[128,256], index: 10, kind: input, shape index: {}]
  %s11 = inlined_call_operand.vmem [shape: f32[1,256], index: 11, kind: input, shape index: {}]
  %s12 = inlined_call_operand.hbm [shape: bf16[128,128], index: 12, kind: input, shape index: {}]
  %s13 = inlined_call_operand.hbm [shape: f32[1,128], index: 13, kind: input, shape index: {}]
  %s14 = inlined_call_operand.hbm [shape: bf16[128,256], index: 14, kind: input, shape index: {}]
  %s15 = inlined_call_operand.vmem [shape: f32[1,256], index: 15, kind: input, shape index: {}]
  %s16 = inlined_call_operand.hbm [shape: bf16[256,128], index: 16, kind: input, shape index: {}]
  %s17 = inlined_call_operand.vmem [shape: f32[1,128], index: 17, kind: input, shape index: {}]
  %s18 = inlined_call_operand.vmem [shape: f32[6,128], index: 18, kind: input, shape index: {}]
  %s19 = inlined_call_operand.hbm [shape: f32[2,8,128], index: 19, kind: output, shape index: {}]
  %s20 = sld [smem:[#allocation0]]
  $region161: #{tpu_custom_call.1} parent=0
    _
  %s22 = ssub.s32 1, %s20
  %s23 = scalar_select 0, %s22, %s20
  $region1: #{tpu_custom_call.1} parent=0
    #allocation2 [shape = 'u8[8192]{0}', space=vmem, size = 0x2000, scoped, tag = 'input window, operand 0']
    #allocation3 [shape = 's32[2]{0}', space=sflag, size = 0x8, scoped, tag = 'scoped memory for tpu_custom_call.1']
    #allocation4 [shape = 's32[2]{0}', space=sflag, size = 0x8, scoped, tag = 'scoped memory for tpu_custom_call.1']
    #allocation5 [shape = 'u8[16384]{0}', space=vmem, size = 0x4000, scoped, tag = 'input window, operand 1']
    #allocation6 [shape = 's32[2]{0}', space=sflag, size = 0x8, scoped, tag = 'scoped memory for tpu_custom_call.1']
    #allocation7 [shape = 'u8[2048]{0}', space=vmem, size = 0x800, scoped, tag = 'input window, operand 2']
    #allocation8 [shape = 'u8[98304]{0}', space=vmem, size = 0x18000, scoped, tag = 'input window, operand 4, single buffered']
    #allocation9 [shape = 's32[1]{0}', space=sflag, size = 0x4, scoped, tag = 'scoped memory for tpu_custom_call.1']
    #allocation10 [shape = 'u8[32768]{0}', space=vmem, size = 0x8000, scoped, tag = 'input window, operand 6, single buffered']
    #allocation11 [shape = 'u8[512]{0}', space=vmem, size = 0x400, scoped, tag = 'input window, operand 7, single buffered']
    #allocation12 [shape = 's32[1]{0}', space=sflag, size = 0x4, scoped, tag = 'scoped memory for tpu_custom_call.1']
    #allocation13 [shape = 'u8[32768]{0}', space=vmem, size = 0x8000, scoped, tag = 'input window, operand 8, single buffered']
    #allocation14 [shape = 'u8[512]{0}', space=vmem, size = 0x400, scoped, tag = 'input window, operand 9, single buffered']
    #allocation15 [shape = 's32[1]{0}', space=sflag, size = 0x4, scoped, tag = 'scoped memory for tpu_custom_call.1']
    #allocation16 [shape = 'u8[65536]{0}', space=vmem, size = 0x10000, scoped, tag = 'input window, operand 10, single buffered']
    #allocation17 [shape = 'u8[32768]{0}', space=vmem, size = 0x8000, scoped, tag = 'input window, operand 12, single buffered']
    #allocation18 [shape = 's32[1]{0}', space=sflag, size = 0x4, scoped, tag = 'scoped memory for tpu_custom_call.1']
    #allocation19 [shape = 'u8[512]{0}', space=vmem, size = 0x400, scoped, tag = 'input window, operand 13, single buffered']
    #allocation20 [shape = 'u8[65536]{0}', space=vmem, size = 0x10000, scoped, tag = 'input window, operand 14, single buffered']
    #allocation21 [shape = 's32[1]{0}', space=sflag, size = 0x4, scoped, tag = 'scoped memory for tpu_custom_call.1']
    #allocation22 [shape = 'u8[65536]{0}', space=vmem, size = 0x10000, scoped, tag = 'input window, operand 16, single buffered']
    #allocation23 [shape = 'u8[8192]{0}', space=vmem, size = 0x2000, scoped, tag = 'output window, operand 0']
    %24 = vsyncpa [#allocation3], 0
    %s25 = scalar_lea.sflag [#allocation3], 1
    %26 = vsyncpa %s25, 0
    %27 = vsyncpa [#allocation6], 0
    %s28 = scalar_lea.sflag [#allocation6], 1
    %29 = vsyncpa %s28, 0
    %30 = vsyncpa [#allocation9], 0
    %31 = vsyncpa [#allocation12], 0
    %32 = vsyncpa [#allocation15], 0
    %33 = vsyncpa [#allocation18], 0
    %34 = vsyncpa [#allocation21], 0
    %35 = vsyncpa [#allocation4], 0
    %s36 = scalar_lea.sflag [#allocation4], 1
    %37 = vsyncpa %s36, 0
    loop: start=0, step=1, limit=4
    $region2: #{tpu_custom_call.1} parent=1 // loop_pre_header
      _
    $region3: #{tpu_custom_call.1} parent=1 // loop_header
      %s39 = sphi 0, %s43
      %p40 = scmp.ge.s32.totalorder %s39, 4
      %s49 = sphi 0, %s51
      %s52 = sphi 0, %s49
      %s53 = sphi 0, %s52
      %s69 = sphi 0, %s53
      %s75 = sphi 0, %s77
      %s78 = sphi 0, %s75
      %s79 = sphi 0, %s78
      %s95 = sphi 0, %s79
      %s101 = sphi 0, %s103
      %s104 = sphi 0, %s101
      %s105 = sphi 0, %s104
      %s121 = sphi 0, %s105
      %s127 = sphi 0, %s129
      %s130 = sphi 0, %s127
      %s131 = sphi 0, %s130
      %s147 = sphi 0, %s131
      %s151 = sphi 0, %s151
      %s153 = sphi 0, %s151
      %s154 = sphi 0, %s153
      %s168 = sphi 0, %s154
      %s172 = sphi 0, %s172
      %s174 = sphi 0, %s172
      %s175 = sphi 0, %s174
      %s189 = sphi 0, %s175
      %s193 = sphi 0, %s193
      %s195 = sphi 0, %s193
      %s196 = sphi 0, %s195
      %s210 = sphi 0, %s196
      %s214 = sphi 0, %s214
      %s216 = sphi 0, %s214
      %s217 = sphi 0, %s216
      %s231 = sphi 0, %s217
      %s235 = sphi 0, %s235
      %s237 = sphi 0, %s235
      %s238 = sphi 0, %s237
      %s252 = sphi 0, %s238
      %s256 = sphi 0, %s256
      %s258 = sphi 0, %s256
      %s259 = sphi 0, %s258
      %s273 = sphi 0, %s259
      %s277 = sphi 0, %s277
      %s279 = sphi 0, %s277
      %s280 = sphi 0, %s279
      %s294 = sphi 0, %s280
      %s298 = sphi 0, %s298
      %s300 = sphi 0, %s298
      %s301 = sphi 0, %s300
      %s315 = sphi 0, %s301
      %s319 = sphi 0, %s319
      %s321 = sphi 0, %s319
      %s322 = sphi 0, %s321
      %s336 = sphi 0, %s322
      %s340 = sphi 0, %s340
      %s342 = sphi 0, %s340
      %s343 = sphi 0, %s342
      %s357 = sphi 0, %s343
      %s361 = sphi 0, %s361
      %s363 = sphi 0, %s361
      %s364 = sphi 0, %s363
      %s378 = sphi 0, %s364
      %s382 = sphi 0, %s382
      %s384 = sphi 0, %s382
      %s385 = sphi 0, %s384
      %s399 = sphi 0, %s385
      %s403 = sphi 0, %s403
      %s405 = sphi 0, %s403
      %s406 = sphi 0, %s405
      %s420 = sphi 0, %s406
      %s424 = sphi 0, %s424
      %s426 = sphi 0, %s424
      %s427 = sphi 0, %s426
      %s441 = sphi 0, %s427
      %s445 = sphi 0, %s445
      %s447 = sphi 0, %s445
      %s448 = sphi 0, %s447
      %s462 = sphi 0, %s448
      %s468 = sphi 0, %s470
      %s471 = sphi 0, %s468
      %s472 = sphi 0, %s471
      %s488 = sphi 0, %s472
    $region4: #{tpu_custom_call.1} parent=1 // loop_header_branch
      %42 = sbr.rel (%p40) target = $region8
    $region5: #{tpu_custom_call.1} parent=1 // loop_body
      %s44 = ssub.s32 %s39, 1
      %s45 = ssub.s32 %s39, 2
      %s46 = sadd.s32 %s39, 1
      %s47 = ssub.s32 %s39, %s46
      %p48 = scmp.eq.s32.totalorder %s47, 0
      %s50 = sadd.s32 %s49, 1
      %s51 = scalar_select %p48, %s49, %s50
      %p54 = pneg %p48
      %p55 = scmp.eq.s32.totalorder %s39, 1
      %p56 = por %p54, %p55
      %p57 = scmp.ne.s32.totalorder %s49, %s52
      %p58 = scmp.eq.s32.totalorder %s39, 0
      %p59 = por %p57, %p58
      %p60 = scmp.ne.s32.totalorder %s49, %s52
      %p61 = scmp.eq.s32.totalorder %s44, 1
      %p62 = por %p60, %p61
      %p63 = scmp.ne.s32.totalorder %s52, %s53
      %p64 = scmp.eq.s32.totalorder %s44, 0
      %p65 = por %p63, %p64
      %p66 = scmp.ne.s32.totalorder %s52, %s53
      %p67 = scmp.eq.s32.totalorder %s45, 1
      %p68 = por %p66, %p67
      %p70 = scmp.ne.s32.totalorder %s53, %s69
      %p71 = scmp.eq.s32.totalorder %s45, 0
      %p72 = por %p70, %p71
      %s73 = ssub.s32 %s39, %s46
      %p74 = scmp.eq.s32.totalorder %s73, 0
      %s76 = sadd.s32 %s75, 1
      %s77 = scalar_select %p74, %s75, %s76
      %p80 = pneg %p74
      %p81 = scmp.eq.s32.totalorder %s39, 1
      %p82 = por %p80, %p81
      %p83 = scmp.ne.s32.totalorder %s75, %s78
      %p84 = scmp.eq.s32.totalorder %s39, 0
      %p85 = por %p83, %p84
      %p86 = scmp.ne.s32.totalorder %s75, %s78
      %p87 = scmp.eq.s32.totalorder %s44, 1
      %p88 = por %p86, %p87
      %p89 = scmp.ne.s32.totalorder %s78, %s79
      %p90 = scmp.eq.s32.totalorder %s44, 0
      %p91 = por %p89, %p90
      %p92 = scmp.ne.s32.totalorder %s78, %s79
      %p93 = scmp.eq.s32.totalorder %s45, 1
      %p94 = por %p92, %p93
      %p96 = scmp.ne.s32.totalorder %s79, %s95
      %p97 = scmp.eq.s32.totalorder %s45, 0
      %p98 = por %p96, %p97
      %s99 = ssub.s32 %s39, %s46
      %p100 = scmp.eq.s32.totalorder %s99, 0
      %s102 = sadd.s32 %s101, 1
      %s103 = scalar_select %p100, %s101, %s102
      %p106 = pneg %p100
      %p107 = scmp.eq.s32.totalorder %s39, 1
      %p108 = por %p106, %p107
      %p109 = scmp.ne.s32.totalorder %s101, %s104
      %p110 = scmp.eq.s32.totalorder %s39, 0
      %p111 = por %p109, %p110
      %p112 = scmp.ne.s32.totalorder %s101, %s104
      %p113 = scmp.eq.s32.totalorder %s44, 1
      %p114 = por %p112, %p113
      %p115 = scmp.ne.s32.totalorder %s104, %s105
      %p116 = scmp.eq.s32.totalorder %s44, 0
      %p117 = por %p115, %p116
      %p118 = scmp.ne.s32.totalorder %s104, %s105
      %p119 = scmp.eq.s32.totalorder %s45, 1
      %p120 = por %p118, %p119
      %p122 = scmp.ne.s32.totalorder %s105, %s121
      %p123 = scmp.eq.s32.totalorder %s45, 0
      %p124 = por %p122, %p123
      %s125 = ssub.s32 %s39, %s46
      %p126 = scmp.eq.s32.totalorder %s125, 0
      %s128 = sadd.s32 %s127, 1
      %s129 = scalar_select %p126, %s127, %s128
      %p132 = pneg %p126
      %p133 = scmp.eq.s32.totalorder %s39, 1
      %p134 = por %p132, %p133
      %p135 = scmp.ne.s32.totalorder %s127, %s130
      %p136 = scmp.eq.s32.totalorder %s39, 0
      %p137 = por %p135, %p136
      %p138 = scmp.ne.s32.totalorder %s127, %s130
      %p139 = scmp.eq.s32.totalorder %s44, 1
      %p140 = por %p138, %p139
      %p141 = scmp.ne.s32.totalorder %s130, %s131
      %p142 = scmp.eq.s32.totalorder %s44, 0
      %p143 = por %p141, %p142
      %p144 = scmp.ne.s32.totalorder %s130, %s131
      %p145 = scmp.eq.s32.totalorder %s45, 1
      %p146 = por %p144, %p145
      %p148 = scmp.ne.s32.totalorder %s131, %s147
      %p149 = scmp.eq.s32.totalorder %s45, 0
      %p150 = por %p148, %p149
      %s152 = sadd.s32 %s151, 1
      %p155 = scmp.eq.s32.totalorder %s39, 1
      %p156 = scmp.ne.s32.totalorder %s151, %s153
      %p157 = scmp.eq.s32.totalorder %s39, 0
      %p158 = por %p156, %p157
      %p159 = scmp.ne.s32.totalorder %s151, %s153
      %p160 = scmp.eq.s32.totalorder %s44, 1
      %p161 = por %p159, %p160
      %p162 = scmp.ne.s32.totalorder %s153, %s154
      %p163 = scmp.eq.s32.totalorder %s44, 0
      %p164 = por %p162, %p163
      %p165 = scmp.ne.s32.totalorder %s153, %s154
      %p166 = scmp.eq.s32.totalorder %s45, 1
      %p167 = por %p165, %p166
      %p169 = scmp.ne.s32.totalorder %s154, %s168
      %p170 = scmp.eq.s32.totalorder %s45, 0
      %p171 = por %p169, %p170
      %s173 = sadd.s32 %s172, 1
      %p176 = scmp.eq.s32.totalorder %s39, 1
      %p177 = scmp.ne.s32.totalorder %s172, %s174
      %p178 = scmp.eq.s32.totalorder %s39, 0
      %p179 = por %p177, %p178
      %p180 = scmp.ne.s32.totalorder %s172, %s174
      %p181 = scmp.eq.s32.totalorder %s44, 1
      %p182 = por %p180, %p181
      %p183 = scmp.ne.s32.totalorder %s174, %s175
      %p184 = scmp.eq.s32.totalorder %s44, 0
      %p185 = por %p183, %p184
      %p186 = scmp.ne.s32.totalorder %s174, %s175
      %p187 = scmp.eq.s32.totalorder %s45, 1
      %p188 = por %p186, %p187
      %p190 = scmp.ne.s32.totalorder %s175, %s189
      %p191 = scmp.eq.s32.totalorder %s45, 0
      %p192 = por %p190, %p191
      %s194 = sadd.s32 %s193, 1
      %p197 = scmp.eq.s32.totalorder %s39, 1
      %p198 = scmp.ne.s32.totalorder %s193, %s195
      %p199 = scmp.eq.s32.totalorder %s39, 0
      %p200 = por %p198, %p199
      %p201 = scmp.ne.s32.totalorder %s193, %s195
      %p202 = scmp.eq.s32.totalorder %s44, 1
      %p203 = por %p201, %p202
      %p204 = scmp.ne.s32.totalorder %s195, %s196
      %p205 = scmp.eq.s32.totalorder %s44, 0
      %p206 = por %p204, %p205
      %p207 = scmp.ne.s32.totalorder %s195, %s196
      %p208 = scmp.eq.s32.totalorder %s45, 1
      %p209 = por %p207, %p208
      %p211 = scmp.ne.s32.totalorder %s196, %s210
      %p212 = scmp.eq.s32.totalorder %s45, 0
      %p213 = por %p211, %p212
      %s215 = sadd.s32 %s214, 1
      %p218 = scmp.eq.s32.totalorder %s39, 1
      %p219 = scmp.ne.s32.totalorder %s214, %s216
      %p220 = scmp.eq.s32.totalorder %s39, 0
      %p221 = por %p219, %p220
      %p222 = scmp.ne.s32.totalorder %s214, %s216
      %p223 = scmp.eq.s32.totalorder %s44, 1
      %p224 = por %p222, %p223
      %p225 = scmp.ne.s32.totalorder %s216, %s217
      %p226 = scmp.eq.s32.totalorder %s44, 0
      %p227 = por %p225, %p226
      %p228 = scmp.ne.s32.totalorder %s216, %s217
      %p229 = scmp.eq.s32.totalorder %s45, 1
      %p230 = por %p228, %p229
      %p232 = scmp.ne.s32.totalorder %s217, %s231
      %p233 = scmp.eq.s32.totalorder %s45, 0
      %p234 = por %p232, %p233
      %s236 = sadd.s32 %s235, 1
      %p239 = scmp.eq.s32.totalorder %s39, 1
      %p240 = scmp.ne.s32.totalorder %s235, %s237
      %p241 = scmp.eq.s32.totalorder %s39, 0
      %p242 = por %p240, %p241
      %p243 = scmp.ne.s32.totalorder %s235, %s237
      %p244 = scmp.eq.s32.totalorder %s44, 1
      %p245 = por %p243, %p244
      %p246 = scmp.ne.s32.totalorder %s237, %s238
      %p247 = scmp.eq.s32.totalorder %s44, 0
      %p248 = por %p246, %p247
      %p249 = scmp.ne.s32.totalorder %s237, %s238
      %p250 = scmp.eq.s32.totalorder %s45, 1
      %p251 = por %p249, %p250
      %p253 = scmp.ne.s32.totalorder %s238, %s252
      %p254 = scmp.eq.s32.totalorder %s45, 0
      %p255 = por %p253, %p254
      %s257 = sadd.s32 %s256, 1
      %p260 = scmp.eq.s32.totalorder %s39, 1
      %p261 = scmp.ne.s32.totalorder %s256, %s258
      %p262 = scmp.eq.s32.totalorder %s39, 0
      %p263 = por %p261, %p262
      %p264 = scmp.ne.s32.totalorder %s256, %s258
      %p265 = scmp.eq.s32.totalorder %s44, 1
      %p266 = por %p264, %p265
      %p267 = scmp.ne.s32.totalorder %s258, %s259
      %p268 = scmp.eq.s32.totalorder %s44, 0
      %p269 = por %p267, %p268
      %p270 = scmp.ne.s32.totalorder %s258, %s259
      %p271 = scmp.eq.s32.totalorder %s45, 1
      %p272 = por %p270, %p271
      %p274 = scmp.ne.s32.totalorder %s259, %s273
      %p275 = scmp.eq.s32.totalorder %s45, 0
      %p276 = por %p274, %p275
      %s278 = sadd.s32 %s277, 1
      %p281 = scmp.eq.s32.totalorder %s39, 1
      %p282 = scmp.ne.s32.totalorder %s277, %s279
      %p283 = scmp.eq.s32.totalorder %s39, 0
      %p284 = por %p282, %p283
      %p285 = scmp.ne.s32.totalorder %s277, %s279
      %p286 = scmp.eq.s32.totalorder %s44, 1
      %p287 = por %p285, %p286
      %p288 = scmp.ne.s32.totalorder %s279, %s280
      %p289 = scmp.eq.s32.totalorder %s44, 0
      %p290 = por %p288, %p289
      %p291 = scmp.ne.s32.totalorder %s279, %s280
      %p292 = scmp.eq.s32.totalorder %s45, 1
      %p293 = por %p291, %p292
      %p295 = scmp.ne.s32.totalorder %s280, %s294
      %p296 = scmp.eq.s32.totalorder %s45, 0
      %p297 = por %p295, %p296
      %s299 = sadd.s32 %s298, 1
      %p302 = scmp.eq.s32.totalorder %s39, 1
      %p303 = scmp.ne.s32.totalorder %s298, %s300
      %p304 = scmp.eq.s32.totalorder %s39, 0
      %p305 = por %p303, %p304
      %p306 = scmp.ne.s32.totalorder %s298, %s300
      %p307 = scmp.eq.s32.totalorder %s44, 1
      %p308 = por %p306, %p307
      %p309 = scmp.ne.s32.totalorder %s300, %s301
      %p310 = scmp.eq.s32.totalorder %s44, 0
      %p311 = por %p309, %p310
      %p312 = scmp.ne.s32.totalorder %s300, %s301
      %p313 = scmp.eq.s32.totalorder %s45, 1
      %p314 = por %p312, %p313
      %p316 = scmp.ne.s32.totalorder %s301, %s315
      %p317 = scmp.eq.s32.totalorder %s45, 0
      %p318 = por %p316, %p317
      %s320 = sadd.s32 %s319, 1
      %p323 = scmp.eq.s32.totalorder %s39, 1
      %p324 = scmp.ne.s32.totalorder %s319, %s321
      %p325 = scmp.eq.s32.totalorder %s39, 0
      %p326 = por %p324, %p325
      %p327 = scmp.ne.s32.totalorder %s319, %s321
      %p328 = scmp.eq.s32.totalorder %s44, 1
      %p329 = por %p327, %p328
      %p330 = scmp.ne.s32.totalorder %s321, %s322
      %p331 = scmp.eq.s32.totalorder %s44, 0
      %p332 = por %p330, %p331
      %p333 = scmp.ne.s32.totalorder %s321, %s322
      %p334 = scmp.eq.s32.totalorder %s45, 1
      %p335 = por %p333, %p334
      %p337 = scmp.ne.s32.totalorder %s322, %s336
      %p338 = scmp.eq.s32.totalorder %s45, 0
      %p339 = por %p337, %p338
      %s341 = sadd.s32 %s340, 1
      %p344 = scmp.eq.s32.totalorder %s39, 1
      %p345 = scmp.ne.s32.totalorder %s340, %s342
      %p346 = scmp.eq.s32.totalorder %s39, 0
      %p347 = por %p345, %p346
      %p348 = scmp.ne.s32.totalorder %s340, %s342
      %p349 = scmp.eq.s32.totalorder %s44, 1
      %p350 = por %p348, %p349
      %p351 = scmp.ne.s32.totalorder %s342, %s343
      %p352 = scmp.eq.s32.totalorder %s44, 0
      %p353 = por %p351, %p352
      %p354 = scmp.ne.s32.totalorder %s342, %s343
      %p355 = scmp.eq.s32.totalorder %s45, 1
      %p356 = por %p354, %p355
      %p358 = scmp.ne.s32.totalorder %s343, %s357
      %p359 = scmp.eq.s32.totalorder %s45, 0
      %p360 = por %p358, %p359
      %s362 = sadd.s32 %s361, 1
      %p365 = scmp.eq.s32.totalorder %s39, 1
      %p366 = scmp.ne.s32.totalorder %s361, %s363
      %p367 = scmp.eq.s32.totalorder %s39, 0
      %p368 = por %p366, %p367
      %p369 = scmp.ne.s32.totalorder %s361, %s363
      %p370 = scmp.eq.s32.totalorder %s44, 1
      %p371 = por %p369, %p370
      %p372 = scmp.ne.s32.totalorder %s363, %s364
      %p373 = scmp.eq.s32.totalorder %s44, 0
      %p374 = por %p372, %p373
      %p375 = scmp.ne.s32.totalorder %s363, %s364
      %p376 = scmp.eq.s32.totalorder %s45, 1
      %p377 = por %p375, %p376
      %p379 = scmp.ne.s32.totalorder %s364, %s378
      %p380 = scmp.eq.s32.totalorder %s45, 0
      %p381 = por %p379, %p380
      %s383 = sadd.s32 %s382, 1
      %p386 = scmp.eq.s32.totalorder %s39, 1
      %p387 = scmp.ne.s32.totalorder %s382, %s384
      %p388 = scmp.eq.s32.totalorder %s39, 0
      %p389 = por %p387, %p388
      %p390 = scmp.ne.s32.totalorder %s382, %s384
      %p391 = scmp.eq.s32.totalorder %s44, 1
      %p392 = por %p390, %p391
      %p393 = scmp.ne.s32.totalorder %s384, %s385
      %p394 = scmp.eq.s32.totalorder %s44, 0
      %p395 = por %p393, %p394
      %p396 = scmp.ne.s32.totalorder %s384, %s385
      %p397 = scmp.eq.s32.totalorder %s45, 1
      %p398 = por %p396, %p397
      %p400 = scmp.ne.s32.totalorder %s385, %s399
      %p401 = scmp.eq.s32.totalorder %s45, 0
      %p402 = por %p400, %p401
      %s404 = sadd.s32 %s403, 1
      %p407 = scmp.eq.s32.totalorder %s39, 1
      %p408 = scmp.ne.s32.totalorder %s403, %s405
      %p409 = scmp.eq.s32.totalorder %s39, 0
      %p410 = por %p408, %p409
      %p411 = scmp.ne.s32.totalorder %s403, %s405
      %p412 = scmp.eq.s32.totalorder %s44, 1
      %p413 = por %p411, %p412
      %p414 = scmp.ne.s32.totalorder %s405, %s406
      %p415 = scmp.eq.s32.totalorder %s44, 0
      %p416 = por %p414, %p415
      %p417 = scmp.ne.s32.totalorder %s405, %s406
      %p418 = scmp.eq.s32.totalorder %s45, 1
      %p419 = por %p417, %p418
      %p421 = scmp.ne.s32.totalorder %s406, %s420
      %p422 = scmp.eq.s32.totalorder %s45, 0
      %p423 = por %p421, %p422
      %s425 = sadd.s32 %s424, 1
      %p428 = scmp.eq.s32.totalorder %s39, 1
      %p429 = scmp.ne.s32.totalorder %s424, %s426
      %p430 = scmp.eq.s32.totalorder %s39, 0
      %p431 = por %p429, %p430
      %p432 = scmp.ne.s32.totalorder %s424, %s426
      %p433 = scmp.eq.s32.totalorder %s44, 1
      %p434 = por %p432, %p433
      %p435 = scmp.ne.s32.totalorder %s426, %s427
      %p436 = scmp.eq.s32.totalorder %s44, 0
      %p437 = por %p435, %p436
      %p438 = scmp.ne.s32.totalorder %s426, %s427
      %p439 = scmp.eq.s32.totalorder %s45, 1
      %p440 = por %p438, %p439
      %p442 = scmp.ne.s32.totalorder %s427, %s441
      %p443 = scmp.eq.s32.totalorder %s45, 0
      %p444 = por %p442, %p443
      %s446 = sadd.s32 %s445, 1
      %p449 = scmp.eq.s32.totalorder %s39, 1
      %p450 = scmp.ne.s32.totalorder %s445, %s447
      %p451 = scmp.eq.s32.totalorder %s39, 0
      %p452 = por %p450, %p451
      %p453 = scmp.ne.s32.totalorder %s445, %s447
      %p454 = scmp.eq.s32.totalorder %s44, 1
      %p455 = por %p453, %p454
      %p456 = scmp.ne.s32.totalorder %s447, %s448
      %p457 = scmp.eq.s32.totalorder %s44, 0
      %p458 = por %p456, %p457
      %p459 = scmp.ne.s32.totalorder %s447, %s448
      %p460 = scmp.eq.s32.totalorder %s45, 1
      %p461 = por %p459, %p460
      %p463 = scmp.ne.s32.totalorder %s448, %s462
      %p464 = scmp.eq.s32.totalorder %s45, 0
      %p465 = por %p463, %p464
      %s466 = ssub.s32 %s39, %s46
      %p467 = scmp.eq.s32.totalorder %s466, 0
      %s469 = sadd.s32 %s468, 1
      %s470 = scalar_select %p467, %s468, %s469
      %p473 = pneg %p467
      %p474 = scmp.eq.s32.totalorder %s39, 1
      %p475 = por %p473, %p474
      %p476 = scmp.ne.s32.totalorder %s468, %s471
      %p477 = scmp.eq.s32.totalorder %s39, 0
      %p478 = por %p476, %p477
      %p479 = scmp.ne.s32.totalorder %s468, %s471
      %p480 = scmp.eq.s32.totalorder %s44, 1
      %p481 = por %p479, %p480
      %p482 = scmp.ne.s32.totalorder %s471, %s472
      %p483 = scmp.eq.s32.totalorder %s44, 0
      %p484 = por %p482, %p483
      %p485 = scmp.ne.s32.totalorder %s471, %s472
      %p486 = scmp.eq.s32.totalorder %s45, 1
      %p487 = por %p485, %p486
      %p489 = scmp.ne.s32.totalorder %s472, %s488
      %p490 = scmp.eq.s32.totalorder %s45, 0
      %p491 = por %p489, %p490
      %p492 = scmp.le.s32.totalorder 1, %s39
      %p493 = scmp.lt.s32.totalorder %s39, 3
      %p494 = pnand %p492, %p493
      %p495 = pneg %p494
      // Predicated region
      $region9: #{tpu_custom_call.1} parent=5 // pred_check
        _
      $region10: #{tpu_custom_call.1} parent=5 // pred_check_branch
        %497 = sbr.rel (%p494) target = $region12
      $region11: #{tpu_custom_call.1} parent=5 // pred_region
        %s498 = ssub.s32 %s39, 1
        // Predicated region
        $region13: #{tpu_custom_call.1} parent=11 // pred_check
          %p499 = pneg %p164
        $region14: #{tpu_custom_call.1} parent=11 // pred_check_branch
          %501 = sbr.rel (%p499) target = $region16
        $region15: #{tpu_custom_call.1} parent=11 // pred_region
          %503 = vsyncadd [#allocation9], 0
          %s504 = sshll.u32 %s4, 4
          %s505 = int_to_ptr.hbm [resolvable:$true] %s504
          %s506 = sshll.u32 [#allocation8], 4
          %s507 = int_to_ptr.vmem [resolvable:$true] %s506
          %512 = dma.hbm_to_vmem [thread:$0]  %s505, 3072, %s507, [#allocation9], 192, 192, 12
        $region16: #{tpu_custom_call.1} parent=11 // pred_fallthru
          _
        // Predicated region
        $region17: #{tpu_custom_call.1} parent=11 // pred_check
          %p513 = pneg %p185
        $region18: #{tpu_custom_call.1} parent=11 // pred_check_branch
          %515 = sbr.rel (%p513) target = $region20
        $region19: #{tpu_custom_call.1} parent=11 // pred_region
          _
        $region20: #{tpu_custom_call.1} parent=11 // pred_fallthru
          _
        // Predicated region
        $region21: #{tpu_custom_call.1} parent=11 // pred_check
          %p516 = pneg %p206
        $region22: #{tpu_custom_call.1} parent=11 // pred_check_branch
          %518 = sbr.rel (%p516) target = $region24
        $region23: #{tpu_custom_call.1} parent=11 // pred_region
          %520 = vsyncadd [#allocation9], 0
          %s521 = sshll.u32 %s6, 4
          %s522 = int_to_ptr.hbm [resolvable:$true] %s521
          %s523 = sshll.u32 [#allocation10], 4
          %s524 = int_to_ptr.vmem [resolvable:$true] %s523
          %529 = dma.hbm_to_vmem [thread:$0]  %s522, 1024, %s524, [#allocation9], 64, 64, 4
        $region24: #{tpu_custom_call.1} parent=11 // pred_fallthru
          _
        // Predicated region
        $region25: #{tpu_custom_call.1} parent=11 // pred_check
          %p530 = pneg %p227
        $region26: #{tpu_custom_call.1} parent=11 // pred_check_branch
          %532 = sbr.rel (%p530) target = $region28
        $region27: #{tpu_custom_call.1} parent=11 // pred_region
          %534 = vsyncadd [#allocation12], 0
          %s536 = sshll.u32 %s7, 4
          %s537 = int_to_ptr.hbm [resolvable:$true] %s536
          %s538 = sshll.u32 [#allocation11], 4
          %s539 = int_to_ptr.vmem [resolvable:$true] %s538
          %541 = dma.hbm_to_vmem [thread:$0]  %s537, 16, %s539, [#allocation12]
        $region28: #{tpu_custom_call.1} parent=11 // pred_fallthru
          _
        // Predicated region
        $region29: #{tpu_custom_call.1} parent=11 // pred_check
          %p542 = pneg %p248
        $region30: #{tpu_custom_call.1} parent=11 // pred_check_branch
          %544 = sbr.rel (%p542) target = $region32
        $region31: #{tpu_custom_call.1} parent=11 // pred_region
          %546 = vsyncadd [#allocation12], 0
          %s547 = sshll.u32 %s8, 4
          %s548 = int_to_ptr.hbm [resolvable:$true] %s547
          %s549 = sshll.u32 [#allocation13], 4
          %s550 = int_to_ptr.vmem [resolvable:$true] %s549
          %555 = dma.hbm_to_vmem [thread:$0]  %s548, 1024, %s550, [#allocation12], 64, 64, 4
        $region32: #{tpu_custom_call.1} parent=11 // pred_fallthru
          _
        // Predicated region
        $region33: #{tpu_custom_call.1} parent=11 // pred_check
          %p556 = pneg %p269
        $region34: #{tpu_custom_call.1} parent=11 // pred_check_branch
          %558 = sbr.rel (%p556) target = $region36
        $region35: #{tpu_custom_call.1} parent=11 // pred_region
          %560 = vsyncadd [#allocation15], 0
          %s562 = sshll.u32 %s9, 4
          %s563 = int_to_ptr.hbm [resolvable:$true] %s562
          %s564 = sshll.u32 [#allocation14], 4
          %s565 = int_to_ptr.vmem [resolvable:$true] %s564
          %567 = dma.hbm_to_vmem [thread:$0]  %s563, 16, %s565, [#allocation15]
        $region36: #{tpu_custom_call.1} parent=11 // pred_fallthru
          _
        // Predicated region
        $region37: #{tpu_custom_call.1} parent=11 // pred_check
          %p568 = pneg %p290
        $region38: #{tpu_custom_call.1} parent=11 // pred_check_branch
          %570 = sbr.rel (%p568) target = $region40
        $region39: #{tpu_custom_call.1} parent=11 // pred_region
          %572 = vsyncadd [#allocation15], 0
          %s573 = sshll.u32 %s10, 4
          %s574 = int_to_ptr.hbm [resolvable:$true] %s573
          %s575 = sshll.u32 [#allocation16], 4
          %s576 = int_to_ptr.vmem [resolvable:$true] %s575
          %581 = dma.hbm_to_vmem [thread:$0]  %s574, 2048, %s576, [#allocation15], 128, 128, 8
        $region40: #{tpu_custom_call.1} parent=11 // pred_fallthru
          _
        // Predicated region
        $region41: #{tpu_custom_call.1} parent=11 // pred_check
          %p582 = pneg %p311
        $region42: #{tpu_custom_call.1} parent=11 // pred_check_branch
          %584 = sbr.rel (%p582) target = $region44
        $region43: #{tpu_custom_call.1} parent=11 // pred_region
          _
        $region44: #{tpu_custom_call.1} parent=11 // pred_fallthru
          _
        // Predicated region
        $region45: #{tpu_custom_call.1} parent=11 // pred_check
          %p585 = pneg %p332
        $region46: #{tpu_custom_call.1} parent=11 // pred_check_branch
          %587 = sbr.rel (%p585) target = $region48
        $region47: #{tpu_custom_call.1} parent=11 // pred_region
          %589 = vsyncadd [#allocation18], 0
          %s590 = sshll.u32 %s12, 4
          %s591 = int_to_ptr.hbm [resolvable:$true] %s590
          %s592 = sshll.u32 [#allocation17], 4
          %s593 = int_to_ptr.vmem [resolvable:$true] %s592
          %598 = dma.hbm_to_vmem [thread:$0]  %s591, 1024, %s593, [#allocation18], 64, 64, 4
        $region48: #{tpu_custom_call.1} parent=11 // pred_fallthru
          _
        // Predicated region
        $region49: #{tpu_custom_call.1} parent=11 // pred_check
          %p599 = pneg %p353
        $region50: #{tpu_custom_call.1} parent=11 // pred_check_branch
          %601 = sbr.rel (%p599) target = $region52
        $region51: #{tpu_custom_call.1} parent=11 // pred_region
          %603 = vsyncadd [#allocation18], 0
          %s605 = sshll.u32 %s13, 4
          %s606 = int_to_ptr.hbm [resolvable:$true] %s605
          %s607 = sshll.u32 [#allocation19], 4
          %s608 = int_to_ptr.vmem [resolvable:$true] %s607
          %610 = dma.hbm_to_vmem [thread:$0]  %s606, 16, %s608, [#allocation18]
        $region52: #{tpu_custom_call.1} parent=11 // pred_fallthru
          _
        // Predicated region
        $region53: #{tpu_custom_call.1} parent=11 // pred_check
          %p611 = pneg %p374
        $region54: #{tpu_custom_call.1} parent=11 // pred_check_branch
          %613 = sbr.rel (%p611) target = $region56
        $region55: #{tpu_custom_call.1} parent=11 // pred_region
          %615 = vsyncadd [#allocation21], 0
          %s616 = sshll.u32 %s14, 4
          %s617 = int_to_ptr.hbm [resolvable:$true] %s616
          %s618 = sshll.u32 [#allocation20], 4
          %s619 = int_to_ptr.vmem [resolvable:$true] %s618
          %624 = dma.hbm_to_vmem [thread:$0]  %s617, 2048, %s619, [#allocation21], 128, 128, 8
        $region56: #{tpu_custom_call.1} parent=11 // pred_fallthru
          _
        // Predicated region
        $region57: #{tpu_custom_call.1} parent=11 // pred_check
          %p625 = pneg %p395
        $region58: #{tpu_custom_call.1} parent=11 // pred_check_branch
          %627 = sbr.rel (%p625) target = $region60
        $region59: #{tpu_custom_call.1} parent=11 // pred_region
          _
        $region60: #{tpu_custom_call.1} parent=11 // pred_fallthru
          _
        // Predicated region
        $region61: #{tpu_custom_call.1} parent=11 // pred_check
          %p628 = pneg %p416
        $region62: #{tpu_custom_call.1} parent=11 // pred_check_branch
          %630 = sbr.rel (%p628) target = $region64
        $region63: #{tpu_custom_call.1} parent=11 // pred_region
          %632 = vsyncadd [#allocation21], 0
          %s633 = sshll.u32 %s16, 4
          %s634 = int_to_ptr.hbm [resolvable:$true] %s633
          %s635 = sshll.u32 [#allocation22], 4
          %s636 = int_to_ptr.vmem [resolvable:$true] %s635
          %641 = dma.hbm_to_vmem [thread:$0]  %s634, 2048, %s636, [#allocation21], 64, 64, 4
        $region64: #{tpu_custom_call.1} parent=11 // pred_fallthru
          _
        // Predicated region
        $region65: #{tpu_custom_call.1} parent=11 // pred_check
          %p642 = pneg %p437
        $region66: #{tpu_custom_call.1} parent=11 // pred_check_branch
          %644 = sbr.rel (%p642) target = $region68
        $region67: #{tpu_custom_call.1} parent=11 // pred_region
          _
        $region68: #{tpu_custom_call.1} parent=11 // pred_fallthru
          _
        // Predicated region
        $region69: #{tpu_custom_call.1} parent=11 // pred_check
          %p645 = pneg %p458
        $region70: #{tpu_custom_call.1} parent=11 // pred_check_branch
          %647 = sbr.rel (%p645) target = $region72
        $region71: #{tpu_custom_call.1} parent=11 // pred_region
          _
        $region72: #{tpu_custom_call.1} parent=11 // pred_fallthru
          _
      $region12: #{tpu_custom_call.1} parent=5 // pred_fallthru
        _
      %p648 = scmp.lt.s32.totalorder %s39, 2
      // Predicated region
      $region73: #{tpu_custom_call.1} parent=5 // pred_check
        %p649 = pneg %p648
      $region74: #{tpu_custom_call.1} parent=5 // pred_check_branch
        %651 = sbr.rel (%p649) target = $region76
      $region75: #{tpu_custom_call.1} parent=5 // pred_region
        // Predicated region
        $region77: #{tpu_custom_call.1} parent=75 // pred_check
          %p652 = pneg %p59
        $region78: #{tpu_custom_call.1} parent=75 // pred_check_branch
          %654 = sbr.rel (%p652) target = $region80
        $region79: #{tpu_custom_call.1} parent=75 // pred_region
          %s655 = sand.u32 %s49, 1
          %s656 = scalar_lea.sflag [#allocation3], %s655
          %s657 = sand.u32 %s49, 1
          %s658 = smul.addr %s657, 8
          %s659 = scalar_lea.vmem [#allocation2], %s658
          %661 = vsyncadd %s656, 0
          %s662 = smul.addr %s39, 8
          %s663 = scalar_lea.hbm %s0, %s662
          %s665 = sshll.u32 %s663, 4
          %s666 = int_to_ptr.hbm [resolvable:$true] %s665
          %s667 = sshll.u32 %s659, 4
          %s668 = int_to_ptr.vmem [resolvable:$true] %s667
          %670 = dma.hbm_to_vmem [thread:$0]  %s666, 128, %s668, %s656
        $region80: #{tpu_custom_call.1} parent=75 // pred_fallthru
          _
        // Predicated region
        $region81: #{tpu_custom_call.1} parent=75 // pred_check
          %p671 = pneg %p85
        $region82: #{tpu_custom_call.1} parent=75 // pred_check_branch
          %673 = sbr.rel (%p671) target = $region84
        $region83: #{tpu_custom_call.1} parent=75 // pred_region
          %s674 = sand.u32 %s39, 1
          %s675 = scalar_lea.sflag [#allocation6], %s674
          %s676 = sand.u32 %s75, 1
          %s677 = smul.addr %s676, 16
          %s678 = scalar_lea.vmem [#allocation5], %s677
          %680 = vsyncadd %s675, 0
          %s681 = smul.addr %s39, 2
          %s682 = smul.addr %s681, 8
          %s683 = scalar_lea.hbm %s1, %s682
          %s684 = sshll.u32 %s683, 4
          %s685 = int_to_ptr.hbm [resolvable:$true] %s684
          %s686 = sshll.u32 %s678, 4
          %s687 = int_to_ptr.vmem [resolvable:$true] %s686
          %692 = dma.hbm_to_vmem [thread:$0]  %s685, 256, %s687, %s675, 128, 128, 8
        $region84: #{tpu_custom_call.1} parent=75 // pred_fallthru
          _
        // Predicated region
        $region85: #{tpu_custom_call.1} parent=75 // pred_check
          %p693 = pneg %p111
        $region86: #{tpu_custom_call.1} parent=75 // pred_check_branch
          %695 = sbr.rel (%p693) target = $region88
        $region87: #{tpu_custom_call.1} parent=75 // pred_region
          %s696 = sand.u32 %s39, 1
          %s697 = scalar_lea.sflag [#allocation6], %s696
          %s698 = sand.u32 %s101, 1
          %s699 = smul.addr %s698, 2
          %s700 = scalar_lea.vmem [#allocation7], %s699
          %702 = vsyncadd %s697, 0
          %s703 = smul.addr %s39, 2
          %s704 = scalar_lea.hbm %s2, %s703
          %s706 = sshll.u32 %s704, 4
          %s707 = int_to_ptr.hbm [resolvable:$true] %s706
          %s708 = sshll.u32 %s700, 4
          %s709 = int_to_ptr.vmem [resolvable:$true] %s708
          %711 = dma.hbm_to_vmem [thread:$0]  %s707, 32, %s709, %s697
        $region88: #{tpu_custom_call.1} parent=75 // pred_fallthru
          _
        // Predicated region
        $region89: #{tpu_custom_call.1} parent=75 // pred_check
          %p712 = pneg %p137
        $region90: #{tpu_custom_call.1} parent=75 // pred_check_branch
          %714 = sbr.rel (%p712) target = $region92
        $region91: #{tpu_custom_call.1} parent=75 // pred_region
          %p715 = scmp.lt.s32.totalorder %s39, 1
          %s716 = scalar_select %p715, %s39, 1
          %s717 = scalar_lea.vmem %s3, %s716
        $region92: #{tpu_custom_call.1} parent=75 // pred_fallthru
          _
      $region76: #{tpu_custom_call.1} parent=5 // pred_fallthru
        _
      %p718 = scmp.le.s32.totalorder 1, %s39
      %p719 = scmp.lt.s32.totalorder %s39, 3
      %p720 = pnand %p718, %p719
      %p721 = pneg %p720
      // Predicated region
      $region93: #{tpu_custom_call.1} parent=5 // pred_check
        _
      $region94: #{tpu_custom_call.1} parent=5 // pred_check_branch
        %723 = sbr.rel (%p720) target = $region96
      $region95: #{tpu_custom_call.1} parent=5 // pred_region
        %s724 = ssub.s32 %s39, 1
        %s725 = sand.u32 %s52, 1
        %s726 = scalar_lea.sflag [#allocation3], %s725
        %s727 = sand.u32 %s52, 1
        %s728 = smul.addr %s727, 8
        %s729 = scalar_lea.vmem [#allocation2], %s728
        // Predicated region
        $region97: #{tpu_custom_call.1} parent=95 // pred_check
          %p730 = pneg %p65
        $region98: #{tpu_custom_call.1} parent=95 // pred_check_branch
          %732 = sbr.rel (%p730) target = $region100
        $region99: #{tpu_custom_call.1} parent=95 // pred_region
          %734 = dma.done %s726, 128
        $region100: #{tpu_custom_call.1} parent=95 // pred_fallthru
          _
        %s735 = sand.u32 %s44, 1
        %s736 = scalar_lea.sflag [#allocation6], %s735
        %s737 = sand.u32 %s78, 1
        %s738 = smul.addr %s737, 16
        %s739 = scalar_lea.vmem [#allocation5], %s738
        // Predicated region
        $region101: #{tpu_custom_call.1} parent=95 // pred_check
          %p740 = pneg %p91
        $region102: #{tpu_custom_call.1} parent=95 // pred_check_branch
          %742 = sbr.rel (%p740) target = $region104
        $region103: #{tpu_custom_call.1} parent=95 // pred_region
          %744 = dma.done %s736, 256
        $region104: #{tpu_custom_call.1} parent=95 // pred_fallthru
          _
        %s745 = sand.u32 %s44, 1
        %s746 = scalar_lea.sflag [#allocation6], %s745
        %s747 = sand.u32 %s104, 1
        %s748 = smul.addr %s747, 2
        %s749 = scalar_lea.vmem [#allocation7], %s748
        // Predicated region
        $region105: #{tpu_custom_call.1} parent=95 // pred_check
          %p750 = pneg %p117
        $region106: #{tpu_custom_call.1} parent=95 // pred_check_branch
          %752 = sbr.rel (%p750) target = $region108
        $region107: #{tpu_custom_call.1} parent=95 // pred_region
          %754 = dma.done %s746, 32
        $region108: #{tpu_custom_call.1} parent=95 // pred_fallthru
          _
        // Predicated region
        $region109: #{tpu_custom_call.1} parent=95 // pred_check
          %p755 = pneg %p164
        $region110: #{tpu_custom_call.1} parent=95 // pred_check_branch
          %757 = sbr.rel (%p755) target = $region112
        $region111: #{tpu_custom_call.1} parent=95 // pred_region
          %759 = dma.done [#allocation9], 3072
        $region112: #{tpu_custom_call.1} parent=95 // pred_fallthru
          _
        // Predicated region
        $region113: #{tpu_custom_call.1} parent=95 // pred_check
          %p760 = pneg %p206
        $region114: #{tpu_custom_call.1} parent=95 // pred_check_branch
          %762 = sbr.rel (%p760) target = $region116
        $region115: #{tpu_custom_call.1} parent=95 // pred_region
          %764 = dma.done [#allocation9], 1024
        $region116: #{tpu_custom_call.1} parent=95 // pred_fallthru
          _
        // Predicated region
        $region117: #{tpu_custom_call.1} parent=95 // pred_check
          %p765 = pneg %p227
        $region118: #{tpu_custom_call.1} parent=95 // pred_check_branch
          %767 = sbr.rel (%p765) target = $region120
        $region119: #{tpu_custom_call.1} parent=95 // pred_region
          %769 = dma.done [#allocation12], 16
        $region120: #{tpu_custom_call.1} parent=95 // pred_fallthru
          _
        // Predicated region
        $region121: #{tpu_custom_call.1} parent=95 // pred_check
          %p770 = pneg %p248
        $region122: #{tpu_custom_call.1} parent=95 // pred_check_branch
          %772 = sbr.rel (%p770) target = $region124
        $region123: #{tpu_custom_call.1} parent=95 // pred_region
          %774 = dma.done [#allocation12], 1024
        $region124: #{tpu_custom_call.1} parent=95 // pred_fallthru
          _
        // Predicated region
        $region125: #{tpu_custom_call.1} parent=95 // pred_check
          %p775 = pneg %p269
        $region126: #{tpu_custom_call.1} parent=95 // pred_check_branch
          %777 = sbr.rel (%p775) target = $region128
        $region127: #{tpu_custom_call.1} parent=95 // pred_region
          %779 = dma.done [#allocation15], 16
        $region128: #{tpu_custom_call.1} parent=95 // pred_fallthru
          _
        // Predicated region
        $region129: #{tpu_custom_call.1} parent=95 // pred_check
          %p780 = pneg %p290
        $region130: #{tpu_custom_call.1} parent=95 // pred_check_branch
          %782 = sbr.rel (%p780) target = $region132
        $region131: #{tpu_custom_call.1} parent=95 // pred_region
          %784 = dma.done [#allocation15], 2048
        $region132: #{tpu_custom_call.1} parent=95 // pred_fallthru
          _
        // Predicated region
        $region133: #{tpu_custom_call.1} parent=95 // pred_check
          %p785 = pneg %p332
        $region134: #{tpu_custom_call.1} parent=95 // pred_check_branch
          %787 = sbr.rel (%p785) target = $region136
        $region135: #{tpu_custom_call.1} parent=95 // pred_region
          %789 = dma.done [#allocation18], 1024
        $region136: #{tpu_custom_call.1} parent=95 // pred_fallthru
          _
        // Predicated region
        $region137: #{tpu_custom_call.1} parent=95 // pred_check
          %p790 = pneg %p353
        $region138: #{tpu_custom_call.1} parent=95 // pred_check_branch
          %792 = sbr.rel (%p790) target = $region140
        $region139: #{tpu_custom_call.1} parent=95 // pred_region
          %794 = dma.done [#allocation18], 16
        $region140: #{tpu_custom_call.1} parent=95 // pred_fallthru
          _
        // Predicated region
        $region141: #{tpu_custom_call.1} parent=95 // pred_check
          %p795 = pneg %p374
        $region142: #{tpu_custom_call.1} parent=95 // pred_check_branch
          %797 = sbr.rel (%p795) target = $region144
        $region143: #{tpu_custom_call.1} parent=95 // pred_region
          %799 = dma.done [#allocation21], 2048
        $region144: #{tpu_custom_call.1} parent=95 // pred_fallthru
          _
        // Predicated region
        $region145: #{tpu_custom_call.1} parent=95 // pred_check
          %p800 = pneg %p416
        $region146: #{tpu_custom_call.1} parent=95 // pred_check_branch
          %802 = sbr.rel (%p800) target = $region148
        $region147: #{tpu_custom_call.1} parent=95 // pred_region
          %804 = dma.done [#allocation21], 2048
        $region148: #{tpu_custom_call.1} parent=95 // pred_fallthru
          _
        %s805 = sand.u32 %s52, 1
        %s806 = scalar_lea.sflag [#allocation3], %s805
        %s807 = sand.u32 %s52, 1
        %s808 = smul.addr %s807, 8
        %s809 = scalar_lea.vmem [#allocation2], %s808
        %p810 = pneg %p65
        %p811 = pneg %p62
        %s812 = sand.u32 %s44, 1
        %s813 = scalar_lea.sflag [#allocation6], %s812
        %s814 = sand.u32 %s78, 1
        %s815 = smul.addr %s814, 16
        %s816 = scalar_lea.vmem [#allocation5], %s815
        %p817 = pneg %p91
        %p818 = pneg %p88
        %s819 = sand.u32 %s44, 1
        %s820 = scalar_lea.sflag [#allocation6], %s819
        %s821 = sand.u32 %s104, 1
        %s822 = smul.addr %s821, 2
        %s823 = scalar_lea.vmem [#allocation7], %s822
        %p824 = pneg %p117
        %p825 = pneg %p114
        %p826 = scmp.lt.s32.totalorder %s44, 1
        %s827 = scalar_select %p826, %s44, 1
        %s828 = scalar_lea.vmem %s3, %s827
        %p829 = pneg %p143
        %p830 = pneg %p140
        %p831 = pneg %p164
        %p832 = pneg %p161
        %p833 = pneg %p185
        %p834 = pneg %p182
        %p835 = pneg %p206
        %p836 = pneg %p203
        %p837 = pneg %p227
        %p838 = pneg %p224
        %p839 = pneg %p248
        %p840 = pneg %p245
        %p841 = pneg %p269
        %p842 = pneg %p266
        %p843 = pneg %p290
        %p844 = pneg %p287
        %p845 = pneg %p311
        %p846 = pneg %p308
        %p847 = pneg %p332
        %p848 = pneg %p329
        %p849 = pneg %p353
        %p850 = pneg %p350
        %p851 = pneg %p374
        %p852 = pneg %p371
        %p853 = pneg %p395
        %p854 = pneg %p392
        %p855 = pneg %p416
        %p856 = pneg %p413
        %p857 = pneg %p437
        %p858 = pneg %p434
        %p859 = pneg %p458
        %p860 = pneg %p455
        %p861 = pneg %p484
        %p862 = pneg %p481
        %s863 = sand.u32 %s471, 1
        %s864 = scalar_lea.sflag [#allocation4], %s863
        %s865 = sand.u32 %s471, 1
        %s866 = smul.addr %s865, 8
        %s867 = scalar_lea.vmem [#allocation23], %s866
        %p868 = scmp.lt.s32.totalorder %s44, 1
        %s869 = scalar_select %p868, %s44, 1
        %s870 = scalar_lea.vmem %s3, %s869
        %v872 = vld [vmem:[%s729] sm:$0xff]
        %v873 = vld [vmem:[%s739] sm:$0xff]
        %v874 = vld [vmem:[%s739 + $0x8] sm:$0xff]
        %v875 = vld [vmem:[%s18] sm:$0x3f]
        %v876 = vld [vmem:[%s749] sm:$0x3]
        %v877 = vunpack.c.0.s8 %v876
        %v878 = vcvt.s32.f32 %v877
        %vm879 = vcmp.eq.f32.partialorder %v878, 0.0
        %v880 = vsel %vm879, -1e+09, 0.0
        %v881 = vld [vmem:[%s870] sm:$0x1]
        %v882 = vunpack.c.0.s8 %v881
        %v883 = vcvt.s32.f32 %v882
        %vm884 = vcmp.eq.f32.partialorder %v883, 0.0
        %v885 = vsel %vm884, -1e+09, 0.0
        %v886 = vpack.c.bf16 %v872, %v872
        %v887 = vld [vmem:[#allocation8] sm:$0xff]
        %v888 = vld [vmem:[#allocation8 + $0x8] sm:$0xf]
        %v889 = vld [vmem:[#allocation8 + $0xc] sm:$0xff]
        %v890 = vld [vmem:[#allocation8 + $0x14] sm:$0xf]
        %v891 = vld [vmem:[#allocation8 + $0x18] sm:$0xff]
        %v892 = vld [vmem:[#allocation8 + $0x20] sm:$0xf]
        %v893 = vld [vmem:[#allocation8 + $0x24] sm:$0xff]
        %v894 = vld [vmem:[#allocation8 + $0x2c] sm:$0xf]
        %v895 = vld [vmem:[#allocation8 + $0x30] sm:$0xff]
        %v896 = vld [vmem:[#allocation8 + $0x38] sm:$0xf]
        %v897 = vld [vmem:[#allocation8 + $0x3c] sm:$0xff]
        %v898 = vld [vmem:[#allocation8 + $0x44] sm:$0xf]
        %v899 = vld [vmem:[#allocation8 + $0x48] sm:$0xff]
        %v900 = vld [vmem:[#allocation8 + $0x50] sm:$0xf]
        %v901 = vld [vmem:[#allocation8 + $0x54] sm:$0xff]
        %v902 = vld [vmem:[#allocation8 + $0x5c] sm:$0xf]
        %v903 = vld [vmem:[#allocation8 + $0x60] sm:$0xff]
        %v904 = vld [vmem:[#allocation8 + $0x68] sm:$0xf]
        %v905 = vld [vmem:[#allocation8 + $0x6c] sm:$0xff]
        %v906 = vld [vmem:[#allocation8 + $0x74] sm:$0xf]
        %v907 = vld [vmem:[#allocation8 + $0x78] sm:$0xff]
        %v908 = vld [vmem:[#allocation8 + $0x80] sm:$0xf]
        %v909 = vld [vmem:[#allocation8 + $0x84] sm:$0xff]
        %v910 = vld [vmem:[#allocation8 + $0x8c] sm:$0xf]
        %v911 = vld [vmem:[#allocation8 + $0x90] sm:$0xff]
        %v912 = vld [vmem:[#allocation8 + $0x98] sm:$0xf]
        %v913 = vld [vmem:[#allocation8 + $0x9c] sm:$0xff]
        %v914 = vld [vmem:[#allocation8 + $0xa4] sm:$0xf]
        %v915 = vld [vmem:[#allocation8 + $0xa8] sm:$0xff]
        %v916 = vld [vmem:[#allocation8 + $0xb0] sm:$0xf]
        %v917 = vld [vmem:[#allocation8 + $0xb4] sm:$0xff]
        %v918 = vld [vmem:[#allocation8 + $0xbc] sm:$0xf]
        %v919 = vld [vmem:[%s5] sm:$0x7]
        %v921 = vperm.slane %v919, 0
        %v922 = vperm.slane %v919, 1
        %v923 = vperm.slane %v919, 2
        %v959 = vunpack.c.l.b16 %v887
        %v960 = vunpack.c.h.b16 %v887
        %v961 = vunpack.c.l.b16 %v888
        %v962 = vunpack.c.l.b16 %v889
        %v963 = vunpack.c.h.b16 %v889
        %v964 = vunpack.c.l.b16 %v890
        %v965 = vunpack.c.l.b16 %v891
        %v966 = vunpack.c.h.b16 %v891
        %v967 = vunpack.c.l.b16 %v892
        %v968 = vunpack.c.l.b16 %v893
        %v969 = vunpack.c.h.b16 %v893
        %v970 = vunpack.c.l.b16 %v894
        %v971 = vunpack.c.l.b16 %v895
        %v972 = vunpack.c.h.b16 %v895
        %v973 = vunpack.c.l.b16 %v896
        %v974 = vunpack.c.l.b16 %v897
        %v975 = vunpack.c.h.b16 %v897
        %v976 = vunpack.c.l.b16 %v898
        %v977 = vunpack.c.l.b16 %v899
        %v978 = vunpack.c.h.b16 %v899
        %v979 = vunpack.c.l.b16 %v900
        %v980 = vunpack.c.l.b16 %v901
        %v981 = vunpack.c.h.b16 %v901
        %v982 = vunpack.c.l.b16 %v902
        %v983 = vunpack.c.l.b16 %v903
        %v984 = vunpack.c.h.b16 %v903
        %v985 = vunpack.c.l.b16 %v904
        %v986 = vunpack.c.l.b16 %v905
        %v987 = vunpack.c.h.b16 %v905
        %v988 = vunpack.c.l.b16 %v906
        %v989 = vunpack.c.l.b16 %v907
        %v990 = vunpack.c.h.b16 %v907
        %v991 = vunpack.c.l.b16 %v908
        %v992 = vunpack.c.l.b16 %v909
        %v993 = vunpack.c.h.b16 %v909
        %v994 = vunpack.c.l.b16 %v910
        %v995 = vunpack.c.l.b16 %v911
        %v996 = vunpack.c.h.b16 %v911
        %v997 = vunpack.c.l.b16 %v912
        %v998 = vunpack.c.l.b16 %v913
        %v999 = vunpack.c.h.b16 %v913
        %v1000 = vunpack.c.l.b16 %v914
        %v1001 = vunpack.c.l.b16 %v915
        %v1002 = vunpack.c.h.b16 %v915
        %v1003 = vunpack.c.l.b16 %v916
        %v1004 = vunpack.c.l.b16 %v917
        %v1005 = vunpack.c.h.b16 %v917
        %v1006 = vunpack.c.l.b16 %v918
        %v1007 = vpack.c.b16 %v962, %v959
        %v1008 = vpack.c.b16 %v963, %v960
        %v1009 = vpack.c.b16 %v964, %v961
        %v1010 = vpack.c.b16 %v968, %v965
        %v1011 = vpack.c.b16 %v969, %v966
        %v1012 = vpack.c.b16 %v970, %v967
        %v1013 = vpack.c.b16 %v974, %v971
        %v1014 = vpack.c.b16 %v975, %v972
        %v1015 = vpack.c.b16 %v976, %v973
        %v1016 = vpack.c.b16 %v980, %v977
        %v1017 = vpack.c.b16 %v981, %v978
        %v1018 = vpack.c.b16 %v982, %v979
        %v1019 = vpack.c.b16 %v986, %v983
        %v1020 = vpack.c.b16 %v987, %v984
        %v1021 = vpack.c.b16 %v988, %v985
        %v1022 = vpack.c.b16 %v992, %v989
        %v1023 = vpack.c.b16 %v993, %v990
        %v1024 = vpack.c.b16 %v994, %v991
        %v1025 = vpack.c.b16 %v998, %v995
        %v1026 = vpack.c.b16 %v999, %v996
        %v1027 = vpack.c.b16 %v1000, %v997
        %v1028 = vpack.c.b16 %v1004, %v1001
        %v1029 = vpack.c.b16 %v1005, %v1002
        %v1030 = vpack.c.b16 %v1006, %v1003
        %1055 = vmatpush.bf16.msra.mxu0 %v1028
        %1056 = vmatpush.bf16.msra.mxu0 %v1025
        %1057 = vmatpush.bf16.msra.mxu0 %v1022
        %1058 = vmatpush.bf16.msra.mxu0 %v1019
        %1059 = vmatpush.bf16.msra.mxu0 %v1016
        %1060 = vmatpush.bf16.msra.mxu0 %v1013
        %1061 = vmatpush.bf16.msra.mxu0 %v1010
        %1062 = vmatpush.bf16.msra.mxu0 %v1007
        %1063 = vmatmul.bf16.gmra.mxu0 %v886
        %v1064 = vpop.f32.mrf.mxu0
        %v1065 = vadd.f32 %v921, %v1064
        %v1066 = vpop.f32.mrf.mxu0
        %1067 = vdwg.mxu0
        %1068 = vmatpush.bf16.msra.mxu0 %v1029
        %1069 = vmatpush.bf16.msra.mxu0 %v1026
        %1070 = vmatpush.bf16.msra.mxu0 %v1023
        %1071 = vmatpush.bf16.msra.mxu0 %v1020
        %1072 = vmatpush.bf16.msra.mxu0 %v1017
        %1073 = vmatpush.bf16.msra.mxu0 %v1014
        %1074 = vmatpush.bf16.msra.mxu0 %v1011
        %1075 = vmatpush.bf16.msra.mxu0 %v1008
        %1076 = vmatmul.bf16.gmra.mxu0 %v886
        %v1077 = vpop.f32.mrf.mxu0
        %v1078 = vadd.f32 %v922, %v1077
        %v1079 = vpop.f32.mrf.mxu0
        %1080 = vdwg.mxu0
        %1081 = vmatpush.bf16.msra.mxu0 %v1030
        %1082 = vmatpush.bf16.msra.mxu0 %v1027
        %1083 = vmatpush.bf16.msra.mxu0 %v1024
        %1084 = vmatpush.bf16.msra.mxu0 %v1021
        %1085 = vmatpush.bf16.msra.mxu0 %v1018
        %1086 = vmatpush.bf16.msra.mxu0 %v1015
        %1087 = vmatpush.bf16.msra.mxu0 %v1012
        %1088 = vmatpush.bf16.msra.mxu0 %v1009
        %1089 = vmatmul.bf16.gmra.mxu0 %v886
        %v1090 = vpop.f32.mrf.mxu0
        %v1091 = vadd.f32 %v923, %v1090
        %v1092 = vpop.f32.mrf.mxu0
        %1093 = vdwg.mxu0
        %1095 = vrot.lane.b32.xlu0 %v1065, 96
        %v1096 = vpop.permute.xlu0 %1095
        %1098 = vrot.lane.b32.xlu0 %v1065, 64
        %v1099 = vpop.permute.xlu0 %1098
        %1101 = vrot.lane.b32.xlu0 %v1065, 32
        %v1102 = vpop.permute.xlu0 %1101
        %v1104 = vrot.slane %v1099, 4
        %vm1105 = vcmask 1047556
        %v1106 = vsel %vm1105, %v1104, %v1065
        %v1107 = vrot.slane %v1065, 4
        %v1108 = vsel %vm1105, %v1099, %v1107
        %v1110 = vunpack.c.l.s4 1983009808
        %v1111 = vunpack.c.0.s8 %v1110
        %v1112 = vperm.slane %v1106, %v1111
        %v1114 = vunpack.c.l.s4 1983009808
        %v1115 = vunpack.c.0.s8 %v1114
        %v1116 = vperm.slane %v1108, %v1115
        %v1117 = vrot.slane %v1102, 4
        %v1118 = vsel %vm1105, %v1117, %v1096
        %v1119 = vrot.slane %v1096, 4
        %v1120 = vsel %vm1105, %v1102, %v1119
        %v1122 = vunpack.c.l.s4 1983009808
        %v1123 = vunpack.c.0.s8 %v1122
        %v1124 = vperm.slane %v1118, %v1123
        %v1126 = vunpack.c.l.s4 1983009808
        %v1127 = vunpack.c.0.s8 %v1126
        %v1128 = vperm.slane %v1120, %v1127
        %v1129 = vrot.slane %v1124, 4
        %v1130 = vsel %vm1105, %v1129, %v1112
        %v1131 = vrot.slane %v1112, 4
        %v1132 = vsel %vm1105, %v1124, %v1131
        %v1134 = vunpack.c.l.s4 1934713408
        %v1135 = vunpack.c.0.s8 %v1134
        %v1136 = vperm.slane %v1130, %v1135
        %v1138 = vunpack.c.l.s4 1934713408
        %v1139 = vunpack.c.0.s8 %v1138
        %v1140 = vperm.slane %v1132, %v1139
        %v1141 = vrot.slane %v1128, 4
        %v1142 = vsel %vm1105, %v1141, %v1116
        %v1143 = vrot.slane %v1116, 4
        %v1144 = vsel %vm1105, %v1128, %v1143
        %v1146 = vunpack.c.l.s4 1934713408
        %v1147 = vunpack.c.0.s8 %v1146
        %v1148 = vperm.slane %v1142, %v1147
        %v1150 = vunpack.c.l.s4 1934713408
        %v1151 = vunpack.c.0.s8 %v1150
        %v1152 = vperm.slane %v1144, %v1151
        %v1153 = vrot.slane %v1136, 4
        %v1154 = vsel %vm1105, 0.0, %v1153
        %v1155 = vrot.slane %v1140, 4
        %v1156 = vsel %vm1105, 0.0, %v1155
        %v1157 = vrot.slane %v1148, 4
        %v1158 = vsel %vm1105, 0.0, %v1157
        %v1159 = vrot.slane %v1152, 4
        %v1160 = vsel %vm1105, 0.0, %v1159
        %v1161 = vsel %vm1105, %v1155, %v1136
        %v1163 = vunpack.c.l.s4 1983009808
        %v1164 = vunpack.c.0.s8 %v1163
        %v1165 = vperm.slane %v1161, %v1164
        %v1166 = vrot.slane %v1156, 4
        %v1167 = vsel %vm1105, %v1166, %v1154
        %v1169 = vunpack.c.l.s4 1983009808
        %v1170 = vunpack.c.0.s8 %v1169
        %v1171 = vperm.slane %v1167, %v1170
        %v1172 = vsel %vm1105, %v1159, %v1148
        %v1174 = vunpack.c.l.s4 1983009808
        %v1175 = vunpack.c.0.s8 %v1174
        %v1176 = vperm.slane %v1172, %v1175
        %v1177 = vrot.slane %v1160, 4
        %v1178 = vsel %vm1105, %v1177, %v1158
        %v1180 = vunpack.c.l.s4 1983009808
        %v1181 = vunpack.c.0.s8 %v1180
        %v1182 = vperm.slane %v1178, %v1181
        %v1183 = vrot.slane %v1171, 4
        %v1184 = vsel %vm1105, %v1183, %v1165
        %v1185 = vrot.slane %v1165, 4
        %v1186 = vsel %vm1105, %v1171, %v1185
        %v1188 = vunpack.c.l.s4 1934713408
        %v1189 = vunpack.c.0.s8 %v1188
        %v1190 = vperm.slane %v1184, %v1189
        %v1192 = vunpack.c.l.s4 1934713408
        %v1193 = vunpack.c.0.s8 %v1192
        %v1194 = vperm.slane %v1186, %v1193
        %v1195 = vrot.slane %v1182, 4
        %v1196 = vsel %vm1105, %v1195, %v1176
        %v1197 = vrot.slane %v1176, 4
        %v1198 = vsel %vm1105, %v1182, %v1197
        %v1200 = vunpack.c.l.s4 1934713408
        %v1201 = vunpack.c.0.s8 %v1200
        %v1202 = vperm.slane %v1196, %v1201
        %v1204 = vunpack.c.l.s4 1934713408
        %v1205 = vunpack.c.0.s8 %v1204
        %v1206 = vperm.slane %v1198, %v1205
        %v1207 = vrot.slane %v1202, 4
        %v1208 = vsel %vm1105, %v1207, %v1190
        %v1209 = vrot.slane %v1190, 4
        %v1210 = vsel %vm1105, %v1202, %v1209
        %v1211 = vrot.slane %v1206, 4
        %v1212 = vsel %vm1105, %v1211, %v1194
        %v1213 = vrot.slane %v1194, 4
        %v1214 = vsel %vm1105, %v1206, %v1213
        %v1215 = vpack.c.bf16 %v1208, %v1208
        %v1216 = vpack.c.bf16 %v1210, %v1210
        %v1217 = vpack.c.bf16 %v1212, %v1212
        %v1218 = vpack.c.bf16 %v1214, %v1214
        %1220 = vrot.lane.b32.xlu0 %v1078, 96
        %v1221 = vpop.permute.xlu0 %1220
        %1223 = vrot.lane.b32.xlu0 %v1078, 64
        %v1224 = vpop.permute.xlu0 %1223
        %1226 = vrot.lane.b32.xlu0 %v1078, 32
        %v1227 = vpop.permute.xlu0 %1226
        %v1229 = vrot.slane %v1224, 4
        %v1230 = vsel %vm1105, %v1229, %v1078
        %v1231 = vrot.slane %v1078, 4
        %v1232 = vsel %vm1105, %v1224, %v1231
        %v1234 = vunpack.c.l.s4 1983009808
        %v1235 = vunpack.c.0.s8 %v1234
        %v1236 = vperm.slane %v1230, %v1235
        %v1238 = vunpack.c.l.s4 1983009808
        %v1239 = vunpack.c.0.s8 %v1238
        %v1240 = vperm.slane %v1232, %v1239
        %v1241 = vrot.slane %v1227, 4
        %v1242 = vsel %vm1105, %v1241, %v1221
        %v1243 = vrot.slane %v1221, 4
        %v1244 = vsel %vm1105, %v1227, %v1243
        %v1246 = vunpack.c.l.s4 1983009808
        %v1247 = vunpack.c.0.s8 %v1246
        %v1248 = vperm.slane %v1242, %v1247
        %v1250 = vunpack.c.l.s4 1983009808
        %v1251 = vunpack.c.0.s8 %v1250
        %v1252 = vperm.slane %v1244, %v1251
        %v1253 = vrot.slane %v1248, 4
        %v1254 = vsel %vm1105, %v1253, %v1236
        %v1255 = vrot.slane %v1236, 4
        %v1256 = vsel %vm1105, %v1248, %v1255
        %v1258 = vunpack.c.l.s4 1934713408
        %v1259 = vunpack.c.0.s8 %v1258
        %v1260 = vperm.slane %v1254, %v1259
        %v1262 = vunpack.c.l.s4 1934713408
        %v1263 = vunpack.c.0.s8 %v1262
        %v1264 = vperm.slane %v1256, %v1263
        %v1265 = vrot.slane %v1252, 4
        %v1266 = vsel %vm1105, %v1265, %v1240
        %v1267 = vrot.slane %v1240, 4
        %v1268 = vsel %vm1105, %v1252, %v1267
        %v1270 = vunpack.c.l.s4 1934713408
        %v1271 = vunpack.c.0.s8 %v1270
        %v1272 = vperm.slane %v1266, %v1271
        %v1274 = vunpack.c.l.s4 1934713408
        %v1275 = vunpack.c.0.s8 %v1274
        %v1276 = vperm.slane %v1268, %v1275
        %v1277 = vrot.slane %v1260, 4
        %v1278 = vsel %vm1105, 0.0, %v1277
        %v1279 = vrot.slane %v1264, 4
        %v1280 = vsel %vm1105, 0.0, %v1279
        %v1281 = vrot.slane %v1272, 4
        %v1282 = vsel %vm1105, 0.0, %v1281
        %v1283 = vrot.slane %v1276, 4
        %v1284 = vsel %vm1105, 0.0, %v1283
        %v1285 = vsel %vm1105, %v1279, %v1260
        %v1287 = vunpack.c.l.s4 1983009808
        %v1288 = vunpack.c.0.s8 %v1287
        %v1289 = vperm.slane %v1285, %v1288
        %v1290 = vrot.slane %v1280, 4
        %v1291 = vsel %vm1105, %v1290, %v1278
        %v1293 = vunpack.c.l.s4 1983009808
        %v1294 = vunpack.c.0.s8 %v1293
        %v1295 = vperm.slane %v1291, %v1294
        %v1296 = vsel %vm1105, %v1283, %v1272
        %v1298 = vunpack.c.l.s4 1983009808
        %v1299 = vunpack.c.0.s8 %v1298
        %v1300 = vperm.slane %v1296, %v1299
        %v1301 = vrot.slane %v1284, 4
        %v1302 = vsel %vm1105, %v1301, %v1282
        %v1304 = vunpack.c.l.s4 1983009808
        %v1305 = vunpack.c.0.s8 %v1304
        %v1306 = vperm.slane %v1302, %v1305
        %v1307 = vrot.slane %v1295, 4
        %v1308 = vsel %vm1105, %v1307, %v1289
        %v1309 = vrot.slane %v1289, 4
        %v1310 = vsel %vm1105, %v1295, %v1309
        %v1312 = vunpack.c.l.s4 1934713408
        %v1313 = vunpack.c.0.s8 %v1312
        %v1314 = vperm.slane %v1308, %v1313
        %v1316 = vunpack.c.l.s4 1934713408
        %v1317 = vunpack.c.0.s8 %v1316
        %v1318 = vperm.slane %v1310, %v1317
        %v1319 = vrot.slane %v1306, 4
        %v1320 = vsel %vm1105, %v1319, %v1300
        %v1321 = vrot.slane %v1300, 4
        %v1322 = vsel %vm1105, %v1306, %v1321
        %v1324 = vunpack.c.l.s4 1934713408
        %v1325 = vunpack.c.0.s8 %v1324
        %v1326 = vperm.slane %v1320, %v1325
        %v1328 = vunpack.c.l.s4 1934713408
        %v1329 = vunpack.c.0.s8 %v1328
        %v1330 = vperm.slane %v1322, %v1329
        %v1331 = vrot.slane %v1326, 4
        %v1332 = vsel %vm1105, %v1331, %v1314
        %v1333 = vrot.slane %v1314, 4
        %v1334 = vsel %vm1105, %v1326, %v1333
        %v1335 = vrot.slane %v1330, 4
        %v1336 = vsel %vm1105, %v1335, %v1318
        %v1337 = vrot.slane %v1318, 4
        %v1338 = vsel %vm1105, %v1330, %v1337
        %v1339 = vpack.c.bf16 %v1332, %v1332
        %v1340 = vpack.c.bf16 %v1334, %v1334
        %v1341 = vpack.c.bf16 %v1336, %v1336
        %v1342 = vpack.c.bf16 %v1338, %v1338
        %1344 = vrot.lane.b32.xlu0 %v1091, 96
        %v1345 = vpop.permute.xlu0 %1344
        %1347 = vrot.lane.b32.xlu0 %v1091, 64
        %v1348 = vpop.permute.xlu0 %1347
        %1350 = vrot.lane.b32.xlu0 %v1091, 32
        %v1351 = vpop.permute.xlu0 %1350
        %v1353 = vrot.slane %v1348, 4
        %v1354 = vsel %vm1105, %v1353, %v1091
        %v1355 = vrot.slane %v1091, 4
        %v1356 = vsel %vm1105, %v1348, %v1355
        %v1358 = vunpack.c.l.s4 1983009808
        %v1359 = vunpack.c.0.s8 %v1358
        %v1360 = vperm.slane %v1354, %v1359
        %v1362 = vunpack.c.l.s4 1983009808
        %v1363 = vunpack.c.0.s8 %v1362
        %v1364 = vperm.slane %v1356, %v1363
        %v1365 = vrot.slane %v1351, 4
        %v1366 = vsel %vm1105, %v1365, %v1345
        %v1367 = vrot.slane %v1345, 4
        %v1368 = vsel %vm1105, %v1351, %v1367
        %v1370 = vunpack.c.l.s4 1983009808
        %v1371 = vunpack.c.0.s8 %v1370
        %v1372 = vperm.slane %v1366, %v1371
        %v1374 = vunpack.c.l.s4 1983009808
        %v1375 = vunpack.c.0.s8 %v1374
        %v1376 = vperm.slane %v1368, %v1375
        %v1377 = vrot.slane %v1372, 4
        %v1378 = vsel %vm1105, %v1377, %v1360
        %v1379 = vrot.slane %v1360, 4
        %v1380 = vsel %vm1105, %v1372, %v1379
        %v1382 = vunpack.c.l.s4 1934713408
        %v1383 = vunpack.c.0.s8 %v1382
        %v1384 = vperm.slane %v1378, %v1383
        %v1386 = vunpack.c.l.s4 1934713408
        %v1387 = vunpack.c.0.s8 %v1386
        %v1388 = vperm.slane %v1380, %v1387
        %v1389 = vrot.slane %v1376, 4
        %v1390 = vsel %vm1105, %v1389, %v1364
        %v1391 = vrot.slane %v1364, 4
        %v1392 = vsel %vm1105, %v1376, %v1391
        %v1394 = vunpack.c.l.s4 1934713408
        %v1395 = vunpack.c.0.s8 %v1394
        %v1396 = vperm.slane %v1390, %v1395
        %v1398 = vunpack.c.l.s4 1934713408
        %v1399 = vunpack.c.0.s8 %v1398
        %v1400 = vperm.slane %v1392, %v1399
        %v1401 = vrot.slane %v1384, 4
        %v1402 = vsel %vm1105, 0.0, %v1401
        %v1403 = vrot.slane %v1388, 4
        %v1404 = vsel %vm1105, 0.0, %v1403
        %v1405 = vrot.slane %v1396, 4
        %v1406 = vsel %vm1105, 0.0, %v1405
        %v1407 = vrot.slane %v1400, 4
        %v1408 = vsel %vm1105, 0.0, %v1407
        %v1409 = vsel %vm1105, %v1403, %v1384
        %v1411 = vunpack.c.l.s4 1983009808
        %v1412 = vunpack.c.0.s8 %v1411
        %v1413 = vperm.slane %v1409, %v1412
        %v1414 = vrot.slane %v1404, 4
        %v1415 = vsel %vm1105, %v1414, %v1402
        %v1417 = vunpack.c.l.s4 1983009808
        %v1418 = vunpack.c.0.s8 %v1417
        %v1419 = vperm.slane %v1415, %v1418
        %v1420 = vsel %vm1105, %v1407, %v1396
        %v1422 = vunpack.c.l.s4 1983009808
        %v1423 = vunpack.c.0.s8 %v1422
        %v1424 = vperm.slane %v1420, %v1423
        %v1425 = vrot.slane %v1408, 4
        %v1426 = vsel %vm1105, %v1425, %v1406
        %v1428 = vunpack.c.l.s4 1983009808
        %v1429 = vunpack.c.0.s8 %v1428
        %v1430 = vperm.slane %v1426, %v1429
        %v1431 = vrot.slane %v1419, 4
        %v1432 = vsel %vm1105, %v1431, %v1413
        %v1433 = vrot.slane %v1413, 4
        %v1434 = vsel %vm1105, %v1419, %v1433
        %v1436 = vunpack.c.l.s4 1934713408
        %v1437 = vunpack.c.0.s8 %v1436
        %v1438 = vperm.slane %v1432, %v1437
        %v1440 = vunpack.c.l.s4 1934713408
        %v1441 = vunpack.c.0.s8 %v1440
        %v1442 = vperm.slane %v1434, %v1441
        %v1443 = vrot.slane %v1430, 4
        %v1444 = vsel %vm1105, %v1443, %v1424
        %v1445 = vrot.slane %v1424, 4
        %v1446 = vsel %vm1105, %v1430, %v1445
        %v1448 = vunpack.c.l.s4 1934713408
        %v1449 = vunpack.c.0.s8 %v1448
        %v1450 = vperm.slane %v1444, %v1449
        %v1452 = vunpack.c.l.s4 1934713408
        %v1453 = vunpack.c.0.s8 %v1452
        %v1454 = vperm.slane %v1446, %v1453
        %v1455 = vrot.slane %v1450, 4
        %v1456 = vsel %vm1105, %v1455, %v1438
        %v1457 = vrot.slane %v1438, 4
        %v1458 = vsel %vm1105, %v1450, %v1457
        %v1459 = vrot.slane %v1454, 4
        %v1460 = vsel %vm1105, %v1459, %v1442
        %v1461 = vrot.slane %v1442, 4
        %v1462 = vsel %vm1105, %v1454, %v1461
        %v1463 = vpack.c.bf16 %v1456, %v1456
        %v1464 = vpack.c.bf16 %v1458, %v1458
        %v1465 = vpack.c.bf16 %v1460, %v1460
        %v1466 = vpack.c.bf16 %v1462, %v1462
        %vm1467 = vcmask 261120
        %v1469 = vsel %vm1467, %v1215, 0
        %v1472 = vsel %vm1467, %v1339, 0
        %1474 = vmatpush.bf16.xpose.msra.mxu0 0
        %1475 = vmatpush.bf16.xpose.msra.mxu0 0
        %1476 = vmatpush.bf16.xpose.msra.mxu0 0
        %1477 = vmatpush.bf16.xpose.msra.mxu0 0
        %1478 = vmatpush.bf16.xpose.msra.mxu0 0
        %1479 = vmatpush.bf16.xpose.msra.mxu0 0
        %1480 = vmatpush.bf16.xpose.msra.mxu0 0
        %1481 = vmatpush.bf16.xpose.msra.mxu0 %v1472
        %1482 = vmatmul.bf16.gmra.mxu0 %v1469
        %v1483 = vpop.f32.mrf.mxu0
        %v1484 = vadd.f32 0.0, %v1483
        %v1485 = vpop.f32.mrf.mxu0
        %1486 = vdwg.mxu0
        %v1488 = vsel %vm1467, %v1216, 0
        %v1491 = vsel %vm1467, %v1340, 0
        %1493 = vmatpush.bf16.xpose.msra.mxu0 0
        %1494 = vmatpush.bf16.xpose.msra.mxu0 0
        %1495 = vmatpush.bf16.xpose.msra.mxu0 0
        %1496 = vmatpush.bf16.xpose.msra.mxu0 0
        %1497 = vmatpush.bf16.xpose.msra.mxu0 0
        %1498 = vmatpush.bf16.xpose.msra.mxu0 0
        %1499 = vmatpush.bf16.xpose.msra.mxu0 0
        %1500 = vmatpush.bf16.xpose.msra.mxu0 %v1491
        %1501 = vmatmul.bf16.gmra.mxu0 %v1488
        %v1502 = vpop.f32.mrf.mxu0
        %v1503 = vadd.f32 0.0, %v1502
        %v1504 = vpop.f32.mrf.mxu0
        %1505 = vdwg.mxu0
        %v1507 = vsel %vm1467, %v1217, 0
        %v1510 = vsel %vm1467, %v1341, 0
        %1512 = vmatpush.bf16.xpose.msra.mxu0 0
        %1513 = vmatpush.bf16.xpose.msra.mxu0 0
        %1514 = vmatpush.bf16.xpose.msra.mxu0 0
        %1515 = vmatpush.bf16.xpose.msra.mxu0 0
        %1516 = vmatpush.bf16.xpose.msra.mxu0 0
        %1517 = vmatpush.bf16.xpose.msra.mxu0 0
        %1518 = vmatpush.bf16.xpose.msra.mxu0 0
        %1519 = vmatpush.bf16.xpose.msra.mxu0 %v1510
        %1520 = vmatmul.bf16.gmra.mxu0 %v1507
        %v1521 = vpop.f32.mrf.mxu0
        %v1522 = vadd.f32 0.0, %v1521
        %v1523 = vpop.f32.mrf.mxu0
        %1524 = vdwg.mxu0
        %v1526 = vsel %vm1467, %v1218, 0
        %v1529 = vsel %vm1467, %v1342, 0
        %1531 = vmatpush.bf16.xpose.msra.mxu0 0
        %1532 = vmatpush.bf16.xpose.msra.mxu0 0
        %1533 = vmatpush.bf16.xpose.msra.mxu0 0
        %1534 = vmatpush.bf16.xpose.msra.mxu0 0
        %1535 = vmatpush.bf16.xpose.msra.mxu0 0
        %1536 = vmatpush.bf16.xpose.msra.mxu0 0
        %1537 = vmatpush.bf16.xpose.msra.mxu0 0
        %1538 = vmatpush.bf16.xpose.msra.mxu0 %v1529
        %1539 = vmatmul.bf16.gmra.mxu0 %v1526
        %v1540 = vpop.f32.mrf.mxu0
        %v1541 = vadd.f32 0.0, %v1540
        %v1542 = vpop.f32.mrf.mxu0
        %1543 = vdwg.mxu0
        %v1544 = vadd.f32 %v1484, %v880
        %v1545 = vadd.f32 %v1503, %v880
        %v1546 = vadd.f32 %v1522, %v880
        %v1547 = vadd.f32 %v1541, %v880
        %vm1548 = vcmask 64512
        %v1549 = vsel %vm1548, %v1544, -inf
        %1550 = vmax.xlane.f32.xlu0 %v1549
        %v1551 = vpop.xlane.xlu0 %1550
        %v1552 = vsel %vm1548, %v1545, -inf
        %1553 = vmax.xlane.f32.xlu0 %v1552
        %v1554 = vpop.xlane.xlu0 %1553
        %v1555 = vsel %vm1548, %v1546, -inf
        %1556 = vmax.xlane.f32.xlu0 %v1555
        %v1557 = vpop.xlane.xlu0 %1556
        %v1558 = vsel %vm1548, %v1547, -inf
        %1559 = vmax.xlane.f32.xlu0 %v1558
        %v1560 = vpop.xlane.xlu0 %1559
        %v1561 = vsub.f32 %v1544, %v1551
        %v1562 = vsub.f32 %v1545, %v1554
        %v1563 = vsub.f32 %v1546, %v1557
        %v1564 = vsub.f32 %v1547, %v1560
        %v1565 = vmul.f32 %v1561, 1.442695
        %v1566 = vpow.pop %v1565
        %v1567 = vmul.f32 %v1562, 1.442695
        %v1568 = vpow.pop %v1567
        %v1569 = vmul.f32 %v1563, 1.442695
        %v1570 = vpow.pop %v1569
        %v1571 = vmul.f32 %v1564, 1.442695
        %v1572 = vpow.pop %v1571
        %v1573 = vsel %vm1548, %v1566, 0.0
        %1574 = vadd.xlane.f32.xlu0 %v1573
        %v1575 = vpop.xlane.xlu0 %1574
        %v1576 = vsel %vm1548, %v1568, 0.0
        %1577 = vadd.xlane.f32.xlu0 %v1576
        %v1578 = vpop.xlane.xlu0 %1577
        %v1579 = vsel %vm1548, %v1570, 0.0
        %1580 = vadd.xlane.f32.xlu0 %v1579
        %v1581 = vpop.xlane.xlu0 %1580
        %v1582 = vsel %vm1548, %v1572, 0.0
        %1583 = vadd.xlane.f32.xlu0 %v1582
        %v1584 = vpop.xlane.xlu0 %1583
        %v1585 = vpack.c.bf16 %v1566, %v1566
        %v1586 = vpack.c.bf16 %v1568, %v1568
        %v1587 = vpack.c.bf16 %v1570, %v1570
        %v1588 = vpack.c.bf16 %v1572, %v1572
        %v1590 = vsel %vm1548, %v1585, 0
        %vm1592 = vcmask 1043456
        %v1594 = vsel %vm1592, %v1463, 0
        %1596 = vmatpush.bf16.msra.mxu0 0
        %1597 = vmatpush.bf16.msra.mxu0 0
        %1598 = vmatpush.bf16.msra.mxu0 0
        %1599 = vmatpush.bf16.msra.mxu0 0
        %1600 = vmatpush.bf16.msra.mxu0 0
        %1601 = vmatpush.bf16.msra.mxu0 0
        %1602 = vmatpush.bf16.msra.mxu0 0
        %1603 = vmatpush.bf16.msra.mxu0 %v1594
        %1604 = vmatmul.bf16.gmra.mxu0 %v1590
        %v1605 = vpop.f32.mrf.mxu0
        %v1606 = vadd.f32 0.0, %v1605
        %v1607 = vpop.f32.mrf.mxu0
        %1608 = vdwg.mxu0
        %v1610 = vsel %vm1548, %v1586, 0
        %v1613 = vsel %vm1592, %v1464, 0
        %1615 = vmatpush.bf16.msra.mxu0 0
        %1616 = vmatpush.bf16.msra.mxu0 0
        %1617 = vmatpush.bf16.msra.mxu0 0
        %1618 = vmatpush.bf16.msra.mxu0 0
        %1619 = vmatpush.bf16.msra.mxu0 0
        %1620 = vmatpush.bf16.msra.mxu0 0
        %1621 = vmatpush.bf16.msra.mxu0 0
        %1622 = vmatpush.bf16.msra.mxu0 %v1613
        %1623 = vmatmul.bf16.gmra.mxu0 %v1610
        %v1624 = vpop.f32.mrf.mxu0
        %v1625 = vadd.f32 0.0, %v1624
        %v1626 = vpop.f32.mrf.mxu0
        %1627 = vdwg.mxu0
        %v1629 = vsel %vm1548, %v1587, 0
        %v1632 = vsel %vm1592, %v1465, 0
        %1634 = vmatpush.bf16.msra.mxu0 0
        %1635 = vmatpush.bf16.msra.mxu0 0
        %1636 = vmatpush.bf16.msra.mxu0 0
        %1637 = vmatpush.bf16.msra.mxu0 0
        %1638 = vmatpush.bf16.msra.mxu0 0
        %1639 = vmatpush.bf16.msra.mxu0 0
        %1640 = vmatpush.bf16.msra.mxu0 0
        %1641 = vmatpush.bf16.msra.mxu0 %v1632
        %1642 = vmatmul.bf16.gmra.mxu0 %v1629
        %v1643 = vpop.f32.mrf.mxu0
        %v1644 = vadd.f32 0.0, %v1643
        %v1645 = vpop.f32.mrf.mxu0
        %1646 = vdwg.mxu0
        %v1648 = vsel %vm1548, %v1588, 0
        %v1651 = vsel %vm1592, %v1466, 0
        %1653 = vmatpush.bf16.msra.mxu0 0
        %1654 = vmatpush.bf16.msra.mxu0 0
        %1655 = vmatpush.bf16.msra.mxu0 0
        %1656 = vmatpush.bf16.msra.mxu0 0
        %1657 = vmatpush.bf16.msra.mxu0 0
        %1658 = vmatpush.bf16.msra.mxu0 0
        %1659 = vmatpush.bf16.msra.mxu0 0
        %1660 = vmatpush.bf16.msra.mxu0 %v1651
        %1661 = vmatmul.bf16.gmra.mxu0 %v1648
        %v1662 = vpop.f32.mrf.mxu0
        %v1663 = vadd.f32 0.0, %v1662
        %v1664 = vpop.f32.mrf.mxu0
        %1665 = vdwg.mxu0
        %v1666 = vrcp.pop %v1575
        %v1667 = vrcp.pop %v1578
        %v1668 = vrcp.pop %v1581
        %v1669 = vrcp.pop %v1584
        %v1670 = vmul.f32 %v1606, %v1666
        %v1671 = vmul.f32 %v1625, %v1667
        %v1672 = vmul.f32 %v1644, %v1668
        %v1673 = vmul.f32 %v1663, %v1669
        %v1674 = vrot.slane %v1672, 4
        %v1675 = vsel %vm1105, %v1674, %v1670
        %v1676 = vrot.slane %v1670, 4
        %v1677 = vsel %vm1105, %v1672, %v1676
        %v1679 = vunpack.c.l.s4 1983009808
        %v1680 = vunpack.c.0.s8 %v1679
        %v1681 = vperm.slane %v1675, %v1680
        %v1683 = vunpack.c.l.s4 1983009808
        %v1684 = vunpack.c.0.s8 %v1683
        %v1685 = vperm.slane %v1677, %v1684
        %v1686 = vrot.slane %v1673, 4
        %v1687 = vsel %vm1105, %v1686, %v1671
        %v1688 = vrot.slane %v1671, 4
        %v1689 = vsel %vm1105, %v1673, %v1688
        %v1691 = vunpack.c.l.s4 1983009808
        %v1692 = vunpack.c.0.s8 %v1691
        %v1693 = vperm.slane %v1687, %v1692
        %v1695 = vunpack.c.l.s4 1983009808
        %v1696 = vunpack.c.0.s8 %v1695
        %v1697 = vperm.slane %v1689, %v1696
        %v1698 = vrot.slane %v1693, 4
        %v1699 = vsel %vm1105, %v1698, %v1681
        %v1700 = vrot.slane %v1681, 4
        %v1701 = vsel %vm1105, %v1693, %v1700
        %v1703 = vunpack.c.l.s4 1934713408
        %v1704 = vunpack.c.0.s8 %v1703
        %v1705 = vperm.slane %v1699, %v1704
        %v1707 = vunpack.c.l.s4 1934713408
        %v1708 = vunpack.c.0.s8 %v1707
        %v1709 = vperm.slane %v1701, %v1708
        %v1710 = vrot.slane %v1697, 4
        %v1711 = vsel %vm1105, %v1710, %v1685
        %v1712 = vrot.slane %v1685, 4
        %v1713 = vsel %vm1105, %v1697, %v1712
        %v1715 = vunpack.c.l.s4 1934713408
        %v1716 = vunpack.c.0.s8 %v1715
        %v1717 = vperm.slane %v1711, %v1716
        %v1719 = vunpack.c.l.s4 1934713408
        %v1720 = vunpack.c.0.s8 %v1719
        %v1721 = vperm.slane %v1713, %v1720
        %v1722 = vrot.slane %v1705, 4
        %v1723 = vsel %vm1105, 0.0, %v1722
        %v1724 = vrot.slane %v1709, 4
        %v1725 = vsel %vm1105, 0.0, %v1724
        %v1726 = vrot.slane %v1717, 4
        %v1727 = vsel %vm1105, 0.0, %v1726
        %v1728 = vrot.slane %v1721, 4
        %v1729 = vsel %vm1105, 0.0, %v1728
        %v1730 = vsel %vm1105, %v1724, %v1705
        %v1732 = vunpack.c.l.s4 1983009808
        %v1733 = vunpack.c.0.s8 %v1732
        %v1734 = vperm.slane %v1730, %v1733
        %v1735 = vrot.slane %v1725, 4
        %v1736 = vsel %vm1105, %v1735, %v1723
        %v1738 = vunpack.c.l.s4 1983009808
        %v1739 = vunpack.c.0.s8 %v1738
        %v1740 = vperm.slane %v1736, %v1739
        %v1741 = vsel %vm1105, %v1728, %v1717
        %v1743 = vunpack.c.l.s4 1983009808
        %v1744 = vunpack.c.0.s8 %v1743
        %v1745 = vperm.slane %v1741, %v1744
        %v1746 = vrot.slane %v1729, 4
        %v1747 = vsel %vm1105, %v1746, %v1727
        %v1749 = vunpack.c.l.s4 1983009808
        %v1750 = vunpack.c.0.s8 %v1749
        %v1751 = vperm.slane %v1747, %v1750
        %v1752 = vrot.slane %v1740, 4
        %v1753 = vsel %vm1105, %v1752, %v1734
        %v1754 = vrot.slane %v1734, 4
        %v1755 = vsel %vm1105, %v1740, %v1754
        %v1757 = vunpack.c.l.s4 1934713408
        %v1758 = vunpack.c.0.s8 %v1757
        %v1759 = vperm.slane %v1753, %v1758
        %v1761 = vunpack.c.l.s4 1934713408
        %v1762 = vunpack.c.0.s8 %v1761
        %v1763 = vperm.slane %v1755, %v1762
        %v1764 = vrot.slane %v1751, 4
        %v1765 = vsel %vm1105, %v1764, %v1745
        %v1766 = vrot.slane %v1745, 4
        %v1767 = vsel %vm1105, %v1751, %v1766
        %v1769 = vunpack.c.l.s4 1934713408
        %v1770 = vunpack.c.0.s8 %v1769
        %v1771 = vperm.slane %v1765, %v1770
        %v1773 = vunpack.c.l.s4 1934713408
        %v1774 = vunpack.c.0.s8 %v1773
        %v1775 = vperm.slane %v1767, %v1774
        %v1776 = vrot.slane %v1771, 4
        %v1777 = vsel %vm1105, %v1776, %v1759
        %v1778 = vrot.slane %v1759, 4
        %v1779 = vsel %vm1105, %v1771, %v1778
        %v1780 = vrot.slane %v1775, 4
        %v1781 = vsel %vm1105, %v1780, %v1763
        %v1782 = vrot.slane %v1763, 4
        %v1783 = vsel %vm1105, %v1775, %v1782
        %1785 = vrot.lane.b32.xlu0 %v1779, 32
        %v1786 = vpop.permute.xlu0 %1785
        %1789 = vrot.lane.b32.xlu0 %v1781, 64
        %v1790 = vpop.permute.xlu0 %1789
        %1793 = vrot.lane.b32.xlu0 %v1783, 96
        %v1794 = vpop.permute.xlu0 %1793
        %v1796 = vsel %vm1467, %v1777, %v1786
        %vm1797 = vcmask 523264
        %v1798 = vsel %vm1797, %v1796, %v1790
        %vm1799 = vcmask 785408
        %v1800 = vsel %vm1799, %v1798, %v1794
        %v1801 = vpack.c.bf16 %v1800, %v1800
        %v1802 = vld [vmem:[#allocation10] sm:$0xf]
        %v1803 = vld [vmem:[#allocation10 + $0x4] sm:$0xf]
        %v1804 = vld [vmem:[#allocation10 + $0x8] sm:$0xf]
        %v1805 = vld [vmem:[#allocation10 + $0xc] sm:$0xf]
        %v1806 = vld [vmem:[#allocation10 + $0x10] sm:$0xf]
        %v1807 = vld [vmem:[#allocation10 + $0x14] sm:$0xf]
        %v1808 = vld [vmem:[#allocation10 + $0x18] sm:$0xf]
        %v1809 = vld [vmem:[#allocation10 + $0x1c] sm:$0xf]
        %v1810 = vld [vmem:[#allocation10 + $0x20] sm:$0xf]
        %v1811 = vld [vmem:[#allocation10 + $0x24] sm:$0xf]
        %v1812 = vld [vmem:[#allocation10 + $0x28] sm:$0xf]
        %v1813 = vld [vmem:[#allocation10 + $0x2c] sm:$0xf]
        %v1814 = vld [vmem:[#allocation10 + $0x30] sm:$0xf]
        %v1815 = vld [vmem:[#allocation10 + $0x34] sm:$0xf]
        %v1816 = vld [vmem:[#allocation10 + $0x38] sm:$0xf]
        %v1817 = vld [vmem:[#allocation10 + $0x3c] sm:$0xf]
        %v1818 = vld [vmem:[#allocation11] sm:$0x1]
        %v1820 = vperm.slane %v1818, 0
        %v1838 = vunpack.c.l.b16 %v1802
        %v1839 = vunpack.c.l.b16 %v1803
        %v1840 = vunpack.c.l.b16 %v1804
        %v1841 = vunpack.c.l.b16 %v1805
        %v1842 = vunpack.c.l.b16 %v1806
        %v1843 = vunpack.c.l.b16 %v1807
        %v1844 = vunpack.c.l.b16 %v1808
        %v1845 = vunpack.c.l.b16 %v1809
        %v1846 = vunpack.c.l.b16 %v1810
        %v1847 = vunpack.c.l.b16 %v1811
        %v1848 = vunpack.c.l.b16 %v1812
        %v1849 = vunpack.c.l.b16 %v1813
        %v1850 = vunpack.c.l.b16 %v1814
        %v1851 = vunpack.c.l.b16 %v1815
        %v1852 = vunpack.c.l.b16 %v1816
        %v1853 = vunpack.c.l.b16 %v1817
        %v1854 = vpack.c.b16 %v1839, %v1838
        %v1855 = vpack.c.b16 %v1841, %v1840
        %v1856 = vpack.c.b16 %v1843, %v1842
        %v1857 = vpack.c.b16 %v1845, %v1844
        %v1858 = vpack.c.b16 %v1847, %v1846
        %v1859 = vpack.c.b16 %v1849, %v1848
        %v1860 = vpack.c.b16 %v1851, %v1850
        %v1861 = vpack.c.b16 %v1853, %v1852
        %1870 = vmatpush.bf16.msra.mxu0 %v1861
        %1871 = vmatpush.bf16.msra.mxu0 %v1860
        %1872 = vmatpush.bf16.msra.mxu0 %v1859
        %1873 = vmatpush.bf16.msra.mxu0 %v1858
        %1874 = vmatpush.bf16.msra.mxu0 %v1857
        %1875 = vmatpush.bf16.msra.mxu0 %v1856
        %1876 = vmatpush.bf16.msra.mxu0 %v1855
        %1877 = vmatpush.bf16.msra.mxu0 %v1854
        %1878 = vmatmul.bf16.gmra.mxu0 %v1801
        %v1879 = vpop.f32.mrf.mxu0
        %v1880 = vadd.f32 %v1820, %v1879
        %v1881 = vpop.f32.mrf.mxu0
        %1882 = vdwg.mxu0
        %v1883 = vadd.f32 %v872, %v1880
        %1884 = vadd.xlane.f32.xlu0 %v1883
        %v1885 = vpop.xlane.xlu0 %1884
        %v1886 = vrcp.pop 128.0
        %v1887 = vmul.f32 128.0, %v1886
        %v1888 = vsub.f32 1.0, %v1887
        %v1889 = vmul.f32 %v1886, %v1888
        %v1890 = vadd.f32 %v1886, %v1889
        %vm1891 = vweird.f32 %v1886
        %v1892 = vsel %vm1891, %v1886, %v1890
        %v1893 = vmul.f32 %v1885, %v1892
        %v1894 = vsub.f32 %v1883, %v1893
        %v1895 = vmul.f32 %v1894, %v1894
        %1896 = vadd.xlane.f32.xlu0 %v1895
        %v1897 = vpop.xlane.xlu0 %1896
        %v1898 = vmul.f32 %v1897, %v1892
        %v1899 = vadd.f32 %v1898, 1e-05
        %v1900 = vrsqrt.pop %v1899
        %v1901 = vmul.f32 %v1900, %v1899
        %v1902 = vmul.f32 %v1901, %v1900
        %v1903 = vmul.f32 0.5, %v1902
        %v1904 = vsub.f32 1.5, %v1903
        %v1905 = vmul.f32 %v1900, %v1904
        %vm1906 = vweird.f32 %v1899
        %vm1907 = vweird.f32 %v1900
        %vm1908 = vmor %vm1906, %vm1907
        %v1909 = vsel %vm1908, %v1900, %v1905
        %v1910 = vmul.f32 %v1894, %v1909
        %v1911 = vperm.slane %v875, 0
        %v1912 = vmul.f32 %v1910, %v1911
        %v1913 = vperm.slane %v875, 1
        %v1914 = vadd.f32 %v1912, %v1913
        %v1915 = vpack.c.bf16 %v1914, %v1914
        %v1916 = vld [vmem:[#allocation13] sm:$0xf]
        %v1917 = vld [vmem:[#allocation13 + $0x4] sm:$0xf]
        %v1918 = vld [vmem:[#allocation13 + $0x8] sm:$0xf]
        %v1919 = vld [vmem:[#allocation13 + $0xc] sm:$0xf]
        %v1920 = vld [vmem:[#allocation13 + $0x10] sm:$0xf]
        %v1921 = vld [vmem:[#allocation13 + $0x14] sm:$0xf]
        %v1922 = vld [vmem:[#allocation13 + $0x18] sm:$0xf]
        %v1923 = vld [vmem:[#allocation13 + $0x1c] sm:$0xf]
        %v1924 = vld [vmem:[#allocation13 + $0x20] sm:$0xf]
        %v1925 = vld [vmem:[#allocation13 + $0x24] sm:$0xf]
        %v1926 = vld [vmem:[#allocation13 + $0x28] sm:$0xf]
        %v1927 = vld [vmem:[#allocation13 + $0x2c] sm:$0xf]
        %v1928 = vld [vmem:[#allocation13 + $0x30] sm:$0xf]
        %v1929 = vld [vmem:[#allocation13 + $0x34] sm:$0xf]
        %v1930 = vld [vmem:[#allocation13 + $0x38] sm:$0xf]
        %v1931 = vld [vmem:[#allocation13 + $0x3c] sm:$0xf]
        %v1932 = vld [vmem:[#allocation14] sm:$0x1]
        %v1934 = vperm.slane %v1932, 0
        %v1952 = vunpack.c.l.b16 %v1916
        %v1953 = vunpack.c.l.b16 %v1917
        %v1954 = vunpack.c.l.b16 %v1918
        %v1955 = vunpack.c.l.b16 %v1919
        %v1956 = vunpack.c.l.b16 %v1920
        %v1957 = vunpack.c.l.b16 %v1921
        %v1958 = vunpack.c.l.b16 %v1922
        %v1959 = vunpack.c.l.b16 %v1923
        %v1960 = vunpack.c.l.b16 %v1924
        %v1961 = vunpack.c.l.b16 %v1925
        %v1962 = vunpack.c.l.b16 %v1926
        %v1963 = vunpack.c.l.b16 %v1927
        %v1964 = vunpack.c.l.b16 %v1928
        %v1965 = vunpack.c.l.b16 %v1929
        %v1966 = vunpack.c.l.b16 %v1930
        %v1967 = vunpack.c.l.b16 %v1931
        %v1968 = vpack.c.b16 %v1953, %v1952
        %v1969 = vpack.c.b16 %v1955, %v1954
        %v1970 = vpack.c.b16 %v1957, %v1956
        %v1971 = vpack.c.b16 %v1959, %v1958
        %v1972 = vpack.c.b16 %v1961, %v1960
        %v1973 = vpack.c.b16 %v1963, %v1962
        %v1974 = vpack.c.b16 %v1965, %v1964
        %v1975 = vpack.c.b16 %v1967, %v1966
        %1984 = vmatpush.bf16.msra.mxu0 %v1975
        %1985 = vmatpush.bf16.msra.mxu0 %v1974
        %1986 = vmatpush.bf16.msra.mxu0 %v1973
        %1987 = vmatpush.bf16.msra.mxu0 %v1972
        %1988 = vmatpush.bf16.msra.mxu0 %v1971
        %1989 = vmatpush.bf16.msra.mxu0 %v1970
        %1990 = vmatpush.bf16.msra.mxu0 %v1969
        %1991 = vmatpush.bf16.msra.mxu0 %v1968
        %1992 = vmatmul.bf16.gmra.mxu0 %v1915
        %v1993 = vpop.f32.mrf.mxu0
        %v1994 = vadd.f32 %v1934, %v1993
        %v1995 = vpop.f32.mrf.mxu0
        %1996 = vdwg.mxu0
        %v1997 = vpack.c.bf16 %v874, %v873
        %v1998 = vld [vmem:[#allocation16] sm:$0xff]
        %v1999 = vld [vmem:[#allocation16 + $0x8] sm:$0xff]
        %v2000 = vld [vmem:[#allocation16 + $0x10] sm:$0xff]
        %v2001 = vld [vmem:[#allocation16 + $0x18] sm:$0xff]
        %v2002 = vld [vmem:[#allocation16 + $0x20] sm:$0xff]
        %v2003 = vld [vmem:[#allocation16 + $0x28] sm:$0xff]
        %v2004 = vld [vmem:[#allocation16 + $0x30] sm:$0xff]
        %v2005 = vld [vmem:[#allocation16 + $0x38] sm:$0xff]
        %v2006 = vld [vmem:[#allocation16 + $0x40] sm:$0xff]
        %v2007 = vld [vmem:[#allocation16 + $0x48] sm:$0xff]
        %v2008 = vld [vmem:[#allocation16 + $0x50] sm:$0xff]
        %v2009 = vld [vmem:[#allocation16 + $0x58] sm:$0xff]
        %v2010 = vld [vmem:[#allocation16 + $0x60] sm:$0xff]
        %v2011 = vld [vmem:[#allocation16 + $0x68] sm:$0xff]
        %v2012 = vld [vmem:[#allocation16 + $0x70] sm:$0xff]
        %v2013 = vld [vmem:[#allocation16 + $0x78] sm:$0xff]
        %v2014 = vld [vmem:[%s11] sm:$0x3]
        %v2016 = vperm.slane %v2014, 0
        %v2017 = vperm.slane %v2014, 1
        %v2036 = vunpack.c.l.b16 %v1998
        %v2037 = vunpack.c.h.b16 %v1998
        %v2038 = vunpack.c.l.b16 %v1999
        %v2039 = vunpack.c.h.b16 %v1999
        %v2040 = vunpack.c.l.b16 %v2000
        %v2041 = vunpack.c.h.b16 %v2000
        %v2042 = vunpack.c.l.b16 %v2001
        %v2043 = vunpack.c.h.b16 %v2001
        %v2044 = vunpack.c.l.b16 %v2002
        %v2045 = vunpack.c.h.b16 %v2002
        %v2046 = vunpack.c.l.b16 %v2003
        %v2047 = vunpack.c.h.b16 %v2003
        %v2048 = vunpack.c.l.b16 %v2004
        %v2049 = vunpack.c.h.b16 %v2004
        %v2050 = vunpack.c.l.b16 %v2005
        %v2051 = vunpack.c.h.b16 %v2005
        %v2052 = vunpack.c.l.b16 %v2006
        %v2053 = vunpack.c.h.b16 %v2006
        %v2054 = vunpack.c.l.b16 %v2007
        %v2055 = vunpack.c.h.b16 %v2007
        %v2056 = vunpack.c.l.b16 %v2008
        %v2057 = vunpack.c.h.b16 %v2008
        %v2058 = vunpack.c.l.b16 %v2009
        %v2059 = vunpack.c.h.b16 %v2009
        %v2060 = vunpack.c.l.b16 %v2010
        %v2061 = vunpack.c.h.b16 %v2010
        %v2062 = vunpack.c.l.b16 %v2011
        %v2063 = vunpack.c.h.b16 %v2011
        %v2064 = vunpack.c.l.b16 %v2012
        %v2065 = vunpack.c.h.b16 %v2012
        %v2066 = vunpack.c.l.b16 %v2013
        %v2067 = vunpack.c.h.b16 %v2013
        %v2068 = vpack.c.b16 %v2038, %v2036
        %v2069 = vpack.c.b16 %v2039, %v2037
        %v2070 = vpack.c.b16 %v2042, %v2040
        %v2071 = vpack.c.b16 %v2043, %v2041
        %v2072 = vpack.c.b16 %v2046, %v2044
        %v2073 = vpack.c.b16 %v2047, %v2045
        %v2074 = vpack.c.b16 %v2050, %v2048
        %v2075 = vpack.c.b16 %v2051, %v2049
        %v2076 = vpack.c.b16 %v2054, %v2052
        %v2077 = vpack.c.b16 %v2055, %v2053
        %v2078 = vpack.c.b16 %v2058, %v2056
        %v2079 = vpack.c.b16 %v2059, %v2057
        %v2080 = vpack.c.b16 %v2062, %v2060
        %v2081 = vpack.c.b16 %v2063, %v2061
        %v2082 = vpack.c.b16 %v2066, %v2064
        %v2083 = vpack.c.b16 %v2067, %v2065
        %2100 = vmatpush.bf16.msra.mxu0 %v2082
        %2101 = vmatpush.bf16.msra.mxu0 %v2080
        %2102 = vmatpush.bf16.msra.mxu0 %v2078
        %2103 = vmatpush.bf16.msra.mxu0 %v2076
        %2104 = vmatpush.bf16.msra.mxu0 %v2074
        %2105 = vmatpush.bf16.msra.mxu0 %v2072
        %2106 = vmatpush.bf16.msra.mxu0 %v2070
        %2107 = vmatpush.bf16.msra.mxu0 %v2068
        %2108 = vmatmul.bf16.gmra.mxu0 %v1997
        %v2109 = vpop.f32.mrf.mxu0
        %v2110 = vadd.f32 %v2016, %v2109
        %v2111 = vpop.f32.mrf.mxu0
        %v2112 = vadd.f32 %v2016, %v2111
        %2113 = vdwg.mxu0
        %2114 = vmatpush.bf16.msra.mxu0 %v2083
        %2115 = vmatpush.bf16.msra.mxu0 %v2081
        %2116 = vmatpush.bf16.msra.mxu0 %v2079
        %2117 = vmatpush.bf16.msra.mxu0 %v2077
        %2118 = vmatpush.bf16.msra.mxu0 %v2075
        %2119 = vmatpush.bf16.msra.mxu0 %v2073
        %2120 = vmatpush.bf16.msra.mxu0 %v2071
        %2121 = vmatpush.bf16.msra.mxu0 %v2069
        %2122 = vmatmul.bf16.gmra.mxu0 %v1997
        %v2123 = vpop.f32.mrf.mxu0
        %v2124 = vadd.f32 %v2017, %v2123
        %v2125 = vpop.f32.mrf.mxu0
        %v2126 = vadd.f32 %v2017, %v2125
        %2127 = vdwg.mxu0
        %2129 = vrot.lane.b32.xlu0 %v1994, 96
        %v2130 = vpop.permute.xlu0 %2129
        %2132 = vrot.lane.b32.xlu0 %v1994, 64
        %v2133 = vpop.permute.xlu0 %2132
        %2135 = vrot.lane.b32.xlu0 %v1994, 32
        %v2136 = vpop.permute.xlu0 %2135
        %v2138 = vrot.slane %v2133, 4
        %v2139 = vsel %vm1105, %v2138, %v1994
        %v2140 = vrot.slane %v1994, 4
        %v2141 = vsel %vm1105, %v2133, %v2140
        %v2143 = vunpack.c.l.s4 1983009808
        %v2144 = vunpack.c.0.s8 %v2143
        %v2145 = vperm.slane %v2139, %v2144
        %v2147 = vunpack.c.l.s4 1983009808
        %v2148 = vunpack.c.0.s8 %v2147
        %v2149 = vperm.slane %v2141, %v2148
        %v2150 = vrot.slane %v2136, 4
        %v2151 = vsel %vm1105, %v2150, %v2130
        %v2152 = vrot.slane %v2130, 4
        %v2153 = vsel %vm1105, %v2136, %v2152
        %v2155 = vunpack.c.l.s4 1983009808
        %v2156 = vunpack.c.0.s8 %v2155
        %v2157 = vperm.slane %v2151, %v2156
        %v2159 = vunpack.c.l.s4 1983009808
        %v2160 = vunpack.c.0.s8 %v2159
        %v2161 = vperm.slane %v2153, %v2160
        %v2162 = vrot.slane %v2157, 4
        %v2163 = vsel %vm1105, %v2162, %v2145
        %v2164 = vrot.slane %v2145, 4
        %v2165 = vsel %vm1105, %v2157, %v2164
        %v2167 = vunpack.c.l.s4 1934713408
        %v2168 = vunpack.c.0.s8 %v2167
        %v2169 = vperm.slane %v2163, %v2168
        %v2171 = vunpack.c.l.s4 1934713408
        %v2172 = vunpack.c.0.s8 %v2171
        %v2173 = vperm.slane %v2165, %v2172
        %v2174 = vrot.slane %v2161, 4
        %v2175 = vsel %vm1105, %v2174, %v2149
        %v2176 = vrot.slane %v2149, 4
        %v2177 = vsel %vm1105, %v2161, %v2176
        %v2179 = vunpack.c.l.s4 1934713408
        %v2180 = vunpack.c.0.s8 %v2179
        %v2181 = vperm.slane %v2175, %v2180
        %v2183 = vunpack.c.l.s4 1934713408
        %v2184 = vunpack.c.0.s8 %v2183
        %v2185 = vperm.slane %v2177, %v2184
        %v2186 = vrot.slane %v2169, 4
        %v2187 = vsel %vm1105, 0.0, %v2186
        %v2188 = vrot.slane %v2173, 4
        %v2189 = vsel %vm1105, 0.0, %v2188
        %v2190 = vrot.slane %v2181, 4
        %v2191 = vsel %vm1105, 0.0, %v2190
        %v2192 = vrot.slane %v2185, 4
        %v2193 = vsel %vm1105, 0.0, %v2192
        %v2194 = vsel %vm1105, %v2188, %v2169
        %v2196 = vunpack.c.l.s4 1983009808
        %v2197 = vunpack.c.0.s8 %v2196
        %v2198 = vperm.slane %v2194, %v2197
        %v2199 = vrot.slane %v2189, 4
        %v2200 = vsel %vm1105, %v2199, %v2187
        %v2202 = vunpack.c.l.s4 1983009808
        %v2203 = vunpack.c.0.s8 %v2202
        %v2204 = vperm.slane %v2200, %v2203
        %v2205 = vsel %vm1105, %v2192, %v2181
        %v2207 = vunpack.c.l.s4 1983009808
        %v2208 = vunpack.c.0.s8 %v2207
        %v2209 = vperm.slane %v2205, %v2208
        %v2210 = vrot.slane %v2193, 4
        %v2211 = vsel %vm1105, %v2210, %v2191
        %v2213 = vunpack.c.l.s4 1983009808
        %v2214 = vunpack.c.0.s8 %v2213
        %v2215 = vperm.slane %v2211, %v2214
        %v2216 = vrot.slane %v2204, 4
        %v2217 = vsel %vm1105, %v2216, %v2198
        %v2218 = vrot.slane %v2198, 4
        %v2219 = vsel %vm1105, %v2204, %v2218
        %v2221 = vunpack.c.l.s4 1934713408
        %v2222 = vunpack.c.0.s8 %v2221
        %v2223 = vperm.slane %v2217, %v2222
        %v2225 = vunpack.c.l.s4 1934713408
        %v2226 = vunpack.c.0.s8 %v2225
        %v2227 = vperm.slane %v2219, %v2226
        %v2228 = vrot.slane %v2215, 4
        %v2229 = vsel %vm1105, %v2228, %v2209
        %v2230 = vrot.slane %v2209, 4
        %v2231 = vsel %vm1105, %v2215, %v2230
        %v2233 = vunpack.c.l.s4 1934713408
        %v2234 = vunpack.c.0.s8 %v2233
        %v2235 = vperm.slane %v2229, %v2234
        %v2237 = vunpack.c.l.s4 1934713408
        %v2238 = vunpack.c.0.s8 %v2237
        %v2239 = vperm.slane %v2231, %v2238
        %v2240 = vrot.slane %v2235, 4
        %v2241 = vsel %vm1105, %v2240, %v2223
        %v2242 = vrot.slane %v2223, 4
        %v2243 = vsel %vm1105, %v2235, %v2242
        %v2244 = vrot.slane %v2239, 4
        %v2245 = vsel %vm1105, %v2244, %v2227
        %v2246 = vrot.slane %v2227, 4
        %v2247 = vsel %vm1105, %v2239, %v2246
        %v2248 = vpack.c.bf16 %v2241, %v2241
        %v2249 = vpack.c.bf16 %v2243, %v2243
        %v2250 = vpack.c.bf16 %v2245, %v2245
        %v2251 = vpack.c.bf16 %v2247, %v2247
        %2254 = vrot.lane.b32.xlu0 %v2110, 96
        %v2255 = vpop.permute.xlu0 %2254
        %2256 = vrot.lane.b32.xlu0 %v2112, 96
        %v2257 = vpop.permute.xlu0 %2256
        %2260 = vrot.lane.b32.xlu0 %v2110, 64
        %v2261 = vpop.permute.xlu0 %2260
        %2262 = vrot.lane.b32.xlu0 %v2112, 64
        %v2263 = vpop.permute.xlu0 %2262
        %2266 = vrot.lane.b32.xlu0 %v2110, 32
        %v2267 = vpop.permute.xlu0 %2266
        %2268 = vrot.lane.b32.xlu0 %v2112, 32
        %v2269 = vpop.permute.xlu0 %2268
        %v2272 = vrot.slane %v2261, 4
        %v2273 = vsel %vm1105, %v2272, %v2110
        %v2274 = vrot.slane %v2110, 4
        %v2275 = vsel %vm1105, %v2261, %v2274
        %v2277 = vunpack.c.l.s4 1983009808
        %v2278 = vunpack.c.0.s8 %v2277
        %v2279 = vperm.slane %v2273, %v2278
        %v2281 = vunpack.c.l.s4 1983009808
        %v2282 = vunpack.c.0.s8 %v2281
        %v2283 = vperm.slane %v2275, %v2282
        %v2284 = vrot.slane %v2267, 4
        %v2285 = vsel %vm1105, %v2284, %v2255
        %v2286 = vrot.slane %v2255, 4
        %v2287 = vsel %vm1105, %v2267, %v2286
        %v2289 = vunpack.c.l.s4 1983009808
        %v2290 = vunpack.c.0.s8 %v2289
        %v2291 = vperm.slane %v2285, %v2290
        %v2293 = vunpack.c.l.s4 1983009808
        %v2294 = vunpack.c.0.s8 %v2293
        %v2295 = vperm.slane %v2287, %v2294
        %v2296 = vrot.slane %v2291, 4
        %v2297 = vsel %vm1105, %v2296, %v2279
        %v2298 = vrot.slane %v2279, 4
        %v2299 = vsel %vm1105, %v2291, %v2298
        %v2301 = vunpack.c.l.s4 1934713408
        %v2302 = vunpack.c.0.s8 %v2301
        %v2303 = vperm.slane %v2297, %v2302
        %v2305 = vunpack.c.l.s4 1934713408
        %v2306 = vunpack.c.0.s8 %v2305
        %v2307 = vperm.slane %v2299, %v2306
        %v2308 = vrot.slane %v2295, 4
        %v2309 = vsel %vm1105, %v2308, %v2283
        %v2310 = vrot.slane %v2283, 4
        %v2311 = vsel %vm1105, %v2295, %v2310
        %v2313 = vunpack.c.l.s4 1934713408
        %v2314 = vunpack.c.0.s8 %v2313
        %v2315 = vperm.slane %v2309, %v2314
        %v2317 = vunpack.c.l.s4 1934713408
        %v2318 = vunpack.c.0.s8 %v2317
        %v2319 = vperm.slane %v2311, %v2318
        %v2320 = vrot.slane %v2303, 4
        %v2321 = vsel %vm1105, 0.0, %v2320
        %v2322 = vrot.slane %v2307, 4
        %v2323 = vsel %vm1105, 0.0, %v2322
        %v2324 = vrot.slane %v2315, 4
        %v2325 = vsel %vm1105, 0.0, %v2324
        %v2326 = vrot.slane %v2319, 4
        %v2327 = vsel %vm1105, 0.0, %v2326
        %v2328 = vrot.slane %v2263, 4
        %v2329 = vsel %vm1105, %v2328, %v2112
        %v2330 = vrot.slane %v2112, 4
        %v2331 = vsel %vm1105, %v2263, %v2330
        %v2333 = vunpack.c.l.s4 1983009808
        %v2334 = vunpack.c.0.s8 %v2333
        %v2335 = vperm.slane %v2329, %v2334
        %v2337 = vunpack.c.l.s4 1983009808
        %v2338 = vunpack.c.0.s8 %v2337
        %v2339 = vperm.slane %v2331, %v2338
        %v2340 = vrot.slane %v2269, 4
        %v2341 = vsel %vm1105, %v2340, %v2257
        %v2342 = vrot.slane %v2257, 4
        %v2343 = vsel %vm1105, %v2269, %v2342
        %v2345 = vunpack.c.l.s4 1983009808
        %v2346 = vunpack.c.0.s8 %v2345
        %v2347 = vperm.slane %v2341, %v2346
        %v2349 = vunpack.c.l.s4 1983009808
        %v2350 = vunpack.c.0.s8 %v2349
        %v2351 = vperm.slane %v2343, %v2350
        %v2352 = vrot.slane %v2347, 4
        %v2353 = vsel %vm1105, %v2352, %v2335
        %v2354 = vrot.slane %v2335, 4
        %v2355 = vsel %vm1105, %v2347, %v2354
        %v2357 = vunpack.c.l.s4 1934713408
        %v2358 = vunpack.c.0.s8 %v2357
        %v2359 = vperm.slane %v2353, %v2358
        %v2361 = vunpack.c.l.s4 1934713408
        %v2362 = vunpack.c.0.s8 %v2361
        %v2363 = vperm.slane %v2355, %v2362
        %v2364 = vrot.slane %v2351, 4
        %v2365 = vsel %vm1105, %v2364, %v2339
        %v2366 = vrot.slane %v2339, 4
        %v2367 = vsel %vm1105, %v2351, %v2366
        %v2369 = vunpack.c.l.s4 1934713408
        %v2370 = vunpack.c.0.s8 %v2369
        %v2371 = vperm.slane %v2365, %v2370
        %v2373 = vunpack.c.l.s4 1934713408
        %v2374 = vunpack.c.0.s8 %v2373
        %v2375 = vperm.slane %v2367, %v2374
        %v2376 = vrot.slane %v2359, 4
        %v2377 = vsel %vm1105, 0.0, %v2376
        %v2378 = vrot.slane %v2363, 4
        %v2379 = vsel %vm1105, 0.0, %v2378
        %v2380 = vrot.slane %v2371, 4
        %v2381 = vsel %vm1105, 0.0, %v2380
        %v2382 = vrot.slane %v2375, 4
        %v2383 = vsel %vm1105, 0.0, %v2382
        %v2384 = vsel %vm1105, %v2322, %v2303
        %v2386 = vunpack.c.l.s4 1983009808
        %v2387 = vunpack.c.0.s8 %v2386
        %v2388 = vperm.slane %v2384, %v2387
        %v2389 = vrot.slane %v2323, 4
        %v2390 = vsel %vm1105, %v2389, %v2321
        %v2392 = vunpack.c.l.s4 1983009808
        %v2393 = vunpack.c.0.s8 %v2392
        %v2394 = vperm.slane %v2390, %v2393
        %v2395 = vsel %vm1105, %v2326, %v2315
        %v2397 = vunpack.c.l.s4 1983009808
        %v2398 = vunpack.c.0.s8 %v2397
        %v2399 = vperm.slane %v2395, %v2398
        %v2400 = vrot.slane %v2327, 4
        %v2401 = vsel %vm1105, %v2400, %v2325
        %v2403 = vunpack.c.l.s4 1983009808
        %v2404 = vunpack.c.0.s8 %v2403
        %v2405 = vperm.slane %v2401, %v2404
        %v2406 = vrot.slane %v2394, 4
        %v2407 = vsel %vm1105, %v2406, %v2388
        %v2408 = vrot.slane %v2388, 4
        %v2409 = vsel %vm1105, %v2394, %v2408
        %v2411 = vunpack.c.l.s4 1934713408
        %v2412 = vunpack.c.0.s8 %v2411
        %v2413 = vperm.slane %v2407, %v2412
        %v2415 = vunpack.c.l.s4 1934713408
        %v2416 = vunpack.c.0.s8 %v2415
        %v2417 = vperm.slane %v2409, %v2416
        %v2418 = vrot.slane %v2405, 4
        %v2419 = vsel %vm1105, %v2418, %v2399
        %v2420 = vrot.slane %v2399, 4
        %v2421 = vsel %vm1105, %v2405, %v2420
        %v2423 = vunpack.c.l.s4 1934713408
        %v2424 = vunpack.c.0.s8 %v2423
        %v2425 = vperm.slane %v2419, %v2424
        %v2427 = vunpack.c.l.s4 1934713408
        %v2428 = vunpack.c.0.s8 %v2427
        %v2429 = vperm.slane %v2421, %v2428
        %v2430 = vrot.slane %v2425, 4
        %v2431 = vsel %vm1105, %v2430, %v2413
        %v2432 = vrot.slane %v2413, 4
        %v2433 = vsel %vm1105, %v2425, %v2432
        %v2434 = vrot.slane %v2429, 4
        %v2435 = vsel %vm1105, %v2434, %v2417
        %v2436 = vrot.slane %v2417, 4
        %v2437 = vsel %vm1105, %v2429, %v2436
        %v2438 = vsel %vm1105, %v2378, %v2359
        %v2440 = vunpack.c.l.s4 1983009808
        %v2441 = vunpack.c.0.s8 %v2440
        %v2442 = vperm.slane %v2438, %v2441
        %v2443 = vrot.slane %v2379, 4
        %v2444 = vsel %vm1105, %v2443, %v2377
        %v2446 = vunpack.c.l.s4 1983009808
        %v2447 = vunpack.c.0.s8 %v2446
        %v2448 = vperm.slane %v2444, %v2447
        %v2449 = vsel %vm1105, %v2382, %v2371
        %v2451 = vunpack.c.l.s4 1983009808
        %v2452 = vunpack.c.0.s8 %v2451
        %v2453 = vperm.slane %v2449, %v2452
        %v2454 = vrot.slane %v2383, 4
        %v2455 = vsel %vm1105, %v2454, %v2381
        %v2457 = vunpack.c.l.s4 1983009808
        %v2458 = vunpack.c.0.s8 %v2457
        %v2459 = vperm.slane %v2455, %v2458
        %v2460 = vrot.slane %v2448, 4
        %v2461 = vsel %vm1105, %v2460, %v2442
        %v2462 = vrot.slane %v2442, 4
        %v2463 = vsel %vm1105, %v2448, %v2462
        %v2465 = vunpack.c.l.s4 1934713408
        %v2466 = vunpack.c.0.s8 %v2465
        %v2467 = vperm.slane %v2461, %v2466
        %v2469 = vunpack.c.l.s4 1934713408
        %v2470 = vunpack.c.0.s8 %v2469
        %v2471 = vperm.slane %v2463, %v2470
        %v2472 = vrot.slane %v2459, 4
        %v2473 = vsel %vm1105, %v2472, %v2453
        %v2474 = vrot.slane %v2453, 4
        %v2475 = vsel %vm1105, %v2459, %v2474
        %v2477 = vunpack.c.l.s4 1934713408
        %v2478 = vunpack.c.0.s8 %v2477
        %v2479 = vperm.slane %v2473, %v2478
        %v2481 = vunpack.c.l.s4 1934713408
        %v2482 = vunpack.c.0.s8 %v2481
        %v2483 = vperm.slane %v2475, %v2482
        %v2484 = vrot.slane %v2479, 4
        %v2485 = vsel %vm1105, %v2484, %v2467
        %v2486 = vrot.slane %v2467, 4
        %v2487 = vsel %vm1105, %v2479, %v2486
        %v2488 = vrot.slane %v2483, 4
        %v2489 = vsel %vm1105, %v2488, %v2471
        %v2490 = vrot.slane %v2471, 4
        %v2491 = vsel %vm1105, %v2483, %v2490
        %v2492 = vpack.c.bf16 %v2431, %v2431
        %v2493 = vpack.c.bf16 %v2485, %v2485
        %v2494 = vpack.c.bf16 %v2433, %v2433
        %v2495 = vpack.c.bf16 %v2487, %v2487
        %v2496 = vpack.c.bf16 %v2435, %v2435
        %v2497 = vpack.c.bf16 %v2489, %v2489
        %v2498 = vpack.c.bf16 %v2437, %v2437
        %v2499 = vpack.c.bf16 %v2491, %v2491
        %2502 = vrot.lane.b32.xlu0 %v2124, 96
        %v2503 = vpop.permute.xlu0 %2502
        %2504 = vrot.lane.b32.xlu0 %v2126, 96
        %v2505 = vpop.permute.xlu0 %2504
        %2508 = vrot.lane.b32.xlu0 %v2124, 64
        %v2509 = vpop.permute.xlu0 %2508
        %2510 = vrot.lane.b32.xlu0 %v2126, 64
        %v2511 = vpop.permute.xlu0 %2510
        %2514 = vrot.lane.b32.xlu0 %v2124, 32
        %v2515 = vpop.permute.xlu0 %2514
        %2516 = vrot.lane.b32.xlu0 %v2126, 32
        %v2517 = vpop.permute.xlu0 %2516
        %v2520 = vrot.slane %v2509, 4
        %v2521 = vsel %vm1105, %v2520, %v2124
        %v2522 = vrot.slane %v2124, 4
        %v2523 = vsel %vm1105, %v2509, %v2522
        %v2525 = vunpack.c.l.s4 1983009808
        %v2526 = vunpack.c.0.s8 %v2525
        %v2527 = vperm.slane %v2521, %v2526
        %v2529 = vunpack.c.l.s4 1983009808
        %v2530 = vunpack.c.0.s8 %v2529
        %v2531 = vperm.slane %v2523, %v2530
        %v2532 = vrot.slane %v2515, 4
        %v2533 = vsel %vm1105, %v2532, %v2503
        %v2534 = vrot.slane %v2503, 4
        %v2535 = vsel %vm1105, %v2515, %v2534
        %v2537 = vunpack.c.l.s4 1983009808
        %v2538 = vunpack.c.0.s8 %v2537
        %v2539 = vperm.slane %v2533, %v2538
        %v2541 = vunpack.c.l.s4 1983009808
        %v2542 = vunpack.c.0.s8 %v2541
        %v2543 = vperm.slane %v2535, %v2542
        %v2544 = vrot.slane %v2539, 4
        %v2545 = vsel %vm1105, %v2544, %v2527
        %v2546 = vrot.slane %v2527, 4
        %v2547 = vsel %vm1105, %v2539, %v2546
        %v2549 = vunpack.c.l.s4 1934713408
        %v2550 = vunpack.c.0.s8 %v2549
        %v2551 = vperm.slane %v2545, %v2550
        %v2553 = vunpack.c.l.s4 1934713408
        %v2554 = vunpack.c.0.s8 %v2553
        %v2555 = vperm.slane %v2547, %v2554
        %v2556 = vrot.slane %v2543, 4
        %v2557 = vsel %vm1105, %v2556, %v2531
        %v2558 = vrot.slane %v2531, 4
        %v2559 = vsel %vm1105, %v2543, %v2558
        %v2561 = vunpack.c.l.s4 1934713408
        %v2562 = vunpack.c.0.s8 %v2561
        %v2563 = vperm.slane %v2557, %v2562
        %v2565 = vunpack.c.l.s4 1934713408
        %v2566 = vunpack.c.0.s8 %v2565
        %v2567 = vperm.slane %v2559, %v2566
        %v2568 = vrot.slane %v2551, 4
        %v2569 = vsel %vm1105, 0.0, %v2568
        %v2570 = vrot.slane %v2555, 4
        %v2571 = vsel %vm1105, 0.0, %v2570
        %v2572 = vrot.slane %v2563, 4
        %v2573 = vsel %vm1105, 0.0, %v2572
        %v2574 = vrot.slane %v2567, 4
        %v2575 = vsel %vm1105, 0.0, %v2574
        %v2576 = vrot.slane %v2511, 4
        %v2577 = vsel %vm1105, %v2576, %v2126
        %v2578 = vrot.slane %v2126, 4
        %v2579 = vsel %vm1105, %v2511, %v2578
        %v2581 = vunpack.c.l.s4 1983009808
        %v2582 = vunpack.c.0.s8 %v2581
        %v2583 = vperm.slane %v2577, %v2582
        %v2585 = vunpack.c.l.s4 1983009808
        %v2586 = vunpack.c.0.s8 %v2585
        %v2587 = vperm.slane %v2579, %v2586
        %v2588 = vrot.slane %v2517, 4
        %v2589 = vsel %vm1105, %v2588, %v2505
        %v2590 = vrot.slane %v2505, 4
        %v2591 = vsel %vm1105, %v2517, %v2590
        %v2593 = vunpack.c.l.s4 1983009808
        %v2594 = vunpack.c.0.s8 %v2593
        %v2595 = vperm.slane %v2589, %v2594
        %v2597 = vunpack.c.l.s4 1983009808
        %v2598 = vunpack.c.0.s8 %v2597
        %v2599 = vperm.slane %v2591, %v2598
        %v2600 = vrot.slane %v2595, 4
        %v2601 = vsel %vm1105, %v2600, %v2583
        %v2602 = vrot.slane %v2583, 4
        %v2603 = vsel %vm1105, %v2595, %v2602
        %v2605 = vunpack.c.l.s4 1934713408
        %v2606 = vunpack.c.0.s8 %v2605
        %v2607 = vperm.slane %v2601, %v2606
        %v2609 = vunpack.c.l.s4 1934713408
        %v2610 = vunpack.c.0.s8 %v2609
        %v2611 = vperm.slane %v2603, %v2610
        %v2612 = vrot.slane %v2599, 4
        %v2613 = vsel %vm1105, %v2612, %v2587
        %v2614 = vrot.slane %v2587, 4
        %v2615 = vsel %vm1105, %v2599, %v2614
        %v2617 = vunpack.c.l.s4 1934713408
        %v2618 = vunpack.c.0.s8 %v2617
        %v2619 = vperm.slane %v2613, %v2618
        %v2621 = vunpack.c.l.s4 1934713408
        %v2622 = vunpack.c.0.s8 %v2621
        %v2623 = vperm.slane %v2615, %v2622
        %v2624 = vrot.slane %v2607, 4
        %v2625 = vsel %vm1105, 0.0, %v2624
        %v2626 = vrot.slane %v2611, 4
        %v2627 = vsel %vm1105, 0.0, %v2626
        %v2628 = vrot.slane %v2619, 4
        %v2629 = vsel %vm1105, 0.0, %v2628
        %v2630 = vrot.slane %v2623, 4
        %v2631 = vsel %vm1105, 0.0, %v2630
        %v2632 = vsel %vm1105, %v2570, %v2551
        %v2634 = vunpack.c.l.s4 1983009808
        %v2635 = vunpack.c.0.s8 %v2634
        %v2636 = vperm.slane %v2632, %v2635
        %v2637 = vrot.slane %v2571, 4
        %v2638 = vsel %vm1105, %v2637, %v2569
        %v2640 = vunpack.c.l.s4 1983009808
        %v2641 = vunpack.c.0.s8 %v2640
        %v2642 = vperm.slane %v2638, %v2641
        %v2643 = vsel %vm1105, %v2574, %v2563
        %v2645 = vunpack.c.l.s4 1983009808
        %v2646 = vunpack.c.0.s8 %v2645
        %v2647 = vperm.slane %v2643, %v2646
        %v2648 = vrot.slane %v2575, 4
        %v2649 = vsel %vm1105, %v2648, %v2573
        %v2651 = vunpack.c.l.s4 1983009808
        %v2652 = vunpack.c.0.s8 %v2651
        %v2653 = vperm.slane %v2649, %v2652
        %v2654 = vrot.slane %v2642, 4
        %v2655 = vsel %vm1105, %v2654, %v2636
        %v2656 = vrot.slane %v2636, 4
        %v2657 = vsel %vm1105, %v2642, %v2656
        %v2659 = vunpack.c.l.s4 1934713408
        %v2660 = vunpack.c.0.s8 %v2659
        %v2661 = vperm.slane %v2655, %v2660
        %v2663 = vunpack.c.l.s4 1934713408
        %v2664 = vunpack.c.0.s8 %v2663
        %v2665 = vperm.slane %v2657, %v2664
        %v2666 = vrot.slane %v2653, 4
        %v2667 = vsel %vm1105, %v2666, %v2647
        %v2668 = vrot.slane %v2647, 4
        %v2669 = vsel %vm1105, %v2653, %v2668
        %v2671 = vunpack.c.l.s4 1934713408
        %v2672 = vunpack.c.0.s8 %v2671
        %v2673 = vperm.slane %v2667, %v2672
        %v2675 = vunpack.c.l.s4 1934713408
        %v2676 = vunpack.c.0.s8 %v2675
        %v2677 = vperm.slane %v2669, %v2676
        %v2678 = vrot.slane %v2673, 4
        %v2679 = vsel %vm1105, %v2678, %v2661
        %v2680 = vrot.slane %v2661, 4
        %v2681 = vsel %vm1105, %v2673, %v2680
        %v2682 = vrot.slane %v2677, 4
        %v2683 = vsel %vm1105, %v2682, %v2665
        %v2684 = vrot.slane %v2665, 4
        %v2685 = vsel %vm1105, %v2677, %v2684
        %v2686 = vsel %vm1105, %v2626, %v2607
        %v2688 = vunpack.c.l.s4 1983009808
        %v2689 = vunpack.c.0.s8 %v2688
        %v2690 = vperm.slane %v2686, %v2689
        %v2691 = vrot.slane %v2627, 4
        %v2692 = vsel %vm1105, %v2691, %v2625
        %v2694 = vunpack.c.l.s4 1983009808
        %v2695 = vunpack.c.0.s8 %v2694
        %v2696 = vperm.slane %v2692, %v2695
        %v2697 = vsel %vm1105, %v2630, %v2619
        %v2699 = vunpack.c.l.s4 1983009808
        %v2700 = vunpack.c.0.s8 %v2699
        %v2701 = vperm.slane %v2697, %v2700
        %v2702 = vrot.slane %v2631, 4
        %v2703 = vsel %vm1105, %v2702, %v2629
        %v2705 = vunpack.c.l.s4 1983009808
        %v2706 = vunpack.c.0.s8 %v2705
        %v2707 = vperm.slane %v2703, %v2706
        %v2708 = vrot.slane %v2696, 4
        %v2709 = vsel %vm1105, %v2708, %v2690
        %v2710 = vrot.slane %v2690, 4
        %v2711 = vsel %vm1105, %v2696, %v2710
        %v2713 = vunpack.c.l.s4 1934713408
        %v2714 = vunpack.c.0.s8 %v2713
        %v2715 = vperm.slane %v2709, %v2714
        %v2717 = vunpack.c.l.s4 1934713408
        %v2718 = vunpack.c.0.s8 %v2717
        %v2719 = vperm.slane %v2711, %v2718
        %v2720 = vrot.slane %v2707, 4
        %v2721 = vsel %vm1105, %v2720, %v2701
        %v2722 = vrot.slane %v2701, 4
        %v2723 = vsel %vm1105, %v2707, %v2722
        %v2725 = vunpack.c.l.s4 1934713408
        %v2726 = vunpack.c.0.s8 %v2725
        %v2727 = vperm.slane %v2721, %v2726
        %v2729 = vunpack.c.l.s4 1934713408
        %v2730 = vunpack.c.0.s8 %v2729
        %v2731 = vperm.slane %v2723, %v2730
        %v2732 = vrot.slane %v2727, 4
        %v2733 = vsel %vm1105, %v2732, %v2715
        %v2734 = vrot.slane %v2715, 4
        %v2735 = vsel %vm1105, %v2727, %v2734
        %v2736 = vrot.slane %v2731, 4
        %v2737 = vsel %vm1105, %v2736, %v2719
        %v2738 = vrot.slane %v2719, 4
        %v2739 = vsel %vm1105, %v2731, %v2738
        %v2740 = vpack.c.bf16 %v2679, %v2679
        %v2741 = vpack.c.bf16 %v2733, %v2733
        %v2742 = vpack.c.bf16 %v2681, %v2681
        %v2743 = vpack.c.bf16 %v2735, %v2735
        %v2744 = vpack.c.bf16 %v2683, %v2683
        %v2745 = vpack.c.bf16 %v2737, %v2737
        %v2746 = vpack.c.bf16 %v2685, %v2685
        %v2747 = vpack.c.bf16 %v2739, %v2739
        %v2749 = vsel %vm1467, %v2248, 0
        %v2752 = vsel %vm1467, %v2492, 0
        %2754 = vmatpush.bf16.xpose.msra.mxu0 0
        %2755 = vmatpush.bf16.xpose.msra.mxu0 0
        %2756 = vmatpush.bf16.xpose.msra.mxu0 0
        %2757 = vmatpush.bf16.xpose.msra.mxu0 0
        %2758 = vmatpush.bf16.xpose.msra.mxu0 0
        %2759 = vmatpush.bf16.xpose.msra.mxu0 0
        %2760 = vmatpush.bf16.xpose.msra.mxu0 0
        %2761 = vmatpush.bf16.xpose.msra.mxu0 %v2752
        %2762 = vmatmul.bf16.gmra.mxu0 %v2749
        %v2763 = vpop.f32.mrf.mxu0
        %v2764 = vadd.f32 0.0, %v2763
        %v2765 = vpop.f32.mrf.mxu0
        %2766 = vdwg.mxu0
        %v2768 = vsel %vm1467, %v2249, 0
        %v2771 = vsel %vm1467, %v2494, 0
        %2773 = vmatpush.bf16.xpose.msra.mxu0 0
        %2774 = vmatpush.bf16.xpose.msra.mxu0 0
        %2775 = vmatpush.bf16.xpose.msra.mxu0 0
        %2776 = vmatpush.bf16.xpose.msra.mxu0 0
        %2777 = vmatpush.bf16.xpose.msra.mxu0 0
        %2778 = vmatpush.bf16.xpose.msra.mxu0 0
        %2779 = vmatpush.bf16.xpose.msra.mxu0 0
        %2780 = vmatpush.bf16.xpose.msra.mxu0 %v2771
        %2781 = vmatmul.bf16.gmra.mxu0 %v2768
        %v2782 = vpop.f32.mrf.mxu0
        %v2783 = vadd.f32 0.0, %v2782
        %v2784 = vpop.f32.mrf.mxu0
        %2785 = vdwg.mxu0
        %v2787 = vsel %vm1467, %v2250, 0
        %v2790 = vsel %vm1467, %v2496, 0
        %2792 = vmatpush.bf16.xpose.msra.mxu0 0
        %2793 = vmatpush.bf16.xpose.msra.mxu0 0
        %2794 = vmatpush.bf16.xpose.msra.mxu0 0
        %2795 = vmatpush.bf16.xpose.msra.mxu0 0
        %2796 = vmatpush.bf16.xpose.msra.mxu0 0
        %2797 = vmatpush.bf16.xpose.msra.mxu0 0
        %2798 = vmatpush.bf16.xpose.msra.mxu0 0
        %2799 = vmatpush.bf16.xpose.msra.mxu0 %v2790
        %2800 = vmatmul.bf16.gmra.mxu0 %v2787
        %v2801 = vpop.f32.mrf.mxu0
        %v2802 = vadd.f32 0.0, %v2801
        %v2803 = vpop.f32.mrf.mxu0
        %2804 = vdwg.mxu0
        %v2806 = vsel %vm1467, %v2251, 0
        %v2809 = vsel %vm1467, %v2498, 0
        %2811 = vmatpush.bf16.xpose.msra.mxu0 0
        %2812 = vmatpush.bf16.xpose.msra.mxu0 0
        %2813 = vmatpush.bf16.xpose.msra.mxu0 0
        %2814 = vmatpush.bf16.xpose.msra.mxu0 0
        %2815 = vmatpush.bf16.xpose.msra.mxu0 0
        %2816 = vmatpush.bf16.xpose.msra.mxu0 0
        %2817 = vmatpush.bf16.xpose.msra.mxu0 0
        %2818 = vmatpush.bf16.xpose.msra.mxu0 %v2809
        %2819 = vmatmul.bf16.gmra.mxu0 %v2806
        %v2820 = vpop.f32.mrf.mxu0
        %v2821 = vadd.f32 0.0, %v2820
        %v2822 = vpop.f32.mrf.mxu0
        %2823 = vdwg.mxu0
        %v2824 = vperm.slane %v885, 0
        %v2825 = vadd.f32 %v2764, %v2824
        %v2826 = vadd.f32 %v2783, %v2824
        %v2827 = vadd.f32 %v2802, %v2824
        %v2828 = vadd.f32 %v2821, %v2824
        %v2829 = vsel %vm1548, %v2825, -inf
        %2830 = vmax.xlane.f32.xlu0 %v2829
        %v2831 = vpop.xlane.xlu0 %2830
        %v2832 = vsel %vm1548, %v2826, -inf
        %2833 = vmax.xlane.f32.xlu0 %v2832
        %v2834 = vpop.xlane.xlu0 %2833
        %v2835 = vsel %vm1548, %v2827, -inf
        %2836 = vmax.xlane.f32.xlu0 %v2835
        %v2837 = vpop.xlane.xlu0 %2836
        %v2838 = vsel %vm1548, %v2828, -inf
        %2839 = vmax.xlane.f32.xlu0 %v2838
        %v2840 = vpop.xlane.xlu0 %2839
        %v2841 = vsub.f32 %v2825, %v2831
        %v2842 = vsub.f32 %v2826, %v2834
        %v2843 = vsub.f32 %v2827, %v2837
        %v2844 = vsub.f32 %v2828, %v2840
        %v2845 = vmul.f32 %v2841, 1.442695
        %v2846 = vpow.pop %v2845
        %v2847 = vmul.f32 %v2842, 1.442695
        %v2848 = vpow.pop %v2847
        %v2849 = vmul.f32 %v2843, 1.442695
        %v2850 = vpow.pop %v2849
        %v2851 = vmul.f32 %v2844, 1.442695
        %v2852 = vpow.pop %v2851
        %v2853 = vsel %vm1548, %v2846, 0.0
        %2854 = vadd.xlane.f32.xlu0 %v2853
        %v2855 = vpop.xlane.xlu0 %2854
        %v2856 = vsel %vm1548, %v2848, 0.0
        %2857 = vadd.xlane.f32.xlu0 %v2856
        %v2858 = vpop.xlane.xlu0 %2857
        %v2859 = vsel %vm1548, %v2850, 0.0
        %2860 = vadd.xlane.f32.xlu0 %v2859
        %v2861 = vpop.xlane.xlu0 %2860
        %v2862 = vsel %vm1548, %v2852, 0.0
        %2863 = vadd.xlane.f32.xlu0 %v2862
        %v2864 = vpop.xlane.xlu0 %2863
        %v2865 = vpack.c.bf16 %v2846, %v2846
        %v2866 = vpack.c.bf16 %v2848, %v2848
        %v2867 = vpack.c.bf16 %v2850, %v2850
        %v2868 = vpack.c.bf16 %v2852, %v2852
        %v2870 = vsel %vm1548, %v2865, 0
        %v2873 = vsel %vm1592, %v2740, 0
        %2875 = vmatpush.bf16.msra.mxu0 0
        %2876 = vmatpush.bf16.msra.mxu0 0
        %2877 = vmatpush.bf16.msra.mxu0 0
        %2878 = vmatpush.bf16.msra.mxu0 0
        %2879 = vmatpush.bf16.msra.mxu0 0
        %2880 = vmatpush.bf16.msra.mxu0 0
        %2881 = vmatpush.bf16.msra.mxu0 0
        %2882 = vmatpush.bf16.msra.mxu0 %v2873
        %2883 = vmatmul.bf16.gmra.mxu0 %v2870
        %v2884 = vpop.f32.mrf.mxu0
        %v2885 = vadd.f32 0.0, %v2884
        %v2886 = vpop.f32.mrf.mxu0
        %2887 = vdwg.mxu0
        %v2889 = vsel %vm1548, %v2866, 0
        %v2892 = vsel %vm1592, %v2742, 0
        %2894 = vmatpush.bf16.msra.mxu0 0
        %2895 = vmatpush.bf16.msra.mxu0 0
        %2896 = vmatpush.bf16.msra.mxu0 0
        %2897 = vmatpush.bf16.msra.mxu0 0
        %2898 = vmatpush.bf16.msra.mxu0 0
        %2899 = vmatpush.bf16.msra.mxu0 0
        %2900 = vmatpush.bf16.msra.mxu0 0
        %2901 = vmatpush.bf16.msra.mxu0 %v2892
        %2902 = vmatmul.bf16.gmra.mxu0 %v2889
        %v2903 = vpop.f32.mrf.mxu0
        %v2904 = vadd.f32 0.0, %v2903
        %v2905 = vpop.f32.mrf.mxu0
        %2906 = vdwg.mxu0
        %v2908 = vsel %vm1548, %v2867, 0
        %v2911 = vsel %vm1592, %v2744, 0
        %2913 = vmatpush.bf16.msra.mxu0 0
        %2914 = vmatpush.bf16.msra.mxu0 0
        %2915 = vmatpush.bf16.msra.mxu0 0
        %2916 = vmatpush.bf16.msra.mxu0 0
        %2917 = vmatpush.bf16.msra.mxu0 0
        %2918 = vmatpush.bf16.msra.mxu0 0
        %2919 = vmatpush.bf16.msra.mxu0 0
        %2920 = vmatpush.bf16.msra.mxu0 %v2911
        %2921 = vmatmul.bf16.gmra.mxu0 %v2908
        %v2922 = vpop.f32.mrf.mxu0
        %v2923 = vadd.f32 0.0, %v2922
        %v2924 = vpop.f32.mrf.mxu0
        %2925 = vdwg.mxu0
        %v2927 = vsel %vm1548, %v2868, 0
        %v2930 = vsel %vm1592, %v2746, 0
        %2932 = vmatpush.bf16.msra.mxu0 0
        %2933 = vmatpush.bf16.msra.mxu0 0
        %2934 = vmatpush.bf16.msra.mxu0 0
        %2935 = vmatpush.bf16.msra.mxu0 0
        %2936 = vmatpush.bf16.msra.mxu0 0
        %2937 = vmatpush.bf16.msra.mxu0 0
        %2938 = vmatpush.bf16.msra.mxu0 0
        %2939 = vmatpush.bf16.msra.mxu0 %v2930
        %2940 = vmatmul.bf16.gmra.mxu0 %v2927
        %v2941 = vpop.f32.mrf.mxu0
        %v2942 = vadd.f32 0.0, %v2941
        %v2943 = vpop.f32.mrf.mxu0
        %2944 = vdwg.mxu0
        %v2946 = vsel %vm1467, %v2493, 0
        %2948 = vmatpush.bf16.xpose.msra.mxu0 0
        %2949 = vmatpush.bf16.xpose.msra.mxu0 0
        %2950 = vmatpush.bf16.xpose.msra.mxu0 0
        %2951 = vmatpush.bf16.xpose.msra.mxu0 0
        %2952 = vmatpush.bf16.xpose.msra.mxu0 0
        %2953 = vmatpush.bf16.xpose.msra.mxu0 0
        %2954 = vmatpush.bf16.xpose.msra.mxu0 0
        %2955 = vmatpush.bf16.xpose.msra.mxu0 %v2946
        %2956 = vmatmul.bf16.gmra.mxu0 %v2749
        %v2957 = vpop.f32.mrf.mxu0
        %v2958 = vadd.f32 0.0, %v2957
        %v2959 = vpop.f32.mrf.mxu0
        %2960 = vdwg.mxu0
        %v2962 = vsel %vm1467, %v2495, 0
        %2964 = vmatpush.bf16.xpose.msra.mxu0 0
        %2965 = vmatpush.bf16.xpose.msra.mxu0 0
        %2966 = vmatpush.bf16.xpose.msra.mxu0 0
        %2967 = vmatpush.bf16.xpose.msra.mxu0 0
        %2968 = vmatpush.bf16.xpose.msra.mxu0 0
        %2969 = vmatpush.bf16.xpose.msra.mxu0 0
        %2970 = vmatpush.bf16.xpose.msra.mxu0 0
        %2971 = vmatpush.bf16.xpose.msra.mxu0 %v2962
        %2972 = vmatmul.bf16.gmra.mxu0 %v2768
        %v2973 = vpop.f32.mrf.mxu0
        %v2974 = vadd.f32 0.0, %v2973
        %v2975 = vpop.f32.mrf.mxu0
        %2976 = vdwg.mxu0
        %v2978 = vsel %vm1467, %v2497, 0
        %2980 = vmatpush.bf16.xpose.msra.mxu0 0
        %2981 = vmatpush.bf16.xpose.msra.mxu0 0
        %2982 = vmatpush.bf16.xpose.msra.mxu0 0
        %2983 = vmatpush.bf16.xpose.msra.mxu0 0
        %2984 = vmatpush.bf16.xpose.msra.mxu0 0
        %2985 = vmatpush.bf16.xpose.msra.mxu0 0
        %2986 = vmatpush.bf16.xpose.msra.mxu0 0
        %2987 = vmatpush.bf16.xpose.msra.mxu0 %v2978
        %2988 = vmatmul.bf16.gmra.mxu0 %v2787
        %v2989 = vpop.f32.mrf.mxu0
        %v2990 = vadd.f32 0.0, %v2989
        %v2991 = vpop.f32.mrf.mxu0
        %2992 = vdwg.mxu0
        %v2994 = vsel %vm1467, %v2499, 0
        %2996 = vmatpush.bf16.xpose.msra.mxu0 0
        %2997 = vmatpush.bf16.xpose.msra.mxu0 0
        %2998 = vmatpush.bf16.xpose.msra.mxu0 0
        %2999 = vmatpush.bf16.xpose.msra.mxu0 0
        %3000 = vmatpush.bf16.xpose.msra.mxu0 0
        %3001 = vmatpush.bf16.xpose.msra.mxu0 0
        %3002 = vmatpush.bf16.xpose.msra.mxu0 0
        %3003 = vmatpush.bf16.xpose.msra.mxu0 %v2994
        %3004 = vmatmul.bf16.gmra.mxu0 %v2806
        %v3005 = vpop.f32.mrf.mxu0
        %v3006 = vadd.f32 0.0, %v3005
        %v3007 = vpop.f32.mrf.mxu0
        %3008 = vdwg.mxu0
        %3010 = vrot.lane.b32.xlu0 %v2824, 120
        %v3011 = vpop.permute.xlu0 %3010
        %v3013 = vadd.f32 %v2958, %v3011
        %v3014 = vadd.f32 %v2974, %v3011
        %v3015 = vadd.f32 %v2990, %v3011
        %v3016 = vadd.f32 %v3006, %v3011
        %v3017 = vsel %vm1548, %v3013, -inf
        %3018 = vmax.xlane.f32.xlu0 %v3017
        %v3019 = vpop.xlane.xlu0 %3018
        %v3020 = vsel %vm1548, %v3014, -inf
        %3021 = vmax.xlane.f32.xlu0 %v3020
        %v3022 = vpop.xlane.xlu0 %3021
        %v3023 = vsel %vm1548, %v3015, -inf
        %3024 = vmax.xlane.f32.xlu0 %v3023
        %v3025 = vpop.xlane.xlu0 %3024
        %v3026 = vsel %vm1548, %v3016, -inf
        %3027 = vmax.xlane.f32.xlu0 %v3026
        %v3028 = vpop.xlane.xlu0 %3027
        %v3029 = vmax.f32 %v2831, %v3019
        %v3030 = vmax.f32 %v2834, %v3022
        %v3031 = vmax.f32 %v2837, %v3025
        %v3032 = vmax.f32 %v2840, %v3028
        %v3033 = vsub.f32 %v2831, %v3029
        %v3034 = vsub.f32 %v2834, %v3030
        %v3035 = vsub.f32 %v2837, %v3031
        %v3036 = vsub.f32 %v2840, %v3032
        %v3037 = vmul.f32 %v3033, 1.442695
        %v3038 = vpow.pop %v3037
        %v3039 = vmul.f32 %v3034, 1.442695
        %v3040 = vpow.pop %v3039
        %v3041 = vmul.f32 %v3035, 1.442695
        %v3042 = vpow.pop %v3041
        %v3043 = vmul.f32 %v3036, 1.442695
        %v3044 = vpow.pop %v3043
        %v3045 = vsub.f32 %v3013, %v3029
        %v3046 = vsub.f32 %v3014, %v3030
        %v3047 = vsub.f32 %v3015, %v3031
        %v3048 = vsub.f32 %v3016, %v3032
        %v3049 = vmul.f32 %v3045, 1.442695
        %v3050 = vpow.pop %v3049
        %v3051 = vmul.f32 %v3046, 1.442695
        %v3052 = vpow.pop %v3051
        %v3053 = vmul.f32 %v3047, 1.442695
        %v3054 = vpow.pop %v3053
        %v3055 = vmul.f32 %v3048, 1.442695
        %v3056 = vpow.pop %v3055
        %v3057 = vmul.f32 %v3038, %v2855
        %v3058 = vmul.f32 %v3040, %v2858
        %v3059 = vmul.f32 %v3042, %v2861
        %v3060 = vmul.f32 %v3044, %v2864
        %v3061 = vsel %vm1548, %v3050, 0.0
        %3062 = vadd.xlane.f32.xlu0 %v3061
        %v3063 = vpop.xlane.xlu0 %3062
        %v3064 = vsel %vm1548, %v3052, 0.0
        %3065 = vadd.xlane.f32.xlu0 %v3064
        %v3066 = vpop.xlane.xlu0 %3065
        %v3067 = vsel %vm1548, %v3054, 0.0
        %3068 = vadd.xlane.f32.xlu0 %v3067
        %v3069 = vpop.xlane.xlu0 %3068
        %v3070 = vsel %vm1548, %v3056, 0.0
        %3071 = vadd.xlane.f32.xlu0 %v3070
        %v3072 = vpop.xlane.xlu0 %3071
        %v3073 = vadd.f32 %v3057, %v3063
        %v3074 = vadd.f32 %v3058, %v3066
        %v3075 = vadd.f32 %v3059, %v3069
        %v3076 = vadd.f32 %v3060, %v3072
        %v3077 = vmul.f32 %v3038, %v2885
        %v3078 = vmul.f32 %v3040, %v2904
        %v3079 = vmul.f32 %v3042, %v2923
        %v3080 = vmul.f32 %v3044, %v2942
        %v3081 = vpack.c.bf16 %v3050, %v3050
        %v3082 = vpack.c.bf16 %v3052, %v3052
        %v3083 = vpack.c.bf16 %v3054, %v3054
        %v3084 = vpack.c.bf16 %v3056, %v3056
        %v3086 = vsel %vm1548, %v3081, 0
        %v3089 = vsel %vm1592, %v2741, 0
        %3091 = vmatpush.bf16.msra.mxu0 0
        %3092 = vmatpush.bf16.msra.mxu0 0
        %3093 = vmatpush.bf16.msra.mxu0 0
        %3094 = vmatpush.bf16.msra.mxu0 0
        %3095 = vmatpush.bf16.msra.mxu0 0
        %3096 = vmatpush.bf16.msra.mxu0 0
        %3097 = vmatpush.bf16.msra.mxu0 0
        %3098 = vmatpush.bf16.msra.mxu0 %v3089
        %3099 = vmatmul.bf16.gmra.mxu0 %v3086
        %v3100 = vpop.f32.mrf.mxu0
        %v3101 = vadd.f32 0.0, %v3100
        %v3102 = vpop.f32.mrf.mxu0
        %3103 = vdwg.mxu0
        %v3105 = vsel %vm1548, %v3082, 0
        %v3108 = vsel %vm1592, %v2743, 0
        %3110 = vmatpush.bf16.msra.mxu0 0
        %3111 = vmatpush.bf16.msra.mxu0 0
        %3112 = vmatpush.bf16.msra.mxu0 0
        %3113 = vmatpush.bf16.msra.mxu0 0
        %3114 = vmatpush.bf16.msra.mxu0 0
        %3115 = vmatpush.bf16.msra.mxu0 0
        %3116 = vmatpush.bf16.msra.mxu0 0
        %3117 = vmatpush.bf16.msra.mxu0 %v3108
        %3118 = vmatmul.bf16.gmra.mxu0 %v3105
        %v3119 = vpop.f32.mrf.mxu0
        %v3120 = vadd.f32 0.0, %v3119
        %v3121 = vpop.f32.mrf.mxu0
        %3122 = vdwg.mxu0
        %v3124 = vsel %vm1548, %v3083, 0
        %v3127 = vsel %vm1592, %v2745, 0
        %3129 = vmatpush.bf16.msra.mxu0 0
        %3130 = vmatpush.bf16.msra.mxu0 0
        %3131 = vmatpush.bf16.msra.mxu0 0
        %3132 = vmatpush.bf16.msra.mxu0 0
        %3133 = vmatpush.bf16.msra.mxu0 0
        %3134 = vmatpush.bf16.msra.mxu0 0
        %3135 = vmatpush.bf16.msra.mxu0 0
        %3136 = vmatpush.bf16.msra.mxu0 %v3127
        %3137 = vmatmul.bf16.gmra.mxu0 %v3124
        %v3138 = vpop.f32.mrf.mxu0
        %v3139 = vadd.f32 0.0, %v3138
        %v3140 = vpop.f32.mrf.mxu0
        %3141 = vdwg.mxu0
        %v3143 = vsel %vm1548, %v3084, 0
        %v3146 = vsel %vm1592, %v2747, 0
        %3148 = vmatpush.bf16.msra.mxu0 0
        %3149 = vmatpush.bf16.msra.mxu0 0
        %3150 = vmatpush.bf16.msra.mxu0 0
        %3151 = vmatpush.bf16.msra.mxu0 0
        %3152 = vmatpush.bf16.msra.mxu0 0
        %3153 = vmatpush.bf16.msra.mxu0 0
        %3154 = vmatpush.bf16.msra.mxu0 0
        %3155 = vmatpush.bf16.msra.mxu0 %v3146
        %3156 = vmatmul.bf16.gmra.mxu0 %v3143
        %v3157 = vpop.f32.mrf.mxu0
        %v3158 = vadd.f32 0.0, %v3157
        %v3159 = vpop.f32.mrf.mxu0
        %3160 = vdwg.mxu0
        %v3161 = vadd.f32 %v3077, %v3101
        %v3162 = vadd.f32 %v3078, %v3120
        %v3163 = vadd.f32 %v3079, %v3139
        %v3164 = vadd.f32 %v3080, %v3158
        %v3165 = vrcp.pop %v3073
        %v3166 = vrcp.pop %v3074
        %v3167 = vrcp.pop %v3075
        %v3168 = vrcp.pop %v3076
        %v3169 = vmul.f32 %v3161, %v3165
        %v3170 = vmul.f32 %v3162, %v3166
        %v3171 = vmul.f32 %v3163, %v3167
        %v3172 = vmul.f32 %v3164, %v3168
        %v3173 = vrot.slane %v3171, 4
        %v3174 = vsel %vm1105, %v3173, %v3169
        %v3175 = vrot.slane %v3169, 4
        %v3176 = vsel %vm1105, %v3171, %v3175
        %v3178 = vunpack.c.l.s4 1983009808
        %v3179 = vunpack.c.0.s8 %v3178
        %v3180 = vperm.slane %v3174, %v3179
        %v3182 = vunpack.c.l.s4 1983009808
        %v3183 = vunpack.c.0.s8 %v3182
        %v3184 = vperm.slane %v3176, %v3183
        %v3185 = vrot.slane %v3172, 4
        %v3186 = vsel %vm1105, %v3185, %v3170
        %v3187 = vrot.slane %v3170, 4
        %v3188 = vsel %vm1105, %v3172, %v3187
        %v3190 = vunpack.c.l.s4 1983009808
        %v3191 = vunpack.c.0.s8 %v3190
        %v3192 = vperm.slane %v3186, %v3191
        %v3194 = vunpack.c.l.s4 1983009808
        %v3195 = vunpack.c.0.s8 %v3194
        %v3196 = vperm.slane %v3188, %v3195
        %v3197 = vrot.slane %v3192, 4
        %v3198 = vsel %vm1105, %v3197, %v3180
        %v3199 = vrot.slane %v3180, 4
        %v3200 = vsel %vm1105, %v3192, %v3199
        %v3202 = vunpack.c.l.s4 1934713408
        %v3203 = vunpack.c.0.s8 %v3202
        %v3204 = vperm.slane %v3198, %v3203
        %v3206 = vunpack.c.l.s4 1934713408
        %v3207 = vunpack.c.0.s8 %v3206
        %v3208 = vperm.slane %v3200, %v3207
        %v3209 = vrot.slane %v3196, 4
        %v3210 = vsel %vm1105, %v3209, %v3184
        %v3211 = vrot.slane %v3184, 4
        %v3212 = vsel %vm1105, %v3196, %v3211
        %v3214 = vunpack.c.l.s4 1934713408
        %v3215 = vunpack.c.0.s8 %v3214
        %v3216 = vperm.slane %v3210, %v3215
        %v3218 = vunpack.c.l.s4 1934713408
        %v3219 = vunpack.c.0.s8 %v3218
        %v3220 = vperm.slane %v3212, %v3219
        %v3221 = vrot.slane %v3204, 4
        %v3222 = vsel %vm1105, 0.0, %v3221
        %v3223 = vrot.slane %v3208, 4
        %v3224 = vsel %vm1105, 0.0, %v3223
        %v3225 = vrot.slane %v3216, 4
        %v3226 = vsel %vm1105, 0.0, %v3225
        %v3227 = vrot.slane %v3220, 4
        %v3228 = vsel %vm1105, 0.0, %v3227
        %v3229 = vsel %vm1105, %v3223, %v3204
        %v3231 = vunpack.c.l.s4 1983009808
        %v3232 = vunpack.c.0.s8 %v3231
        %v3233 = vperm.slane %v3229, %v3232
        %v3234 = vrot.slane %v3224, 4
        %v3235 = vsel %vm1105, %v3234, %v3222
        %v3237 = vunpack.c.l.s4 1983009808
        %v3238 = vunpack.c.0.s8 %v3237
        %v3239 = vperm.slane %v3235, %v3238
        %v3240 = vsel %vm1105, %v3227, %v3216
        %v3242 = vunpack.c.l.s4 1983009808
        %v3243 = vunpack.c.0.s8 %v3242
        %v3244 = vperm.slane %v3240, %v3243
        %v3245 = vrot.slane %v3228, 4
        %v3246 = vsel %vm1105, %v3245, %v3226
        %v3248 = vunpack.c.l.s4 1983009808
        %v3249 = vunpack.c.0.s8 %v3248
        %v3250 = vperm.slane %v3246, %v3249
        %v3251 = vrot.slane %v3239, 4
        %v3252 = vsel %vm1105, %v3251, %v3233
        %v3253 = vrot.slane %v3233, 4
        %v3254 = vsel %vm1105, %v3239, %v3253
        %v3256 = vunpack.c.l.s4 1934713408
        %v3257 = vunpack.c.0.s8 %v3256
        %v3258 = vperm.slane %v3252, %v3257
        %v3260 = vunpack.c.l.s4 1934713408
        %v3261 = vunpack.c.0.s8 %v3260
        %v3262 = vperm.slane %v3254, %v3261
        %v3263 = vrot.slane %v3250, 4
        %v3264 = vsel %vm1105, %v3263, %v3244
        %v3265 = vrot.slane %v3244, 4
        %v3266 = vsel %vm1105, %v3250, %v3265
        %v3268 = vunpack.c.l.s4 1934713408
        %v3269 = vunpack.c.0.s8 %v3268
        %v3270 = vperm.slane %v3264, %v3269
        %v3272 = vunpack.c.l.s4 1934713408
        %v3273 = vunpack.c.0.s8 %v3272
        %v3274 = vperm.slane %v3266, %v3273
        %v3275 = vrot.slane %v3270, 4
        %v3276 = vsel %vm1105, %v3275, %v3258
        %v3277 = vrot.slane %v3258, 4
        %v3278 = vsel %vm1105, %v3270, %v3277
        %v3279 = vrot.slane %v3274, 4
        %v3280 = vsel %vm1105, %v3279, %v3262
        %v3281 = vrot.slane %v3262, 4
        %v3282 = vsel %vm1105, %v3274, %v3281
        %3284 = vrot.lane.b32.xlu0 %v3278, 32
        %v3285 = vpop.permute.xlu0 %3284
        %3288 = vrot.lane.b32.xlu0 %v3280, 64
        %v3289 = vpop.permute.xlu0 %3288
        %3292 = vrot.lane.b32.xlu0 %v3282, 96
        %v3293 = vpop.permute.xlu0 %3292
        %v3295 = vsel %vm1467, %v3276, %v3285
        %v3296 = vsel %vm1797, %v3295, %v3289
        %v3297 = vsel %vm1799, %v3296, %v3293
        %v3298 = vpack.c.bf16 %v3297, %v3297
        %v3299 = vld [vmem:[#allocation17] sm:$0xf]
        %v3300 = vld [vmem:[#allocation17 + $0x4] sm:$0xf]
        %v3301 = vld [vmem:[#allocation17 + $0x8] sm:$0xf]
        %v3302 = vld [vmem:[#allocation17 + $0xc] sm:$0xf]
        %v3303 = vld [vmem:[#allocation17 + $0x10] sm:$0xf]
        %v3304 = vld [vmem:[#allocation17 + $0x14] sm:$0xf]
        %v3305 = vld [vmem:[#allocation17 + $0x18] sm:$0xf]
        %v3306 = vld [vmem:[#allocation17 + $0x1c] sm:$0xf]
        %v3307 = vld [vmem:[#allocation17 + $0x20] sm:$0xf]
        %v3308 = vld [vmem:[#allocation17 + $0x24] sm:$0xf]
        %v3309 = vld [vmem:[#allocation17 + $0x28] sm:$0xf]
        %v3310 = vld [vmem:[#allocation17 + $0x2c] sm:$0xf]
        %v3311 = vld [vmem:[#allocation17 + $0x30] sm:$0xf]
        %v3312 = vld [vmem:[#allocation17 + $0x34] sm:$0xf]
        %v3313 = vld [vmem:[#allocation17 + $0x38] sm:$0xf]
        %v3314 = vld [vmem:[#allocation17 + $0x3c] sm:$0xf]
        %v3315 = vld [vmem:[#allocation19] sm:$0x1]
        %v3317 = vperm.slane %v3315, 0
        %v3335 = vunpack.c.l.b16 %v3299
        %v3336 = vunpack.c.l.b16 %v3300
        %v3337 = vunpack.c.l.b16 %v3301
        %v3338 = vunpack.c.l.b16 %v3302
        %v3339 = vunpack.c.l.b16 %v3303
        %v3340 = vunpack.c.l.b16 %v3304
        %v3341 = vunpack.c.l.b16 %v3305
        %v3342 = vunpack.c.l.b16 %v3306
        %v3343 = vunpack.c.l.b16 %v3307
        %v3344 = vunpack.c.l.b16 %v3308
        %v3345 = vunpack.c.l.b16 %v3309
        %v3346 = vunpack.c.l.b16 %v3310
        %v3347 = vunpack.c.l.b16 %v3311
        %v3348 = vunpack.c.l.b16 %v3312
        %v3349 = vunpack.c.l.b16 %v3313
        %v3350 = vunpack.c.l.b16 %v3314
        %v3351 = vpack.c.b16 %v3336, %v3335
        %v3352 = vpack.c.b16 %v3338, %v3337
        %v3353 = vpack.c.b16 %v3340, %v3339
        %v3354 = vpack.c.b16 %v3342, %v3341
        %v3355 = vpack.c.b16 %v3344, %v3343
        %v3356 = vpack.c.b16 %v3346, %v3345
        %v3357 = vpack.c.b16 %v3348, %v3347
        %v3358 = vpack.c.b16 %v3350, %v3349
        %3367 = vmatpush.bf16.msra.mxu0 %v3358
        %3368 = vmatpush.bf16.msra.mxu0 %v3357
        %3369 = vmatpush.bf16.msra.mxu0 %v3356
        %3370 = vmatpush.bf16.msra.mxu0 %v3355
        %3371 = vmatpush.bf16.msra.mxu0 %v3354
        %3372 = vmatpush.bf16.msra.mxu0 %v3353
        %3373 = vmatpush.bf16.msra.mxu0 %v3352
        %3374 = vmatpush.bf16.msra.mxu0 %v3351
        %3375 = vmatmul.bf16.gmra.mxu0 %v3298
        %v3376 = vpop.f32.mrf.mxu0
        %v3377 = vadd.f32 %v3317, %v3376
        %v3378 = vpop.f32.mrf.mxu0
        %3379 = vdwg.mxu0
        %v3380 = vadd.f32 %v1914, %v3377
        %3381 = vadd.xlane.f32.xlu0 %v3380
        %v3382 = vpop.xlane.xlu0 %3381
        %v3383 = vmul.f32 %v3382, %v1892
        %v3384 = vsub.f32 %v3380, %v3383
        %v3385 = vmul.f32 %v3384, %v3384
        %3386 = vadd.xlane.f32.xlu0 %v3385
        %v3387 = vpop.xlane.xlu0 %3386
        %v3388 = vmul.f32 %v3387, %v1892
        %v3389 = vadd.f32 %v3388, 1e-05
        %v3390 = vrsqrt.pop %v3389
        %v3391 = vmul.f32 %v3390, %v3389
        %v3392 = vmul.f32 %v3391, %v3390
        %v3393 = vmul.f32 0.5, %v3392
        %v3394 = vsub.f32 1.5, %v3393
        %v3395 = vmul.f32 %v3390, %v3394
        %vm3396 = vweird.f32 %v3389
        %vm3397 = vweird.f32 %v3390
        %vm3398 = vmor %vm3396, %vm3397
        %v3399 = vsel %vm3398, %v3390, %v3395
        %v3400 = vmul.f32 %v3384, %v3399
        %v3401 = vperm.slane %v875, 2
        %v3402 = vmul.f32 %v3400, %v3401
        %v3403 = vperm.slane %v875, 3
        %v3404 = vadd.f32 %v3402, %v3403
        %v3405 = vpack.c.bf16 %v3404, %v3404
        %v3406 = vld [vmem:[#allocation20] sm:$0xff]
        %v3407 = vld [vmem:[#allocation20 + $0x8] sm:$0xff]
        %v3408 = vld [vmem:[#allocation20 + $0x10] sm:$0xff]
        %v3409 = vld [vmem:[#allocation20 + $0x18] sm:$0xff]
        %v3410 = vld [vmem:[#allocation20 + $0x20] sm:$0xff]
        %v3411 = vld [vmem:[#allocation20 + $0x28] sm:$0xff]
        %v3412 = vld [vmem:[#allocation20 + $0x30] sm:$0xff]
        %v3413 = vld [vmem:[#allocation20 + $0x38] sm:$0xff]
        %v3414 = vld [vmem:[#allocation20 + $0x40] sm:$0xff]
        %v3415 = vld [vmem:[#allocation20 + $0x48] sm:$0xff]
        %v3416 = vld [vmem:[#allocation20 + $0x50] sm:$0xff]
        %v3417 = vld [vmem:[#allocation20 + $0x58] sm:$0xff]
        %v3418 = vld [vmem:[#allocation20 + $0x60] sm:$0xff]
        %v3419 = vld [vmem:[#allocation20 + $0x68] sm:$0xff]
        %v3420 = vld [vmem:[#allocation20 + $0x70] sm:$0xff]
        %v3421 = vld [vmem:[#allocation20 + $0x78] sm:$0xff]
        %v3422 = vld [vmem:[%s15] sm:$0x3]
        %v3424 = vperm.slane %v3422, 0
        %v3425 = vperm.slane %v3422, 1
        %v3444 = vunpack.c.l.b16 %v3406
        %v3445 = vunpack.c.h.b16 %v3406
        %v3446 = vunpack.c.l.b16 %v3407
        %v3447 = vunpack.c.h.b16 %v3407
        %v3448 = vunpack.c.l.b16 %v3408
        %v3449 = vunpack.c.h.b16 %v3408
        %v3450 = vunpack.c.l.b16 %v3409
        %v3451 = vunpack.c.h.b16 %v3409
        %v3452 = vunpack.c.l.b16 %v3410
        %v3453 = vunpack.c.h.b16 %v3410
        %v3454 = vunpack.c.l.b16 %v3411
        %v3455 = vunpack.c.h.b16 %v3411
        %v3456 = vunpack.c.l.b16 %v3412
        %v3457 = vunpack.c.h.b16 %v3412
        %v3458 = vunpack.c.l.b16 %v3413
        %v3459 = vunpack.c.h.b16 %v3413
        %v3460 = vunpack.c.l.b16 %v3414
        %v3461 = vunpack.c.h.b16 %v3414
        %v3462 = vunpack.c.l.b16 %v3415
        %v3463 = vunpack.c.h.b16 %v3415
        %v3464 = vunpack.c.l.b16 %v3416
        %v3465 = vunpack.c.h.b16 %v3416
        %v3466 = vunpack.c.l.b16 %v3417
        %v3467 = vunpack.c.h.b16 %v3417
        %v3468 = vunpack.c.l.b16 %v3418
        %v3469 = vunpack.c.h.b16 %v3418
        %v3470 = vunpack.c.l.b16 %v3419
        %v3471 = vunpack.c.h.b16 %v3419
        %v3472 = vunpack.c.l.b16 %v3420
        %v3473 = vunpack.c.h.b16 %v3420
        %v3474 = vunpack.c.l.b16 %v3421
        %v3475 = vunpack.c.h.b16 %v3421
        %v3476 = vpack.c.b16 %v3446, %v3444
        %v3477 = vpack.c.b16 %v3447, %v3445
        %v3478 = vpack.c.b16 %v3450, %v3448
        %v3479 = vpack.c.b16 %v3451, %v3449
        %v3480 = vpack.c.b16 %v3454, %v3452
        %v3481 = vpack.c.b16 %v3455, %v3453
        %v3482 = vpack.c.b16 %v3458, %v3456
        %v3483 = vpack.c.b16 %v3459, %v3457
        %v3484 = vpack.c.b16 %v3462, %v3460
        %v3485 = vpack.c.b16 %v3463, %v3461
        %v3486 = vpack.c.b16 %v3466, %v3464
        %v3487 = vpack.c.b16 %v3467, %v3465
        %v3488 = vpack.c.b16 %v3470, %v3468
        %v3489 = vpack.c.b16 %v3471, %v3469
        %v3490 = vpack.c.b16 %v3474, %v3472
        %v3491 = vpack.c.b16 %v3475, %v3473
        %3508 = vmatpush.bf16.msra.mxu0 %v3490
        %3509 = vmatpush.bf16.msra.mxu0 %v3488
        %3510 = vmatpush.bf16.msra.mxu0 %v3486
        %3511 = vmatpush.bf16.msra.mxu0 %v3484
        %3512 = vmatpush.bf16.msra.mxu0 %v3482
        %3513 = vmatpush.bf16.msra.mxu0 %v3480
        %3514 = vmatpush.bf16.msra.mxu0 %v3478
        %3515 = vmatpush.bf16.msra.mxu0 %v3476
        %3516 = vmatmul.bf16.gmra.mxu0 %v3405
        %v3517 = vpop.f32.mrf.mxu0
        %v3518 = vadd.f32 %v3424, %v3517
        %v3519 = vpop.f32.mrf.mxu0
        %3520 = vdwg.mxu0
        %3521 = vmatpush.bf16.msra.mxu0 %v3491
        %3522 = vmatpush.bf16.msra.mxu0 %v3489
        %3523 = vmatpush.bf16.msra.mxu0 %v3487
        %3524 = vmatpush.bf16.msra.mxu0 %v3485
        %3525 = vmatpush.bf16.msra.mxu0 %v3483
        %3526 = vmatpush.bf16.msra.mxu0 %v3481
        %3527 = vmatpush.bf16.msra.mxu0 %v3479
        %3528 = vmatpush.bf16.msra.mxu0 %v3477
        %3529 = vmatmul.bf16.gmra.mxu0 %v3405
        %v3530 = vpop.f32.mrf.mxu0
        %v3531 = vadd.f32 %v3425, %v3530
        %v3532 = vpop.f32.mrf.mxu0
        %3533 = vdwg.mxu0
        %v3534 = vmax.f32 %v3518, 0.0
        %v3535 = vmax.f32 %v3531, 0.0
        %v3536 = vpack.c.bf16 %v3534, %v3534
        %v3537 = vpack.c.bf16 %v3535, %v3535
        %v3538 = vld [vmem:[#allocation22] sm:$0xf]
        %v3539 = vld [vmem:[#allocation22 + $0x4] sm:$0xf]
        %v3540 = vld [vmem:[#allocation22 + $0x8] sm:$0xf]
        %v3541 = vld [vmem:[#allocation22 + $0xc] sm:$0xf]
        %v3542 = vld [vmem:[#allocation22 + $0x10] sm:$0xf]
        %v3543 = vld [vmem:[#allocation22 + $0x14] sm:$0xf]
        %v3544 = vld [vmem:[#allocation22 + $0x18] sm:$0xf]
        %v3545 = vld [vmem:[#allocation22 + $0x1c] sm:$0xf]
        %v3546 = vld [vmem:[#allocation22 + $0x20] sm:$0xf]
        %v3547 = vld [vmem:[#allocation22 + $0x24] sm:$0xf]
        %v3548 = vld [vmem:[#allocation22 + $0x28] sm:$0xf]
        %v3549 = vld [vmem:[#allocation22 + $0x2c] sm:$0xf]
        %v3550 = vld [vmem:[#allocation22 + $0x30] sm:$0xf]
        %v3551 = vld [vmem:[#allocation22 + $0x34] sm:$0xf]
        %v3552 = vld [vmem:[#allocation22 + $0x38] sm:$0xf]
        %v3553 = vld [vmem:[#allocation22 + $0x3c] sm:$0xf]
        %v3554 = vld [vmem:[#allocation22 + $0x40] sm:$0xf]
        %v3555 = vld [vmem:[#allocation22 + $0x44] sm:$0xf]
        %v3556 = vld [vmem:[#allocation22 + $0x48] sm:$0xf]
        %v3557 = vld [vmem:[#allocation22 + $0x4c] sm:$0xf]
        %v3558 = vld [vmem:[#allocation22 + $0x50] sm:$0xf]
        %v3559 = vld [vmem:[#allocation22 + $0x54] sm:$0xf]
        %v3560 = vld [vmem:[#allocation22 + $0x58] sm:$0xf]
        %v3561 = vld [vmem:[#allocation22 + $0x5c] sm:$0xf]
        %v3562 = vld [vmem:[#allocation22 + $0x60] sm:$0xf]
        %v3563 = vld [vmem:[#allocation22 + $0x64] sm:$0xf]
        %v3564 = vld [vmem:[#allocation22 + $0x68] sm:$0xf]
        %v3565 = vld [vmem:[#allocation22 + $0x6c] sm:$0xf]
        %v3566 = vld [vmem:[#allocation22 + $0x70] sm:$0xf]
        %v3567 = vld [vmem:[#allocation22 + $0x74] sm:$0xf]
        %v3568 = vld [vmem:[#allocation22 + $0x78] sm:$0xf]
        %v3569 = vld [vmem:[#allocation22 + $0x7c] sm:$0xf]
        %v3570 = vld [vmem:[%s17] sm:$0x1]
        %v3572 = vperm.slane %v3570, 0
        %v3606 = vunpack.c.l.b16 %v3538
        %v3607 = vunpack.c.l.b16 %v3539
        %v3608 = vunpack.c.l.b16 %v3540
        %v3609 = vunpack.c.l.b16 %v3541
        %v3610 = vunpack.c.l.b16 %v3542
        %v3611 = vunpack.c.l.b16 %v3543
        %v3612 = vunpack.c.l.b16 %v3544
        %v3613 = vunpack.c.l.b16 %v3545
        %v3614 = vunpack.c.l.b16 %v3546
        %v3615 = vunpack.c.l.b16 %v3547
        %v3616 = vunpack.c.l.b16 %v3548
        %v3617 = vunpack.c.l.b16 %v3549
        %v3618 = vunpack.c.l.b16 %v3550
        %v3619 = vunpack.c.l.b16 %v3551
        %v3620 = vunpack.c.l.b16 %v3552
        %v3621 = vunpack.c.l.b16 %v3553
        %v3622 = vunpack.c.l.b16 %v3554
        %v3623 = vunpack.c.l.b16 %v3555
        %v3624 = vunpack.c.l.b16 %v3556
        %v3625 = vunpack.c.l.b16 %v3557
        %v3626 = vunpack.c.l.b16 %v3558
        %v3627 = vunpack.c.l.b16 %v3559
        %v3628 = vunpack.c.l.b16 %v3560
        %v3629 = vunpack.c.l.b16 %v3561
        %v3630 = vunpack.c.l.b16 %v3562
        %v3631 = vunpack.c.l.b16 %v3563
        %v3632 = vunpack.c.l.b16 %v3564
        %v3633 = vunpack.c.l.b16 %v3565
        %v3634 = vunpack.c.l.b16 %v3566
        %v3635 = vunpack.c.l.b16 %v3567
        %v3636 = vunpack.c.l.b16 %v3568
        %v3637 = vunpack.c.l.b16 %v3569
        %v3638 = vpack.c.b16 %v3607, %v3606
        %v3639 = vpack.c.b16 %v3609, %v3608
        %v3640 = vpack.c.b16 %v3611, %v3610
        %v3641 = vpack.c.b16 %v3613, %v3612
        %v3642 = vpack.c.b16 %v3615, %v3614
        %v3643 = vpack.c.b16 %v3617, %v3616
        %v3644 = vpack.c.b16 %v3619, %v3618
        %v3645 = vpack.c.b16 %v3621, %v3620
        %v3646 = vpack.c.b16 %v3623, %v3622
        %v3647 = vpack.c.b16 %v3625, %v3624
        %v3648 = vpack.c.b16 %v3627, %v3626
        %v3649 = vpack.c.b16 %v3629, %v3628
        %v3650 = vpack.c.b16 %v3631, %v3630
        %v3651 = vpack.c.b16 %v3633, %v3632
        %v3652 = vpack.c.b16 %v3635, %v3634
        %v3653 = vpack.c.b16 %v3637, %v3636
        %3670 = vmatpush.bf16.msra.mxu0 %v3645
        %3671 = vmatpush.bf16.msra.mxu0 %v3644
        %3672 = vmatpush.bf16.msra.mxu0 %v3643
        %3673 = vmatpush.bf16.msra.mxu0 %v3642
        %3674 = vmatpush.bf16.msra.mxu0 %v3641
        %3675 = vmatpush.bf16.msra.mxu0 %v3640
        %3676 = vmatpush.bf16.msra.mxu0 %v3639
        %3677 = vmatpush.bf16.msra.mxu0 %v3638
        %3678 = vmatmul.bf16.gmra.mxu0 %v3536
        %v3679 = vpop.f32.mrf.mxu0
        %v3680 = vadd.f32 %v3572, %v3679
        %v3681 = vpop.f32.mrf.mxu0
        %3682 = vdwg.mxu0
        %3683 = vmatpush.bf16.msra.mxu0 %v3653
        %3684 = vmatpush.bf16.msra.mxu0 %v3652
        %3685 = vmatpush.bf16.msra.mxu0 %v3651
        %3686 = vmatpush.bf16.msra.mxu0 %v3650
        %3687 = vmatpush.bf16.msra.mxu0 %v3649
        %3688 = vmatpush.bf16.msra.mxu0 %v3648
        %3689 = vmatpush.bf16.msra.mxu0 %v3647
        %3690 = vmatpush.bf16.msra.mxu0 %v3646
        %3691 = vmatmul.bf16.gmra.mxu0 %v3537
        %v3692 = vpop.f32.mrf.mxu0
        %v3693 = vadd.f32 %v3680, %v3692
        %v3694 = vpop.f32.mrf.mxu0
        %3695 = vdwg.mxu0
        %v3696 = vadd.f32 %v3404, %v3693
        %3697 = vadd.xlane.f32.xlu0 %v3696
        %v3698 = vpop.xlane.xlu0 %3697
        %v3699 = vmul.f32 %v3698, %v1892
        %v3700 = vsub.f32 %v3696, %v3699
        %v3701 = vmul.f32 %v3700, %v3700
        %3702 = vadd.xlane.f32.xlu0 %v3701
        %v3703 = vpop.xlane.xlu0 %3702
        %v3704 = vmul.f32 %v3703, %v1892
        %v3705 = vadd.f32 %v3704, 1e-05
        %v3706 = vrsqrt.pop %v3705
        %v3707 = vmul.f32 %v3706, %v3705
        %v3708 = vmul.f32 %v3707, %v3706
        %v3709 = vmul.f32 0.5, %v3708
        %v3710 = vsub.f32 1.5, %v3709
        %v3711 = vmul.f32 %v3706, %v3710
        %vm3712 = vweird.f32 %v3705
        %vm3713 = vweird.f32 %v3706
        %vm3714 = vmor %vm3712, %vm3713
        %v3715 = vsel %vm3714, %v3706, %v3711
        %v3716 = vmul.f32 %v3700, %v3715
        %v3717 = vperm.slane %v875, 4
        %v3718 = vmul.f32 %v3716, %v3717
        %v3719 = vperm.slane %v875, 5
        %v3720 = vadd.f32 %v3718, %v3719
        %3721 = vst [vmem:[%s867] sm:$0xff] %v3720
        %s3722 = sand.u32 %s471, 1
        %s3723 = scalar_lea.sflag [#allocation4], %s3722
        %s3724 = sand.u32 %s471, 1
        %s3725 = smul.addr %s3724, 8
        %s3726 = scalar_lea.vmem [#allocation23], %s3725
        // Predicated region
        $region149: #{tpu_custom_call.1} parent=95 // pred_check
          %p3727 = pneg %p481
        $region150: #{tpu_custom_call.1} parent=95 // pred_check_branch
          %3729 = sbr.rel (%p3727) target = $region152
        $region151: #{tpu_custom_call.1} parent=95 // pred_region
          %3731 = vsyncadd %s3723, 0
          %s3732 = smul.addr %s44, 8
          %s3733 = scalar_lea.hbm %s19, %s3732
          %s3735 = sshll.u32 %s3726, 4
          %s3736 = int_to_ptr.vmem [resolvable:$true] %s3735
          %s3737 = sshll.u32 %s3733, 4
          %s3738 = int_to_ptr.hbm [resolvable:$true] %s3737
          %3740 = dma.vmem_to_hbm [thread:$0]  %s3736, 128, %s3738, %s3723
        $region152: #{tpu_custom_call.1} parent=95 // pred_fallthru
          _
      $region96: #{tpu_custom_call.1} parent=5 // pred_fallthru
        _
      %p3741 = scmp.le.s32.totalorder 2, %s39
      // Predicated region
      $region153: #{tpu_custom_call.1} parent=5 // pred_check
        %p3742 = pneg %p3741
      $region154: #{tpu_custom_call.1} parent=5 // pred_check_branch
        %3744 = sbr.rel (%p3742) target = $region156
      $region155: #{tpu_custom_call.1} parent=5 // pred_region
        %s3745 = ssub.s32 %s39, 2
        // Predicated region
        $region157: #{tpu_custom_call.1} parent=155 // pred_check
          %p3746 = pneg %p487
        $region158: #{tpu_custom_call.1} parent=155 // pred_check_branch
          %3748 = sbr.rel (%p3746) target = $region160
        $region159: #{tpu_custom_call.1} parent=155 // pred_region
          %s3749 = sand.u32 %s472, 1
          %s3750 = scalar_lea.sflag [#allocation4], %s3749
          %s3751 = sand.u32 %s472, 1
          %s3752 = smul.addr %s3751, 8
          %s3753 = scalar_lea.vmem [#allocation23], %s3752
          %3755 = dma.done %s3750, 128
        $region160: #{tpu_custom_call.1} parent=155 // pred_fallthru
          _
      $region156: #{tpu_custom_call.1} parent=5 // pred_fallthru
        _
    $region6: #{tpu_custom_call.1} parent=1 // loop_footer
      %s43 = sadd.s32 1, %s39
    $region7: #{tpu_custom_call.1} parent=1 // loop_footer_branch
      %38 = sbr.rel target = $region3
    $region8: #{tpu_custom_call.1} parent=1 // loop_exit
      _
    %3756 = vsyncpa [#allocation3], 1
    %s3757 = scalar_lea.sflag [#allocation3], 1
    %3758 = vsyncpa %s3757, 1
    %3759 = vsyncpa [#allocation6], 1
    %s3760 = scalar_lea.sflag [#allocation6], 1
    %3761 = vsyncpa %s3760, 1
    %3762 = vsyncpa [#allocation9], 1
    %3763 = vsyncpa [#allocation12], 1
    %3764 = vsyncpa [#allocation15], 1
    %3765 = vsyncpa [#allocation18], 1
    %3766 = vsyncpa [#allocation21], 1
    %3767 = vsyncpa [#allocation4], 1
    %s3768 = scalar_lea.sflag [#allocation4], 1
    %3769 = vsyncpa %s3768, 1

// kernel: tpu_custom_call.1
$region0: #{tpu_custom_call.1}
  #allocation0 [shape = 'u32[]', space=smem, size = 0x4, offset = 0x4, fixed_abs, tag = 'smem constant byte address 0x4 - core index']
  #allocation1 [shape = 'u32[72,128]{1,0:T(1,128)}', space=vmem, size = 0x9000, scoped, tag = 'internal scratch']
  %s0 = inlined_call_operand.hbm [shape: f32[2,8,128], index: 0, kind: input, shape index: {}]
  %s1 = inlined_call_operand.hbm [shape: f32[2,16,128], index: 1, kind: input, shape index: {}]
  %s2 = inlined_call_operand.hbm [shape: s8[2,8,8], index: 2, kind: input, shape index: {}]
  %s3 = inlined_call_operand.vmem [shape: s8[2,1,16], index: 3, kind: input, shape index: {}]
  %s4 = inlined_call_operand.hbm [shape: bf16[128,384], index: 4, kind: input, shape index: {}]
  %s5 = inlined_call_operand.vmem [shape: f32[1,384], index: 5, kind: input, shape index: {}]
  %s6 = inlined_call_operand.hbm [shape: bf16[128,128], index: 6, kind: input, shape index: {}]
  %s7 = inlined_call_operand.hbm [shape: f32[1,128], index: 7, kind: input, shape index: {}]
  %s8 = inlined_call_operand.hbm [shape: bf16[128,128], index: 8, kind: input, shape index: {}]
  %s9 = inlined_call_operand.hbm [shape: f32[1,128], index: 9, kind: input, shape index: {}]
  %s10 = inlined_call_operand.hbm [shape: bf16[128,256], index: 10, kind: input, shape index: {}]
  %s11 = inlined_call_operand.vmem [shape: f32[1,256], index: 11, kind: input, shape index: {}]
  %s12 = inlined_call_operand.hbm [shape: bf16[128,128], index: 12, kind: input, shape index: {}]
  %s13 = inlined_call_operand.hbm [shape: f32[1,128], index: 13, kind: input, shape index: {}]
  %s14 = inlined_call_operand.hbm [shape: bf16[128,256], index: 14, kind: input, shape index: {}]
  %s15 = inlined_call_operand.vmem [shape: f32[1,256], index: 15, kind: input, shape index: {}]
  %s16 = inlined_call_operand.hbm [shape: bf16[256,128], index: 16, kind: input, shape index: {}]
  %s17 = inlined_call_operand.vmem [shape: f32[1,128], index: 17, kind: input, shape index: {}]
  %s18 = inlined_call_operand.vmem [shape: f32[6,128], index: 18, kind: input, shape index: {}]
  %s19 = inlined_call_operand.hbm [shape: f32[2,8,128], index: 19, kind: output, shape index: {}]
  %s20 = sld [smem:[#allocation0]]
  $region161: #{tpu_custom_call.1} parent=0
    _
  %s22 = ssub.s32 1, %s20
  %s23 = scalar_select 0, %s22, %s20
  $region1: #{tpu_custom_call.1} parent=0
    #allocation2 [shape = 'u8[8192]{0}', space=vmem, size = 0x2000, scoped, tag = 'input window, operand 0']
    #allocation3 [shape = 's32[2]{0}', space=sflag, size = 0x8, scoped, tag = 'scoped memory for tpu_custom_call.1']
    #allocation4 [shape = 's32[2]{0}', space=sflag, size = 0x8, scoped, tag = 'scoped memory for tpu_custom_call.1']
    #allocation5 [shape = 'u8[16384]{0}', space=vmem, size = 0x4000, scoped, tag = 'input window, operand 1']
    #allocation6 [shape = 's32[2]{0}', space=sflag, size = 0x8, scoped, tag = 'scoped memory for tpu_custom_call.1']
    #allocation7 [shape = 'u8[2048]{0}', space=vmem, size = 0x800, scoped, tag = 'input window, operand 2']
    #allocation8 [shape = 'u8[98304]{0}', space=vmem, size = 0x18000, scoped, tag = 'input window, operand 4, single buffered']
    #allocation9 [shape = 's32[1]{0}', space=sflag, size = 0x4, scoped, tag = 'scoped memory for tpu_custom_call.1']
    #allocation10 [shape = 'u8[32768]{0}', space=vmem, size = 0x8000, scoped, tag = 'input window, operand 6, single buffered']
    #allocation11 [shape = 'u8[512]{0}', space=vmem, size = 0x400, scoped, tag = 'input window, operand 7, single buffered']
    #allocation12 [shape = 's32[1]{0}', space=sflag, size = 0x4, scoped, tag = 'scoped memory for tpu_custom_call.1']
    #allocation13 [shape = 'u8[32768]{0}', space=vmem, size = 0x8000, scoped, tag = 'input window, operand 8, single buffered']
    #allocation14 [shape = 'u8[512]{0}', space=vmem, size = 0x400, scoped, tag = 'input window, operand 9, single buffered']
    #allocation15 [shape = 's32[1]{0}', space=sflag, size = 0x4, scoped, tag = 'scoped memory for tpu_custom_call.1']
    #allocation16 [shape = 'u8[65536]{0}', space=vmem, size = 0x10000, scoped, tag = 'input window, operand 10, single buffered']
    #allocation17 [shape = 'u8[32768]{0}', space=vmem, size = 0x8000, scoped, tag = 'input window, operand 12, single buffered']
    #allocation18 [shape = 's32[1]{0}', space=sflag, size = 0x4, scoped, tag = 'scoped memory for tpu_custom_call.1']
    #allocation19 [shape = 'u8[512]{0}', space=vmem, size = 0x400, scoped, tag = 'input window, operand 13, single buffered']
    #allocation20 [shape = 'u8[65536]{0}', space=vmem, size = 0x10000, scoped, tag = 'input window, operand 14, single buffered']
    #allocation21 [shape = 's32[1]{0}', space=sflag, size = 0x4, scoped, tag = 'scoped memory for tpu_custom_call.1']
    #allocation22 [shape = 'u8[65536]{0}', space=vmem, size = 0x10000, scoped, tag = 'input window, operand 16, single buffered']
    #allocation23 [shape = 'u8[8192]{0}', space=vmem, size = 0x2000, scoped, tag = 'output window, operand 0']
    %24 = vsyncpa [#allocation3], 0
    %s25 = scalar_lea.sflag [#allocation3], 1
    %26 = vsyncpa %s25, 0
    %27 = vsyncpa [#allocation6], 0
    %s28 = scalar_lea.sflag [#allocation6], 1
    %29 = vsyncpa %s28, 0
    %30 = vsyncpa [#allocation9], 0
    %31 = vsyncpa [#allocation12], 0
    %32 = vsyncpa [#allocation15], 0
    %33 = vsyncpa [#allocation18], 0
    %34 = vsyncpa [#allocation21], 0
    %35 = vsyncpa [#allocation4], 0
    %s36 = scalar_lea.sflag [#allocation4], 1
    %37 = vsyncpa %s36, 0
    loop: start=0, step=1, limit=4
    $region2: #{tpu_custom_call.1} parent=1 // loop_pre_header
      _
    $region3: #{tpu_custom_call.1} parent=1 // loop_header
      %s39 = sphi 0, %s43
      %p40 = scmp.ge.s32.totalorder %s39, 4
      %s49 = sphi 0, %s51
      %s52 = sphi 0, %s49
      %s53 = sphi 0, %s52
      %s69 = sphi 0, %s53
      %s75 = sphi 0, %s77
      %s78 = sphi 0, %s75
      %s79 = sphi 0, %s78
      %s95 = sphi 0, %s79
      %s101 = sphi 0, %s103
      %s104 = sphi 0, %s101
      %s105 = sphi 0, %s104
      %s121 = sphi 0, %s105
      %s127 = sphi 0, %s129
      %s130 = sphi 0, %s127
      %s131 = sphi 0, %s130
      %s147 = sphi 0, %s131
      %s151 = sphi 0, %s151
      %s153 = sphi 0, %s151
      %s154 = sphi 0, %s153
      %s168 = sphi 0, %s154
      %s172 = sphi 0, %s172
      %s174 = sphi 0, %s172
      %s175 = sphi 0, %s174
      %s189 = sphi 0, %s175
      %s193 = sphi 0, %s193
      %s195 = sphi 0, %s193
      %s196 = sphi 0, %s195
      %s210 = sphi 0, %s196
      %s214 = sphi 0, %s214
      %s216 = sphi 0, %s214
      %s217 = sphi 0, %s216
      %s231 = sphi 0, %s217
      %s235 = sphi 0, %s235
      %s237 = sphi 0, %s235
      %s238 = sphi 0, %s237
      %s252 = sphi 0, %s238
      %s256 = sphi 0, %s256
      %s258 = sphi 0, %s256
      %s259 = sphi 0, %s258
      %s273 = sphi 0, %s259
      %s277 = sphi 0, %s277
      %s279 = sphi 0, %s277
      %s280 = sphi 0, %s279
      %s294 = sphi 0, %s280
      %s298 = sphi 0, %s298
      %s300 = sphi 0, %s298
      %s301 = sphi 0, %s300
      %s315 = sphi 0, %s301
      %s319 = sphi 0, %s319
      %s321 = sphi 0, %s319
      %s322 = sphi 0, %s321
      %s336 = sphi 0, %s322
      %s340 = sphi 0, %s340
      %s342 = sphi 0, %s340
      %s343 = sphi 0, %s342
      %s357 = sphi 0, %s343
      %s361 = sphi 0, %s361
      %s363 = sphi 0, %s361
      %s364 = sphi 0, %s363
      %s378 = sphi 0, %s364
      %s382 = sphi 0, %s382
      %s384 = sphi 0, %s382
      %s385 = sphi 0, %s384
      %s399 = sphi 0, %s385
      %s403 = sphi 0, %s403
      %s405 = sphi 0, %s403
      %s406 = sphi 0, %s405
      %s420 = sphi 0, %s406
      %s424 = sphi 0, %s424
      %s426 = sphi 0, %s424
      %s427 = sphi 0, %s426
      %s441 = sphi 0, %s427
      %s445 = sphi 0, %s445
      %s447 = sphi 0, %s445
      %s448 = sphi 0, %s447
      %s462 = sphi 0, %s448
      %s468 = sphi 0, %s470
      %s471 = sphi 0, %s468
      %s472 = sphi 0, %s471
      %s488 = sphi 0, %s472
    $region4: #{tpu_custom_call.1} parent=1 // loop_header_branch
      %42 = sbr.rel (%p40) target = $region8
    $region5: #{tpu_custom_call.1} parent=1 // loop_body
      %s44 = ssub.s32 %s39, 1
      %s45 = ssub.s32 %s39, 2
      %s46 = sadd.s32 %s39, 1
      %s47 = ssub.s32 %s39, %s46
      %p48 = scmp.eq.s32.totalorder %s47, 0
      %s50 = sadd.s32 %s49, 1
      %s51 = scalar_select %p48, %s49, %s50
      %p54 = pneg %p48
      %p55 = scmp.eq.s32.totalorder %s39, 1
      %p56 = por %p54, %p55
      %p57 = scmp.ne.s32.totalorder %s49, %s52
      %p58 = scmp.eq.s32.totalorder %s39, 0
      %p59 = por %p57, %p58
      %p60 = scmp.ne.s32.totalorder %s49, %s52
      %p61 = scmp.eq.s32.totalorder %s44, 1
      %p62 = por %p60, %p61
      %p63 = scmp.ne.s32.totalorder %s52, %s53
      %p64 = scmp.eq.s32.totalorder %s44, 0
      %p65 = por %p63, %p64
      %p66 = scmp.ne.s32.totalorder %s52, %s53
      %p67 = scmp.eq.s32.totalorder %s45, 1
      %p68 = por %p66, %p67
      %p70 = scmp.ne.s32.totalorder %s53, %s69
      %p71 = scmp.eq.s32.totalorder %s45, 0
      %p72 = por %p70, %p71
      %s73 = ssub.s32 %s39, %s46
      %p74 = scmp.eq.s32.totalorder %s73, 0
      %s76 = sadd.s32 %s75, 1
      %s77 = scalar_select %p74, %s75, %s76
      %p80 = pneg %p74
      %p81 = scmp.eq.s32.totalorder %s39, 1
      %p82 = por %p80, %p81
      %p83 = scmp.ne.s32.totalorder %s75, %s78
      %p84 = scmp.eq.s32.totalorder %s39, 0
      %p85 = por %p83, %p84
      %p86 = scmp.ne.s32.totalorder %s75, %s78
      %p87 = scmp.eq.s32.totalorder %s44, 1
      %p88 = por %p86, %p87
      %p89 = scmp.ne.s32.totalorder %s78, %s79
      %p90 = scmp.eq.s32.totalorder %s44, 0
      %p91 = por %p89, %p90
      %p92 = scmp.ne.s32.totalorder %s78, %s79
      %p93 = scmp.eq.s32.totalorder %s45, 1
      %p94 = por %p92, %p93
      %p96 = scmp.ne.s32.totalorder %s79, %s95
      %p97 = scmp.eq.s32.totalorder %s45, 0
      %p98 = por %p96, %p97
      %s99 = ssub.s32 %s39, %s46
      %p100 = scmp.eq.s32.totalorder %s99, 0
      %s102 = sadd.s32 %s101, 1
      %s103 = scalar_select %p100, %s101, %s102
      %p106 = pneg %p100
      %p107 = scmp.eq.s32.totalorder %s39, 1
      %p108 = por %p106, %p107
      %p109 = scmp.ne.s32.totalorder %s101, %s104
      %p110 = scmp.eq.s32.totalorder %s39, 0
      %p111 = por %p109, %p110
      %p112 = scmp.ne.s32.totalorder %s101, %s104
      %p113 = scmp.eq.s32.totalorder %s44, 1
      %p114 = por %p112, %p113
      %p115 = scmp.ne.s32.totalorder %s104, %s105
      %p116 = scmp.eq.s32.totalorder %s44, 0
      %p117 = por %p115, %p116
      %p118 = scmp.ne.s32.totalorder %s104, %s105
      %p119 = scmp.eq.s32.totalorder %s45, 1
      %p120 = por %p118, %p119
      %p122 = scmp.ne.s32.totalorder %s105, %s121
      %p123 = scmp.eq.s32.totalorder %s45, 0
      %p124 = por %p122, %p123
      %s125 = ssub.s32 %s39, %s46
      %p126 = scmp.eq.s32.totalorder %s125, 0
      %s128 = sadd.s32 %s127, 1
      %s129 = scalar_select %p126, %s127, %s128
      %p132 = pneg %p126
      %p133 = scmp.eq.s32.totalorder %s39, 1
      %p134 = por %p132, %p133
      %p135 = scmp.ne.s32.totalorder %s127, %s130
      %p136 = scmp.eq.s32.totalorder %s39, 0
      %p137 = por %p135, %p136
      %p138 = scmp.ne.s32.totalorder %s127, %s130
      %p139 = scmp.eq.s32.totalorder %s44, 1
      %p140 = por %p138, %p139
      %p141 = scmp.ne.s32.totalorder %s130, %s131
      %p142 = scmp.eq.s32.totalorder %s44, 0
      %p143 = por %p141, %p142
      %p144 = scmp.ne.s32.totalorder %s130, %s131
      %p145 = scmp.eq.s32.totalorder %s45, 1
      %p146 = por %p144, %p145
      %p148 = scmp.ne.s32.totalorder %s131, %s147
      %p149 = scmp.eq.s32.totalorder %s45, 0
      %p150 = por %p148, %p149
      %s152 = sadd.s32 %s151, 1
      %p155 = scmp.eq.s32.totalorder %s39, 1
      %p156 = scmp.ne.s32.totalorder %s151, %s153
      %p157 = scmp.eq.s32.totalorder %s39, 0
      %p158 = por %p156, %p157
      %p159 = scmp.ne.s32.totalorder %s151, %s153
      %p160 = scmp.eq.s32.totalorder %s44, 1
      %p161 = por %p159, %p160
      %p162 = scmp.ne.s32.totalorder %s153, %s154
      %p163 = scmp.eq.s32.totalorder %s44, 0
      %p164 = por %p162, %p163
      %p165 = scmp.ne.s32.totalorder %s153, %s154
      %p166 = scmp.eq.s32.totalorder %s45, 1
      %p167 = por %p165, %p166
      %p169 = scmp.ne.s32.totalorder %s154, %s168
      %p170 = scmp.eq.s32.totalorder %s45, 0
      %p171 = por %p169, %p170
      %s173 = sadd.s32 %s172, 1
      %p176 = scmp.eq.s32.totalorder %s39, 1
      %p177 = scmp.ne.s32.totalorder %s172, %s174
      %p178 = scmp.eq.s32.totalorder %s39, 0
      %p179 = por %p177, %p178
      %p180 = scmp.ne.s32.totalorder %s172, %s174
      %p181 = scmp.eq.s32.totalorder %s44, 1
      %p182 = por %p180, %p181
      %p183 = scmp.ne.s32.totalorder %s174, %s175
      %p184 = scmp.eq.s32.totalorder %s44, 0
      %p185 = por %p183, %p184
      %p186 = scmp.ne.s32.totalorder %s174, %s175
      %p187 = scmp.eq.s32.totalorder %s45, 1
      %p188 = por %p186, %p187
      %p190 = scmp.ne.s32.totalorder %s175, %s189
      %p191 = scmp.eq.s32.totalorder %s45, 0
      %p192 = por %p190, %p191
      %s194 = sadd.s32 %s193, 1
      %p197 = scmp.eq.s32.totalorder %s39, 1
      %p198 = scmp.ne.s32.totalorder %s193, %s195
      %p199 = scmp.eq.s32.totalorder %s39, 0
      %p200 = por %p198, %p199
      %p201 = scmp.ne.s32.totalorder %s193, %s195
      %p202 = scmp.eq.s32.totalorder %s44, 1
      %p203 = por %p201, %p202
      %p204 = scmp.ne.s32.totalorder %s195, %s196
      %p205 = scmp.eq.s32.totalorder %s44, 0
      %p206 = por %p204, %p205
      %p207 = scmp.ne.s32.totalorder %s195, %s196
      %p208 = scmp.eq.s32.totalorder %s45, 1
      %p209 = por %p207, %p208
      %p211 = scmp.ne.s32.totalorder %s196, %s210
      %p212 = scmp.eq.s32.totalorder %s45, 0
      %p213 = por %p211, %p212
      %s215 = sadd.s32 %s214, 1
      %p218 = scmp.eq.s32.totalorder %s39, 1
      %p219 = scmp.ne.s32.totalorder %s214, %s216
      %p220 = scmp.eq.s32.totalorder %s39, 0
      %p221 = por %p219, %p220
      %p222 = scmp.ne.s32.totalorder %s214, %s216
      %p223 = scmp.eq.s32.totalorder %s44, 1
      %p224 = por %p222, %p223
      %p225 = scmp.ne.s32.totalorder %s216, %s217
      %p226 = scmp.eq.s32.totalorder %s44, 0
      %p227 = por %p225, %p226
      %p228 = scmp.ne.s32.totalorder %s216, %s217
      %p229 = scmp.eq.s32.totalorder %s45, 1
      %p230 = por %p228, %p229
      %p232 = scmp.ne.s32.totalorder %s217, %s231
      %p233 = scmp.eq.s32.totalorder %s45, 0
      %p234 = por %p232, %p233
      %s236 = sadd.s32 %s235, 1
      %p239 = scmp.eq.s32.totalorder %s39, 1
      %p240 = scmp.ne.s32.totalorder %s235, %s237
      %p241 = scmp.eq.s32.totalorder %s39, 0
      %p242 = por %p240, %p241
      %p243 = scmp.ne.s32.totalorder %s235, %s237
      %p244 = scmp.eq.s32.totalorder %s44, 1
      %p245 = por %p243, %p244
      %p246 = scmp.ne.s32.totalorder %s237, %s238
      %p247 = scmp.eq.s32.totalorder %s44, 0
      %p248 = por %p246, %p247
      %p249 = scmp.ne.s32.totalorder %s237, %s238
      %p250 = scmp.eq.s32.totalorder %s45, 1
      %p251 = por %p249, %p250
      %p253 = scmp.ne.s32.totalorder %s238, %s252
      %p254 = scmp.eq.s32.totalorder %s45, 0
      %p255 = por %p253, %p254
      %s257 = sadd.s32 %s256, 1
      %p260 = scmp.eq.s32.totalorder %s39, 1
      %p261 = scmp.ne.s32.totalorder %s256, %s258
      %p262 = scmp.eq.s32.totalorder %s39, 0
      %p263 = por %p261, %p262
      %p264 = scmp.ne.s32.totalorder %s256, %s258
      %p265 = scmp.eq.s32.totalorder %s44, 1
      %p266 = por %p264, %p265
      %p267 = scmp.ne.s32.totalorder %s258, %s259
      %p268 = scmp.eq.s32.totalorder %s44, 0
      %p269 = por %p267, %p268
      %p270 = scmp.ne.s32.totalorder %s258, %s259
      %p271 = scmp.eq.s32.totalorder %s45, 1
      %p272 = por %p270, %p271
      %p274 = scmp.ne.s32.totalorder %s259, %s273
      %p275 = scmp.eq.s32.totalorder %s45, 0
      %p276 = por %p274, %p275
      %s278 = sadd.s32 %s277, 1
      %p281 = scmp.eq.s32.totalorder %s39, 1
      %p282 = scmp.ne.s32.totalorder %s277, %s279
      %p283 = scmp.eq.s32.totalorder %s39, 0
      %p284 = por %p282, %p283
      %p285 = scmp.ne.s32.totalorder %s277, %s279
      %p286 = scmp.eq.s32.totalorder %s44, 1
      %p287 = por %p285, %p286
      %p288 = scmp.ne.s32.totalorder %s279, %s280
      %p289 = scmp.eq.s32.totalorder %s44, 0
      %p290 = por %p288, %p289
      %p291 = scmp.ne.s32.totalorder %s279, %s280
      %p292 = scmp.eq.s32.totalorder %s45, 1
      %p293 = por %p291, %p292
      %p295 = scmp.ne.s32.totalorder %s280, %s294
      %p296 = scmp.eq.s32.totalorder %s45, 0
      %p297 = por %p295, %p296
      %s299 = sadd.s32 %s298, 1
      %p302 = scmp.eq.s32.totalorder %s39, 1
      %p303 = scmp.ne.s32.totalorder %s298, %s300
      %p304 = scmp.eq.s32.totalorder %s39, 0
      %p305 = por %p303, %p304
      %p306 = scmp.ne.s32.totalorder %s298, %s300
      %p307 = scmp.eq.s32.totalorder %s44, 1
      %p308 = por %p306, %p307
      %p309 = scmp.ne.s32.totalorder %s300, %s301
      %p310 = scmp.eq.s32.totalorder %s44, 0
      %p311 = por %p309, %p310
      %p312 = scmp.ne.s32.totalorder %s300, %s301
      %p313 = scmp.eq.s32.totalorder %s45, 1
      %p314 = por %p312, %p313
      %p316 = scmp.ne.s32.totalorder %s301, %s315
      %p317 = scmp.eq.s32.totalorder %s45, 0
      %p318 = por %p316, %p317
      %s320 = sadd.s32 %s319, 1
      %p323 = scmp.eq.s32.totalorder %s39, 1
      %p324 = scmp.ne.s32.totalorder %s319, %s321
      %p325 = scmp.eq.s32.totalorder %s39, 0
      %p326 = por %p324, %p325
      %p327 = scmp.ne.s32.totalorder %s319, %s321
      %p328 = scmp.eq.s32.totalorder %s44, 1
      %p329 = por %p327, %p328
      %p330 = scmp.ne.s32.totalorder %s321, %s322
      %p331 = scmp.eq.s32.totalorder %s44, 0
      %p332 = por %p330, %p331
      %p333 = scmp.ne.s32.totalorder %s321, %s322
      %p334 = scmp.eq.s32.totalorder %s45, 1
      %p335 = por %p333, %p334
      %p337 = scmp.ne.s32.totalorder %s322, %s336
      %p338 = scmp.eq.s32.totalorder %s45, 0
      %p339 = por %p337, %p338
      %s341 = sadd.s32 %s340, 1
      %p344 = scmp.eq.s32.totalorder %s39, 1
      %p345 = scmp.ne.s32.totalorder %s340, %s342
      %p346 = scmp.eq.s32.totalorder %s39, 0
      %p347 = por %p345, %p346
      %p348 = scmp.ne.s32.totalorder %s340, %s342
      %p349 = scmp.eq.s32.totalorder %s44, 1
      %p350 = por %p348, %p349
      %p351 = scmp.ne.s32.totalorder %s342, %s343
      %p352 = scmp.eq.s32.totalorder %s44, 0
      %p353 = por %p351, %p352
      %p354 = scmp.ne.s32.totalorder %s342, %s343
      %p355 = scmp.eq.s32.totalorder %s45, 1
      %p356 = por %p354, %p355
      %p358 = scmp.ne.s32.totalorder %s343, %s357
      %p359 = scmp.eq.s32.totalorder %s45, 0
      %p360 = por %p358, %p359
      %s362 = sadd.s32 %s361, 1
      %p365 = scmp.eq.s32.totalorder %s39, 1
      %p366 = scmp.ne.s32.totalorder %s361, %s363
      %p367 = scmp.eq.s32.totalorder %s39, 0
      %p368 = por %p366, %p367
      %p369 = scmp.ne.s32.totalorder %s361, %s363
      %p370 = scmp.eq.s32.totalorder %s44, 1
      %p371 = por %p369, %p370
      %p372 = scmp.ne.s32.totalorder %s363, %s364
      %p373 = scmp.eq.s32.totalorder %s44, 0
      %p374 = por %p372, %p373
      %p375 = scmp.ne.s32.totalorder %s363, %s364
      %p376 = scmp.eq.s32.totalorder %s45, 1
      %p377 = por %p375, %p376
      %p379 = scmp.ne.s32.totalorder %s364, %s378
      %p380 = scmp.eq.s32.totalorder %s45, 0
      %p381 = por %p379, %p380
      %s383 = sadd.s32 %s382, 1
      %p386 = scmp.eq.s32.totalorder %s39, 1
      %p387 = scmp.ne.s32.totalorder %s382, %s384
      %p388 = scmp.eq.s32.totalorder %s39, 0
      %p389 = por %p387, %p388
      %p390 = scmp.ne.s32.totalorder %s382, %s384
      %p391 = scmp.eq.s32.totalorder %s44, 1
      %p392 = por %p390, %p391
      %p393 = scmp.ne.s32.totalorder %s384, %s385
      %p394 = scmp.eq.s32.totalorder %s44, 0
      %p395 = por %p393, %p394
      %p396 = scmp.ne.s32.totalorder %s384, %s385
      %p397 = scmp.eq.s32.totalorder %s45, 1
      %p398 = por %p396, %p397
      %p400 = scmp.ne.s32.totalorder %s385, %s399
      %p401 = scmp.eq.s32.totalorder %s45, 0
      %p402 = por %p400, %p401
      %s404 = sadd.s32 %s403, 1
      %p407 = scmp.eq.s32.totalorder %s39, 1
      %p408 = scmp.ne.s32.totalorder %s403, %s405
      %p409 = scmp.eq.s32.totalorder %s39, 0
      %p410 = por %p408, %p409
      %p411 = scmp.ne.s32.totalorder %s403, %s405
      %p412 = scmp.eq.s32.totalorder %s44, 1
      %p413 = por %p411, %p412
      %p414 = scmp.ne.s32.totalorder %s405, %s406
      %p415 = scmp.eq.s32.totalorder %s44, 0
      %p416 = por %p414, %p415
      %p417 = scmp.ne.s32.totalorder %s405, %s406
      %p418 = scmp.eq.s32.totalorder %s45, 1
      %p419 = por %p417, %p418
      %p421 = scmp.ne.s32.totalorder %s406, %s420
      %p422 = scmp.eq.s32.totalorder %s45, 0
      %p423 = por %p421, %p422
      %s425 = sadd.s32 %s424, 1
      %p428 = scmp.eq.s32.totalorder %s39, 1
      %p429 = scmp.ne.s32.totalorder %s424, %s426
      %p430 = scmp.eq.s32.totalorder %s39, 0
      %p431 = por %p429, %p430
      %p432 = scmp.ne.s32.totalorder %s424, %s426
      %p433 = scmp.eq.s32.totalorder %s44, 1
      %p434 = por %p432, %p433
      %p435 = scmp.ne.s32.totalorder %s426, %s427
      %p436 = scmp.eq.s32.totalorder %s44, 0
      %p437 = por %p435, %p436
      %p438 = scmp.ne.s32.totalorder %s426, %s427
      %p439 = scmp.eq.s32.totalorder %s45, 1
      %p440 = por %p438, %p439
      %p442 = scmp.ne.s32.totalorder %s427, %s441
      %p443 = scmp.eq.s32.totalorder %s45, 0
      %p444 = por %p442, %p443
      %s446 = sadd.s32 %s445, 1
      %p449 = scmp.eq.s32.totalorder %s39, 1
      %p450 = scmp.ne.s32.totalorder %s445, %s447
      %p451 = scmp.eq.s32.totalorder %s39, 0
      %p452 = por %p450, %p451
      %p453 = scmp.ne.s32.totalorder %s445, %s447
      %p454 = scmp.eq.s32.totalorder %s44, 1
      %p455 = por %p453, %p454
      %p456 = scmp.ne.s32.totalorder %s447, %s448
      %p457 = scmp.eq.s32.totalorder %s44, 0
      %p458 = por %p456, %p457
      %p459 = scmp.ne.s32.totalorder %s447, %s448
      %p460 = scmp.eq.s32.totalorder %s45, 1
      %p461 = por %p459, %p460
      %p463 = scmp.ne.s32.totalorder %s448, %s462
      %p464 = scmp.eq.s32.totalorder %s45, 0
      %p465 = por %p463, %p464
      %s466 = ssub.s32 %s39, %s46
      %p467 = scmp.eq.s32.totalorder %s466, 0
      %s469 = sadd.s32 %s468, 1
      %s470 = scalar_select %p467, %s468, %s469
      %p473 = pneg %p467
      %p474 = scmp.eq.s32.totalorder %s39, 1
      %p475 = por %p473, %p474
      %p476 = scmp.ne.s32.totalorder %s468, %s471
      %p477 = scmp.eq.s32.totalorder %s39, 0
      %p478 = por %p476, %p477
      %p479 = scmp.ne.s32.totalorder %s468, %s471
      %p480 = scmp.eq.s32.totalorder %s44, 1
      %p481 = por %p479, %p480
      %p482 = scmp.ne.s32.totalorder %s471, %s472
      %p483 = scmp.eq.s32.totalorder %s44, 0
      %p484 = por %p482, %p483
      %p485 = scmp.ne.s32.totalorder %s471, %s472
      %p486 = scmp.eq.s32.totalorder %s45, 1
      %p487 = por %p485, %p486
      %p489 = scmp.ne.s32.totalorder %s472, %s488
      %p490 = scmp.eq.s32.totalorder %s45, 0
      %p491 = por %p489, %p490
      %p492 = scmp.le.s32.totalorder 1, %s39
      %p493 = scmp.lt.s32.totalorder %s39, 3
      %p494 = pnand %p492, %p493
      %p495 = pneg %p494
      // Predicated region
      $region9: #{tpu_custom_call.1} parent=5 // pred_check
        _
      $region10: #{tpu_custom_call.1} parent=5 // pred_check_branch
        %497 = sbr.rel (%p494) target = $region12
      $region11: #{tpu_custom_call.1} parent=5 // pred_region
        %s498 = ssub.s32 %s39, 1
        // Predicated region
        $region13: #{tpu_custom_call.1} parent=11 // pred_check
          %p499 = pneg %p164
        $region14: #{tpu_custom_call.1} parent=11 // pred_check_branch
          %501 = sbr.rel (%p499) target = $region16
        $region15: #{tpu_custom_call.1} parent=11 // pred_region
          %503 = vsyncadd [#allocation9], 0
          %s504 = sshll.u32 %s4, 4
          %s505 = int_to_ptr.hbm [resolvable:$true] %s504
          %s506 = sshll.u32 [#allocation8], 4
          %s507 = int_to_ptr.vmem [resolvable:$true] %s506
          %512 = dma.hbm_to_vmem [thread:$0]  %s505, 3072, %s507, [#allocation9], 192, 192, 12
        $region16: #{tpu_custom_call.1} parent=11 // pred_fallthru
          _
        // Predicated region
        $region17: #{tpu_custom_call.1} parent=11 // pred_check
          %p513 = pneg %p185
        $region18: #{tpu_custom_call.1} parent=11 // pred_check_branch
          %515 = sbr.rel (%p513) target = $region20
        $region19: #{tpu_custom_call.1} parent=11 // pred_region
          _
        $region20: #{tpu_custom_call.1} parent=11 // pred_fallthru
          _
        // Predicated region
        $region21: #{tpu_custom_call.1} parent=11 // pred_check
          %p516 = pneg %p206
        $region22: #{tpu_custom_call.1} parent=11 // pred_check_branch
          %518 = sbr.rel (%p516) target = $region24
        $region23: #{tpu_custom_call.1} parent=11 // pred_region
          %520 = vsyncadd [#allocation9], 0
          %s521 = sshll.u32 %s6, 4
          %s522 = int_to_ptr.hbm [resolvable:$true] %s521
          %s523 = sshll.u32 [#allocation10], 4
          %s524 = int_to_ptr.vmem [resolvable:$true] %s523
          %529 = dma.hbm_to_vmem [thread:$0]  %s522, 1024, %s524, [#allocation9], 64, 64, 4
        $region24: #{tpu_custom_call.1} parent=11 // pred_fallthru
          _
        // Predicated region
        $region25: #{tpu_custom_call.1} parent=11 // pred_check
          %p530 = pneg %p227
        $region26: #{tpu_custom_call.1} parent=11 // pred_check_branch
          %532 = sbr.rel (%p530) target = $region28
        $region27: #{tpu_custom_call.1} parent=11 // pred_region
          %534 = vsyncadd [#allocation12], 0
          %s536 = sshll.u32 %s7, 4
          %s537 = int_to_ptr.hbm [resolvable:$true] %s536
          %s538 = sshll.u32 [#allocation11], 4
          %s539 = int_to_ptr.vmem [resolvable:$true] %s538
          %541 = dma.hbm_to_vmem [thread:$0]  %s537, 16, %s539, [#allocation12]
        $region28: #{tpu_custom_call.1} parent=11 // pred_fallthru
          _
        // Predicated region
        $region29: #{tpu_custom_call.1} parent=11 // pred_check
          %p542 = pneg %p248
        $region30: #{tpu_custom_call.1} parent=11 // pred_check_branch
          %544 = sbr.rel (%p542) target = $region32
        $region31: #{tpu_custom_call.1} parent=11 // pred_region
          %546 = vsyncadd [#allocation12], 0
          %s547 = sshll.u32 %s8, 4
          %s548 = int_to_ptr.hbm [resolvable:$true] %s547
          %s549 = sshll.u32 [#allocation13], 4
          %s550 = int_to_ptr.vmem [resolvable:$true] %s549
          %555 = dma.hbm_to_vmem [thread:$0]  %s548, 1024, %s550, [#allocation12], 64, 64, 4
        $region32: #{tpu_custom_call.1} parent=11 // pred_fallthru
          _
        // Predicated region
        $region33: #{tpu_custom_call.1} parent=11 // pred_check
          %p556 = pneg %p269
        $region34: #{tpu_custom_call.1} parent=11 // pred_check_branch
          %558 = sbr.rel (%p556) target = $region36
        $region35: #{tpu_custom_call.1} parent=11 // pred_region
          %560 = vsyncadd [#allocation15], 0
          %s562 = sshll.u32 %s9, 4
          %s563 = int_to_ptr.hbm [resolvable:$true] %s562
          %s564 = sshll.u32 [#allocation14], 4
          %s565 = int_to_ptr.vmem [resolvable:$true] %s564
          %567 = dma.hbm_to_vmem [thread:$0]  %s563, 16, %s565, [#allocation15]
        $region36: #{tpu_custom_call.1} parent=11 // pred_fallthru
          _
        // Predicated region
        $region37: #{tpu_custom_call.1} parent=11 // pred_check
          %p568 = pneg %p290
        $region38: #{tpu_custom_call.1} parent=11 // pred_check_branch
          %570 = sbr.rel (%p568) target = $region40
        $region39: #{tpu_custom_call.1} parent=11 // pred_region
          %572 = vsyncadd [#allocation15], 0
          %s573 = sshll.u32 %s10, 4
          %s574 = int_to_ptr.hbm [resolvable:$true] %s573
          %s575 = sshll.u32 [#allocation16], 4
          %s576 = int_to_ptr.vmem [resolvable:$true] %s575
          %581 = dma.hbm_to_vmem [thread:$0]  %s574, 2048, %s576, [#allocation15], 128, 128, 8
        $region40: #{tpu_custom_call.1} parent=11 // pred_fallthru
          _
        // Predicated region
        $region41: #{tpu_custom_call.1} parent=11 // pred_check
          %p582 = pneg %p311
        $region42: #{tpu_custom_call.1} parent=11 // pred_check_branch
          %584 = sbr.rel (%p582) target = $region44
        $region43: #{tpu_custom_call.1} parent=11 // pred_region
          _
        $region44: #{tpu_custom_call.1} parent=11 // pred_fallthru
          _
        // Predicated region
        $region45: #{tpu_custom_call.1} parent=11 // pred_check
          %p585 = pneg %p332
        $region46: #{tpu_custom_call.1} parent=11 // pred_check_branch
          %587 = sbr.rel (%p585) target = $region48
        $region47: #{tpu_custom_call.1} parent=11 // pred_region
          %589 = vsyncadd [#allocation18], 0
          %s590 = sshll.u32 %s12, 4
          %s591 = int_to_ptr.hbm [resolvable:$true] %s590
          %s592 = sshll.u32 [#allocation17], 4
          %s593 = int_to_ptr.vmem [resolvable:$true] %s592
          %598 = dma.hbm_to_vmem [thread:$0]  %s591, 1024, %s593, [#allocation18], 64, 64, 4
        $region48: #{tpu_custom_call.1} parent=11 // pred_fallthru
          _
        // Predicated region
        $region49: #{tpu_custom_call.1} parent=11 // pred_check
          %p599 = pneg %p353
        $region50: #{tpu_custom_call.1} parent=11 // pred_check_branch
          %601 = sbr.rel (%p599) target = $region52
        $region51: #{tpu_custom_call.1} parent=11 // pred_region
          %603 = vsyncadd [#allocation18], 0
          %s605 = sshll.u32 %s13, 4
          %s606 = int_to_ptr.hbm [resolvable:$true] %s605
          %s607 = sshll.u32 [#allocation19], 4
          %s608 = int_to_ptr.vmem [resolvable:$true] %s607
          %610 = dma.hbm_to_vmem [thread:$0]  %s606, 16, %s608, [#allocation18]
        $region52: #{tpu_custom_call.1} parent=11 // pred_fallthru
          _
        // Predicated region
        $region53: #{tpu_custom_call.1} parent=11 // pred_check
          %p611 = pneg %p374
        $region54: #{tpu_custom_call.1} parent=11 // pred_check_branch
          %613 = sbr.rel (%p611) target = $region56
        $region55: #{tpu_custom_call.1} parent=11 // pred_region
          %615 = vsyncadd [#allocation21], 0
          %s616 = sshll.u32 %s14, 4
          %s617 = int_to_ptr.hbm [resolvable:$true] %s616
          %s618 = sshll.u32 [#allocation20], 4
          %s619 = int_to_ptr.vmem [resolvable:$true] %s618
          %624 = dma.hbm_to_vmem [thread:$0]  %s617, 2048, %s619, [#allocation21], 128, 128, 8
        $region56: #{tpu_custom_call.1} parent=11 // pred_fallthru
          _
        // Predicated region
        $region57: #{tpu_custom_call.1} parent=11 // pred_check
          %p625 = pneg %p395
        $region58: #{tpu_custom_call.1} parent=11 // pred_check_branch
          %627 = sbr.rel (%p625) target = $region60
        $region59: #{tpu_custom_call.1} parent=11 // pred_region
          _
        $region60: #{tpu_custom_call.1} parent=11 // pred_fallthru
          _
        // Predicated region
        $region61: #{tpu_custom_call.1} parent=11 // pred_check
          %p628 = pneg %p416
        $region62: #{tpu_custom_call.1} parent=11 // pred_check_branch
          %630 = sbr.rel (%p628) target = $region64
        $region63: #{tpu_custom_call.1} parent=11 // pred_region
          %632 = vsyncadd [#allocation21], 0
          %s633 = sshll.u32 %s16, 4
          %s634 = int_to_ptr.hbm [resolvable:$true] %s633
          %s635 = sshll.u32 [#allocation22], 4
          %s636 = int_to_ptr.vmem [resolvable:$true] %s635
          %641 = dma.hbm_to_vmem [thread:$0]  %s634, 2048, %s636, [#allocation21], 64, 64, 4
        $region64: #{tpu_custom_call.1} parent=11 // pred_fallthru
          _
        // Predicated region
        $region65: #{tpu_custom_call.1} parent=11 // pred_check
          %p642 = pneg %p437
        $region66: #{tpu_custom_call.1} parent=11 // pred_check_branch
          %644 = sbr.rel (%p642) target = $region68
        $region67: #{tpu_custom_call.1} parent=11 // pred_region
          _
        $region68: #{tpu_custom_call.1} parent=11 // pred_fallthru
          _
        // Predicated region
        $region69: #{tpu_custom_call.1} parent=11 // pred_check
          %p645 = pneg %p458
        $region70: #{tpu_custom_call.1} parent=11 // pred_check_branch
          %647 = sbr.rel (%p645) target = $region72
        $region71: #{tpu_custom_call.1} parent=11 // pred_region
          _
        $region72: #{tpu_custom_call.1} parent=11 // pred_fallthru
          _
      $region12: #{tpu_custom_call.1} parent=5 // pred_fallthru
        _
      %p648 = scmp.lt.s32.totalorder %s39, 2
      // Predicated region
      $region73: #{tpu_custom_call.1} parent=5 // pred_check
        %p649 = pneg %p648
      $region74: #{tpu_custom_call.1} parent=5 // pred_check_branch
        %651 = sbr.rel (%p649) target = $region76
      $region75: #{tpu_custom_call.1} parent=5 // pred_region
        // Predicated region
        $region77: #{tpu_custom_call.1} parent=75 // pred_check
          %p652 = pneg %p59
        $region78: #{tpu_custom_call.1} parent=75 // pred_check_branch
          %654 = sbr.rel (%p652) target = $region80
        $region79: #{tpu_custom_call.1} parent=75 // pred_region
          %s655 = sand.u32 %s49, 1
          %s656 = scalar_lea.sflag [#allocation3], %s655
          %s657 = sand.u32 %s49, 1
          %s658 = smul.addr %s657, 8
          %s659 = scalar_lea.vmem [#allocation2], %s658
          %661 = vsyncadd %s656, 0
          %s662 = smul.addr %s39, 8
          %s663 = scalar_lea.hbm %s0, %s662
          %s665 = sshll.u32 %s663, 4
          %s666 = int_to_ptr.hbm [resolvable:$true] %s665
          %s667 = sshll.u32 %s659, 4
          %s668 = int_to_ptr.vmem [resolvable:$true] %s667
          %670 = dma.hbm_to_vmem [thread:$0]  %s666, 128, %s668, %s656
        $region80: #{tpu_custom_call.1} parent=75 // pred_fallthru
          _
        // Predicated region
        $region81: #{tpu_custom_call.1} parent=75 // pred_check
          %p671 = pneg %p85
        $region82: #{tpu_custom_call.1} parent=75 // pred_check_branch
          %673 = sbr.rel (%p671) target = $region84
        $region83: #{tpu_custom_call.1} parent=75 // pred_region
          %s674 = sand.u32 %s39, 1
          %s675 = scalar_lea.sflag [#allocation6], %s674
          %s676 = sand.u32 %s75, 1
          %s677 = smul.addr %s676, 16
          %s678 = scalar_lea.vmem [#allocation5], %s677
          %680 = vsyncadd %s675, 0
          %s681 = smul.addr %s39, 2
          %s682 = smul.addr %s681, 8
          %s683 = scalar_lea.hbm %s1, %s682
          %s684 = sshll.u32 %s683, 4
          %s685 = int_to_ptr.hbm [resolvable:$true] %s684
          %s686 = sshll.u32 %s678, 4
          %s687 = int_to_ptr.vmem [resolvable:$true] %s686
          %692 = dma.hbm_to_vmem [thread:$0]  %s685, 256, %s687, %s675, 128, 128, 8
        $region84: #{tpu_custom_call.1} parent=75 // pred_fallthru
          _
        // Predicated region
        $region85: #{tpu_custom_call.1} parent=75 // pred_check
          %p693 = pneg %p111
        $region86: #{tpu_custom_call.1} parent=75 // pred_check_branch
          %695 = sbr.rel (%p693) target = $region88
        $region87: #{tpu_custom_call.1} parent=75 // pred_region
          %s696 = sand.u32 %s39, 1
          %s697 = scalar_lea.sflag [#allocation6], %s696
          %s698 = sand.u32 %s101, 1
          %s699 = smul.addr %s698, 2
          %s700 = scalar_lea.vmem [#allocation7], %s699
          %702 = vsyncadd %s697, 0
          %s703 = smul.addr %s39, 2
          %s704 = scalar_lea.hbm %s2, %s703
          %s706 = sshll.u32 %s704, 4
          %s707 = int_to_ptr.hbm [resolvable:$true] %s706
          %s708 = sshll.u32 %s700, 4
          %s709 = int_to_ptr.vmem [resolvable:$true] %s708
          %711 = dma.hbm_to_vmem [thread:$0]  %s707, 32, %s709, %s697
        $region88: #{tpu_custom_call.1} parent=75 // pred_fallthru
          _
        // Predicated region
        $region89: #{tpu_custom_call.1} parent=75 // pred_check
          %p712 = pneg %p137
        $region90: #{tpu_custom_call.1} parent=75 // pred_check_branch
          %714 = sbr.rel (%p712) target = $region92
        $region91: #{tpu_custom_call.1} parent=75 // pred_region
          %p715 = scmp.lt.s32.totalorder %s39, 1
          %s716 = scalar_select %p715, %s39, 1
          %s717 = scalar_lea.vmem %s3, %s716
        $region92: #{tpu_custom_call.1} parent=75 // pred_fallthru
          _
      $region76: #{tpu_custom_call.1} parent=5 // pred_fallthru
        _
      %p718 = scmp.le.s32.totalorder 1, %s39
      %p719 = scmp.lt.s32.totalorder %s39, 3
      %p720 = pnand %p718, %p719
      %p721 = pneg %p720
      // Predicated region
      $region93: #{tpu_custom_call.1} parent=5 // pred_check
        _
      $region94: #{tpu_custom_call.1} parent=5 // pred_check_branch
        %723 = sbr.rel (%p720) target = $region96
      $region95: #{tpu_custom_call.1} parent=5 // pred_region
        %s724 = ssub.s32 %s39, 1
        %s725 = sand.u32 %s52, 1
        %s726 = scalar_lea.sflag [#allocation3], %s725
        %s727 = sand.u32 %s52, 1
        %s728 = smul.addr %s727, 8
        %s729 = scalar_lea.vmem [#allocation2], %s728
        // Predicated region
        $region97: #{tpu_custom_call.1} parent=95 // pred_check
          %p730 = pneg %p65
        $region98: #{tpu_custom_call.1} parent=95 // pred_check_branch
          %732 = sbr.rel (%p730) target = $region100
        $region99: #{tpu_custom_call.1} parent=95 // pred_region
          %734 = dma.done %s726, 128
        $region100: #{tpu_custom_call.1} parent=95 // pred_fallthru
          _
        %s735 = sand.u32 %s44, 1
        %s736 = scalar_lea.sflag [#allocation6], %s735
        %s737 = sand.u32 %s78, 1
        %s738 = smul.addr %s737, 16
        %s739 = scalar_lea.vmem [#allocation5], %s738
        // Predicated region
        $region101: #{tpu_custom_call.1} parent=95 // pred_check
          %p740 = pneg %p91
        $region102: #{tpu_custom_call.1} parent=95 // pred_check_branch
          %742 = sbr.rel (%p740) target = $region104
        $region103: #{tpu_custom_call.1} parent=95 // pred_region
          %744 = dma.done %s736, 256
        $region104: #{tpu_custom_call.1} parent=95 // pred_fallthru
          _
        %s745 = sand.u32 %s44, 1
        %s746 = scalar_lea.sflag [#allocation6], %s745
        %s747 = sand.u32 %s104, 1
        %s748 = smul.addr %s747, 2
        %s749 = scalar_lea.vmem [#allocation7], %s748
        // Predicated region
        $region105: #{tpu_custom_call.1} parent=95 // pred_check
          %p750 = pneg %p117
        $region106: #{tpu_custom_call.1} parent=95 // pred_check_branch
          %752 = sbr.rel (%p750) target = $region108
        $region107: #{tpu_custom_call.1} parent=95 // pred_region
          %754 = dma.done %s746, 32
        $region108: #{tpu_custom_call.1} parent=95 // pred_fallthru
          _
        // Predicated region
        $region109: #{tpu_custom_call.1} parent=95 // pred_check
          %p755 = pneg %p164
        $region110: #{tpu_custom_call.1} parent=95 // pred_check_branch
          %757 = sbr.rel (%p755) target = $region112
        $region111: #{tpu_custom_call.1} parent=95 // pred_region
          %759 = dma.done [#allocation9], 3072
        $region112: #{tpu_custom_call.1} parent=95 // pred_fallthru
          _
        // Predicated region
        $region113: #{tpu_custom_call.1} parent=95 // pred_check
          %p760 = pneg %p206
        $region114: #{tpu_custom_call.1} parent=95 // pred_check_branch
          %762 = sbr.rel (%p760) target = $region116
        $region115: #{tpu_custom_call.1} parent=95 // pred_region
          %764 = dma.done [#allocation9], 1024
        $region116: #{tpu_custom_call.1} parent=95 // pred_fallthru
          _
        // Predicated region
        $region117: #{tpu_custom_call.1} parent=95 // pred_check
          %p765 = pneg %p227
        $region118: #{tpu_custom_call.1} parent=95 // pred_check_branch
          %767 = sbr.rel (%p765) target = $region120
        $region119: #{tpu_custom_call.1} parent=95 // pred_region
          %769 = dma.done [#allocation12], 16
        $region120: #{tpu_custom_call.1} parent=95 // pred_fallthru
          _
        // Predicated region
        $region121: #{tpu_custom_call.1} parent=95 // pred_check
          %p770 = pneg %p248
        $region122: #{tpu_custom_call.1} parent=95 // pred_check_branch
          %772 = sbr.rel (%p770) target = $region124
        $region123: #{tpu_custom_call.1} parent=95 // pred_region
          %774 = dma.done [#allocation12], 1024
        $region124: #{tpu_custom_call.1} parent=95 // pred_fallthru
          _
        // Predicated region
        $region125: #{tpu_custom_call.1} parent=95 // pred_check
          %p775 = pneg %p269
        $region126: #{tpu_custom_call.1} parent=95 // pred_check_branch
          %777 = sbr.rel (%p775) target = $region128
        $region127: #{tpu_custom_call.1} parent=95 // pred_region
          %779 = dma.done [#allocation15], 16
        $region128: #{tpu_custom_call.1} parent=95 // pred_fallthru
          _
        // Predicated region
        $region129: #{tpu_custom_call.1} parent=95 // pred_check
          %p780 = pneg %p290
        $region130: #{tpu_custom_call.1} parent=95 // pred_check_branch
          %782 = sbr.rel (%p780) target = $region132
        $region131: #{tpu_custom_call.1} parent=95 // pred_region
          %784 = dma.done [#allocation15], 2048
        $region132: #{tpu_custom_call.1} parent=95 // pred_fallthru
          _
        // Predicated region
        $region133: #{tpu_custom_call.1} parent=95 // pred_check
          %p785 = pneg %p332
        $region134: #{tpu_custom_call.1} parent=95 // pred_check_branch
          %787 = sbr.rel (%p785) target = $region136
        $region135: #{tpu_custom_call.1} parent=95 // pred_region
          %789 = dma.done [#allocation18], 1024
        $region136: #{tpu_custom_call.1} parent=95 // pred_fallthru
          _
        // Predicated region
        $region137: #{tpu_custom_call.1} parent=95 // pred_check
          %p790 = pneg %p353
        $region138: #{tpu_custom_call.1} parent=95 // pred_check_branch
          %792 = sbr.rel (%p790) target = $region140
        $region139: #{tpu_custom_call.1} parent=95 // pred_region
          %794 = dma.done [#allocation18], 16
        $region140: #{tpu_custom_call.1} parent=95 // pred_fallthru
          _
        // Predicated region
        $region141: #{tpu_custom_call.1} parent=95 // pred_check
          %p795 = pneg %p374
        $region142: #{tpu_custom_call.1} parent=95 // pred_check_branch
          %797 = sbr.rel (%p795) target = $region144
        $region143: #{tpu_custom_call.1} parent=95 // pred_region
          %799 = dma.done [#allocation21], 2048
        $region144: #{tpu_custom_call.1} parent=95 // pred_fallthru
          _
        // Predicated region
        $region145: #{tpu_custom_call.1} parent=95 // pred_check
          %p800 = pneg %p416
        $region146: #{tpu_custom_call.1} parent=95 // pred_check_branch
          %802 = sbr.rel (%p800) target = $region148
        $region147: #{tpu_custom_call.1} parent=95 // pred_region
          %804 = dma.done [#allocation21], 2048
        $region148: #{tpu_custom_call.1} parent=95 // pred_fallthru
          _
        %s805 = sand.u32 %s52, 1
        %s806 = scalar_lea.sflag [#allocation3], %s805
        %s807 = sand.u32 %s52, 1
        %s808 = smul.addr %s807, 8
        %s809 = scalar_lea.vmem [#allocation2], %s808
        %p810 = pneg %p65
        %p811 = pneg %p62
        %s812 = sand.u32 %s44, 1
        %s813 = scalar_lea.sflag [#allocation6], %s812
        %s814 = sand.u32 %s78, 1
        %s815 = smul.addr %s814, 16
        %s816 = scalar_lea.vmem [#allocation5], %s815
        %p817 = pneg %p91
        %p818 = pneg %p88
        %s819 = sand.u32 %s44, 1
        %s820 = scalar_lea.sflag [#allocation6], %s819
        %s821 = sand.u32 %s104, 1
        %s822 = smul.addr %s821, 2
        %s823 = scalar_lea.vmem [#allocation7], %s822
        %p824 = pneg %p117
        %p825 = pneg %p114
        %p826 = scmp.lt.s32.totalorder %s44, 1
        %s827 = scalar_select %p826, %s44, 1
        %s828 = scalar_lea.vmem %s3, %s827
        %p829 = pneg %p143
        %p830 = pneg %p140
        %p831 = pneg %p164
        %p832 = pneg %p161
        %p833 = pneg %p185
        %p834 = pneg %p182
        %p835 = pneg %p206
        %p836 = pneg %p203
        %p837 = pneg %p227
        %p838 = pneg %p224
        %p839 = pneg %p248
        %p840 = pneg %p245
        %p841 = pneg %p269
        %p842 = pneg %p266
        %p843 = pneg %p290
        %p844 = pneg %p287
        %p845 = pneg %p311
        %p846 = pneg %p308
        %p847 = pneg %p332
        %p848 = pneg %p329
        %p849 = pneg %p353
        %p850 = pneg %p350
        %p851 = pneg %p374
        %p852 = pneg %p371
        %p853 = pneg %p395
        %p854 = pneg %p392
        %p855 = pneg %p416
        %p856 = pneg %p413
        %p857 = pneg %p437
        %p858 = pneg %p434
        %p859 = pneg %p458
        %p860 = pneg %p455
        %p861 = pneg %p484
        %p862 = pneg %p481
        %s863 = sand.u32 %s471, 1
        %s864 = scalar_lea.sflag [#allocation4], %s863
        %s865 = sand.u32 %s471, 1
        %s866 = smul.addr %s865, 8
        %s867 = scalar_lea.vmem [#allocation23], %s866
        %p868 = scmp.lt.s32.totalorder %s44, 1
        %s869 = scalar_select %p868, %s44, 1
        %s870 = scalar_lea.vmem %s3, %s869
        %v872 = vld [vmem:[%s729] sm:$0xff]
        %v873 = vld [vmem:[%s739] sm:$0xff]
        %v874 = vld [vmem:[%s739 + $0x8] sm:$0xff]
        %v875 = vld [vmem:[%s18] sm:$0x3f]
        %v876 = vld [vmem:[%s749] sm:$0x3]
        %v877 = vunpack.c.0.s8 %v876
        %v878 = vcvt.s32.f32 %v877
        %vm879 = vcmp.eq.f32.partialorder %v878, 0.0
        %v880 = vsel %vm879, -1e+09, 0.0
        %v881 = vld [vmem:[%s870] sm:$0x1]
        %v882 = vunpack.c.0.s8 %v881
        %v883 = vcvt.s32.f32 %v882
        %vm884 = vcmp.eq.f32.partialorder %v883, 0.0
        %v885 = vsel %vm884, -1e+09, 0.0
        %v886 = vpack.c.bf16 %v872, %v872
        %v887 = vld [vmem:[#allocation8] sm:$0xff]
        %v888 = vld [vmem:[#allocation8 + $0x8] sm:$0xf]
        %v889 = vld [vmem:[#allocation8 + $0xc] sm:$0xff]
        %v890 = vld [vmem:[#allocation8 + $0x14] sm:$0xf]
        %v891 = vld [vmem:[#allocation8 + $0x18] sm:$0xff]
        %v892 = vld [vmem:[#allocation8 + $0x20] sm:$0xf]
        %v893 = vld [vmem:[#allocation8 + $0x24] sm:$0xff]
        %v894 = vld [vmem:[#allocation8 + $0x2c] sm:$0xf]
        %v895 = vld [vmem:[#allocation8 + $0x30] sm:$0xff]
        %v896 = vld [vmem:[#allocation8 + $0x38] sm:$0xf]
        %v897 = vld [vmem:[#allocation8 + $0x3c] sm:$0xff]
        %v898 = vld [vmem:[#allocation8 + $0x44] sm:$0xf]
        %v899 = vld [vmem:[#allocation8 + $0x48] sm:$0xff]
        %v900 = vld [vmem:[#allocation8 + $0x50] sm:$0xf]
        %v901 = vld [vmem:[#allocation8 + $0x54] sm:$0xff]
        %v902 = vld [vmem:[#allocation8 + $0x5c] sm:$0xf]
        %v903 = vld [vmem:[#allocation8 + $0x60] sm:$0xff]
        %v904 = vld [vmem:[#allocation8 + $0x68] sm:$0xf]
        %v905 = vld [vmem:[#allocation8 + $0x6c] sm:$0xff]
        %v906 = vld [vmem:[#allocation8 + $0x74] sm:$0xf]
        %v907 = vld [vmem:[#allocation8 + $0x78] sm:$0xff]
        %v908 = vld [vmem:[#allocation8 + $0x80] sm:$0xf]
        %v909 = vld [vmem:[#allocation8 + $0x84] sm:$0xff]
        %v910 = vld [vmem:[#allocation8 + $0x8c] sm:$0xf]
        %v911 = vld [vmem:[#allocation8 + $0x90] sm:$0xff]
        %v912 = vld [vmem:[#allocation8 + $0x98] sm:$0xf]
        %v913 = vld [vmem:[#allocation8 + $0x9c] sm:$0xff]
        %v914 = vld [vmem:[#allocation8 + $0xa4] sm:$0xf]
        %v915 = vld [vmem:[#allocation8 + $0xa8] sm:$0xff]
        %v916 = vld [vmem:[#allocation8 + $0xb0] sm:$0xf]
        %v917 = vld [vmem:[#allocation8 + $0xb4] sm:$0xff]
        %v918 = vld [vmem:[#allocation8 + $0xbc] sm:$0xf]
        %v919 = vld [vmem:[%s5] sm:$0x7]
        %v921 = vperm.slane %v919, 0
        %v922 = vperm.slane %v919, 1
        %v923 = vperm.slane %v919, 2
        %v959 = vunpack.c.l.b16 %v887
        %v960 = vunpack.c.h.b16 %v887
        %v961 = vunpack.c.l.b16 %v888
        %v962 = vunpack.c.l.b16 %v889
        %v963 = vunpack.c.h.b16 %v889
        %v964 = vunpack.c.l.b16 %v890
        %v965 = vunpack.c.l.b16 %v891
        %v966 = vunpack.c.h.b16 %v891
        %v967 = vunpack.c.l.b16 %v892
        %v968 = vunpack.c.l.b16 %v893
        %v969 = vunpack.c.h.b16 %v893
        %v970 = vunpack.c.l.b16 %v894
        %v971 = vunpack.c.l.b16 %v895
        %v972 = vunpack.c.h.b16 %v895
        %v973 = vunpack.c.l.b16 %v896
        %v974 = vunpack.c.l.b16 %v897
        %v975 = vunpack.c.h.b16 %v897
        %v976 = vunpack.c.l.b16 %v898
        %v977 = vunpack.c.l.b16 %v899
        %v978 = vunpack.c.h.b16 %v899
        %v979 = vunpack.c.l.b16 %v900
        %v980 = vunpack.c.l.b16 %v901
        %v981 = vunpack.c.h.b16 %v901
        %v982 = vunpack.c.l.b16 %v902
        %v983 = vunpack.c.l.b16 %v903
        %v984 = vunpack.c.h.b16 %v903
        %v985 = vunpack.c.l.b16 %v904
        %v986 = vunpack.c.l.b16 %v905
        %v987 = vunpack.c.h.b16 %v905
        %v988 = vunpack.c.l.b16 %v906
        %v989 = vunpack.c.l.b16 %v907
        %v990 = vunpack.c.h.b16 %v907
        %v991 = vunpack.c.l.b16 %v908
        %v992 = vunpack.c.l.b16 %v909
        %v993 = vunpack.c.h.b16 %v909
        %v994 = vunpack.c.l.b16 %v910
        %v995 = vunpack.c.l.b16 %v911
        %v996 = vunpack.c.h.b16 %v911
        %v997 = vunpack.c.l.b16 %v912
        %v998 = vunpack.c.l.b16 %v913
        %v999 = vunpack.c.h.b16 %v913
        %v1000 = vunpack.c.l.b16 %v914
        %v1001 = vunpack.c.l.b16 %v915
        %v1002 = vunpack.c.h.b16 %v915
        %v1003 = vunpack.c.l.b16 %v916
        %v1004 = vunpack.c.l.b16 %v917
        %v1005 = vunpack.c.h.b16 %v917
        %v1006 = vunpack.c.l.b16 %v918
        %v1007 = vpack.c.b16 %v962, %v959
        %v1008 = vpack.c.b16 %v963, %v960
        %v1009 = vpack.c.b16 %v964, %v961
        %v1010 = vpack.c.b16 %v968, %v965
        %v1011 = vpack.c.b16 %v969, %v966
        %v1012 = vpack.c.b16 %v970, %v967
        %v1013 = vpack.c.b16 %v974, %v971
        %v1014 = vpack.c.b16 %v975, %v972
        %v1015 = vpack.c.b16 %v976, %v973
        %v1016 = vpack.c.b16 %v980, %v977
        %v1017 = vpack.c.b16 %v981, %v978
        %v1018 = vpack.c.b16 %v982, %v979
        %v1019 = vpack.c.b16 %v986, %v983
        %v1020 = vpack.c.b16 %v987, %v984
        %v1021 = vpack.c.b16 %v988, %v985
        %v1022 = vpack.c.b16 %v992, %v989
        %v1023 = vpack.c.b16 %v993, %v990
        %v1024 = vpack.c.b16 %v994, %v991
        %v1025 = vpack.c.b16 %v998, %v995
        %v1026 = vpack.c.b16 %v999, %v996
        %v1027 = vpack.c.b16 %v1000, %v997
        %v1028 = vpack.c.b16 %v1004, %v1001
        %v1029 = vpack.c.b16 %v1005, %v1002
        %v1030 = vpack.c.b16 %v1006, %v1003
        %1055 = vmatpush.bf16.msra.mxu0 %v1028
        %1056 = vmatpush.bf16.msra.mxu0 %v1025
        %1057 = vmatpush.bf16.msra.mxu0 %v1022
        %1058 = vmatpush.bf16.msra.mxu0 %v1019
        %1059 = vmatpush.bf16.msra.mxu0 %v1016
        %1060 = vmatpush.bf16.msra.mxu0 %v1013
        %1061 = vmatpush.bf16.msra.mxu0 %v1010
        %1062 = vmatpush.bf16.msra.mxu0 %v1007
        %1063 = vmatmul.bf16.gmra.mxu0 %v886
        %v1064 = vpop.f32.mrf.mxu0
        %v1065 = vadd.f32 %v921, %v1064
        %v1066 = vpop.f32.mrf.mxu0
        %1067 = vdwg.mxu0
        %1068 = vmatpush.bf16.msra.mxu0 %v1029
        %1069 = vmatpush.bf16.msra.mxu0 %v1026
        %1070 = vmatpush.bf16.msra.mxu0 %v1023
        %1071 = vmatpush.bf16.msra.mxu0 %v1020
        %1072 = vmatpush.bf16.msra.mxu0 %v1017
        %1073 = vmatpush.bf16.msra.mxu0 %v1014
        %1074 = vmatpush.bf16.msra.mxu0 %v1011
        %1075 = vmatpush.bf16.msra.mxu0 %v1008
        %1076 = vmatmul.bf16.gmra.mxu0 %v886
        %v1077 = vpop.f32.mrf.mxu0
        %v1078 = vadd.f32 %v922, %v1077
        %v1079 = vpop.f32.mrf.mxu0
        %1080 = vdwg.mxu0
        %1081 = vmatpush.bf16.msra.mxu0 %v1030
        %1082 = vmatpush.bf16.msra.mxu0 %v1027
        %1083 = vmatpush.bf16.msra.mxu0 %v1024
        %1084 = vmatpush.bf16.msra.mxu0 %v1021
        %1085 = vmatpush.bf16.msra.mxu0 %v1018
        %1086 = vmatpush.bf16.msra.mxu0 %v1015
        %1087 = vmatpush.bf16.msra.mxu0 %v1012
        %1088 = vmatpush.bf16.msra.mxu0 %v1009
        %1089 = vmatmul.bf16.gmra.mxu0 %v886
        %v1090 = vpop.f32.mrf.mxu0
        %v1091 = vadd.f32 %v923, %v1090
        %v1092 = vpop.f32.mrf.mxu0
        %1093 = vdwg.mxu0
        %1095 = vrot.lane.b32.xlu0 %v1065, 96
        %v1096 = vpop.permute.xlu0 %1095
        %1098 = vrot.lane.b32.xlu0 %v1065, 64
        %v1099 = vpop.permute.xlu0 %1098
        %1101 = vrot.lane.b32.xlu0 %v1065, 32
        %v1102 = vpop.permute.xlu0 %1101
        %v1104 = vrot.slane %v1099, 4
        %vm1105 = vcmask 1047556
        %v1106 = vsel %vm1105, %v1104, %v1065
        %v1107 = vrot.slane %v1065, 4
        %v1108 = vsel %vm1105, %v1099, %v1107
        %v1110 = vunpack.c.l.s4 1983009808
        %v1111 = vunpack.c.0.s8 %v1110
        %v1112 = vperm.slane %v1106, %v1111
        %v1114 = vunpack.c.l.s4 1983009808
        %v1115 = vunpack.c.0.s8 %v1114
        %v1116 = vperm.slane %v1108, %v1115
        %v1117 = vrot.slane %v1102, 4
        %v1118 = vsel %vm1105, %v1117, %v1096
        %v1119 = vrot.slane %v1096, 4
        %v1120 = vsel %vm1105, %v1102, %v1119
        %v1122 = vunpack.c.l.s4 1983009808
        %v1123 = vunpack.c.0.s8 %v1122
        %v1124 = vperm.slane %v1118, %v1123
        %v1126 = vunpack.c.l.s4 1983009808
        %v1127 = vunpack.c.0.s8 %v1126
        %v1128 = vperm.slane %v1120, %v1127
        %v1129 = vrot.slane %v1124, 4
        %v1130 = vsel %vm1105, %v1129, %v1112
        %v1131 = vrot.slane %v1112, 4
        %v1132 = vsel %vm1105, %v1124, %v1131
        %v1134 = vunpack.c.l.s4 1934713408
        %v1135 = vunpack.c.0.s8 %v1134
        %v1136 = vperm.slane %v1130, %v1135
        %v1138 = vunpack.c.l.s4 1934713408
        %v1139 = vunpack.c.0.s8 %v1138
        %v1140 = vperm.slane %v1132, %v1139
        %v1141 = vrot.slane %v1128, 4
        %v1142 = vsel %vm1105, %v1141, %v1116
        %v1143 = vrot.slane %v1116, 4
        %v1144 = vsel %vm1105, %v1128, %v1143
        %v1146 = vunpack.c.l.s4 1934713408
        %v1147 = vunpack.c.0.s8 %v1146
        %v1148 = vperm.slane %v1142, %v1147
        %v1150 = vunpack.c.l.s4 1934713408
        %v1151 = vunpack.c.0.s8 %v1150
        %v1152 = vperm.slane %v1144, %v1151
        %v1153 = vrot.slane %v1136, 4
        %v1154 = vsel %vm1105, 0.0, %v1153
        %v1155 = vrot.slane %v1140, 4
        %v1156 = vsel %vm1105, 0.0, %v1155
        %v1157 = vrot.slane %v1148, 4
        %v1158 = vsel %vm1105, 0.0, %v1157
        %v1159 = vrot.slane %v1152, 4
        %v1160 = vsel %vm1105, 0.0, %v1159
        %v1161 = vsel %vm1105, %v1155, %v1136
        %v1163 = vunpack.c.l.s4 1983009808
        %v1164 = vunpack.c.0.s8 %v1163
        %v1165 = vperm.slane %v1161, %v1164
        %v1166 = vrot.slane %v1156, 4
        %v1167 = vsel %vm1105, %v1166, %v1154
        %v1169 = vunpack.c.l.s4 1983009808
        %v1170 = vunpack.c.0.s8 %v1169
        %v1171 = vperm.slane %v1167, %v1170
        %v1172 = vsel %vm1105, %v1159, %v1148
        %v1174 = vunpack.c.l.s4 1983009808
        %v1175 = vunpack.c.0.s8 %v1174
        %v1176 = vperm.slane %v1172, %v1175
        %v1177 = vrot.slane %v1160, 4
        %v1178 = vsel %vm1105, %v1177, %v1158
        %v1180 = vunpack.c.l.s4 1983009808
        %v1181 = vunpack.c.0.s8 %v1180
        %v1182 = vperm.slane %v1178, %v1181
        %v1183 = vrot.slane %v1171, 4
        %v1184 = vsel %vm1105, %v1183, %v1165
        %v1185 = vrot.slane %v1165, 4
        %v1186 = vsel %vm1105, %v1171, %v1185
        %v1188 = vunpack.c.l.s4 1934713408
        %v1189 = vunpack.c.0.s8 %v1188
        %v1190 = vperm.slane %v1184, %v1189
        %v1192 = vunpack.c.l.s4 1934713408
        %v1193 = vunpack.c.0.s8 %v1192
        %v1194 = vperm.slane %v1186, %v1193
        %v1195 = vrot.slane %v1182, 4
        %v1196 = vsel %vm1105, %v1195, %v1176
        %v1197 = vrot.slane %v1176, 4
        %v1198 = vsel %vm1105, %v1182, %v1197
        %v1200 = vunpack.c.l.s4 1934713408
        %v1201 = vunpack.c.0.s8 %v1200
        %v1202 = vperm.slane %v1196, %v1201
        %v1204 = vunpack.c.l.s4 1934713408
        %v1205 = vunpack.c.0.s8 %v1204
        %v1206 = vperm.slane %v1198, %v1205
        %v1207 = vrot.slane %v1202, 4
        %v1208 = vsel %vm1105, %v1207, %v1190
        %v1209 = vrot.slane %v1190, 4
        %v1210 = vsel %vm1105, %v1202, %v1209
        %v1211 = vrot.slane %v1206, 4
        %v1212 = vsel %vm1105, %v1211, %v1194
        %v1213 = vrot.slane %v1194, 4
        %v1214 = vsel %vm1105, %v1206, %v1213
        %v1215 = vpack.c.bf16 %v1208, %v1208
        %v1216 = vpack.c.bf16 %v1210, %v1210
        %v1217 = vpack.c.bf16 %v1212, %v1212
        %v1218 = vpack.c.bf16 %v1214, %v1214
        %1220 = vrot.lane.b32.xlu0 %v1078, 96
        %v1221 = vpop.permute.xlu0 %1220
        %1223 = vrot.lane.b32.xlu0 %v1078, 64
        %v1224 = vpop.permute.xlu0 %1223
        %1226 = vrot.lane.b32.xlu0 %v1078, 32
        %v1227 = vpop.permute.xlu0 %1226
        %v1229 = vrot.slane %v1224, 4
        %v1230 = vsel %vm1105, %v1229, %v1078
        %v1231 = vrot.slane %v1078, 4
        %v1232 = vsel %vm1105, %v1224, %v1231
        %v1234 = vunpack.c.l.s4 1983009808
        %v1235 = vunpack.c.0.s8 %v1234
        %v1236 = vperm.slane %v1230, %v1235
        %v1238 = vunpack.c.l.s4 1983009808
        %v1239 = vunpack.c.0.s8 %v1238
        %v1240 = vperm.slane %v1232, %v1239
        %v1241 = vrot.slane %v1227, 4
        %v1242 = vsel %vm1105, %v1241, %v1221
        %v1243 = vrot.slane %v1221, 4
        %v1244 = vsel %vm1105, %v1227, %v1243
        %v1246 = vunpack.c.l.s4 1983009808
        %v1247 = vunpack.c.0.s8 %v1246
        %v1248 = vperm.slane %v1242, %v1247
        %v1250 = vunpack.c.l.s4 1983009808
        %v1251 = vunpack.c.0.s8 %v1250
        %v1252 = vperm.slane %v1244, %v1251
        %v1253 = vrot.slane %v1248, 4
        %v1254 = vsel %vm1105, %v1253, %v1236
        %v1255 = vrot.slane %v1236, 4
        %v1256 = vsel %vm1105, %v1248, %v1255
        %v1258 = vunpack.c.l.s4 1934713408
        %v1259 = vunpack.c.0.s8 %v1258
        %v1260 = vperm.slane %v1254, %v1259
        %v1262 = vunpack.c.l.s4 1934713408
        %v1263 = vunpack.c.0.s8 %v1262
        %v1264 = vperm.slane %v1256, %v1263
        %v1265 = vrot.slane %v1252, 4
        %v1266 = vsel %vm1105, %v1265, %v1240
        %v1267 = vrot.slane %v1240, 4
        %v1268 = vsel %vm1105, %v1252, %v1267
        %v1270 = vunpack.c.l.s4 1934713408
        %v1271 = vunpack.c.0.s8 %v1270
        %v1272 = vperm.slane %v1266, %v1271
        %v1274 = vunpack.c.l.s4 1934713408
        %v1275 = vunpack.c.0.s8 %v1274
        %v1276 = vperm.slane %v1268, %v1275
        %v1277 = vrot.slane %v1260, 4
        %v1278 = vsel %vm1105, 0.0, %v1277
        %v1279 = vrot.slane %v1264, 4
        %v1280 = vsel %vm1105, 0.0, %v1279
        %v1281 = vrot.slane %v1272, 4
        %v1282 = vsel %vm1105, 0.0, %v1281
        %v1283 = vrot.slane %v1276, 4
        %v1284 = vsel %vm1105, 0.0, %v1283
        %v1285 = vsel %vm1105, %v1279, %v1260
        %v1287 = vunpack.c.l.s4 1983009808
        %v1288 = vunpack.c.0.s8 %v1287
        %v1289 = vperm.slane %v1285, %v1288
        %v1290 = vrot.slane %v1280, 4
        %v1291 = vsel %vm1105, %v1290, %v1278
        %v1293 = vunpack.c.l.s4 1983009808
        %v1294 = vunpack.c.0.s8 %v1293
        %v1295 = vperm.slane %v1291, %v1294
        %v1296 = vsel %vm1105, %v1283, %v1272
        %v1298 = vunpack.c.l.s4 1983009808
        %v1299 = vunpack.c.0.s8 %v1298
        %v1300 = vperm.slane %v1296, %v1299
        %v1301 = vrot.slane %v1284, 4
        %v1302 = vsel %vm1105, %v1301, %v1282
        %v1304 = vunpack.c.l.s4 1983009808
        %v1305 = vunpack.c.0.s8 %v1304
        %v1306 = vperm.slane %v1302, %v1305
        %v1307 = vrot.slane %v1295, 4
        %v1308 = vsel %vm1105, %v1307, %v1289
        %v1309 = vrot.slane %v1289, 4
        %v1310 = vsel %vm1105, %v1295, %v1309
        %v1312 = vunpack.c.l.s4 1934713408
        %v1313 = vunpack.c.0.s8 %v1312
        %v1314 = vperm.slane %v1308, %v1313
        %v1316 = vunpack.c.l.s4 1934713408
        %v1317 = vunpack.c.0.s8 %v1316
        %v1318 = vperm.slane %v1310, %v1317
        %v1319 = vrot.slane %v1306, 4
        %v1320 = vsel %vm1105, %v1319, %v1300
        %v1321 = vrot.slane %v1300, 4
        %v1322 = vsel %vm1105, %v1306, %v1321
        %v1324 = vunpack.c.l.s4 1934713408
        %v1325 = vunpack.c.0.s8 %v1324
        %v1326 = vperm.slane %v1320, %v1325
        %v1328 = vunpack.c.l.s4 1934713408
        %v1329 = vunpack.c.0.s8 %v1328
        %v1330 = vperm.slane %v1322, %v1329
        %v1331 = vrot.slane %v1326, 4
        %v1332 = vsel %vm1105, %v1331, %v1314
        %v1333 = vrot.slane %v1314, 4
        %v1334 = vsel %vm1105, %v1326, %v1333
        %v1335 = vrot.slane %v1330, 4
        %v1336 = vsel %vm1105, %v1335, %v1318
        %v1337 = vrot.slane %v1318, 4
        %v1338 = vsel %vm1105, %v1330, %v1337
        %v1339 = vpack.c.bf16 %v1332, %v1332
        %v1340 = vpack.c.bf16 %v1334, %v1334
        %v1341 = vpack.c.bf16 %v1336, %v1336
        %v1342 = vpack.c.bf16 %v1338, %v1338
        %1344 = vrot.lane.b32.xlu0 %v1091, 96
        %v1345 = vpop.permute.xlu0 %1344
        %1347 = vrot.lane.b32.xlu0 %v1091, 64
        %v1348 = vpop.permute.xlu0 %1347
        %1350 = vrot.lane.b32.xlu0 %v1091, 32
        %v1351 = vpop.permute.xlu0 %1350
        %v1353 = vrot.slane %v1348, 4
        %v1354 = vsel %vm1105, %v1353, %v1091
        %v1355 = vrot.slane %v1091, 4
        %v1356 = vsel %vm1105, %v1348, %v1355
        %v1358 = vunpack.c.l.s4 1983009808
        %v1359 = vunpack.c.0.s8 %v1358
        %v1360 = vperm.slane %v1354, %v1359
        %v1362 = vunpack.c.l.s4 1983009808
        %v1363 = vunpack.c.0.s8 %v1362
        %v1364 = vperm.slane %v1356, %v1363
        %v1365 = vrot.slane %v1351, 4
        %v1366 = vsel %vm1105, %v1365, %v1345
        %v1367 = vrot.slane %v1345, 4
        %v1368 = vsel %vm1105, %v1351, %v1367
        %v1370 = vunpack.c.l.s4 1983009808
        %v1371 = vunpack.c.0.s8 %v1370
        %v1372 = vperm.slane %v1366, %v1371
        %v1374 = vunpack.c.l.s4 1983009808
        %v1375 = vunpack.c.0.s8 %v1374
        %v1376 = vperm.slane %v1368, %v1375
        %v1377 = vrot.slane %v1372, 4
        %v1378 = vsel %vm1105, %v1377, %v1360
        %v1379 = vrot.slane %v1360, 4
        %v1380 = vsel %vm1105, %v1372, %v1379
        %v1382 = vunpack.c.l.s4 1934713408
        %v1383 = vunpack.c.0.s8 %v1382
        %v1384 = vperm.slane %v1378, %v1383
        %v1386 = vunpack.c.l.s4 1934713408
        %v1387 = vunpack.c.0.s8 %v1386
        %v1388 = vperm.slane %v1380, %v1387
        %v1389 = vrot.slane %v1376, 4
        %v1390 = vsel %vm1105, %v1389, %v1364
        %v1391 = vrot.slane %v1364, 4
        %v1392 = vsel %vm1105, %v1376, %v1391
        %v1394 = vunpack.c.l.s4 1934713408
        %v1395 = vunpack.c.0.s8 %v1394
        %v1396 = vperm.slane %v1390, %v1395
        %v1398 = vunpack.c.l.s4 1934713408
        %v1399 = vunpack.c.0.s8 %v1398
        %v1400 = vperm.slane %v1392, %v1399
        %v1401 = vrot.slane %v1384, 4
        %v1402 = vsel %vm1105, 0.0, %v1401
        %v1403 = vrot.slane %v1388, 4
        %v1404 = vsel %vm1105, 0.0, %v1403
        %v1405 = vrot.slane %v1396, 4
        %v1406 = vsel %vm1105, 0.0, %v1405
        %v1407 = vrot.slane %v1400, 4
        %v1408 = vsel %vm1105, 0.0, %v1407
        %v1409 = vsel %vm1105, %v1403, %v1384
        %v1411 = vunpack.c.l.s4 1983009808
        %v1412 = vunpack.c.0.s8 %v1411
        %v1413 = vperm.slane %v1409, %v1412
        %v1414 = vrot.slane %v1404, 4
        %v1415 = vsel %vm1105, %v1414, %v1402
        %v1417 = vunpack.c.l.s4 1983009808
        %v1418 = vunpack.c.0.s8 %v1417
        %v1419 = vperm.slane %v1415, %v1418
        %v1420 = vsel %vm1105, %v1407, %v1396
        %v1422 = vunpack.c.l.s4 1983009808
        %v1423 = vunpack.c.0.s8 %v1422
        %v1424 = vperm.slane %v1420, %v1423
        %v1425 = vrot.slane %v1408, 4
        %v1426 = vsel %vm1105, %v1425, %v1406
        %v1428 = vunpack.c.l.s4 1983009808
        %v1429 = vunpack.c.0.s8 %v1428
        %v1430 = vperm.slane %v1426, %v1429
        %v1431 = vrot.slane %v1419, 4
        %v1432 = vsel %vm1105, %v1431, %v1413
        %v1433 = vrot.slane %v1413, 4
        %v1434 = vsel %vm1105, %v1419, %v1433
        %v1436 = vunpack.c.l.s4 1934713408
        %v1437 = vunpack.c.0.s8 %v1436
        %v1438 = vperm.slane %v1432, %v1437
        %v1440 = vunpack.c.l.s4 1934713408
        %v1441 = vunpack.c.0.s8 %v1440
        %v1442 = vperm.slane %v1434, %v1441
        %v1443 = vrot.slane %v1430, 4
        %v1444 = vsel %vm1105, %v1443, %v1424
        %v1445 = vrot.slane %v1424, 4
        %v1446 = vsel %vm1105, %v1430, %v1445
        %v1448 = vunpack.c.l.s4 1934713408
        %v1449 = vunpack.c.0.s8 %v1448
        %v1450 = vperm.slane %v1444, %v1449
        %v1452 = vunpack.c.l.s4 1934713408
        %v1453 = vunpack.c.0.s8 %v1452
        %v1454 = vperm.slane %v1446, %v1453
        %v1455 = vrot.slane %v1450, 4
        %v1456 = vsel %vm1105, %v1455, %v1438
        %v1457 = vrot.slane %v1438, 4
        %v1458 = vsel %vm1105, %v1450, %v1457
        %v1459 = vrot.slane %v1454, 4
        %v1460 = vsel %vm1105, %v1459, %v1442
        %v1461 = vrot.slane %v1442, 4
        %v1462 = vsel %vm1105, %v1454, %v1461
        %v1463 = vpack.c.bf16 %v1456, %v1456
        %v1464 = vpack.c.bf16 %v1458, %v1458
        %v1465 = vpack.c.bf16 %v1460, %v1460
        %v1466 = vpack.c.bf16 %v1462, %v1462
        %vm1467 = vcmask 261120
        %v1469 = vsel %vm1467, %v1215, 0
        %v1472 = vsel %vm1467, %v1339, 0
        %1474 = vmatpush.bf16.xpose.msra.mxu0 0
        %1475 = vmatpush.bf16.xpose.msra.mxu0 0
        %1476 = vmatpush.bf16.xpose.msra.mxu0 0
        %1477 = vmatpush.bf16.xpose.msra.mxu0 0
        %1478 = vmatpush.bf16.xpose.msra.mxu0 0
        %1479 = vmatpush.bf16.xpose.msra.mxu0 0
        %1480 = vmatpush.bf16.xpose.msra.mxu0 0
        %1481 = vmatpush.bf16.xpose.msra.mxu0 %v1472
        %1482 = vmatmul.bf16.gmra.mxu0 %v1469
        %v1483 = vpop.f32.mrf.mxu0
        %v1484 = vadd.f32 0.0, %v1483
        %v1485 = vpop.f32.mrf.mxu0
        %1486 = vdwg.mxu0
        %v1488 = vsel %vm1467, %v1216, 0
        %v1491 = vsel %vm1467, %v1340, 0
        %1493 = vmatpush.bf16.xpose.msra.mxu0 0
        %1494 = vmatpush.bf16.xpose.msra.mxu0 0
        %1495 = vmatpush.bf16.xpose.msra.mxu0 0
        %1496 = vmatpush.bf16.xpose.msra.mxu0 0
        %1497 = vmatpush.bf16.xpose.msra.mxu0 0
        %1498 = vmatpush.bf16.xpose.msra.mxu0 0
        %1499 = vmatpush.bf16.xpose.msra.mxu0 0
        %1500 = vmatpush.bf16.xpose.msra.mxu0 %v1491
        %1501 = vmatmul.bf16.gmra.mxu0 %v1488
        %v1502 = vpop.f32.mrf.mxu0
        %v1503 = vadd.f32 0.0, %v1502
        %v1504 = vpop.f32.mrf.mxu0
        %1505 = vdwg.mxu0
        %v1507 = vsel %vm1467, %v1217, 0
        %v1510 = vsel %vm1467, %v1341, 0
        %1512 = vmatpush.bf16.xpose.msra.mxu0 0
        %1513 = vmatpush.bf16.xpose.msra.mxu0 0
        %1514 = vmatpush.bf16.xpose.msra.mxu0 0
        %1515 = vmatpush.bf16.xpose.msra.mxu0 0
        %1516 = vmatpush.bf16.xpose.msra.mxu0 0
        %1517 = vmatpush.bf16.xpose.msra.mxu0 0
        %1518 = vmatpush.bf16.xpose.msra.mxu0 0
        %1519 = vmatpush.bf16.xpose.msra.mxu0 %v1510
        %1520 = vmatmul.bf16.gmra.mxu0 %v1507
        %v1521 = vpop.f32.mrf.mxu0
        %v1522 = vadd.f32 0.0, %v1521
        %v1523 = vpop.f32.mrf.mxu0
        %1524 = vdwg.mxu0
        %v1526 = vsel %vm1467, %v1218, 0
        %v1529 = vsel %vm1467, %v1342, 0
        %1531 = vmatpush.bf16.xpose.msra.mxu0 0
        %1532 = vmatpush.bf16.xpose.msra.mxu0 0
        %1533 = vmatpush.bf16.xpose.msra.mxu0 0
        %1534 = vmatpush.bf16.xpose.msra.mxu0 0
        %1535 = vmatpush.bf16.xpose.msra.mxu0 0
        %1536 = vmatpush.bf16.xpose.msra.mxu0 0
        %1537 = vmatpush.bf16.xpose.msra.mxu0 0
        %1538 = vmatpush.bf16.xpose.msra.mxu0 %v1529
        %1539 = vmatmul.bf16.gmra.mxu0 %v1526
        %v1540 = vpop.f32.mrf.mxu0
        %v1541 = vadd.f32 0.0, %v1540
        %v1542 = vpop.f32.mrf.mxu0
        %1543 = vdwg.mxu0
        %v1544 = vadd.f32 %v1484, %v880
        %v1545 = vadd.f32 %v1503, %v880
        %v1546 = vadd.f32 %v1522, %v880
        %v1547 = vadd.f32 %v1541, %v880
        %vm1548 = vcmask 64512
        %v1549 = vsel %vm1548, %v1544, -inf
        %1550 = vmax.xlane.f32.xlu0 %v1549
        %v1551 = vpop.xlane.xlu0 %1550
        %v1552 = vsel %vm1548, %v1545, -inf
        %1553 = vmax.xlane.f32.xlu0 %v1552
        %v1554 = vpop.xlane.xlu0 %1553
        %v1555 = vsel %vm1548, %v1546, -inf
        %1556 = vmax.xlane.f32.xlu0 %v1555
        %v1557 = vpop.xlane.xlu0 %1556
        %v1558 = vsel %vm1548, %v1547, -inf
        %1559 = vmax.xlane.f32.xlu0 %v1558
        %v1560 = vpop.xlane.xlu0 %1559
        %v1561 = vsub.f32 %v1544, %v1551
        %v1562 = vsub.f32 %v1545, %v1554
        %v1563 = vsub.f32 %v1546, %v1557
        %v1564 = vsub.f32 %v1547, %v1560
        %v1565 = vmul.f32 %v1561, 1.442695
        %v1566 = vpow.pop %v1565
        %v1567 = vmul.f32 %v1562, 1.442695
        %v1568 = vpow.pop %v1567
        %v1569 = vmul.f32 %v1563, 1.442695
        %v1570 = vpow.pop %v1569
        %v1571 = vmul.f32 %v1564, 1.442695
        %v1572 = vpow.pop %v1571
        %v1573 = vsel %vm1548, %v1566, 0.0
        %1574 = vadd.xlane.f32.xlu0 %v1573
        %v1575 = vpop.xlane.xlu0 %1574
        %v1576 = vsel %vm1548, %v1568, 0.0
        %1577 = vadd.xlane.f32.xlu0 %v1576
        %v1578 = vpop.xlane.xlu0 %1577
        %v1579 = vsel %vm1548, %v1570, 0.0
        %1580 = vadd.xlane.f32.xlu0 %v1579
        %v1581 = vpop.xlane.xlu0 %1580
        %v1582 = vsel %vm1548, %v1572, 0.0
        %1583 = vadd.xlane.f32.xlu0 %v1582
        %v1584 = vpop.xlane.xlu0 %1583
        %v1585 = vpack.c.bf16 %v1566, %v1566
        %v1586 = vpack.c.bf16 %v1568, %v1568
        %v1587 = vpack.c.bf16 %v1570, %v1570
        %v1588 = vpack.c.bf16 %v1572, %v1572
        %v1590 = vsel %vm1548, %v1585, 0
        %vm1592 = vcmask 1043456
        %v1594 = vsel %vm1592, %v1463, 0
        %1596 = vmatpush.bf16.msra.mxu0 0
        %1597 = vmatpush.bf16.msra.mxu0 0
        %1598 = vmatpush.bf16.msra.mxu0 0
        %1599 = vmatpush.bf16.msra.mxu0 0
        %1600 = vmatpush.bf16.msra.mxu0 0
        %1601 = vmatpush.bf16.msra.mxu0 0
        %1602 = vmatpush.bf16.msra.mxu0 0
        %1603 = vmatpush.bf16.msra.mxu0 %v1594
        %1604 = vmatmul.bf16.gmra.mxu0 %v1590
        %v1605 = vpop.f32.mrf.mxu0
        %v1606 = vadd.f32 0.0, %v1605
        %v1607 = vpop.f32.mrf.mxu0
        %1608 = vdwg.mxu0
        %v1610 = vsel %vm1548, %v1586, 0
        %v1613 = vsel %vm1592, %v1464, 0
        %1615 = vmatpush.bf16.msra.mxu0 0
        %1616 = vmatpush.bf16.msra.mxu0 0
        %1617 = vmatpush.bf16.msra.mxu0 0
        %1618 = vmatpush.bf16.msra.mxu0 0
        %1619 = vmatpush.bf16.msra.mxu0 0
        %1620 = vmatpush.bf16.msra.mxu0 0
        %1621 = vmatpush.bf16.msra.mxu0 0
        %1622 = vmatpush.bf16.msra.mxu0 %v1613
        %1623 = vmatmul.bf16.gmra.mxu0 %v1610
        %v1624 = vpop.f32.mrf.mxu0
        %v1625 = vadd.f32 0.0, %v1624
        %v1626 = vpop.f32.mrf.mxu0
        %1627 = vdwg.mxu0
        %v1629 = vsel %vm1548, %v1587, 0
        %v1632 = vsel %vm1592, %v1465, 0
        %1634 = vmatpush.bf16.msra.mxu0 0
        %1635 = vmatpush.bf16.msra.mxu0 0
        %1636 = vmatpush.bf16.msra.mxu0 0
        %1637 = vmatpush.bf16.msra.mxu0 0
        %1638 = vmatpush.bf16.msra.mxu0 0
        %1639 = vmatpush.bf16.msra.mxu0 0
        %1640 = vmatpush.bf16.msra.mxu0 0
        %1641 = vmatpush.bf16.msra.mxu0 %v1632
        %1642 = vmatmul.bf16.gmra.mxu0 %v1629
        %v1643 = vpop.f32.mrf.mxu0
        %v1644 = vadd.f32 0.0, %v1643
        %v1645 = vpop.f32.mrf.mxu0
        %1646 = vdwg.mxu0
        %v1648 = vsel %vm1548, %v1588, 0
        %v1651 = vsel %vm1592, %v1466, 0
        %1653 = vmatpush.bf16.msra.mxu0 0
        %1654 = vmatpush.bf16.msra.mxu0 0
        %1655 = vmatpush.bf16.msra.mxu0 0
        %1656 = vmatpush.bf16.msra.mxu0 0
        %1657 = vmatpush.bf16.msra.mxu0 0
        %1658 = vmatpush.bf16.msra.mxu0 0
        %1659 = vmatpush.bf16.msra.mxu0 0
        %1660 = vmatpush.bf16.msra.mxu0 %v1651
        %1661 = vmatmul.bf16.gmra.mxu0 %v1648
        %v1662 = vpop.f32.mrf.mxu0
        %v1663 = vadd.f32 0.0, %v1662
        %v1664 = vpop.f32.mrf.mxu0
        %1665 = vdwg.mxu0
        %v1666 = vrcp.pop %v1575
        %v1667 = vrcp.pop %v1578
        %v1668 = vrcp.pop %v1581
        %v1669 = vrcp.pop %v1584
        %v1670 = vmul.f32 %v1606, %v1666
        %v1671 = vmul.f32 %v1625, %v1667
        %v1672 = vmul.f32 %v1644, %v1668
        %v1673 = vmul.f32 %v1663, %v1669
        %v1674 = vrot.slane %v1672, 4
        %v1675 = vsel %vm1105, %v1674, %v1670
        %v1676 = vrot.slane %v1670, 4
        %v1677 = vsel %vm1105, %v1672, %v1676
        %v1679 = vunpack.c.l.s4 1983009808
        %v1680 = vunpack.c.0.s8 %v1679
        %v1681 = vperm.slane %v1675, %v1680
        %v1683 = vunpack.c.l.s4 1983009808
        %v1684 = vunpack.c.0.s8 %v1683
        %v1685 = vperm.slane %v1677, %v1684
        %v1686 = vrot.slane %v1673, 4
        %v1687 = vsel %vm1105, %v1686, %v1671
        %v1688 = vrot.slane %v1671, 4
        %v1689 = vsel %vm1105, %v1673, %v1688
        %v1691 = vunpack.c.l.s4 1983009808
        %v1692 = vunpack.c.0.s8 %v1691
        %v1693 = vperm.slane %v1687, %v1692
        %v1695 = vunpack.c.l.s4 1983009808
        %v1696 = vunpack.c.0.s8 %v1695
        %v1697 = vperm.slane %v1689, %v1696
        %v1698 = vrot.slane %v1693, 4
        %v1699 = vsel %vm1105, %v1698, %v1681
        %v1700 = vrot.slane %v1681, 4
        %v1701 = vsel %vm1105, %v1693, %v1700
        %v1703 = vunpack.c.l.s4 1934713408
        %v1704 = vunpack.c.0.s8 %v1703
        %v1705 = vperm.slane %v1699, %v1704
        %v1707 = vunpack.c.l.s4 1934713408
        %v1708 = vunpack.c.0.s8 %v1707
        %v1709 = vperm.slane %v1701, %v1708
        %v1710 = vrot.slane %v1697, 4
        %v1711 = vsel %vm1105, %v1710, %v1685
        %v1712 = vrot.slane %v1685, 4
        %v1713 = vsel %vm1105, %v1697, %v1712
        %v1715 = vunpack.c.l.s4 1934713408
        %v1716 = vunpack.c.0.s8 %v1715
        %v1717 = vperm.slane %v1711, %v1716
        %v1719 = vunpack.c.l.s4 1934713408
        %v1720 = vunpack.c.0.s8 %v1719
        %v1721 = vperm.slane %v1713, %v1720
        %v1722 = vrot.slane %v1705, 4
        %v1723 = vsel %vm1105, 0.0, %v1722
        %v1724 = vrot.slane %v1709, 4
        %v1725 = vsel %vm1105, 0.0, %v1724
        %v1726 = vrot.slane %v1717, 4
        %v1727 = vsel %vm1105, 0.0, %v1726
        %v1728 = vrot.slane %v1721, 4
        %v1729 = vsel %vm1105, 0.0, %v1728
        %v1730 = vsel %vm1105, %v1724, %v1705
        %v1732 = vunpack.c.l.s4 1983009808
        %v1733 = vunpack.c.0.s8 %v1732
        %v1734 = vperm.slane %v1730, %v1733
        %v1735 = vrot.slane %v1725, 4
        %v1736 = vsel %vm1105, %v1735, %v1723
        %v1738 = vunpack.c.l.s4 1983009808
        %v1739 = vunpack.c.0.s8 %v1738
        %v1740 = vperm.slane %v1736, %v1739
        %v1741 = vsel %vm1105, %v1728, %v1717
        %v1743 = vunpack.c.l.s4 1983009808
        %v1744 = vunpack.c.0.s8 %v1743
        %v1745 = vperm.slane %v1741, %v1744
        %v1746 = vrot.slane %v1729, 4
        %v1747 = vsel %vm1105, %v1746, %v1727
        %v1749 = vunpack.c.l.s4 1983009808
        %v1750 = vunpack.c.0.s8 %v1749
        %v1751 = vperm.slane %v1747, %v1750
        %v1752 = vrot.slane %v1740, 4
        %v1753 = vsel %vm1105, %v1752, %v1734
        %v1754 = vrot.slane %v1734, 4
        %v1755 = vsel %vm1105, %v1740, %v1754
        %v1757 = vunpack.c.l.s4 1934713408
        %v1758 = vunpack.c.0.s8 %v1757
        %v1759 = vperm.slane %v1753, %v1758
        %v1761 = vunpack.c.l.s4 1934713408
        %v1762 = vunpack.c.0.s8 %v1761
        %v1763 = vperm.slane %v1755, %v1762
        %v1764 = vrot.slane %v1751, 4
        %v1765 = vsel %vm1105, %v1764, %v1745
        %v1766 = vrot.slane %v1745, 4
        %v1767 = vsel %vm1105, %v1751, %v1766
        %v1769 = vunpack.c.l.s4 1934713408
        %v1770 = vunpack.c.0.s8 %v1769
        %v1771 = vperm.slane %v1765, %v1770
        %v1773 = vunpack.c.l.s4 1934713408
        %v1774 = vunpack.c.0.s8 %v1773
        %v1775 = vperm.slane %v1767, %v1774
        %v1776 = vrot.slane %v1771, 4
        %v1777 = vsel %vm1105, %v1776, %v1759
        %v1778 = vrot.slane %v1759, 4
        %v1779 = vsel %vm1105, %v1771, %v1778
        %v1780 = vrot.slane %v1775, 4
        %v1781 = vsel %vm1105, %v1780, %v1763
        %v1782 = vrot.slane %v1763, 4
        %v1783 = vsel %vm1105, %v1775, %v1782
        %1785 = vrot.lane.b32.xlu0 %v1779, 32
        %v1786 = vpop.permute.xlu0 %1785
        %1789 = vrot.lane.b32.xlu0 %v1781, 64
        %v1790 = vpop.permute.xlu0 %1789
        %1793 = vrot.lane.b32.xlu0 %v1783, 96
        %v1794 = vpop.permute.xlu0 %1793
        %v1796 = vsel %vm1467, %v1777, %v1786
        %vm1797 = vcmask 523264
        %v1798 = vsel %vm1797, %v1796, %v1790
        %vm1799 = vcmask 785408
        %v1800 = vsel %vm1799, %v1798, %v1794
        %v1801 = vpack.c.bf16 %v1800, %v1800
        %v1802 = vld [vmem:[#allocation10] sm:$0xf]
        %v1803 = vld [vmem:[#allocation10 + $0x4] sm:$0xf]
        %v1804 = vld [vmem:[#allocation10 + $0x8] sm:$0xf]
        %v1805 = vld [vmem:[#allocation10 + $0xc] sm:$0xf]
        %v1806 = vld [vmem:[#allocation10 + $0x10] sm:$0xf]
        %v1807 = vld [vmem:[#allocation10 + $0x14] sm:$0xf]
        %v1808 = vld [vmem:[#allocation10 + $0x18] sm:$0xf]
        %v1809 = vld [vmem:[#allocation10 + $0x1c] sm:$0xf]
        %v1810 = vld [vmem:[#allocation10 + $0x20] sm:$0xf]
        %v1811 = vld [vmem:[#allocation10 + $0x24] sm:$0xf]
        %v1812 = vld [vmem:[#allocation10 + $0x28] sm:$0xf]
        %v1813 = vld [vmem:[#allocation10 + $0x2c] sm:$0xf]
        %v1814 = vld [vmem:[#allocation10 + $0x30] sm:$0xf]
        %v1815 = vld [vmem:[#allocation10 + $0x34] sm:$0xf]
        %v1816 = vld [vmem:[#allocation10 + $0x38] sm:$0xf]
        %v1817 = vld [vmem:[#allocation10 + $0x3c] sm:$0xf]
        %v1818 = vld [vmem:[#allocation11] sm:$0x1]
        %v1820 = vperm.slane %v1818, 0
        %v1838 = vunpack.c.l.b16 %v1802
        %v1839 = vunpack.c.l.b16 %v1803
        %v1840 = vunpack.c.l.b16 %v1804
        %v1841 = vunpack.c.l.b16 %v1805
        %v1842 = vunpack.c.l.b16 %v1806
        %v1843 = vunpack.c.l.b16 %v1807
        %v1844 = vunpack.c.l.b16 %v1808
        %v1845 = vunpack.c.l.b16 %v1809
        %v1846 = vunpack.c.l.b16 %v1810
        %v1847 = vunpack.c.l.b16 %v1811
        %v1848 = vunpack.c.l.b16 %v1812
        %v1849 = vunpack.c.l.b16 %v1813
        %v1850 = vunpack.c.l.b16 %v1814
        %v1851 = vunpack.c.l.b16 %v1815
        %v1852 = vunpack.c.l.b16 %v1816
        %v1853 = vunpack.c.l.b16 %v1817
        %v1854 = vpack.c.b16 %v1839, %v1838
        %v1855 = vpack.c.b16 %v1841, %v1840
        %v1856 = vpack.c.b16 %v1843, %v1842
        %v1857 = vpack.c.b16 %v1845, %v1844
        %v1858 = vpack.c.b16 %v1847, %v1846
        %v1859 = vpack.c.b16 %v1849, %v1848
        %v1860 = vpack.c.b16 %v1851, %v1850
        %v1861 = vpack.c.b16 %v1853, %v1852
        %1870 = vmatpush.bf16.msra.mxu0 %v1861
        %1871 = vmatpush.bf16.msra.mxu0 %v1860
        %1872 = vmatpush.bf16.msra.mxu0 %v1859
        %1873 = vmatpush.bf16.msra.mxu0 %v1858
        %1874 = vmatpush.bf16.msra.mxu0 %v1857
        %1875 = vmatpush.bf16.msra.mxu0 %v1856
        %1876 = vmatpush.bf16.msra.mxu0 %v1855
        %1877 = vmatpush.bf16.msra.mxu0 %v1854
        %1878 = vmatmul.bf16.gmra.mxu0 %v1801
        %v1879 = vpop.f32.mrf.mxu0
        %v1880 = vadd.f32 %v1820, %v1879
        %v1881 = vpop.f32.mrf.mxu0
        %1882 = vdwg.mxu0
        %v1883 = vadd.f32 %v872, %v1880
        %1884 = vadd.xlane.f32.xlu0 %v1883
        %v1885 = vpop.xlane.xlu0 %1884
        %v1886 = vrcp.pop 128.0
        %v1887 = vmul.f32 128.0, %v1886
        %v1888 = vsub.f32 1.0, %v1887
        %v1889 = vmul.f32 %v1886, %v1888
        %v1890 = vadd.f32 %v1886, %v1889
        %vm1891 = vweird.f32 %v1886
        %v1892 = vsel %vm1891, %v1886, %v1890
        %v1893 = vmul.f32 %v1885, %v1892
        %v1894 = vsub.f32 %v1883, %v1893
        %v1895 = vmul.f32 %v1894, %v1894
        %1896 = vadd.xlane.f32.xlu0 %v1895
        %v1897 = vpop.xlane.xlu0 %1896
        %v1898 = vmul.f32 %v1897, %v1892
        %v1899 = vadd.f32 %v1898, 1e-05
        %v1900 = vrsqrt.pop %v1899
        %v1901 = vmul.f32 %v1900, %v1899
        %v1902 = vmul.f32 %v1901, %v1900
        %v1903 = vmul.f32 0.5, %v1902
        %v1904 = vsub.f32 1.5, %v1903
        %v1905 = vmul.f32 %v1900, %v1904
        %vm1906 = vweird.f32 %v1899
        %vm1907 = vweird.f32 %v1900
        %vm1908 = vmor %vm1906, %vm1907
        %v1909 = vsel %vm1908, %v1900, %v1905
        %v1910 = vmul.f32 %v1894, %v1909
        %v1911 = vperm.slane %v875, 0
        %v1912 = vmul.f32 %v1910, %v1911
        %v1913 = vperm.slane %v875, 1
        %v1914 = vadd.f32 %v1912, %v1913
        %v1915 = vpack.c.bf16 %v1914, %v1914
        %v1916 = vld [vmem:[#allocation13] sm:$0xf]
        %v1917 = vld [vmem:[#allocation13 + $0x4] sm:$0xf]
        %v1918 = vld [vmem:[#allocation13 + $0x8] sm:$0xf]
        %v1919 = vld [vmem:[#allocation13 + $0xc] sm:$0xf]
        %v1920 = vld [vmem:[#allocation13 + $0x10] sm:$0xf]
        %v1921 = vld [vmem:[#allocation13 + $0x14] sm:$0xf]
        %v1922 = vld [vmem:[#allocation13 + $0x18] sm:$0xf]
        %v1923 = vld [vmem:[#allocation13 + $0x1c] sm:$0xf]
        %v1924 = vld [vmem:[#allocation13 + $0x20] sm:$0xf]
        %v1925 = vld [vmem:[#allocation13 + $0x24] sm:$0xf]
        %v1926 = vld [vmem:[#allocation13 + $0x28] sm:$0xf]
        %v1927 = vld [vmem:[#allocation13 + $0x2c] sm:$0xf]
        %v1928 = vld [vmem:[#allocation13 + $0x30] sm:$0xf]
        %v1929 = vld [vmem:[#allocation13 + $0x34] sm:$0xf]
        %v1930 = vld [vmem:[#allocation13 + $0x38] sm:$0xf]
        %v1931 = vld [vmem:[#allocation13 + $0x3c] sm:$0xf]
        %v1932 = vld [vmem:[#allocation14] sm:$0x1]
        %v1934 = vperm.slane %v1932, 0
        %v1952 = vunpack.c.l.b16 %v1916
        %v1953 = vunpack.c.l.b16 %v1917
        %v1954 = vunpack.c.l.b16 %v1918
        %v1955 = vunpack.c.l.b16 %v1919
        %v1956 = vunpack.c.l.b16 %v1920
        %v1957 = vunpack.c.l.b16 %v1921
        %v1958 = vunpack.c.l.b16 %v1922
        %v1959 = vunpack.c.l.b16 %v1923
        %v1960 = vunpack.c.l.b16 %v1924
        %v1961 = vunpack.c.l.b16 %v1925
        %v1962 = vunpack.c.l.b16 %v1926
        %v1963 = vunpack.c.l.b16 %v1927
        %v1964 = vunpack.c.l.b16 %v1928
        %v1965 = vunpack.c.l.b16 %v1929
        %v1966 = vunpack.c.l.b16 %v1930
        %v1967 = vunpack.c.l.b16 %v1931
        %v1968 = vpack.c.b16 %v1953, %v1952
        %v1969 = vpack.c.b16 %v1955, %v1954
        %v1970 = vpack.c.b16 %v1957, %v1956
        %v1971 = vpack.c.b16 %v1959, %v1958
        %v1972 = vpack.c.b16 %v1961, %v1960
        %v1973 = vpack.c.b16 %v1963, %v1962
        %v1974 = vpack.c.b16 %v1965, %v1964
        %v1975 = vpack.c.b16 %v1967, %v1966
        %1984 = vmatpush.bf16.msra.mxu0 %v1975
        %1985 = vmatpush.bf16.msra.mxu0 %v1974
        %1986 = vmatpush.bf16.msra.mxu0 %v1973
        %1987 = vmatpush.bf16.msra.mxu0 %v1972
        %1988 = vmatpush.bf16.msra.mxu0 %v1971
        %1989 = vmatpush.bf16.msra.mxu0 %v1970
        %1990 = vmatpush.bf16.msra.mxu0 %v1969
        %1991 = vmatpush.bf16.msra.mxu0 %v1968
        %1992 = vmatmul.bf16.gmra.mxu0 %v1915
        %v1993 = vpop.f32.mrf.mxu0
        %v1994 = vadd.f32 %v1934, %v1993
        %v1995 = vpop.f32.mrf.mxu0
        %1996 = vdwg.mxu0
        %v1997 = vpack.c.bf16 %v874, %v873
        %v1998 = vld [vmem:[#allocation16] sm:$0xff]
        %v1999 = vld [vmem:[#allocation16 + $0x8] sm:$0xff]
        %v2000 = vld [vmem:[#allocation16 + $0x10] sm:$0xff]
        %v2001 = vld [vmem:[#allocation16 + $0x18] sm:$0xff]
        %v2002 = vld [vmem:[#allocation16 + $0x20] sm:$0xff]
        %v2003 = vld [vmem:[#allocation16 + $0x28] sm:$0xff]
        %v2004 = vld [vmem:[#allocation16 + $0x30] sm:$0xff]
        %v2005 = vld [vmem:[#allocation16 + $0x38] sm:$0xff]
        %v2006 = vld [vmem:[#allocation16 + $0x40] sm:$0xff]
        %v2007 = vld [vmem:[#allocation16 + $0x48] sm:$0xff]
        %v2008 = vld [vmem:[#allocation16 + $0x50] sm:$0xff]
        %v2009 = vld [vmem:[#allocation16 + $0x58] sm:$0xff]
        %v2010 = vld [vmem:[#allocation16 + $0x60] sm:$0xff]
        %v2011 = vld [vmem:[#allocation16 + $0x68] sm:$0xff]
        %v2012 = vld [vmem:[#allocation16 + $0x70] sm:$0xff]
        %v2013 = vld [vmem:[#allocation16 + $0x78] sm:$0xff]
        %v2014 = vld [vmem:[%s11] sm:$0x3]
        %v2016 = vperm.slane %v2014, 0
        %v2017 = vperm.slane %v2014, 1
        %v2036 = vunpack.c.l.b16 %v1998
        %v2037 = vunpack.c.h.b16 %v1998
        %v2038 = vunpack.c.l.b16 %v1999
        %v2039 = vunpack.c.h.b16 %v1999
        %v2040 = vunpack.c.l.b16 %v2000
        %v2041 = vunpack.c.h.b16 %v2000
        %v2042 = vunpack.c.l.b16 %v2001
        %v2043 = vunpack.c.h.b16 %v2001
        %v2044 = vunpack.c.l.b16 %v2002
        %v2045 = vunpack.c.h.b16 %v2002
        %v2046 = vunpack.c.l.b16 %v2003
        %v2047 = vunpack.c.h.b16 %v2003
        %v2048 = vunpack.c.l.b16 %v2004
        %v2049 = vunpack.c.h.b16 %v2004
        %v2050 = vunpack.c.l.b16 %v2005
        %v2051 = vunpack.c.h.b16 %v2005
        %v2052 = vunpack.c.l.b16 %v2006
        %v2053 = vunpack.c.h.b16 %v2006
        %v2054 = vunpack.c.l.b16 %v2007
        %v2055 = vunpack.c.h.b16 %v2007
        %v2056 = vunpack.c.l.b16 %v2008
        %v2057 = vunpack.c.h.b16 %v2008
        %v2058 = vunpack.c.l.b16 %v2009
        %v2059 = vunpack.c.h.b16 %v2009
        %v2060 = vunpack.c.l.b16 %v2010
        %v2061 = vunpack.c.h.b16 %v2010
        %v2062 = vunpack.c.l.b16 %v2011
        %v2063 = vunpack.c.h.b16 %v2011
        %v2064 = vunpack.c.l.b16 %v2012
        %v2065 = vunpack.c.h.b16 %v2012
        %v2066 = vunpack.c.l.b16 %v2013
        %v2067 = vunpack.c.h.b16 %v2013
        %v2068 = vpack.c.b16 %v2038, %v2036
        %v2069 = vpack.c.b16 %v2039, %v2037
        %v2070 = vpack.c.b16 %v2042, %v2040
        %v2071 = vpack.c.b16 %v2043, %v2041
        %v2072 = vpack.c.b16 %v2046, %v2044
        %v2073 = vpack.c.b16 %v2047, %v2045
        %v2074 = vpack.c.b16 %v2050, %v2048
        %v2075 = vpack.c.b16 %v2051, %v2049
        %v2076 = vpack.c.b16 %v2054, %v2052
        %v2077 = vpack.c.b16 %v2055, %v2053
        %v2078 = vpack.c.b16 %v2058, %v2056
        %v2079 = vpack.c.b16 %v2059, %v2057
        %v2080 = vpack.c.b16 %v2062, %v2060
        %v2081 = vpack.c.b16 %v2063, %v2061
        %v2082 = vpack.c.b16 %v2066, %v2064
        %v2083 = vpack.c.b16 %v2067, %v2065
        %2100 = vmatpush.bf16.msra.mxu0 %v2082
        %2101 = vmatpush.bf16.msra.mxu0 %v2080
        %2102 = vmatpush.bf16.msra.mxu0 %v2078
        %2103 = vmatpush.bf16.msra.mxu0 %v2076
        %2104 = vmatpush.bf16.msra.mxu0 %v2074
        %2105 = vmatpush.bf16.msra.mxu0 %v2072
        %2106 = vmatpush.bf16.msra.mxu0 %v2070
        %2107 = vmatpush.bf16.msra.mxu0 %v2068
        %2108 = vmatmul.bf16.gmra.mxu0 %v1997
        %v2109 = vpop.f32.mrf.mxu0
        %v2110 = vadd.f32 %v2016, %v2109
        %v2111 = vpop.f32.mrf.mxu0
        %v2112 = vadd.f32 %v2016, %v2111
        %2113 = vdwg.mxu0
        %2114 = vmatpush.bf16.msra.mxu0 %v2083
        %2115 = vmatpush.bf16.msra.mxu0 %v2081
        %2116 = vmatpush.bf16.msra.mxu0 %v2079
        %2117 = vmatpush.bf16.msra.mxu0 %v2077
        %2118 = vmatpush.bf16.msra.mxu0 %v2075
        %2119 = vmatpush.bf16.msra.mxu0 %v2073
        %2120 = vmatpush.bf16.msra.mxu0 %v2071
        %2121 = vmatpush.bf16.msra.mxu0 %v2069
        %2122 = vmatmul.bf16.gmra.mxu0 %v1997
        %v2123 = vpop.f32.mrf.mxu0
        %v2124 = vadd.f32 %v2017, %v2123
        %v2125 = vpop.f32.mrf.mxu0
        %v2126 = vadd.f32 %v2017, %v2125
        %2127 = vdwg.mxu0
        %2129 = vrot.lane.b32.xlu0 %v1994, 96
        %v2130 = vpop.permute.xlu0 %2129
        %2132 = vrot.lane.b32.xlu0 %v1994, 64
        %v2133 = vpop.permute.xlu0 %2132
        %2135 = vrot.lane.b32.xlu0 %v1994, 32
        %v2136 = vpop.permute.xlu0 %2135
        %v2138 = vrot.slane %v2133, 4
        %v2139 = vsel %vm1105, %v2138, %v1994
        %v2140 = vrot.slane %v1994, 4
        %v2141 = vsel %vm1105, %v2133, %v2140
        %v2143 = vunpack.c.l.s4 1983009808
        %v2144 = vunpack.c.0.s8 %v2143
        %v2145 = vperm.slane %v2139, %v2144
        %v2147 = vunpack.c.l.s4 1983009808
        %v2148 = vunpack.c.0.s8 %v2147
        %v2149 = vperm.slane %v2141, %v2148
        %v2150 = vrot.slane %v2136, 4
        %v2151 = vsel %vm1105, %v2150, %v2130
        %v2152 = vrot.slane %v2130, 4
        %v2153 = vsel %vm1105, %v2136, %v2152
        %v2155 = vunpack.c.l.s4 1983009808
        %v2156 = vunpack.c.0.s8 %v2155
        %v2157 = vperm.slane %v2151, %v2156
        %v2159 = vunpack.c.l.s4 1983009808
        %v2160 = vunpack.c.0.s8 %v2159
        %v2161 = vperm.slane %v2153, %v2160
        %v2162 = vrot.slane %v2157, 4
        %v2163 = vsel %vm1105, %v2162, %v2145
        %v2164 = vrot.slane %v2145, 4
        %v2165 = vsel %vm1105, %v2157, %v2164
        %v2167 = vunpack.c.l.s4 1934713408
        %v2168 = vunpack.c.0.s8 %v2167
        %v2169 = vperm.slane %v2163, %v2168
        %v2171 = vunpack.c.l.s4 1934713408
        %v2172 = vunpack.c.0.s8 %v2171
        %v2173 = vperm.slane %v2165, %v2172
        %v2174 = vrot.slane %v2161, 4
        %v2175 = vsel %vm1105, %v2174, %v2149
        %v2176 = vrot.slane %v2149, 4
        %v2177 = vsel %vm1105, %v2161, %v2176
        %v2179 = vunpack.c.l.s4 1934713408
        %v2180 = vunpack.c.0.s8 %v2179
        %v2181 = vperm.slane %v2175, %v2180
        %v2183 = vunpack.c.l.s4 1934713408
        %v2184 = vunpack.c.0.s8 %v2183
        %v2185 = vperm.slane %v2177, %v2184
        %v2186 = vrot.slane %v2169, 4
        %v2187 = vsel %vm1105, 0.0, %v2186
        %v2188 = vrot.slane %v2173, 4
        %v2189 = vsel %vm1105, 0.0, %v2188
        %v2190 = vrot.slane %v2181, 4
        %v2191 = vsel %vm1105, 0.0, %v2190
        %v2192 = vrot.slane %v2185, 4
        %v2193 = vsel %vm1105, 0.0, %v2192
        %v2194 = vsel %vm1105, %v2188, %v2169
        %v2196 = vunpack.c.l.s4 1983009808
        %v2197 = vunpack.c.0.s8 %v2196
        %v2198 = vperm.slane %v2194, %v2197
        %v2199 = vrot.slane %v2189, 4
        %v2200 = vsel %vm1105, %v2199, %v2187
        %v2202 = vunpack.c.l.s4 1983009808
        %v2203 = vunpack.c.0.s8 %v2202
        %v2204 = vperm.slane %v2200, %v2203
        %v2205 = vsel %vm1105, %v2192, %v2181
        %v2207 = vunpack.c.l.s4 1983009808
        %v2208 = vunpack.c.0.s8 %v2207
        %v2209 = vperm.slane %v2205, %v2208
        %v2210 = vrot.slane %v2193, 4
        %v2211 = vsel %vm1105, %v2210, %v2191
        %v2213 = vunpack.c.l.s4 1983009808
        %v2214 = vunpack.c.0.s8 %v2213
        %v2215 = vperm.slane %v2211, %v2214
        %v2216 = vrot.slane %v2204, 4
        %v2217 = vsel %vm1105, %v2216, %v2198
        %v2218 = vrot.slane %v2198, 4
        %v2219 = vsel %vm1105, %v2204, %v2218
        %v2221 = vunpack.c.l.s4 1934713408
        %v2222 = vunpack.c.0.s8 %v2221
        %v2223 = vperm.slane %v2217, %v2222
        %v2225 = vunpack.c.l.s4 1934713408
        %v2226 = vunpack.c.0.s8 %v2225
        %v2227 = vperm.slane %v2219, %v2226
        %v2228 = vrot.slane %v2215, 4
        %v2229 = vsel %vm1105, %v2228, %v2209
        %v2230 = vrot.slane %v2209, 4
        %v2231 = vsel %vm1105, %v2215, %v2230
        %v2233 = vunpack.c.l.s4 1934713408
        %v2234 = vunpack.c.0.s8 %v2233
        %v2235 = vperm.slane %v2229, %v2234
        %v2237 = vunpack.c.l.s4 1934713408
        %v2238 = vunpack.c.0.s8 %v2237
        %v2239 = vperm.slane %v2231, %v2238
        %v2240 = vrot.slane %v2235, 4
        %v2241 = vsel %vm1105, %v2240, %v2223
        %v2242 = vrot.slane %v2223, 4
        %v2243 = vsel %vm1105, %v2235, %v2242
        %v2244 = vrot.slane %v2239, 4
        %v2245 = vsel %vm1105, %v2244, %v2227
        %v2246 = vrot.slane %v2227, 4
        %v2247 = vsel %vm1105, %v2239, %v2246
        %v2248 = vpack.c.bf16 %v2241, %v2241
        %v2249 = vpack.c.bf16 %v2243, %v2243
        %v2250 = vpack.c.bf16 %v2245, %v2245
        %v2251 = vpack.c.bf16 %v2247, %v2247
        %2254 = vrot.lane.b32.xlu0 %v2110, 96
        %v2255 = vpop.permute.xlu0 %2254
        %2256 = vrot.lane.b32.xlu0 %v2112, 96
        %v2257 = vpop.permute.xlu0 %2256
        %2260 = vrot.lane.b32.xlu0 %v2110, 64
        %v2261 = vpop.permute.xlu0 %2260
        %2262 = vrot.lane.b32.xlu0 %v2112, 64
        %v2263 = vpop.permute.xlu0 %2262
        %2266 = vrot.lane.b32.xlu0 %v2110, 32
        %v2267 = vpop.permute.xlu0 %2266
        %2268 = vrot.lane.b32.xlu0 %v2112, 32
        %v2269 = vpop.permute.xlu0 %2268
        %v2272 = vrot.slane %v2261, 4
        %v2273 = vsel %vm1105, %v2272, %v2110
        %v2274 = vrot.slane %v2110, 4
        %v2275 = vsel %vm1105, %v2261, %v2274
        %v2277 = vunpack.c.l.s4 1983009808
        %v2278 = vunpack.c.0.s8 %v2277
        %v2279 = vperm.slane %v2273, %v2278
        %v2281 = vunpack.c.l.s4 1983009808
        %v2282 = vunpack.c.0.s8 %v2281
        %v2283 = vperm.slane %v2275, %v2282
        %v2284 = vrot.slane %v2267, 4
        %v2285 = vsel %vm1105, %v2284, %v2255
        %v2286 = vrot.slane %v2255, 4
        %v2287 = vsel %vm1105, %v2267, %v2286
        %v2289 = vunpack.c.l.s4 1983009808
        %v2290 = vunpack.c.0.s8 %v2289
        %v2291 = vperm.slane %v2285, %v2290
        %v2293 = vunpack.c.l.s4 1983009808
        %v2294 = vunpack.c.0.s8 %v2293
        %v2295 = vperm.slane %v2287, %v2294
        %v2296 = vrot.slane %v2291, 4
        %v2297 = vsel %vm1105, %v2296, %v2279
        %v2298 = vrot.slane %v2279, 4
        %v2299 = vsel %vm1105, %v2291, %v2298
        %v2301 = vunpack.c.l.s4 1934713408
        %v2302 = vunpack.c.0.s8 %v2301
        %v2303 = vperm.slane %v2297, %v2302
        %v2305 = vunpack.c.l.s4 1934713408
        %v2306 = vunpack.c.0.s8 %v2305
        %v2307 = vperm.slane %v2299, %v2306
        %v2308 = vrot.slane %v2295, 4
        %v2309 = vsel %vm1105, %v2308, %v2283
        %v2310 = vrot.slane %v2283, 4
        %v2311 = vsel %vm1105, %v2295, %v2310
        %v2313 = vunpack.c.l.s4 1934713408
        %v2314 = vunpack.c.0.s8 %v2313
        %v2315 = vperm.slane %v2309, %v2314
        %v2317 = vunpack.c.l.s4 1934713408
        %v2318 = vunpack.c.0.s8 %v2317
        %v2319 = vperm.slane %v2311, %v2318
        %v2320 = vrot.slane %v2303, 4
        %v2321 = vsel %vm1105, 0.0, %v2320
        %v2322 = vrot.slane %v2307, 4
        %v2323 = vsel %vm1105, 0.0, %v2322
        %v2324 = vrot.slane %v2315, 4
        %v2325 = vsel %vm1105, 0.0, %v2324
        %v2326 = vrot.slane %v2319, 4
        %v2327 = vsel %vm1105, 0.0, %v2326
        %v2328 = vrot.slane %v2263, 4
        %v2329 = vsel %vm1105, %v2328, %v2112
        %v2330 = vrot.slane %v2112, 4
        %v2331 = vsel %vm1105, %v2263, %v2330
        %v2333 = vunpack.c.l.s4 1983009808
        %v2334 = vunpack.c.0.s8 %v2333
        %v2335 = vperm.slane %v2329, %v2334
        %v2337 = vunpack.c.l.s4 1983009808
        %v2338 = vunpack.c.0.s8 %v2337
        %v2339 = vperm.slane %v2331, %v2338
        %v2340 = vrot.slane %v2269, 4
        %v2341 = vsel %vm1105, %v2340, %v2257
        %v2342 = vrot.slane %v2257, 4
        %v2343 = vsel %vm1105, %v2269, %v2342
        %v2345 = vunpack.c.l.s4 1983009808
        %v2346 = vunpack.c.0.s8 %v2345
        %v2347 = vperm.slane %v2341, %v2346
        %v2349 = vunpack.c.l.s4 1983009808
        %v2350 = vunpack.c.0.s8 %v2349
        %v2351 = vperm.slane %v2343, %v2350
        %v2352 = vrot.slane %v2347, 4
        %v2353 = vsel %vm1105, %v2352, %v2335
        %v2354 = vrot.slane %v2335, 4
        %v2355 = vsel %vm1105, %v2347, %v2354
        %v2357 = vunpack.c.l.s4 1934713408
        %v2358 = vunpack.c.0.s8 %v2357
        %v2359 = vperm.slane %v2353, %v2358
        %v2361 = vunpack.c.l.s4 1934713408
        %v2362 = vunpack.c.0.s8 %v2361
        %v2363 = vperm.slane %v2355, %v2362
        %v2364 = vrot.slane %v2351, 4
        %v2365 = vsel %vm1105, %v2364, %v2339
        %v2366 = vrot.slane %v2339, 4
        %v2367 = vsel %vm1105, %v2351, %v2366
        %v2369 = vunpack.c.l.s4 1934713408
        %v2370 = vunpack.c.0.s8 %v2369
        %v2371 = vperm.slane %v2365, %v2370
        %v2373 = vunpack.c.l.s4 1934713408
        %v2374 = vunpack.c.0.s8 %v2373
        %v2375 = vperm.slane %v2367, %v2374
        %v2376 = vrot.slane %v2359, 4
        %v2377 = vsel %vm1105, 0.0, %v2376
        %v2378 = vrot.slane %v2363, 4
        %v2379 = vsel %vm1105, 0.0, %v2378
        %v2380 = vrot.slane %v2371, 4
        %v2381 = vsel %vm1105, 0.0, %v2380
        %v2382 = vrot.slane %v2375, 4
        %v2383 = vsel %vm1105, 0.0, %v2382
        %v2384 = vsel %vm1105, %v2322, %v2303
        %v2386 = vunpack.c.l.s4 1983009808
        %v2387 = vunpack.c.0.s8 %v2386
        %v2388 = vperm.slane %v2384, %v2387
        %v2389 = vrot.slane %v2323, 4
        %v2390 = vsel %vm1105, %v2389, %v2321
        %v2392 = vunpack.c.l.s4 1983009808
        %v2393 = vunpack.c.0.s8 %v2392
        %v2394 = vperm.slane %v2390, %v2393
        %v2395 = vsel %vm1105, %v2326, %v2315
        %v2397 = vunpack.c.l.s4 1983009808
        %v2398 = vunpack.c.0.s8 %v2397
        %v2399 = vperm.slane %v2395, %v2398
        %v2400 = vrot.slane %v2327, 4
        %v2401 = vsel %vm1105, %v2400, %v2325
        %v2403 = vunpack.c.l.s4 1983009808
        %v2404 = vunpack.c.0.s8 %v2403
        %v2405 = vperm.slane %v2401, %v2404
        %v2406 = vrot.slane %v2394, 4
        %v2407 = vsel %vm1105, %v2406, %v2388
        %v2408 = vrot.slane %v2388, 4
        %v2409 = vsel %vm1105, %v2394, %v2408
        %v2411 = vunpack.c.l.s4 1934713408
        %v2412 = vunpack.c.0.s8 %v2411
        %v2413 = vperm.slane %v2407, %v2412
        %v2415 = vunpack.c.l.s4 1934713408
        %v2416 = vunpack.c.0.s8 %v2415
        %v2417 = vperm.slane %v2409, %v2416
        %v2418 = vrot.slane %v2405, 4
        %v2419 = vsel %vm1105, %v2418, %v2399
        %v2420 = vrot.slane %v2399, 4
        %v2421 = vsel %vm1105, %v2405, %v2420
        %v2423 = vunpack.c.l.s4 1934713408
        %v2424 = vunpack.c.0.s8 %v2423
        %v2425 = vperm.slane %v2419, %v2424
        %v2427 = vunpack.c.l.s4 1934713408
        %v2428 = vunpack.c.0.s8 %v2427
        %v2429 = vperm.slane %v2421, %v2428
        %v2430 = vrot.slane %v2425, 4
        %v2431 = vsel %vm1105, %v2430, %v2413
        %v2432 = vrot.slane %v2413, 4
        %v2433 = vsel %vm1105, %v2425, %v2432
        %v2434 = vrot.slane %v2429, 4
        %v2435 = vsel %vm1105, %v2434, %v2417
        %v2436 = vrot.slane %v2417, 4
        %v2437 = vsel %vm1105, %v2429, %v2436
        %v2438 = vsel %vm1105, %v2378, %v2359
        %v2440 = vunpack.c.l.s4 1983009808
        %v2441 = vunpack.c.0.s8 %v2440
        %v2442 = vperm.slane %v2438, %v2441
        %v2443 = vrot.slane %v2379, 4
        %v2444 = vsel %vm1105, %v2443, %v2377
        %v2446 = vunpack.c.l.s4 1983009808
        %v2447 = vunpack.c.0.s8 %v2446
        %v2448 = vperm.slane %v2444, %v2447
        %v2449 = vsel %vm1105, %v2382, %v2371
        %v2451 = vunpack.c.l.s4 1983009808
        %v2452 = vunpack.c.0.s8 %v2451
        %v2453 = vperm.slane %v2449, %v2452
        %v2454 = vrot.slane %v2383, 4
        %v2455 = vsel %vm1105, %v2454, %v2381
        %v2457 = vunpack.c.l.s4 1983009808
        %v2458 = vunpack.c.0.s8 %v2457
        %v2459 = vperm.slane %v2455, %v2458
        %v2460 = vrot.slane %v2448, 4
        %v2461 = vsel %vm1105, %v2460, %v2442
        %v2462 = vrot.slane %v2442, 4
        %v2463 = vsel %vm1105, %v2448, %v2462
        %v2465 = vunpack.c.l.s4 1934713408
        %v2466 = vunpack.c.0.s8 %v2465
        %v2467 = vperm.slane %v2461, %v2466
        %v2469 = vunpack.c.l.s4 1934713408
        %v2470 = vunpack.c.0.s8 %v2469
        %v2471 = vperm.slane %v2463, %v2470
        %v2472 = vrot.slane %v2459, 4
        %v2473 = vsel %vm1105, %v2472, %v2453
        %v2474 = vrot.slane %v2453, 4
        %v2475 = vsel %vm1105, %v2459, %v2474
        %v2477 = vunpack.c.l.s4 1934713408
        %v2478 = vunpack.c.0.s8 %v2477
        %v2479 = vperm.slane %v2473, %v2478
        %v2481 = vunpack.c.l.s4 1934713408
        %v2482 = vunpack.c.0.s8 %v2481
        %v2483 = vperm.slane %v2475, %v2482
        %v2484 = vrot.slane %v2479, 4
        %v2485 = vsel %vm1105, %v2484, %v2467
        %v2486 = vrot.slane %v2467, 4
        %v2487 = vsel %vm1105, %v2479, %v2486
        %v2488 = vrot.slane %v2483, 4
        %v2489 = vsel %vm1105, %v2488, %v2471
        %v2490 = vrot.slane %v2471, 4
        %v2491 = vsel %vm1105, %v2483, %v2490
        %v2492 = vpack.c.bf16 %v2431, %v2431
        %v2493 = vpack.c.bf16 %v2485, %v2485
        %v2494 = vpack.c.bf16 %v2433, %v2433
        %v2495 = vpack.c.bf16 %v2487, %v2487
        %v2496 = vpack.c.bf16 %v2435, %v2435
        %v2497 = vpack.c.bf16 %v2489, %v2489
        %v2498 = vpack.c.bf16 %v2437, %v2437
        %v2499 = vpack.c.bf16 %v2491, %v2491
        %2502 = vrot.lane.b32.xlu0 %v2124, 96
        %v2503 = vpop.permute.xlu0 %2502
        %2504 = vrot.lane.b32.xlu0 %v2126, 96
        %v2505 = vpop.permute.xlu0 %2504
        %2508 = vrot.lane.b32.xlu0 %v2124, 64
        %v2509 = vpop.permute.xlu0 %2508
        %2510 = vrot.lane.b32.xlu0 %v2126, 64
        %v2511 = vpop.permute.xlu0 %2510
        %2514 = vrot.lane.b32.xlu0 %v2124, 32
        %v2515 = vpop.permute.xlu0 %2514
        %2516 = vrot.lane.b32.xlu0 %v2126, 32
        %v2517 = vpop.permute.xlu0 %2516
        %v2520 = vrot.slane %v2509, 4
        %v2521 = vsel %vm1105, %v2520, %v2124
        %v2522 = vrot.slane %v2124, 4
        %v2523 = vsel %vm1105, %v2509, %v2522
        %v2525 = vunpack.c.l.s4 1983009808
        %v2526 = vunpack.c.0.s8 %v2525
        %v2527 = vperm.slane %v2521, %v2526
        %v2529 = vunpack.c.l.s4 1983009808
        %v2530 = vunpack.c.0.s8 %v2529
        %v2531 = vperm.slane %v2523, %v2530
        %v2532 = vrot.slane %v2515, 4
        %v2533 = vsel %vm1105, %v2532, %v2503
        %v2534 = vrot.slane %v2503, 4
        %v2535 = vsel %vm1105, %v2515, %v2534
        %v2537 = vunpack.c.l.s4 1983009808
        %v2538 = vunpack.c.0.s8 %v2537
        %v2539 = vperm.slane %v2533, %v2538
        %v2541 = vunpack.c.l.s4 1983009808
        %v2542 = vunpack.c.0.s8 %v2541
        %v2543 = vperm.slane %v2535, %v2542
        %v2544 = vrot.slane %v2539, 4
        %v2545 = vsel %vm1105, %v2544, %v2527
        %v2546 = vrot.slane %v2527, 4
        %v2547 = vsel %vm1105, %v2539, %v2546
        %v2549 = vunpack.c.l.s4 1934713408
        %v2550 = vunpack.c.0.s8 %v2549
        %v2551 = vperm.slane %v2545, %v2550
        %v2553 = vunpack.c.l.s4 1934713408
        %v2554 = vunpack.c.0.s8 %v2553
        %v2555 = vperm.slane %v2547, %v2554
        %v2556 = vrot.slane %v2543, 4
        %v2557 = vsel %vm1105, %v2556, %v2531
        %v2558 = vrot.slane %v2531, 4
        %v2559 = vsel %vm1105, %v2543, %v2558
        %v2561 = vunpack.c.l.s4 1934713408
        %v2562 = vunpack.c.0.s8 %v2561
        %v2563 = vperm.slane %v2557, %v2562
        %v2565 = vunpack.c.l.s4 1934713408
        %v2566 = vunpack.c.0.s8 %v2565
        %v2567 = vperm.slane %v2559, %v2566
        %v2568 = vrot.slane %v2551, 4
        %v2569 = vsel %vm1105, 0.0, %v2568
        %v2570 = vrot.slane %v2555, 4
        %v2571 = vsel %vm1105, 0.0, %v2570
        %v2572 = vrot.slane %v2563, 4
        %v2573 = vsel %vm1105, 0.0, %v2572
        %v2574 = vrot.slane %v2567, 4
        %v2575 = vsel %vm1105, 0.0, %v2574
        %v2576 = vrot.slane %v2511, 4
        %v2577 = vsel %vm1105, %v2576, %v2126
        %v2578 = vrot.slane %v2126, 4
        %v2579 = vsel %vm1105, %v2511, %v2578
        %v2581 = vunpack.c.l.s4 1983009808
        %v2582 = vunpack.c.0.s8 %v2581
        %v2583 = vperm.slane %v2577, %v2582
        %v2585 = vunpack.c.l.s4 1983009808
        %v2586 = vunpack.c.0.s8 %v2585
        %v2587 = vperm.slane %v2579, %v2586
        %v2588 = vrot.slane %v2517, 4
        %v2589 = vsel %vm1105, %v2588, %v2505
        %v2590 = vrot.slane %v2505, 4
        %v2591 = vsel %vm1105, %v2517, %v2590
        %v2593 = vunpack.c.l.s4 1983009808
        %v2594 = vunpack.c.0.s8 %v2593
        %v2595 = vperm.slane %v2589, %v2594
        %v2597 = vunpack.c.l.s4 1983009808
        %v2598 = vunpack.c.0.s8 %v2597
        %v2599 = vperm.slane %v2591, %v2598
        %v2600 = vrot.slane %v2595, 4
        %v2601 = vsel %vm1105, %v2600, %v2583
        %v2602 = vrot.slane %v2583, 4
        %v2603 = vsel %vm1105, %v2595, %v2602
        %v2605 = vunpack.c.l.s4 1934713408
        %v2606 = vunpack.c.0.s8 %v2605
        %v2607 = vperm.slane %v2601, %v2606
        %v2609 = vunpack.c.l.s4 1934713408
        %v2610 = vunpack.c.0.s8 %v2609
        %v2611 = vperm.slane %v2603, %v2610
        %v2612 = vrot.slane %v2599, 4
        %v2613 = vsel %vm1105, %v2612, %v2587
        %v2614 = vrot.slane %v2587, 4
        %v2615 = vsel %vm1105, %v2599, %v2614
        %v2617 = vunpack.c.l.s4 1934713408
        %v2618 = vunpack.c.0.s8 %v2617
        %v2619 = vperm.slane %v2613, %v2618
        %v2621 = vunpack.c.l.s4 1934713408
        %v2622 = vunpack.c.0.s8 %v2621
        %v2623 = vperm.slane %v2615, %v2622
        %v2624 = vrot.slane %v2607, 4
        %v2625 = vsel %vm1105, 0.0, %v2624
        %v2626 = vrot.slane %v2611, 4
        %v2627 = vsel %vm1105, 0.0, %v2626
        %v2628 = vrot.slane %v2619, 4
        %v2629 = vsel %vm1105, 0.0, %v2628
        %v2630 = vrot.slane %v2623, 4
        %v2631 = vsel %vm1105, 0.0, %v2630
        %v2632 = vsel %vm1105, %v2570, %v2551
        %v2634 = vunpack.c.l.s4 1983009808
        %v2635 = vunpack.c.0.s8 %v2634
        %v2636 = vperm.slane %v2632, %v2635
        %v2637 = vrot.slane %v2571, 4
        %v2638 = vsel %vm1105, %v2637, %v2569
        %v2640 = vunpack.c.l.s4 1983009808
        %v2641 = vunpack.c.0.s8 %v2640
        %v2642 = vperm.slane %v2638, %v2641
        %v2643 = vsel %vm1105, %v2574, %v2563
        %v2645 = vunpack.c.l.s4 1983009808
        %v2646 = vunpack.c.0.s8 %v2645
        %v2647 = vperm.slane %v2643, %v2646
        %v2648 = vrot.slane %v2575, 4
        %v2649 = vsel %vm1105, %v2648, %v2573
        %v2651 = vunpack.c.l.s4 1983009808
        %v2652 = vunpack.c.0.s8 %v2651
        %v2653 = vperm.slane %v2649, %v2652
        %v2654 = vrot.slane %v2642, 4
        %v2655 = vsel %vm1105, %v2654, %v2636
        %v2656 = vrot.slane %v2636, 4
        %v2657 = vsel %vm1105, %v2642, %v2656
        %v2659 = vunpack.c.l.s4 1934713408
        %v2660 = vunpack.c.0.s8 %v2659
        %v2661 = vperm.slane %v2655, %v2660
        %v2663 = vunpack.c.l.s4 1934713408
        %v2664 = vunpack.c.0.s8 %v2663
        %v2665 = vperm.slane %v2657, %v2664
        %v2666 = vrot.slane %v2653, 4
        %v2667 = vsel %vm1105, %v2666, %v2647
        %v2668 = vrot.slane %v2647, 4
        %v2669 = vsel %vm1105, %v2653, %v2668
        %v2671 = vunpack.c.l.s4 1934713408
        %v2672 = vunpack.c.0.s8 %v2671
        %v2673 = vperm.slane %v2667, %v2672
        %v2675 = vunpack.c.l.s4 1934713408
        %v2676 = vunpack.c.0.s8 %v2675
        %v2677 = vperm.slane %v2669, %v2676
        %v2678 = vrot.slane %v2673, 4
        %v2679 = vsel %vm1105, %v2678, %v2661
        %v2680 = vrot.slane %v2661, 4
        %v2681 = vsel %vm1105, %v2673, %v2680
        %v2682 = vrot.slane %v2677, 4
        %v2683 = vsel %vm1105, %v2682, %v2665
        %v2684 = vrot.slane %v2665, 4
        %v2685 = vsel %vm1105, %v2677, %v2684
        %v2686 = vsel %vm1105, %v2626, %v2607
        %v2688 = vunpack.c.l.s4 1983009808
        %v2689 = vunpack.c.0.s8 %v2688
        %v2690 = vperm.slane %v2686, %v2689
        %v2691 = vrot.slane %v2627, 4
        %v2692 = vsel %vm1105, %v2691, %v2625
        %v2694 = vunpack.c.l.s4 1983009808
        %v2695 = vunpack.c.0.s8 %v2694
        %v2696 = vperm.slane %v2692, %v2695
        %v2697 = vsel %vm1105, %v2630, %v2619
        %v2699 = vunpack.c.l.s4 1983009808
        %v2700 = vunpack.c.0.s8 %v2699
        %v2701 = vperm.slane %v2697, %v2700
        %v2702 = vrot.slane %v2631, 4
        %v2703 = vsel %vm1105, %v2702, %v2629
        %v2705 = vunpack.c.l.s4 1983009808
        %v2706 = vunpack.c.0.s8 %v2705
        %v2707 = vperm.slane %v2703, %v2706
        %v2708 = vrot.slane %v2696, 4
        %v2709 = vsel %vm1105, %v2708, %v2690
        %v2710 = vrot.slane %v2690, 4
        %v2711 = vsel %vm1105, %v2696, %v2710
        %v2713 = vunpack.c.l.s4 1934713408
        %v2714 = vunpack.c.0.s8 %v2713
        %v2715 = vperm.slane %v2709, %v2714
        %v2717 = vunpack.c.l.s4 1934713408
        %v2718 = vunpack.c.0.s8 %v2717
        %v2719 = vperm.slane %v2711, %v2718
        %v2720 = vrot.slane %v2707, 4
        %v2721 = vsel %vm1105, %v2720, %v2701
        %v2722 = vrot.slane %v2701, 4
        %v2723 = vsel %vm1105, %v2707, %v2722
        %v2725 = vunpack.c.l.s4 1934713408
        %v2726 = vunpack.c.0.s8 %v2725
        %v2727 = vperm.slane %v2721, %v2726
        %v2729 = vunpack.c.l.s4 1934713408
        %v2730 = vunpack.c.0.s8 %v2729
        %v2731 = vperm.slane %v2723, %v2730
        %v2732 = vrot.slane %v2727, 4
        %v2733 = vsel %vm1105, %v2732, %v2715
        %v2734 = vrot.slane %v2715, 4
        %v2735 = vsel %vm1105, %v2727, %v2734
        %v2736 = vrot.slane %v2731, 4
        %v2737 = vsel %vm1105, %v2736, %v2719
        %v2738 = vrot.slane %v2719, 4
        %v2739 = vsel %vm1105, %v2731, %v2738
        %v2740 = vpack.c.bf16 %v2679, %v2679
        %v2741 = vpack.c.bf16 %v2733, %v2733
        %v2742 = vpack.c.bf16 %v2681, %v2681
        %v2743 = vpack.c.bf16 %v2735, %v2735
        %v2744 = vpack.c.bf16 %v2683, %v2683
        %v2745 = vpack.c.bf16 %v2737, %v2737
        %v2746 = vpack.c.bf16 %v2685, %v2685
        %v2747 = vpack.c.bf16 %v2739, %v2739
        %v2749 = vsel %vm1467, %v2248, 0
        %v2752 = vsel %vm1467, %v2492, 0
        %2754 = vmatpush.bf16.xpose.msra.mxu0 0
        %2755 = vmatpush.bf16.xpose.msra.mxu0 0
        %2756 = vmatpush.bf16.xpose.msra.mxu0 0
        %2757 = vmatpush.bf16.xpose.msra.mxu0 0
        %2758 = vmatpush.bf16.xpose.msra.mxu0 0
        %2759 = vmatpush.bf16.xpose.msra.mxu0 0
        %2760 = vmatpush.bf16.xpose.msra.mxu0 0
        %2761 = vmatpush.bf16.xpose.msra.mxu0 %v2752
        %2762 = vmatmul.bf16.gmra.mxu0 %v2749
        %v2763 = vpop.f32.mrf.mxu0
        %v2764 = vadd.f32 0.0, %v2763
        %v2765 = vpop.f32.mrf.mxu0
        %2766 = vdwg.mxu0
        %v2768 = vsel %vm1467, %v2249, 0
        %v2771 = vsel %vm1467, %v2494, 0
        %2773 = vmatpush.bf16.xpose.msra.mxu0 0
        %2774 = vmatpush.bf16.xpose.msra.mxu0 0
        %2775 = vmatpush.bf16.xpose.msra.mxu0 0
        %2776 = vmatpush.bf16.xpose.msra.mxu0 0
        %2777 = vmatpush.bf16.xpose.msra.mxu0 0
        %2778 = vmatpush.bf16.xpose.msra.mxu0 0
        %2779 = vmatpush.bf16.xpose.msra.mxu0 0
        %2780 = vmatpush.bf16.xpose.msra.mxu0 %v2771
        %2781 = vmatmul.bf16.gmra.mxu0 %v2768
        %v2782 = vpop.f32.mrf.mxu0
        %v2783 = vadd.f32 0.0, %v2782
        %v2784 = vpop.f32.mrf.mxu0
        %2785 = vdwg.mxu0
        %v2787 = vsel %vm1467, %v2250, 0
        %v2790 = vsel %vm1467, %v2496, 0
        %2792 = vmatpush.bf16.xpose.msra.mxu0 0
        %2793 = vmatpush.bf16.xpose.msra.mxu0 0
        %2794 = vmatpush.bf16.xpose.msra.mxu0 0
        %2795 = vmatpush.bf16.xpose.msra.mxu0 0
        %2796 = vmatpush.bf16.xpose.msra.mxu0 0
        %2797 = vmatpush.bf16.xpose.msra.mxu0 0
        %2798 = vmatpush.bf16.xpose.msra.mxu0 0
        %2799 = vmatpush.bf16.xpose.msra.mxu0 %v2790
        %2800 = vmatmul.bf16.gmra.mxu0 %v2787
        %v2801 = vpop.f32.mrf.mxu0
        %v2802 = vadd.f32 0.0, %v2801
        %v2803 = vpop.f32.mrf.mxu0
        %2804 = vdwg.mxu0
        %v2806 = vsel %vm1467, %v2251, 0
        %v2809 = vsel %vm1467, %v2498, 0
        %2811 = vmatpush.bf16.xpose.msra.mxu0 0
        %2812 = vmatpush.bf16.xpose.msra.mxu0 0
        %2813 = vmatpush.bf16.xpose.msra.mxu0 0
        %2814 = vmatpush.bf16.xpose.msra.mxu0 0
        %2815 = vmatpush.bf16.xpose.msra.mxu0 0
        %2816 = vmatpush.bf16.xpose.msra.mxu0 0
        %2817 = vmatpush.bf16.xpose.msra.mxu0 0
        %2818 = vmatpush.bf16.xpose.msra.mxu0 %v2809
        %2819 = vmatmul.bf16.gmra.mxu0 %v2806
        %v2820 = vpop.f32.mrf.mxu0
        %v2821 = vadd.f32 0.0, %v2820
        %v2822 = vpop.f32.mrf.mxu0
        %2823 = vdwg.mxu0
        %v2824 = vperm.slane %v885, 0
        %v2825 = vadd.f32 %v2764, %v2824
        %v2826 = vadd.f32 %v2783, %v2824
        %v2827 = vadd.f32 %v2802, %v2824
        %v2828 = vadd.f32 %v2821, %v2824
        %v2829 = vsel %vm1548, %v2825, -inf
        %2830 = vmax.xlane.f32.xlu0 %v2829
        %v2831 = vpop.xlane.xlu0 %2830
        %v2832 = vsel %vm1548, %v2826, -inf
        %2833 = vmax.xlane.f32.xlu0 %v2832
        %v2834 = vpop.xlane.xlu0 %2833
        %v2835 = vsel %vm1548, %v2827, -inf
        %2836 = vmax.xlane.f32.xlu0 %v2835
        %v2837 = vpop.xlane.xlu0 %2836
        %v2838 = vsel %vm1548, %v2828, -inf
        %2839 = vmax.xlane.f32.xlu0 %v2838
        %v2840 = vpop.xlane.xlu0 %2839
        %v2841 = vsub.f32 %v2825, %v2831
        %v2842 = vsub.f32 %v2826, %v2834
        %v2843 = vsub.f32 %v2827, %v2837
        %v2844 = vsub.f32 %v2828, %v2840
        %v2845 = vmul.f32 %v2841, 1.442695
        %v2846 = vpow.pop %v2845
        %v2847 = vmul.f32 %v2842, 1.442695
        %v2848 = vpow.pop %v2847
        %v2849 = vmul.f32 %v2843, 1.442695
        %v2850 = vpow.pop %v2849
        %v2851 = vmul.f32 %v2844, 1.442695
        %v2852 = vpow.pop %v2851
        %v2853 = vsel %vm1548, %v2846, 0.0
        %2854 = vadd.xlane.f32.xlu0 %v2853
        %v2855 = vpop.xlane.xlu0 %2854
        %v2856 = vsel %vm1548, %v2848, 0.0
        %2857 = vadd.xlane.f32.xlu0 %v2856
        %v2858 = vpop.xlane.xlu0 %2857
        %v2859 = vsel %vm1548, %v2850, 0.0
        %2860 = vadd.xlane.f32.xlu0 %v2859
        %v2861 = vpop.xlane.xlu0 %2860
        %v2862 = vsel %vm1548, %v2852, 0.0
        %2863 = vadd.xlane.f32.xlu0 %v2862
        %v2864 = vpop.xlane.xlu0 %2863
        %v2865 = vpack.c.bf16 %v2846, %v2846
        %v2866 = vpack.c.bf16 %v2848, %v2848
        %v2867 = vpack.c.bf16 %v2850, %v2850
        %v2868 = vpack.c.bf16 %v2852, %v2852
        %v2870 = vsel %vm1548, %v2865, 0
        %v2873 = vsel %vm1592, %v2740, 0
        %2875 = vmatpush.bf16.msra.mxu0 0
        %2876 = vmatpush.bf16.msra.mxu0 0
        %2877 = vmatpush.bf16.msra.mxu0 0
        %2878 = vmatpush.bf16.msra.mxu0 0
        %2879 = vmatpush.bf16.msra.mxu0 0
        %2880 = vmatpush.bf16.msra.mxu0 0
        %2881 = vmatpush.bf16.msra.mxu0 0
        %2882 = vmatpush.bf16.msra.mxu0 %v2873
        %2883 = vmatmul.bf16.gmra.mxu0 %v2870
        %v2884 = vpop.f32.mrf.mxu0
        %v2885 = vadd.f32 0.0, %v2884
        %v2886 = vpop.f32.mrf.mxu0
        %2887 = vdwg.mxu0
        %v2889 = vsel %vm1548, %v2866, 0
        %v2892 = vsel %vm1592, %v2742, 0
        %2894 = vmatpush.bf16.msra.mxu0 0
        %2895 = vmatpush.bf16.msra.mxu0 0
        %2896 = vmatpush.bf16.msra.mxu0 0
        %2897 = vmatpush.bf16.msra.mxu0 0
        %2898 = vmatpush.bf16.msra.mxu0 0
        %2899 = vmatpush.bf16.msra.mxu0 0
        %2900 = vmatpush.bf16.msra.mxu0 0
        %2901 = vmatpush.bf16.msra.mxu0 %v2892
        %2902 = vmatmul.bf16.gmra.mxu0 %v2889
        %v2903 = vpop.f32.mrf.mxu0
        %v2904 = vadd.f32 0.0, %v2903
        %v2905 = vpop.f32.mrf.mxu0
        %2906 = vdwg.mxu0
        %v2908 = vsel %vm1548, %v2867, 0
        %v2911 = vsel %vm1592, %v2744, 0
        %2913 = vmatpush.bf16.msra.mxu0 0
        %2914 = vmatpush.bf16.msra.mxu0 0
        %2915 = vmatpush.bf16.msra.mxu0 0
        %2916 = vmatpush.bf16.msra.mxu0 0
        %2917 = vmatpush.bf16.msra.mxu0 0
        %2918 = vmatpush.bf16.msra.mxu0 0
        %2919 = vmatpush.bf16.msra.mxu0 0
        %2920 = vmatpush.bf16.msra.mxu0 %v2911
        %2921 = vmatmul.bf16.gmra.mxu0 %v2908
        %v2922 = vpop.f32.mrf.mxu0
        %v2923 = vadd.f32 0.0, %v2922
        %v2924 = vpop.f32.mrf.mxu0
        %2925 = vdwg.mxu0
        %v2927 = vsel %vm1548, %v2868, 0
        %v2930 = vsel %vm1592, %v2746, 0
        %2932 = vmatpush.bf16.msra.mxu0 0
        %2933 = vmatpush.bf16.msra.mxu0 0
        %2934 = vmatpush.bf16.msra.mxu0 0
        %2935 = vmatpush.bf16.msra.mxu0 0
        %2936 = vmatpush.bf16.msra.mxu0 0
        %2937 = vmatpush.bf16.msra.mxu0 0
        %2938 = vmatpush.bf16.msra.mxu0 0
        %2939 = vmatpush.bf16.msra.mxu0 %v2930
        %2940 = vmatmul.bf16.gmra.mxu0 %v2927
        %v2941 = vpop.f32.mrf.mxu0
        %v2942 = vadd.f32 0.0, %v2941
        %v2943 = vpop.f32.mrf.mxu0
        %2944 = vdwg.mxu0
        %v2946 = vsel %vm1467, %v2493, 0
        %2948 = vmatpush.bf16.xpose.msra.mxu0 0
        %2949 = vmatpush.bf16.xpose.msra.mxu0 0
        %2950 = vmatpush.bf16.xpose.msra.mxu0 0
        %2951 = vmatpush.bf16.xpose.msra.mxu0 0
        %2952 = vmatpush.bf16.xpose.msra.mxu0 0
        %2953 = vmatpush.bf16.xpose.msra.mxu0 0
        %2954 = vmatpush.bf16.xpose.msra.mxu0 0
        %2955 = vmatpush.bf16.xpose.msra.mxu0 %v2946
        %2956 = vmatmul.bf16.gmra.mxu0 %v2749
        %v2957 = vpop.f32.mrf.mxu0
        %v2958 = vadd.f32 0.0, %v2957
        %v2959 = vpop.f32.mrf.mxu0
        %2960 = vdwg.mxu0
        %v2962 = vsel %vm1467, %v2495, 0
        %2964 = vmatpush.bf16.xpose.msra.mxu0 0
        %2965 = vmatpush.bf16.xpose.msra.mxu0 0
        %2966 = vmatpush.bf16.xpose.msra.mxu0 0
        %2967 = vmatpush.bf16.xpose.msra.mxu0 0
        %2968 = vmatpush.bf16.xpose.msra.mxu0 0
        %2969 = vmatpush.bf16.xpose.msra.mxu0 0
        %2970 = vmatpush.bf16.xpose.msra.mxu0 0
        %2971 = vmatpush.bf16.xpose.msra.mxu0 %v2962
        %2972 = vmatmul.bf16.gmra.mxu0 %v2768
        %v2973 = vpop.f32.mrf.mxu0
        %v2974 = vadd.f32 0.0, %v2973
        %v2975 = vpop.f32.mrf.mxu0
        %2976 = vdwg.mxu0
        %v2978 = vsel %vm1467, %v2497, 0
        %2980 = vmatpush.bf16.xpose.msra.mxu0 0
        %2981 = vmatpush.bf16.xpose.msra.mxu0 0
        %2982 = vmatpush.bf16.xpose.msra.mxu0 0
        %2983 = vmatpush.bf16.xpose.msra.mxu0 0
        %2984 = vmatpush.bf16.xpose.msra.mxu0 0
        %2985 = vmatpush.bf16.xpose.msra.mxu0 0
        %2986 = vmatpush.bf16.xpose.msra.mxu0 0
        %2987 = vmatpush.bf16.xpose.msra.mxu0 %v2978
        %2988 = vmatmul.bf16.gmra.mxu0 %v2787
        %v2989 = vpop.f32.mrf.mxu0
        %v2990 = vadd.f32 0.0, %v2989
        %v2991 = vpop.f32.mrf.mxu0
        %2992 = vdwg.mxu0
        %v2994 = vsel %vm1467, %v2499, 0
        %2996 = vmatpush.bf16.xpose.msra.mxu0 0
        %2997 = vmatpush.bf16.xpose.msra.mxu0 0
        %2998 = vmatpush.bf16.xpose.msra.mxu0 0
        %2999 = vmatpush.bf16.xpose.msra.mxu0 0
        %3000 = vmatpush.bf16.xpose.msra.mxu0 0
        %3001 = vmatpush.bf16.xpose.msra.mxu0 0
        %3002 = vmatpush.bf16.xpose.msra.mxu0 0
        %3003 = vmatpush.bf16.xpose.msra.mxu0 %v2994
        %3004 = vmatmul.bf16.gmra.mxu0 %v2806
        %v3005 = vpop.f32.mrf.mxu0
        %v3006 = vadd.f32 0.0, %v3005
        %v3007 = vpop.f32.mrf.mxu0
        %3008 = vdwg.mxu0
        %3010 = vrot.lane.b32.xlu0 %v2824, 120
        %v3011 = vpop.permute.xlu0 %3010
        %v3013 = vadd.f32 %v2958, %v3011
        %v3014 = vadd.f32 %v2974, %v3011
        %v3015 = vadd.f32 %v2990, %v3011
        %v3016 = vadd.f32 %v3006, %v3011
        %v3017 = vsel %vm1548, %v3013, -inf
        %3018 = vmax.xlane.f32.xlu0 %v3017
        %v3019 = vpop.xlane.xlu0 %3018
        %v3020 = vsel %vm1548, %v3014, -inf
        %3021 = vmax.xlane.f32.xlu0 %v3020
        %v3022 = vpop.xlane.xlu0 %3021
        %v3023 = vsel %vm1548, %v3015, -inf
        %3024 = vmax.xlane.f32.xlu0 %v3023
        %v3025 = vpop.xlane.xlu0 %3024
        %v3026 = vsel %vm1548, %v3016, -inf
        %3027 = vmax.xlane.f32.xlu0 %v3026
        %v3028 = vpop.xlane.xlu0 %3027
        %v3029 = vmax.f32 %v2831, %v3019
        %v3030 = vmax.f32 %v2834, %v3022
        %v3031 = vmax.f32 %v2837, %v3025
        %v3032 = vmax.f32 %v2840, %v3028
        %v3033 = vsub.f32 %v2831, %v3029
        %v3034 = vsub.f32 %v2834, %v3030
        %v3035 = vsub.f32 %v2837, %v3031
        %v3036 = vsub.f32 %v2840, %v3032
        %v3037 = vmul.f32 %v3033, 1.442695
        %v3038 = vpow.pop %v3037
        %v3039 = vmul.f32 %v3034, 1.442695
        %v3040 = vpow.pop %v3039
        %v3041 = vmul.f32 %v3035, 1.442695
        %v3042 = vpow.pop %v3041
        %v3043 = vmul.f32 %v3036, 1.442695
        %v3044 = vpow.pop %v3043
        %v3045 = vsub.f32 %v3013, %v3029
        %v3046 = vsub.f32 %v3014, %v3030
        %v3047 = vsub.f32 %v3015, %v3031
        %v3048 = vsub.f32 %v3016, %v3032
        %v3049 = vmul.f32 %v3045, 1.442695
        %v3050 = vpow.pop %v3049
        %v3051 = vmul.f32 %v3046, 1.442695
        %v3052 = vpow.pop %v3051
        %v3053 = vmul.f32 %v3047, 1.442695
        %v3054 = vpow.pop %v3053
        %v3055 = vmul.f32 %v3048, 1.442695
        %v3056 = vpow.pop %v3055
        %v3057 = vmul.f32 %v3038, %v2855
        %v3058 = vmul.f32 %v3040, %v2858
        %v3059 = vmul.f32 %v3042, %v2861
        %v3060 = vmul.f32 %v3044, %v2864
        %v3061 = vsel %vm1548, %v3050, 0.0
        %3062 = vadd.xlane.f32.xlu0 %v3061
        %v3063 = vpop.xlane.xlu0 %3062
        %v3064 = vsel %vm1548, %v3052, 0.0
        %3065 = vadd.xlane.f32.xlu0 %v3064
        %v3066 = vpop.xlane.xlu0 %3065
        %v3067 = vsel %vm1548, %v3054, 0.0
        %3068 = vadd.xlane.f32.xlu0 %v3067
        %v3069 = vpop.xlane.xlu0 %3068
        %v3070 = vsel %vm1548, %v3056, 0.0
        %3071 = vadd.xlane.f32.xlu0 %v3070
        %v3072 = vpop.xlane.xlu0 %3071
        %v3073 = vadd.f32 %v3057, %v3063
        %v3074 = vadd.f32 %v3058, %v3066
        %v3075 = vadd.f32 %v3059, %v3069
        %v3076 = vadd.f32 %v3060, %v3072
        %v3077 = vmul.f32 %v3038, %v2885
        %v3078 = vmul.f32 %v3040, %v2904
        %v3079 = vmul.f32 %v3042, %v2923
        %v3080 = vmul.f32 %v3044, %v2942
        %v3081 = vpack.c.bf16 %v3050, %v3050
        %v3082 = vpack.c.bf16 %v3052, %v3052
        %v3083 = vpack.c.bf16 %v3054, %v3054
        %v3084 = vpack.c.bf16 %v3056, %v3056
        %v3086 = vsel %vm1548, %v3081, 0
        %v3089 = vsel %vm1592, %v2741, 0
        %3091 = vmatpush.bf16.msra.mxu0 0
        %3092 = vmatpush.bf16.msra.mxu0 0
        %3093 = vmatpush.bf16.msra.mxu0 0
        %3094 = vmatpush.bf16.msra.mxu0 0
        %3095 = vmatpush.bf16.msra.mxu0 0
        %3096 = vmatpush.bf16.msra.mxu0 0
        %3097 = vmatpush.bf16.msra.mxu0 0
        %3098 = vmatpush.bf16.msra.mxu0 %v3089
        %3099 = vmatmul.bf16.gmra.mxu0 %v3086
        %v3100 = vpop.f32.mrf.mxu0
        %v3101 = vadd.f32 0.0, %v3100
        %v3102 = vpop.f32.mrf.mxu0
        %3103 = vdwg.mxu0
        %v3105 = vsel %vm1548, %v3082, 0
        %v3108 = vsel %vm1592, %v2743, 0
        %3110 = vmatpush.bf16.msra.mxu0 0
        %3111 = vmatpush.bf16.msra.mxu0 0
        %3112 = vmatpush.bf16.msra.mxu0 0
        %3113 = vmatpush.bf16.msra.mxu0 0
        %3114 = vmatpush.bf16.msra.mxu0 0
        %3115 = vmatpush.bf16.msra.mxu0 0
        %3116 = vmatpush.bf16.msra.mxu0 0
        %3117 = vmatpush.bf16.msra.mxu0 %v3108
        %3118 = vmatmul.bf16.gmra.mxu0 %v3105
        %v3119 = vpop.f32.mrf.mxu0
        %v3120 = vadd.f32 0.0, %v3119
        %v3121 = vpop.f32.mrf.mxu0
        %3122 = vdwg.mxu0
        %v3124 = vsel %vm1548, %v3083, 0
        %v3127 = vsel %vm1592, %v2745, 0
        %3129 = vmatpush.bf16.msra.mxu0 0
        %3130 = vmatpush.bf16.msra.mxu0 0
        %3131 = vmatpush.bf16.msra.mxu0 0
        %3132 = vmatpush.bf16.msra.mxu0 0
        %3133 = vmatpush.bf16.msra.mxu0 0
        %3134 = vmatpush.bf16.msra.mxu0 0
        %3135 = vmatpush.bf16.msra.mxu0 0
        %3136 = vmatpush.bf16.msra.mxu0 %v3127
        %3137 = vmatmul.bf16.gmra.mxu0 %v3124
        %v3138 = vpop.f32.mrf.mxu0
        %v3139 = vadd.f32 0.0, %v3138
        %v3140 = vpop.f32.mrf.mxu0
        %3141 = vdwg.mxu0
        %v3143 = vsel %vm1548, %v3084, 0
        %v3146 = vsel %vm1592, %v2747, 0
        %3148 = vmatpush.bf16.msra.mxu0 0
        %3149 = vmatpush.bf16.msra.mxu0 0
        %3150 = vmatpush.bf16.msra.mxu0 0
        %3151 = vmatpush.bf16.msra.mxu0 0
        %3152 = vmatpush.bf16.msra.mxu0 0
        %3153 = vmatpush.bf16.msra.mxu0 0
        %3154 = vmatpush.bf16.msra.mxu0 0
        %3155 = vmatpush.bf16.msra.mxu0 %v3146
        %3156 = vmatmul.bf16.gmra.mxu0 %v3143
        %v3157 = vpop.f32.mrf.mxu0
        %v3158 = vadd.f32 0.0, %v3157
        %v3159 = vpop.f32.mrf.mxu0
        %3160 = vdwg.mxu0
        %v3161 = vadd.f32 %v3077, %v3101
        %v3162 = vadd.f32 %v3078, %v3120
        %v3163 = vadd.f32 %v3079, %v3139
        %v3164 = vadd.f32 %v3080, %v3158
        %v3165 = vrcp.pop %v3073
        %v3166 = vrcp.pop %v3074
        %v3167 = vrcp.pop %v3075
        %v3168 = vrcp.pop %v3076
        %v3169 = vmul.f32 %v3161, %v3165
        %v3170 = vmul.f32 %v3162, %v3166
        %v3171 = vmul.f32 %v3163, %v3167
        %v3172 = vmul.f32 %v3164, %v3168
        %v3173 = vrot.slane %v3171, 4
        %v3174 = vsel %vm1105, %v3173, %v3169
        %v3175 = vrot.slane %v3169, 4
        %v3176 = vsel %vm1105, %v3171, %v3175
        %v3178 = vunpack.c.l.s4 1983009808
        %v3179 = vunpack.c.0.s8 %v3178
        %v3180 = vperm.slane %v3174, %v3179
        %v3182 = vunpack.c.l.s4 1983009808
        %v3183 = vunpack.c.0.s8 %v3182
        %v3184 = vperm.slane %v3176, %v3183
        %v3185 = vrot.slane %v3172, 4
        %v3186 = vsel %vm1105, %v3185, %v3170
        %v3187 = vrot.slane %v3170, 4
        %v3188 = vsel %vm1105, %v3172, %v3187
        %v3190 = vunpack.c.l.s4 1983009808
        %v3191 = vunpack.c.0.s8 %v3190
        %v3192 = vperm.slane %v3186, %v3191
        %v3194 = vunpack.c.l.s4 1983009808
        %v3195 = vunpack.c.0.s8 %v3194
        %v3196 = vperm.slane %v3188, %v3195
        %v3197 = vrot.slane %v3192, 4
        %v3198 = vsel %vm1105, %v3197, %v3180
        %v3199 = vrot.slane %v3180, 4
        %v3200 = vsel %vm1105, %v3192, %v3199
        %v3202 = vunpack.c.l.s4 1934713408
        %v3203 = vunpack.c.0.s8 %v3202
        %v3204 = vperm.slane %v3198, %v3203
        %v3206 = vunpack.c.l.s4 1934713408
        %v3207 = vunpack.c.0.s8 %v3206
        %v3208 = vperm.slane %v3200, %v3207
        %v3209 = vrot.slane %v3196, 4
        %v3210 = vsel %vm1105, %v3209, %v3184
        %v3211 = vrot.slane %v3184, 4
        %v3212 = vsel %vm1105, %v3196, %v3211
        %v3214 = vunpack.c.l.s4 1934713408
        %v3215 = vunpack.c.0.s8 %v3214
        %v3216 = vperm.slane %v3210, %v3215
        %v3218 = vunpack.c.l.s4 1934713408
        %v3219 = vunpack.c.0.s8 %v3218
        %v3220 = vperm.slane %v3212, %v3219
        %v3221 = vrot.slane %v3204, 4
        %v3222 = vsel %vm1105, 0.0, %v3221
        %v3223 = vrot.slane %v3208, 4
        %v3224 = vsel %vm1105, 0.0, %v3223
        %v3225 = vrot.slane %v3216, 4
        %v3226 = vsel %vm1105, 0.0, %v3225
        %v3227 = vrot.slane %v3220, 4
        %v3228 = vsel %vm1105, 0.0, %v3227
        %v3229 = vsel %vm1105, %v3223, %v3204
        %v3231 = vunpack.c.l.s4 1983009808
        %v3232 = vunpack.c.0.s8 %v3231
        %v3233 = vperm.slane %v3229, %v3232
        %v3234 = vrot.slane %v3224, 4
        %v3235 = vsel %vm1105, %v3234, %v3222
        %v3237 = vunpack.c.l.s4 1983009808
        %v3238 = vunpack.c.0.s8 %v3237
        %v3239 = vperm.slane %v3235, %v3238
        %v3240 = vsel %vm1105, %v3227, %v3216
        %v3242 = vunpack.c.l.s4 1983009808
        %v3243 = vunpack.c.0.s8 %v3242
        %v3244 = vperm.slane %v3240, %v3243
        %v3245 = vrot.slane %v3228, 4
        %v3246 = vsel %vm1105, %v3245, %v3226
        %v3248 = vunpack.c.l.s4 1983009808
        %v3249 = vunpack.c.0.s8 %v3248
        %v3250 = vperm.slane %v3246, %v3249
        %v3251 = vrot.slane %v3239, 4
        %v3252 = vsel %vm1105, %v3251, %v3233
        %v3253 = vrot.slane %v3233, 4
        %v3254 = vsel %vm1105, %v3239, %v3253
        %v3256 = vunpack.c.l.s4 1934713408
        %v3257 = vunpack.c.0.s8 %v3256
        %v3258 = vperm.slane %v3252, %v3257
        %v3260 = vunpack.c.l.s4 1934713408
        %v3261 = vunpack.c.0.s8 %v3260
        %v3262 = vperm.slane %v3254, %v3261
        %v3263 = vrot.slane %v3250, 4
        %v3264 = vsel %vm1105, %v3263, %v3244
        %v3265 = vrot.slane %v3244, 4
        %v3266 = vsel %vm1105, %v3250, %v3265
        %v3268 = vunpack.c.l.s4 1934713408
        %v3269 = vunpack.c.0.s8 %v3268
        %v3270 = vperm.slane %v3264, %v3269
        %v3272 = vunpack.c.l.s4 1934713408
        %v3273 = vunpack.c.0.s8 %v3272
        %v3274 = vperm.slane %v3266, %v3273
        %v3275 = vrot.slane %v3270, 4
        %v3276 = vsel %vm1105, %v3275, %v3258
        %v3277 = vrot.slane %v3258, 4
        %v3278 = vsel %vm1105, %v3270, %v3277
        %v3279 = vrot.slane %v3274, 4
        %v3280 = vsel %vm1105, %v3279, %v3262
        %v3281 = vrot.slane %v3262, 4
        %v3282 = vsel %vm1105, %v3274, %v3281
        %3284 = vrot.lane.b32.xlu0 %v3278, 32
        %v3285 = vpop.permute.xlu0 %3284
        %3288 = vrot.lane.b32.xlu0 %v3280, 64
        %v3289 = vpop.permute.xlu0 %3288
        %3292 = vrot.lane.b32.xlu0 %v3282, 96
        %v3293 = vpop.permute.xlu0 %3292
        %v3295 = vsel %vm1467, %v3276, %v3285
        %v3296 = vsel %vm1797, %v3295, %v3289
        %v3297 = vsel %vm1799, %v3296, %v3293
        %v3298 = vpack.c.bf16 %v3297, %v3297
        %v3299 = vld [vmem:[#allocation17] sm:$0xf]
        %v3300 = vld [vmem:[#allocation17 + $0x4] sm:$0xf]
        %v3301 = vld [vmem:[#allocation17 + $0x8] sm:$0xf]
        %v3302 = vld [vmem:[#allocation17 + $0xc] sm:$0xf]
        %v3303 = vld [vmem:[#allocation17 + $0x10] sm:$0xf]
        %v3304 = vld [vmem:[#allocation17 + $0x14] sm:$0xf]
        %v3305 = vld [vmem:[#allocation17 + $0x18] sm:$0xf]
        %v3306 = vld [vmem:[#allocation17 + $0x1c] sm:$0xf]
        %v3307 = vld [vmem:[#allocation17 + $0x20] sm:$0xf]
        %v3308 = vld [vmem:[#allocation17 + $0x24] sm:$0xf]
        %v3309 = vld [vmem:[#allocation17 + $0x28] sm:$0xf]
        %v3310 = vld [vmem:[#allocation17 + $0x2c] sm:$0xf]
        %v3311 = vld [vmem:[#allocation17 + $0x30] sm:$0xf]
        %v3312 = vld [vmem:[#allocation17 + $0x34] sm:$0xf]
        %v3313 = vld [vmem:[#allocation17 + $0x38] sm:$0xf]
        %v3314 = vld [vmem:[#allocation17 + $0x3c] sm:$0xf]
        %v3315 = vld [vmem:[#allocation19] sm:$0x1]
        %v3317 = vperm.slane %v3315, 0
        %v3335 = vunpack.c.l.b16 %v3299
        %v3336 = vunpack.c.l.b16 %v3300
        %v3337 = vunpack.c.l.b16 %v3301
        %v3338 = vunpack.c.l.b16 %v3302
        %v3339 = vunpack.c.l.b16 %v3303
        %v3340 = vunpack.c.l.b16 %v3304
        %v3341 = vunpack.c.l.b16 %v3305
        %v3342 = vunpack.c.l.b16 %v3306
        %v3343 = vunpack.c.l.b16 %v3307
        %v3344 = vunpack.c.l.b16 %v3308
        %v3345 = vunpack.c.l.b16 %v3309
        %v3346 = vunpack.c.l.b16 %v3310
        %v3347 = vunpack.c.l.b16 %v3311
        %v3348 = vunpack.c.l.b16 %v3312
        %v3349 = vunpack.c.l.b16 %v3313
        %v3350 = vunpack.c.l.b16 %v3314
        %v3351 = vpack.c.b16 %v3336, %v3335
        %v3352 = vpack.c.b16 %v3338, %v3337
        %v3353 = vpack.c.b16 %v3340, %v3339
        %v3354 = vpack.c.b16 %v3342, %v3341
        %v3355 = vpack.c.b16 %v3344, %v3343
        %v3356 = vpack.c.b16 %v3346, %v3345
        %v3357 = vpack.c.b16 %v3348, %v3347
        %v3358 = vpack.c.b16 %v3350, %v3349
        %3367 = vmatpush.bf16.msra.mxu0 %v3358
        %3368 = vmatpush.bf16.msra.mxu0 %v3357
        %3369 = vmatpush.bf16.msra.mxu0 %v3356
        %3370 = vmatpush.bf16.msra.mxu0 %v3355
        %3371 = vmatpush.bf16.msra.mxu0 %v3354
        %3372 = vmatpush.bf16.msra.mxu0 %v3353
        %3373 = vmatpush.bf16.msra.mxu0 %v3352
        %3374 = vmatpush.bf16.msra.mxu0 %v3351
        %3375 = vmatmul.bf16.gmra.mxu0 %v3298
        %v3376 = vpop.f32.mrf.mxu0
        %v3377 = vadd.f32 %v3317, %v3376
        %v3378 = vpop.f32.mrf.mxu0
        %3379 = vdwg.mxu0
        %v3380 = vadd.f32 %v1914, %v3377
        %3381 = vadd.xlane.f32.xlu0 %v3380
        %v3382 = vpop.xlane.xlu0 %3381
        %v3383 = vmul.f32 %v3382, %v1892
        %v3384 = vsub.f32 %v3380, %v3383
        %v3385 = vmul.f32 %v3384, %v3384
        %3386 = vadd.xlane.f32.xlu0 %v3385
        %v3387 = vpop.xlane.xlu0 %3386
        %v3388 = vmul.f32 %v3387, %v1892
        %v3389 = vadd.f32 %v3388, 1e-05
        %v3390 = vrsqrt.pop %v3389
        %v3391 = vmul.f32 %v3390, %v3389
        %v3392 = vmul.f32 %v3391, %v3390
        %v3393 = vmul.f32 0.5, %v3392
        %v3394 = vsub.f32 1.5, %v3393
        %v3395 = vmul.f32 %v3390, %v3394
        %vm3396 = vweird.f32 %v3389
        %vm3397 = vweird.f32 %v3390
        %vm3398 = vmor %vm3396, %vm3397
        %v3399 = vsel %vm3398, %v3390, %v3395
        %v3400 = vmul.f32 %v3384, %v3399
        %v3401 = vperm.slane %v875, 2
        %v3402 = vmul.f32 %v3400, %v3401
        %v3403 = vperm.slane %v875, 3
        %v3404 = vadd.f32 %v3402, %v3403
        %v3405 = vpack.c.bf16 %v3404, %v3404
        %v3406 = vld [vmem:[#allocation20] sm:$0xff]
        %v3407 = vld [vmem:[#allocation20 + $0x8] sm:$0xff]
        %v3408 = vld [vmem:[#allocation20 + $0x10] sm:$0xff]
        %v3409 = vld [vmem:[#allocation20 + $0x18] sm:$0xff]
        %v3410 = vld [vmem:[#allocation20 + $0x20] sm:$0xff]
        %v3411 = vld [vmem:[#allocation20 + $0x28] sm:$0xff]
        %v3412 = vld [vmem:[#allocation20 + $0x30] sm:$0xff]
        %v3413 = vld [vmem:[#allocation20 + $0x38] sm:$0xff]
        %v3414 = vld [vmem:[#allocation20 + $0x40] sm:$0xff]
        %v3415 = vld [vmem:[#allocation20 + $0x48] sm:$0xff]
        %v3416 = vld [vmem:[#allocation20 + $0x50] sm:$0xff]
        %v3417 = vld [vmem:[#allocation20 + $0x58] sm:$0xff]
        %v3418 = vld [vmem:[#allocation20 + $0x60] sm:$0xff]
        %v3419 = vld [vmem:[#allocation20 + $0x68] sm:$0xff]
        %v3420 = vld [vmem:[#allocation20 + $0x70] sm:$0xff]
        %v3421 = vld [vmem:[#allocation20 + $0x78] sm:$0xff]
        %v3422 = vld [vmem:[%s15] sm:$0x3]
        %v3424 = vperm.slane %v3422, 0
        %v3425 = vperm.slane %v3422, 1
        %v3444 = vunpack.c.l.b16 %v3406
        %v3445 = vunpack.c.h.b16 %v3406
        %v3446 = vunpack.c.l.b16 %v3407
        %v3447 = vunpack.c.h.b16 %v3407
        %v3448 = vunpack.c.l.b16 %v3408
        %v3449 = vunpack.c.h.b16 %v3408
        %v3450 = vunpack.c.l.b16 %v3409
        %v3451 = vunpack.c.h.b16 %v3409
        %v3452 = vunpack.c.l.b16 %v3410
        %v3453 = vunpack.c.h.b16 %v3410
        %v3454 = vunpack.c.l.b16 %v3411
        %v3455 = vunpack.c.h.b16 %v3411
        %v3456 = vunpack.c.l.b16 %v3412
        %v3457 = vunpack.c.h.b16 %v3412
        %v3458 = vunpack.c.l.b16 %v3413
        %v3459 = vunpack.c.h.b16 %v3413
        %v3460 = vunpack.c.l.b16 %v3414
        %v3461 = vunpack.c.h.b16 %v3414
        %v3462 = vunpack.c.l.b16 %v3415
        %v3463 = vunpack.c.h.b16 %v3415
        %v3464 = vunpack.c.l.b16 %v3416
        %v3465 = vunpack.c.h.b16 %v3416
        %v3466 = vunpack.c.l.b16 %v3417
        %v3467 = vunpack.c.h.b16 %v3417
        %v3468 = vunpack.c.l.b16 %v3418
        %v3469 = vunpack.c.h.b16 %v3418
        %v3470 = vunpack.c.l.b16 %v3419
        %v3471 = vunpack.c.h.b16 %v3419
        %v3472 = vunpack.c.l.b16 %v3420
        %v3473 = vunpack.c.h.b16 %v3420
        %v3474 = vunpack.c.l.b16 %v3421
        %v3475 = vunpack.c.h.b16 %v3421
        %v3476 = vpack.c.b16 %v3446, %v3444
        %v3477 = vpack.c.b16 %v3447, %v3445
        %v3478 = vpack.c.b16 %v3450, %v3448
        %v3479 = vpack.c.b16 %v3451, %v3449
        %v3480 = vpack.c.b16 %v3454, %v3452
        %v3481 = vpack.c.b16 %v3455, %v3453
        %v3482 = vpack.c.b16 %v3458, %v3456
        %v3483 = vpack.c.b16 %v3459, %v3457
        %v3484 = vpack.c.b16 %v3462, %v3460
        %v3485 = vpack.c.b16 %v3463, %v3461
        %v3486 = vpack.c.b16 %v3466, %v3464
        %v3487 = vpack.c.b16 %v3467, %v3465
        %v3488 = vpack.c.b16 %v3470, %v3468
        %v3489 = vpack.c.b16 %v3471, %v3469
        %v3490 = vpack.c.b16 %v3474, %v3472
        %v3491 = vpack.c.b16 %v3475, %v3473
        %3508 = vmatpush.bf16.msra.mxu0 %v3490
        %3509 = vmatpush.bf16.msra.mxu0 %v3488
        %3510 = vmatpush.bf16.msra.mxu0 %v3486
        %3511 = vmatpush.bf16.msra.mxu0 %v3484
        %3512 = vmatpush.bf16.msra.mxu0 %v3482
        %3513 = vmatpush.bf16.msra.mxu0 %v3480
        %3514 = vmatpush.bf16.msra.mxu0 %v3478
        %3515 = vmatpush.bf16.msra.mxu0 %v3476
        %3516 = vmatmul.bf16.gmra.mxu0 %v3405
        %v3517 = vpop.f32.mrf.mxu0
        %v3518 = vadd.f32 %v3424, %v3517
        %v3519 = vpop.f32.mrf.mxu0
        %3520 = vdwg.mxu0
        %3521 = vmatpush.bf16.msra.mxu0 %v3491
        %3522 = vmatpush.bf16.msra.mxu0 %v3489
        %3523 = vmatpush.bf16.msra.mxu0 %v3487
        %3524 = vmatpush.bf16.msra.mxu0 %v3485
        %3525 = vmatpush.bf16.msra.mxu0 %v3483
        %3526 = vmatpush.bf16.msra.mxu0 %v3481
        %3527 = vmatpush.bf16.msra.mxu0 %v3479
        %3528 = vmatpush.bf16.msra.mxu0 %v3477
        %3529 = vmatmul.bf16.gmra.mxu0 %v3405
        %v3530 = vpop.f32.mrf.mxu0
        %v3531 = vadd.f32 %v3425, %v3530
        %v3532 = vpop.f32.mrf.mxu0
        %3533 = vdwg.mxu0
        %v3534 = vmax.f32 %v3518, 0.0
        %v3535 = vmax.f32 %v3531, 0.0
        %v3536 = vpack.c.bf16 %v3534, %v3534
        %v3537 = vpack.c.bf16 %v3535, %v3535
        %v3538 = vld [vmem:[#allocation22] sm:$0xf]
        %v3539 = vld [vmem:[#allocation22 + $0x4] sm:$0xf]
        %v3540 = vld [vmem:[#allocation22 + $0x8] sm:$0xf]
        %v3541 = vld [vmem:[#allocation22 + $0xc] sm:$0xf]
        %v3542 = vld [vmem:[#allocation22 + $0x10] sm:$0xf]
        %v3543 = vld [vmem:[#allocation22 + $0x14] sm:$0xf]
        %v3544 = vld [vmem:[#allocation22 + $0x18] sm:$0xf]
        %v3545 = vld [vmem:[#allocation22 + $0x1c] sm:$0xf]
        %v3546 = vld [vmem:[#allocation22 + $0x20] sm:$0xf]
        %v3547 = vld [vmem:[#allocation22 + $0x24] sm:$0xf]
        %v3548 = vld [vmem:[#allocation22 + $0x28] sm:$0xf]
        %v3549 = vld [vmem:[#allocation22 + $0x2c] sm:$0xf]
        %v3550 = vld [vmem:[#allocation22 + $0x30] sm:$0xf]
        %v3551 = vld [vmem:[#allocation22 + $0x34] sm:$0xf]
        %v3552 = vld [vmem:[#allocation22 + $0x38] sm:$0xf]
        %v3553 = vld [vmem:[#allocation22 + $0x3c] sm:$0xf]
        %v3554 = vld [vmem:[#allocation22 + $0x40] sm:$0xf]
        %v3555 = vld [vmem:[#allocation22 + $0x44] sm:$0xf]
        %v3556 = vld [vmem:[#allocation22 + $0x48] sm:$0xf]
        %v3557 = vld [vmem:[#allocation22 + $0x4c] sm:$0xf]
        %v3558 = vld [vmem:[#allocation22 + $0x50] sm:$0xf]
        %v3559 = vld [vmem:[#allocation22 + $0x54] sm:$0xf]
        %v3560 = vld [vmem:[#allocation22 + $0x58] sm:$0xf]
        %v3561 = vld [vmem:[#allocation22 + $0x5c] sm:$0xf]
        %v3562 = vld [vmem:[#allocation22 + $0x60] sm:$0xf]
        %v3563 = vld [vmem:[#allocation22 + $0x64] sm:$0xf]
        %v3564 = vld [vmem:[#allocation22 + $0x68] sm:$0xf]
        %v3565 = vld [vmem:[#allocation22 + $0x6c] sm:$0xf]
        %v3566 = vld [vmem:[#allocation22 + $0x70] sm:$0xf]
        %v3567 = vld [vmem:[#allocation22 + $0x74] sm:$0xf]
        %v3568 = vld [vmem:[#allocation22 + $0x78] sm:$0xf]
        %v3569 = vld [vmem:[#allocation22 + $0x7c] sm:$0xf]
        %v3570 = vld [vmem:[%s17] sm:$0x1]
        %v3572 = vperm.slane %v3570, 0
        %v3606 = vunpack.c.l.b16 %v3538
        %v3607 = vunpack.c.l.b16 %v3539
        %v3608 = vunpack.c.l.b16 %v3540
        %v3609 = vunpack.c.l.b16 %v3541
        %v3610 = vunpack.c.l.b16 %v3542
        %v3611 = vunpack.c.l.b16 %v3543
        %v3612 = vunpack.c.l.b16 %v3544
        %v3613 = vunpack.c.l.b16 %v3545
        %v3614 = vunpack.c.l.b16 %v3546
        %v3615 = vunpack.c.l.b16 %v3547
        %v3616 = vunpack.c.l.b16 %v3548
        %v3617 = vunpack.c.l.b16 %v3549
        %v3618 = vunpack.c.l.b16 %v3550
        %v3619 = vunpack.c.l.b16 %v3551
        %v3620 = vunpack.c.l.b16 %v3552
        %v3621 = vunpack.c.l.b16 %v3553
        %v3622 = vunpack.c.l.b16 %v3554
        %v3623 = vunpack.c.l.b16 %v3555
        %v3624 = vunpack.c.l.b16 %v3556
        %v3625 = vunpack.c.l.b16 %v3557
        %v3626 = vunpack.c.l.b16 %v3558
        %v3627 = vunpack.c.l.b16 %v3559
        %v3628 = vunpack.c.l.b16 %v3560
        %v3629 = vunpack.c.l.b16 %v3561
        %v3630 = vunpack.c.l.b16 %v3562
        %v3631 = vunpack.c.l.b16 %v3563
        %v3632 = vunpack.c.l.b16 %v3564
        %v3633 = vunpack.c.l.b16 %v3565
        %v3634 = vunpack.c.l.b16 %v3566
        %v3635 = vunpack.c.l.b16 %v3567
        %v3636 = vunpack.c.l.b16 %v3568
        %v3637 = vunpack.c.l.b16 %v3569
        %v3638 = vpack.c.b16 %v3607, %v3606
        %v3639 = vpack.c.b16 %v3609, %v3608
        %v3640 = vpack.c.b16 %v3611, %v3610
        %v3641 = vpack.c.b16 %v3613, %v3612
        %v3642 = vpack.c.b16 %v3615, %v3614
        %v3643 = vpack.c.b16 %v3617, %v3616
        %v3644 = vpack.c.b16 %v3619, %v3618
        %v3645 = vpack.c.b16 %v3621, %v3620
        %v3646 = vpack.c.b16 %v3623, %v3622
        %v3647 = vpack.c.b16 %v3625, %v3624
        %v3648 = vpack.c.b16 %v3627, %v3626
        %v3649 = vpack.c.b16 %v3629, %v3628
        %v3650 = vpack.c.b16 %v3631, %v3630
        %v3651 = vpack.c.b16 %v3633, %v3632
        %v3652 = vpack.c.b16 %v3635, %v3634
        %v3653 = vpack.c.b16 %v3637, %v3636
        %3670 = vmatpush.bf16.msra.mxu0 %v3645
        %3671 = vmatpush.bf16.msra.mxu0 %v3644
        %3672 = vmatpush.bf16.msra.mxu0 %v3643
        %3673 = vmatpush.bf16.msra.mxu0 %v3642
        %3674 = vmatpush.bf16.msra.mxu0 %v3641
        %3675 = vmatpush.bf16.msra.mxu0 %v3640
        %3676 = vmatpush.bf16.msra.mxu0 %v3639
        %3677 = vmatpush.bf16.msra.mxu0 %v3638
        %3678 = vmatmul.bf16.gmra.mxu0 %v3536
        %v3679 = vpop.f32.mrf.mxu0
        %v3680 = vadd.f32 %v3572, %v3679
        %v3681 = vpop.f32.mrf.mxu0
        %3682 = vdwg.mxu0
        %3683 = vmatpush.bf16.msra.mxu0 %v3653
        %3684 = vmatpush.bf16.msra.mxu0 %v3652
        %3685 = vmatpush.bf16.msra.mxu0 %v3651
        %3686 = vmatpush.bf16.msra.mxu0 %v3650
        %3687 = vmatpush.bf16.msra.mxu0 %v3649
        %3688 = vmatpush.bf16.msra.mxu0 %v3648
        %3689 = vmatpush.bf16.msra.mxu0 %v3647
        %3690 = vmatpush.bf16.msra.mxu0 %v3646
        %3691 = vmatmul.bf16.gmra.mxu0 %v3537
        %v3692 = vpop.f32.mrf.mxu0
        %v3693 = vadd.f32 %v3680, %v3692
        %v3694 = vpop.f32.mrf.mxu0
        %3695 = vdwg.mxu0
        %v3696 = vadd.f32 %v3404, %v3693
        %3697 = vadd.xlane.f32.xlu0 %v3696
        %v3698 = vpop.xlane.xlu0 %3697
        %v3699 = vmul.f32 %v3698, %v1892
        %v3700 = vsub.f32 %v3696, %v3699
        %v3701 = vmul.f32 %v3700, %v3700
        %3702 = vadd.xlane.f32.xlu0 %v3701
        %v3703 = vpop.xlane.xlu0 %3702
        %v3704 = vmul.f32 %v3703, %v1892
        %v3705 = vadd.f32 %v3704, 1e-05
        %v3706 = vrsqrt.pop %v3705
        %v3707 = vmul.f32 %v3706, %v3705
        %v3708 = vmul.f32 %v3707, %v3706
        %v3709 = vmul.f32 0.5, %v3708
        %v3710 = vsub.f32 1.5, %v3709
        %v3711 = vmul.f32 %v3706, %v3710
        %vm3712 = vweird.f32 %v3705
        %vm3713 = vweird.f32 %v3706
        %vm3714 = vmor %vm3712, %vm3713
        %v3715 = vsel %vm3714, %v3706, %v3711
        %v3716 = vmul.f32 %v3700, %v3715
        %v3717 = vperm.slane %v875, 4
        %v3718 = vmul.f32 %v3716, %v3717
        %v3719 = vperm.slane %v875, 5
        %v3720 = vadd.f32 %v3718, %v3719
        %3721 = vst [vmem:[%s867] sm:$0xff] %v3720
        %s3722 = sand.u32 %s471, 1
        %s3723 = scalar_lea.sflag [#allocation4], %s3722
        %s3724 = sand.u32 %s471, 1
        %s3725 = smul.addr %s3724, 8
        %s3726 = scalar_lea.vmem [#allocation23], %s3725
        // Predicated region
        $region149: #{tpu_custom_call.1} parent=95 // pred_check
          %p3727 = pneg %p481
        $region150: #{tpu_custom_call.1} parent=95 // pred_check_branch
          %3729 = sbr.rel (%p3727) target = $region152
        $region151: #{tpu_custom_call.1} parent=95 // pred_region
          %3731 = vsyncadd %s3723, 0
          %s3732 = smul.addr %s44, 8
          %s3733 = scalar_lea.hbm %s19, %s3732
          %s3735 = sshll.u32 %s3726, 4
          %s3736 = int_to_ptr.vmem [resolvable:$true] %s3735
          %s3737 = sshll.u32 %s3733, 4
          %s3738 = int_to_ptr.hbm [resolvable:$true] %s3737
          %3740 = dma.vmem_to_hbm [thread:$0]  %s3736, 128, %s3738, %s3723
        $region152: #{tpu_custom_call.1} parent=95 // pred_fallthru
          _
      $region96: #{tpu_custom_call.1} parent=5 // pred_fallthru
        _
      %p3741 = scmp.le.s32.totalorder 2, %s39
      // Predicated region
      $region153: #{tpu_custom_call.1} parent=5 // pred_check
        %p3742 = pneg %p3741
      $region154: #{tpu_custom_call.1} parent=5 // pred_check_branch
        %3744 = sbr.rel (%p3742) target = $region156
      $region155: #{tpu_custom_call.1} parent=5 // pred_region
        %s3745 = ssub.s32 %s39, 2
        // Predicated region
        $region157: #{tpu_custom_call.1} parent=155 // pred_check
          %p3746 = pneg %p487
        $region158: #{tpu_custom_call.1} parent=155 // pred_check_branch
          %3748 = sbr.rel (%p3746) target = $region160
        $region159: #{tpu_custom_call.1} parent=155 // pred_region
          %s3749 = sand.u32 %s472, 1
          %s3750 = scalar_lea.sflag [#allocation4], %s3749
          %s3751 = sand.u32 %s472, 1
          %s3752 = smul.addr %s3751, 8
          %s3753 = scalar_lea.vmem [#allocation23], %s3752
          %3755 = dma.done %s3750, 128
        $region160: #{tpu_custom_call.1} parent=155 // pred_fallthru
          _
      $region156: #{tpu_custom_call.1} parent=5 // pred_fallthru
        _
    $region6: #{tpu_custom_call.1} parent=1 // loop_footer
      %s43 = sadd.s32 1, %s39
    $region7: #{tpu_custom_call.1} parent=1 // loop_footer_branch
      %38 = sbr.rel target = $region3
    $region8: #{tpu_custom_call.1} parent=1 // loop_exit
      _
    %3756 = vsyncpa [#allocation3], 1
    %s3757 = scalar_lea.sflag [#allocation3], 1
    %3758 = vsyncpa %s3757, 1
    %3759 = vsyncpa [#allocation6], 1
    %s3760 = scalar_lea.sflag [#allocation6], 1
    %3761 = vsyncpa %s3760, 1
    %3762 = vsyncpa [#allocation9], 1
    %3763 = vsyncpa [#allocation12], 1
    %3764 = vsyncpa [#allocation15], 1
    %3765 = vsyncpa [#allocation18], 1
    %3766 = vsyncpa [#allocation21], 1
    %3767 = vsyncpa [#allocation4], 1
    %s3768 = scalar_lea.sflag [#allocation4], 1
    %3769 = vsyncpa %s3768, 1

</llo_original>
